<compile_context>
chip_gen: v6e
topology: v6e:2x2x1
jax: 0.10.0
libtpu: 0.0.40
codegen_flags: <defaults>
</compile_context>

<pallas_src>
import jax
import jax.numpy as jnp
import numpy as np
from jax.experimental import pallas as pl
from jax.experimental.pallas import tpu as pltpu

LANE = 128  # fc intermediate / output lane padding

_VMEM = pl.BlockSpec(memory_space=pltpu.MemorySpace.VMEM)


# ---------------------------------------------------------------------------
# The single fused kernel
# ---------------------------------------------------------------------------
def _lenet_kernel(x_ref, s1_ref, t1_ref, b1c_ref, s2_ref, t2_ref, b2c_ref,
                  w1_ref, b1_ref, w2_ref, b2_ref, w3_ref, b3_ref, o_ref):
    """Whole LeNet forward for a small batch, fully VMEM-resident.

    Layouts (per image):
      conv1 act:  [14, 84]  rows = pooled h, cols = pooled_w*6  + c   (c minor)
      conv2 act:  [5,  80]  rows = pooled h, cols = pooled_w*16 + c   (c minor)
      fc rows:    [1, 128]  (valid prefix 120 / 84 / 10, zero-padded lanes)
    """
    f32 = jnp.float32
    bf16 = jnp.bfloat16
    n_batch = x_ref.shape[0]

    def mm(a, b):
        return jnp.dot(a, b, preferred_element_type=f32)

    for n in range(n_batch):
        # ---------------- conv1 + 2x2 max-pool + bias + ReLU ----------------
        xn = x_ref[n].astype(bf16)                              # [32, 32]
        # Exact 0/1 row selections: xs1[a][p, w] = x[n, 2*p + a, w]
        xs1 = [mm(s1_ref[a], xn).astype(bf16) for a in range(6)]
        pool1 = None
        for di in range(2):
            for dj in range(2):
                acc = mm(xs1[di], t1_ref[dj, 0])                # [14, 84] f32
                for kh in range(1, 5):
                    acc = acc + mm(xs1[di + kh], t1_ref[dj, kh])
                pool1 = acc if pool1 is None else jnp.maximum(pool1, acc)
        # pool-then-bias/ReLU (exact: bias per-channel, ReLU monotone)
        a1 = jnp.maximum(pool1 + b1c_ref[...], 0.0).astype(bf16)   # [14, 84]

        # ---------------- conv2 + 2x2 max-pool + bias + ReLU ----------------
        xs2 = [mm(s2_ref[a], a1).astype(bf16) for a in range(6)]   # [5, 84]
        pool2 = None
        for di in range(2):
            for dj in range(2):
                acc = mm(xs2[di], t2_ref[dj, 0])                # [5, 80] f32
                for kh in range(1, 5):
                    acc = acc + mm(xs2[di + kh], t2_ref[dj, kh])
                pool2 = acc if pool2 is None else jnp.maximum(pool2, acc)
        a2 = jnp.maximum(pool2 + b2c_ref[...], 0.0)             # [5, 80] f32

        # ---------------- fc1 -> relu -> fc2 -> relu -> fc3 -----------------
        # fc1 contracts over (pooled_h, pooled_w, c): sum of 5 row matmuls.
        h = mm(a2[0:1, :].astype(bf16), w1_ref[0])              # [1, 128]
        for p in range(1, 5):
            h = h + mm(a2[p:p + 1, :].astype(bf16), w1_ref[p])
        h = jnp.maximum(h + b1_ref[...], 0.0).astype(bf16)
        h = jnp.maximum(mm(h, w2_ref[...]) + b2_ref[...], 0.0).astype(bf16)
        h = mm(h, w3_ref[...]) + b3_ref[...]                    # [1, 128] f32
        o_ref[pl.ds(n, 1), :] = h.astype(o_ref.dtype)


# ---------------------------------------------------------------------------
# Parameters (PyTorch layout) + one-time TPU-friendly repacking
# ---------------------------------------------------------------------------
def init_params(key):
    """Deterministic params in the PyTorch module's shapes / init style."""
    def uniform(k, shape, fan_in):
        bound = 1.0 / jnp.sqrt(jnp.float32(fan_in))
        return jax.random.uniform(k, shape, jnp.float32, -bound, bound)

    ks = jax.random.split(key, 10)
    return {
        "conv1_w": uniform(ks[0], (6, 1, 5, 5), 25),
        "conv1_b": uniform(ks[1], (6,), 25),
        "conv2_w": uniform(ks[2], (16, 6, 5, 5), 150),
        "conv2_b": uniform(ks[3], (16,), 150),
        "fc1_w": uniform(ks[4], (120, 400), 400),   # PyTorch Linear: [out, in]
        "fc1_b": uniform(ks[5], (120,), 400),
        "fc2_w": uniform(ks[6], (84, 120), 120),
        "fc2_b": uniform(ks[7], (84,), 120),
        "fc3_w": uniform(ks[8], (10, 84), 84),
        "fc3_b": uniform(ks[9], (10,), 84),
    }


def prepare_params(p):
    """One-time layout work (NOT per forward call).

    Builds, in bf16:
      s1/s2 : exact 0/1 row-selection matrices  S[a, q, r] = 1 iff r == 2q+a
      t1/t2 : Toeplitz-packed conv weights
              t1[dj, kh, w,      pw*6 + co] = conv1_w[co, 0,  kh, w - 2pw - dj]
              t2[dj, kh, w*6+ci, pw*16+ co] = conv2_w[co, ci, kh, w - 2pw - dj]
      w1    : fc1 weights permuted from torch's (c,h,w) flatten to our
              row=h, col=(w,c) layout; all fc weights/biases zero-padded to 128.
    Conv biases stay f32, tiled over pooled width so they broadcast over cols.
    """
    bf16 = jnp.bfloat16

    s1 = np.zeros((6, 14, 32), np.float32)
    for a in range(6):
        for q in range(14):
            s1[a, q, 2 * q + a] = 1.0
    s2 = np.zeros((6, 5, 14), np.float32)
    for a in range(6):
        for q in range(5):
            s2[a, q, 2 * q + a] = 1.0

    ind1 = np.zeros((32, 2, 14, 5), np.float32)   # ind1[w,dj,pw,kw]=1 iff w==2pw+dj+kw
    for dj in range(2):
        for pw in range(14):
            for kw in range(5):
                ind1[2 * pw + dj + kw, dj, pw, kw] = 1.0
    ind2 = np.zeros((14, 2, 5, 5), np.float32)
    for dj in range(2):
        for pw in range(5):
            for kw in range(5):
                ind2[2 * pw + dj + kw, dj, pw, kw] = 1.0

    t1 = jnp.einsum("wdpk,chk->dhwpc", ind1, p["conv1_w"][:, 0])
    t1 = t1.reshape(2, 5, 32, 14 * 6).astype(bf16)
    t2 = jnp.einsum("wdpk,cihk->dhwipc", ind2, p["conv2_w"])
    t2 = t2.reshape(2, 5, 14 * 6, 5 * 16).astype(bf16)

    b1c = jnp.tile(p["conv1_b"], 14).reshape(1, 14 * 6)          # f32
    b2c = jnp.tile(p["conv2_b"], 5).reshape(1, 5 * 16)           # f32

    # fc1: torch flat index = c*25 + h*5 + w  ->  w1[h, w*16 + c, j]
    w1 = p["fc1_w"].reshape(120, 16, 5, 5).transpose(2, 3, 1, 0)  # (h, w, c, j)
    w1 = jnp.pad(w1.reshape(5, 80, 120), ((0, 0), (0, 0), (0, 8))).astype(bf16)
    b1 = jnp.pad(p["fc1_b"], (0, 8)).reshape(1, LANE)
    w2 = jnp.pad(p["fc2_w"].T, ((0, 8), (0, 44))).astype(bf16)    # [128, 128]
    b2 = jnp.pad(p["fc2_b"], (0, 44)).reshape(1, LANE)
    w3 = jnp.pad(p["fc3_w"].T, ((0, 44), (0, 118))).astype(bf16)  # [128, 128]
    b3 = jnp.pad(p["fc3_b"], (0, 118)).reshape(1, LANE)

    return {"s1": jnp.asarray(s1, bf16), "t1": t1, "b1c": b1c,
            "s2": jnp.asarray(s2, bf16), "t2": t2, "b2c": b2c,
            "w1": w1, "b1": b1, "w2": w2, "b2": b2, "w3": w3, "b3": b3}


# ---------------------------------------------------------------------------
# Forward pass (ONE pallas_call)
# ---------------------------------------------------------------------------
@jax.jit
def net_forward(prepared, x_nchw):
    n, c, h, w = x_nchw.shape            # LeNet geometry: (N, 1, 32, 32)
    x = x_nchw.reshape(n, h, w)          # C == 1: free reshape, no transpose

    param_bytes = sum(int(v.size) * v.dtype.itemsize for v in prepared.values())
    cost = pl.CostEstimate(
        flops=n * 3_300_000,             # ~3.3 MFLOP of tiny matmuls per image
        transcendentals=0,
        bytes_accessed=param_bytes + 4 * x.size + 4 * n * LANE,
    )
    out = pl.pallas_call(
        _lenet_kernel,
        out_shape=jax.ShapeDtypeStruct((n, LANE), jnp.float32),
        in_specs=[_VMEM] * 13,
        out_specs=_VMEM,
        cost_estimate=cost,
    )(x, prepared["s1"], prepared["t1"], prepared["b1c"],
      prepared["s2"], prepared["t2"], prepared["b2c"],
      prepared["w1"], prepared["b1"], prepared["w2"], prepared["b2"],
      prepared["w3"], prepared["b3"])
    return out[:, :10]


# ---------------------------------------------------------------------------
# Pure-JAX references (independent im2col construction, no Pallas)
# ---------------------------------------------------------------------------
def _net_reference(p, x, dt):
    """dt = matmul-operand dtype (f32 for the exact reference, bf16 for the
    precision-matched reference); accumulation is always f32."""
    def conv(v, w):                                   # NCHW, 'valid', stride 1
        n, c, hh, ww = v.shape
        o, _, k, _ = w.shape
        oh, ow = hh - k + 1, ww - k + 1
        cols = jnp.stack([v[:, :, kh:kh + oh, kw:kw + ow]
                          for kh in range(k) for kw in range(k)], axis=2)
        cols = cols.transpose(0, 3, 4, 1, 2).reshape(n * oh * ow, c * k * k)
        y = jnp.dot(cols.astype(dt), w.reshape(o, c * k * k).T.astype(dt),
                    preferred_element_type=jnp.float32)
        return y.reshape(n, oh, ow, o).transpose(0, 3, 1, 2)

    def pool(v):
        return jnp.maximum(
            jnp.maximum(v[:, :, 0::2, 0::2], v[:, :, 0::2, 1::2]),
            jnp.maximum(v[:, :, 1::2, 0::2], v[:, :, 1::2, 1::2]))

    def dense(v, w, b):
        return jnp.dot(v.astype(dt), w.T.astype(dt),
                       preferred_element_type=jnp.float32) + b

    y = pool(jnp.maximum(conv(x, p["conv1_w"]) + p["conv1_b"].reshape(1, -1, 1, 1), 0.0))
    y = pool(jnp.maximum(conv(y, p["conv2_w"]) + p["conv2_b"].reshape(1, -1, 1, 1), 0.0))
    y = y.reshape(y.shape[0], -1)                     # torch (c, h, w) flatten
    y = jnp.maximum(dense(y, p["fc1_w"], p["fc1_b"]), 0.0)
    y = jnp.maximum(dense(y, p["fc2_w"], p["fc2_b"]), 0.0)
    return dense(y, p["fc3_w"], p["fc3_b"])


@jax.jit
def net_reference_f32(p, x):
    return _net_reference(p, x, jnp.float32)


@jax.jit
def net_reference_bf16(p, x):
    return _net_reference(p, x, jnp.bfloat16)


if __name__ == "__main__":
    key = jax.random.PRNGKey(0)
    pkey, xkey = jax.random.split(key)
    params = init_params(pkey)
    prepared = prepare_params(params)       # one-time repack (bf16 + padding)
    # LeNet geometry requires 32x32 single-channel input (16*5*5 flatten).
    x = jax.random.normal(xkey, (2, 1, 32, 32), jnp.float32)

    out = jax.block_until_ready(net_forward(prepared, x))
    assert out.shape == (2, 10) and out.dtype == jnp.float32

    # Tight check vs a precision-matched reference (same bf16 operands, f32
    # accumulation): catches any permutation / Toeplitz / pooling bug.
    ref_m = jax.block_until_ready(net_reference_bf16(params, x))
    err_m = float(jnp.max(jnp.abs(out - ref_m)))
    scale_m = float(jnp.max(jnp.abs(ref_m))) + 1e-6
    assert err_m / scale_m < 5e-3, f"matched-precision mismatch: {err_m} / {scale_m}"

    # Loose check vs the exact f32 module (headroom only for bf16 rounding).
    ref_f = jax.block_until_ready(net_reference_f32(params, x))
    err_f = float(jnp.max(jnp.abs(out - ref_f)))
    scale_f = float(jnp.max(jnp.abs(ref_f))) + 1e-6
    assert err_f / scale_f < 1e-1, f"f32 reference mismatch: {err_f} / {scale_f}"

    print("KERNEL_OK")
</pallas_src>

<mosaic_0001>
module attributes {stable_mosaic.version = 11 : i64} {
  func.func @_lenet_kernel(%arg0: memref<2x32x32xf32, #tpu.memory_space<vmem>>, %arg1: memref<6x14x32xbf16, #tpu.memory_space<vmem>>, %arg2: memref<2x5x32x84xbf16, #tpu.memory_space<vmem>>, %arg3: memref<1x84xf32, #tpu.memory_space<vmem>>, %arg4: memref<6x5x14xbf16, #tpu.memory_space<vmem>>, %arg5: memref<2x5x84x80xbf16, #tpu.memory_space<vmem>>, %arg6: memref<1x80xf32, #tpu.memory_space<vmem>>, %arg7: memref<5x80x128xbf16, #tpu.memory_space<vmem>>, %arg8: memref<1x128xf32, #tpu.memory_space<vmem>>, %arg9: memref<128x128xbf16, #tpu.memory_space<vmem>>, %arg10: memref<1x128xf32, #tpu.memory_space<vmem>>, %arg11: memref<128x128xbf16, #tpu.memory_space<vmem>>, %arg12: memref<1x128xf32, #tpu.memory_space<vmem>>, %arg13: memref<2x128xf32, #tpu.memory_space<vmem>>) attributes {dimension_semantics = [], scalar_prefetch = 0 : i64, scratch_operands = 0 : i64, tpu.core_type = #tpu.core_type<tc>} {
    %c0 = arith.constant 0 : index
    %c0_0 = arith.constant 0 : index
    %c0_1 = arith.constant 0 : index
    %0 = vector.load %arg0[%c0, %c0_0, %c0_1] : memref<2x32x32xf32, #tpu.memory_space<vmem>>, vector<1x32x32xf32>
    %1 = vector.shape_cast %0 : vector<1x32x32xf32> to vector<32x32xf32>
    %2 = arith.truncf %1 : vector<32x32xf32> to vector<32x32xbf16>
    %c0_2 = arith.constant 0 : index
    %c0_3 = arith.constant 0 : index
    %c0_4 = arith.constant 0 : index
    %3 = vector.load %arg1[%c0_2, %c0_3, %c0_4] : memref<6x14x32xbf16, #tpu.memory_space<vmem>>, vector<1x14x32xbf16>
    %4 = vector.shape_cast %3 : vector<1x14x32xbf16> to vector<14x32xbf16>
    %cst = arith.constant dense<0.000000e+00> : vector<14x32xf32>
    %5 = tpu.matmul %4, %2, %cst {dimension_numbers = #tpu.dot_dimension_numbers<[1], [0], [0], [1], [0, 0, 1, 1], [], []>} : vector<14x32xbf16>, vector<32x32xbf16>, vector<14x32xf32> -> vector<14x32xf32>
    %6 = arith.truncf %5 : vector<14x32xf32> to vector<14x32xbf16>
    %c1 = arith.constant 1 : index
    %c0_5 = arith.constant 0 : index
    %c0_6 = arith.constant 0 : index
    %7 = vector.load %arg1[%c1, %c0_5, %c0_6] : memref<6x14x32xbf16, #tpu.memory_space<vmem>>, vector<1x14x32xbf16>
    %8 = vector.shape_cast %7 : vector<1x14x32xbf16> to vector<14x32xbf16>
    %cst_7 = arith.constant dense<0.000000e+00> : vector<14x32xf32>
    %9 = tpu.matmul %8, %2, %cst_7 {dimension_numbers = #tpu.dot_dimension_numbers<[1], [0], [0], [1], [0, 0, 1, 1], [], []>} : vector<14x32xbf16>, vector<32x32xbf16>, vector<14x32xf32> -> vector<14x32xf32>
    %10 = arith.truncf %9 : vector<14x32xf32> to vector<14x32xbf16>
    %c2 = arith.constant 2 : index
    %c0_8 = arith.constant 0 : index
    %c0_9 = arith.constant 0 : index
    %11 = vector.load %arg1[%c2, %c0_8, %c0_9] : memref<6x14x32xbf16, #tpu.memory_space<vmem>>, vector<1x14x32xbf16>
    %12 = vector.shape_cast %11 : vector<1x14x32xbf16> to vector<14x32xbf16>
    %cst_10 = arith.constant dense<0.000000e+00> : vector<14x32xf32>
    %13 = tpu.matmul %12, %2, %cst_10 {dimension_numbers = #tpu.dot_dimension_numbers<[1], [0], [0], [1], [0, 0, 1, 1], [], []>} : vector<14x32xbf16>, vector<32x32xbf16>, vector<14x32xf32> -> vector<14x32xf32>
    %14 = arith.truncf %13 : vector<14x32xf32> to vector<14x32xbf16>
    %c3 = arith.constant 3 : index
    %c0_11 = arith.constant 0 : index
    %c0_12 = arith.constant 0 : index
    %15 = vector.load %arg1[%c3, %c0_11, %c0_12] : memref<6x14x32xbf16, #tpu.memory_space<vmem>>, vector<1x14x32xbf16>
    %16 = vector.shape_cast %15 : vector<1x14x32xbf16> to vector<14x32xbf16>
    %cst_13 = arith.constant dense<0.000000e+00> : vector<14x32xf32>
    %17 = tpu.matmul %16, %2, %cst_13 {dimension_numbers = #tpu.dot_dimension_numbers<[1], [0], [0], [1], [0, 0, 1, 1], [], []>} : vector<14x32xbf16>, vector<32x32xbf16>, vector<14x32xf32> -> vector<14x32xf32>
    %18 = arith.truncf %17 : vector<14x32xf32> to vector<14x32xbf16>
    %c4 = arith.constant 4 : index
    %c0_14 = arith.constant 0 : index
    %c0_15 = arith.constant 0 : index
    %19 = vector.load %arg1[%c4, %c0_14, %c0_15] : memref<6x14x32xbf16, #tpu.memory_space<vmem>>, vector<1x14x32xbf16>
    %20 = vector.shape_cast %19 : vector<1x14x32xbf16> to vector<14x32xbf16>
    %cst_16 = arith.constant dense<0.000000e+00> : vector<14x32xf32>
    %21 = tpu.matmul %20, %2, %cst_16 {dimension_numbers = #tpu.dot_dimension_numbers<[1], [0], [0], [1], [0, 0, 1, 1], [], []>} : vector<14x32xbf16>, vector<32x32xbf16>, vector<14x32xf32> -> vector<14x32xf32>
    %22 = arith.truncf %21 : vector<14x32xf32> to vector<14x32xbf16>
    %c5 = arith.constant 5 : index
    %c0_17 = arith.constant 0 : index
    %c0_18 = arith.constant 0 : index
    %23 = vector.load %arg1[%c5, %c0_17, %c0_18] : memref<6x14x32xbf16, #tpu.memory_space<vmem>>, vector<1x14x32xbf16>
    %24 = vector.shape_cast %23 : vector<1x14x32xbf16> to vector<14x32xbf16>
    %cst_19 = arith.constant dense<0.000000e+00> : vector<14x32xf32>
    %25 = tpu.matmul %24, %2, %cst_19 {dimension_numbers = #tpu.dot_dimension_numbers<[1], [0], [0], [1], [0, 0, 1, 1], [], []>} : vector<14x32xbf16>, vector<32x32xbf16>, vector<14x32xf32> -> vector<14x32xf32>
    %26 = arith.truncf %25 : vector<14x32xf32> to vector<14x32xbf16>
    %c0_20 = arith.constant 0 : index
    %c0_21 = arith.constant 0 : index
    %c0_22 = arith.constant 0 : index
    %c0_23 = arith.constant 0 : index
    %27 = vector.load %arg2[%c0_20, %c0_21, %c0_22, %c0_23] : memref<2x5x32x84xbf16, #tpu.memory_space<vmem>>, vector<1x1x32x84xbf16>
    %28 = vector.shape_cast %27 : vector<1x1x32x84xbf16> to vector<32x84xbf16>
    %cst_24 = arith.constant dense<0.000000e+00> : vector<14x84xf32>
    %29 = tpu.matmul %6, %28, %cst_24 {dimension_numbers = #tpu.dot_dimension_numbers<[1], [0], [0], [1], [0, 0, 1, 1], [], []>} : vector<14x32xbf16>, vector<32x84xbf16>, vector<14x84xf32> -> vector<14x84xf32>
    %c0_25 = arith.constant 0 : index
    %c1_26 = arith.constant 1 : index
    %c0_27 = arith.constant 0 : index
    %c0_28 = arith.constant 0 : index
    %30 = vector.load %arg2[%c0_25, %c1_26, %c0_27, %c0_28] : memref<2x5x32x84xbf16, #tpu.memory_space<vmem>>, vector<1x1x32x84xbf16>
    %31 = vector.shape_cast %30 : vector<1x1x32x84xbf16> to vector<32x84xbf16>
    %cst_29 = arith.constant dense<0.000000e+00> : vector<14x84xf32>
    %32 = tpu.matmul %10, %31, %cst_29 {dimension_numbers = #tpu.dot_dimension_numbers<[1], [0], [0], [1], [0, 0, 1, 1], [], []>} : vector<14x32xbf16>, vector<32x84xbf16>, vector<14x84xf32> -> vector<14x84xf32>
    %33 = arith.addf %29, %32 : vector<14x84xf32>
    %c0_30 = arith.constant 0 : index
    %c2_31 = arith.constant 2 : index
    %c0_32 = arith.constant 0 : index
    %c0_33 = arith.constant 0 : index
    %34 = vector.load %arg2[%c0_30, %c2_31, %c0_32, %c0_33] : memref<2x5x32x84xbf16, #tpu.memory_space<vmem>>, vector<1x1x32x84xbf16>
    %35 = vector.shape_cast %34 : vector<1x1x32x84xbf16> to vector<32x84xbf16>
    %cst_34 = arith.constant dense<0.000000e+00> : vector<14x84xf32>
    %36 = tpu.matmul %14, %35, %cst_34 {dimension_numbers = #tpu.dot_dimension_numbers<[1], [0], [0], [1], [0, 0, 1, 1], [], []>} : vector<14x32xbf16>, vector<32x84xbf16>, vector<14x84xf32> -> vector<14x84xf32>
    %37 = arith.addf %33, %36 : vector<14x84xf32>
    %c0_35 = arith.constant 0 : index
    %c3_36 = arith.constant 3 : index
    %c0_37 = arith.constant 0 : index
    %c0_38 = arith.constant 0 : index
    %38 = vector.load %arg2[%c0_35, %c3_36, %c0_37, %c0_38] : memref<2x5x32x84xbf16, #tpu.memory_space<vmem>>, vector<1x1x32x84xbf16>
    %39 = vector.shape_cast %38 : vector<1x1x32x84xbf16> to vector<32x84xbf16>
    %cst_39 = arith.constant dense<0.000000e+00> : vector<14x84xf32>
    %40 = tpu.matmul %18, %39, %cst_39 {dimension_numbers = #tpu.dot_dimension_numbers<[1], [0], [0], [1], [0, 0, 1, 1], [], []>} : vector<14x32xbf16>, vector<32x84xbf16>, vector<14x84xf32> -> vector<14x84xf32>
    %41 = arith.addf %37, %40 : vector<14x84xf32>
    %c0_40 = arith.constant 0 : index
    %c4_41 = arith.constant 4 : index
    %c0_42 = arith.constant 0 : index
    %c0_43 = arith.constant 0 : index
    %42 = vector.load %arg2[%c0_40, %c4_41, %c0_42, %c0_43] : memref<2x5x32x84xbf16, #tpu.memory_space<vmem>>, vector<1x1x32x84xbf16>
    %43 = vector.shape_cast %42 : vector<1x1x32x84xbf16> to vector<32x84xbf16>
    %cst_44 = arith.constant dense<0.000000e+00> : vector<14x84xf32>
    %44 = tpu.matmul %22, %43, %cst_44 {dimension_numbers = #tpu.dot_dimension_numbers<[1], [0], [0], [1], [0, 0, 1, 1], [], []>} : vector<14x32xbf16>, vector<32x84xbf16>, vector<14x84xf32> -> vector<14x84xf32>
    %45 = arith.addf %41, %44 : vector<14x84xf32>
    %c1_45 = arith.constant 1 : index
    %c0_46 = arith.constant 0 : index
    %c0_47 = arith.constant 0 : index
    %c0_48 = arith.constant 0 : index
    %46 = vector.load %arg2[%c1_45, %c0_46, %c0_47, %c0_48] : memref<2x5x32x84xbf16, #tpu.memory_space<vmem>>, vector<1x1x32x84xbf16>
    %47 = vector.shape_cast %46 : vector<1x1x32x84xbf16> to vector<32x84xbf16>
    %cst_49 = arith.constant dense<0.000000e+00> : vector<14x84xf32>
    %48 = tpu.matmul %6, %47, %cst_49 {dimension_numbers = #tpu.dot_dimension_numbers<[1], [0], [0], [1], [0, 0, 1, 1], [], []>} : vector<14x32xbf16>, vector<32x84xbf16>, vector<14x84xf32> -> vector<14x84xf32>
    %c1_50 = arith.constant 1 : index
    %c1_51 = arith.constant 1 : index
    %c0_52 = arith.constant 0 : index
    %c0_53 = arith.constant 0 : index
    %49 = vector.load %arg2[%c1_50, %c1_51, %c0_52, %c0_53] : memref<2x5x32x84xbf16, #tpu.memory_space<vmem>>, vector<1x1x32x84xbf16>
    %50 = vector.shape_cast %49 : vector<1x1x32x84xbf16> to vector<32x84xbf16>
    %cst_54 = arith.constant dense<0.000000e+00> : vector<14x84xf32>
    %51 = tpu.matmul %10, %50, %cst_54 {dimension_numbers = #tpu.dot_dimension_numbers<[1], [0], [0], [1], [0, 0, 1, 1], [], []>} : vector<14x32xbf16>, vector<32x84xbf16>, vector<14x84xf32> -> vector<14x84xf32>
    %52 = arith.addf %48, %51 : vector<14x84xf32>
    %c1_55 = arith.constant 1 : index
    %c2_56 = arith.constant 2 : index
    %c0_57 = arith.constant 0 : index
    %c0_58 = arith.constant 0 : index
    %53 = vector.load %arg2[%c1_55, %c2_56, %c0_57, %c0_58] : memref<2x5x32x84xbf16, #tpu.memory_space<vmem>>, vector<1x1x32x84xbf16>
    %54 = vector.shape_cast %53 : vector<1x1x32x84xbf16> to vector<32x84xbf16>
    %cst_59 = arith.constant dense<0.000000e+00> : vector<14x84xf32>
    %55 = tpu.matmul %14, %54, %cst_59 {dimension_numbers = #tpu.dot_dimension_numbers<[1], [0], [0], [1], [0, 0, 1, 1], [], []>} : vector<14x32xbf16>, vector<32x84xbf16>, vector<14x84xf32> -> vector<14x84xf32>
    %56 = arith.addf %52, %55 : vector<14x84xf32>
    %c1_60 = arith.constant 1 : index
    %c3_61 = arith.constant 3 : index
    %c0_62 = arith.constant 0 : index
    %c0_63 = arith.constant 0 : index
    %57 = vector.load %arg2[%c1_60, %c3_61, %c0_62, %c0_63] : memref<2x5x32x84xbf16, #tpu.memory_space<vmem>>, vector<1x1x32x84xbf16>
    %58 = vector.shape_cast %57 : vector<1x1x32x84xbf16> to vector<32x84xbf16>
    %cst_64 = arith.constant dense<0.000000e+00> : vector<14x84xf32>
    %59 = tpu.matmul %18, %58, %cst_64 {dimension_numbers = #tpu.dot_dimension_numbers<[1], [0], [0], [1], [0, 0, 1, 1], [], []>} : vector<14x32xbf16>, vector<32x84xbf16>, vector<14x84xf32> -> vector<14x84xf32>
    %60 = arith.addf %56, %59 : vector<14x84xf32>
    %c1_65 = arith.constant 1 : index
    %c4_66 = arith.constant 4 : index
    %c0_67 = arith.constant 0 : index
    %c0_68 = arith.constant 0 : index
    %61 = vector.load %arg2[%c1_65, %c4_66, %c0_67, %c0_68] : memref<2x5x32x84xbf16, #tpu.memory_space<vmem>>, vector<1x1x32x84xbf16>
    %62 = vector.shape_cast %61 : vector<1x1x32x84xbf16> to vector<32x84xbf16>
    %cst_69 = arith.constant dense<0.000000e+00> : vector<14x84xf32>
    %63 = tpu.matmul %22, %62, %cst_69 {dimension_numbers = #tpu.dot_dimension_numbers<[1], [0], [0], [1], [0, 0, 1, 1], [], []>} : vector<14x32xbf16>, vector<32x84xbf16>, vector<14x84xf32> -> vector<14x84xf32>
    %64 = arith.addf %60, %63 : vector<14x84xf32>
    %65 = arith.maximumf %45, %64 : vector<14x84xf32>
    %c0_70 = arith.constant 0 : index
    %c0_71 = arith.constant 0 : index
    %c0_72 = arith.constant 0 : index
    %c0_73 = arith.constant 0 : index
    %66 = vector.load %arg2[%c0_70, %c0_71, %c0_72, %c0_73] : memref<2x5x32x84xbf16, #tpu.memory_space<vmem>>, vector<1x1x32x84xbf16>
    %67 = vector.shape_cast %66 : vector<1x1x32x84xbf16> to vector<32x84xbf16>
    %cst_74 = arith.constant dense<0.000000e+00> : vector<14x84xf32>
    %68 = tpu.matmul %10, %67, %cst_74 {dimension_numbers = #tpu.dot_dimension_numbers<[1], [0], [0], [1], [0, 0, 1, 1], [], []>} : vector<14x32xbf16>, vector<32x84xbf16>, vector<14x84xf32> -> vector<14x84xf32>
    %c0_75 = arith.constant 0 : index
    %c1_76 = arith.constant 1 : index
    %c0_77 = arith.constant 0 : index
    %c0_78 = arith.constant 0 : index
    %69 = vector.load %arg2[%c0_75, %c1_76, %c0_77, %c0_78] : memref<2x5x32x84xbf16, #tpu.memory_space<vmem>>, vector<1x1x32x84xbf16>
    %70 = vector.shape_cast %69 : vector<1x1x32x84xbf16> to vector<32x84xbf16>
    %cst_79 = arith.constant dense<0.000000e+00> : vector<14x84xf32>
    %71 = tpu.matmul %14, %70, %cst_79 {dimension_numbers = #tpu.dot_dimension_numbers<[1], [0], [0], [1], [0, 0, 1, 1], [], []>} : vector<14x32xbf16>, vector<32x84xbf16>, vector<14x84xf32> -> vector<14x84xf32>
    %72 = arith.addf %68, %71 : vector<14x84xf32>
    %c0_80 = arith.constant 0 : index
    %c2_81 = arith.constant 2 : index
    %c0_82 = arith.constant 0 : index
    %c0_83 = arith.constant 0 : index
    %73 = vector.load %arg2[%c0_80, %c2_81, %c0_82, %c0_83] : memref<2x5x32x84xbf16, #tpu.memory_space<vmem>>, vector<1x1x32x84xbf16>
    %74 = vector.shape_cast %73 : vector<1x1x32x84xbf16> to vector<32x84xbf16>
    %cst_84 = arith.constant dense<0.000000e+00> : vector<14x84xf32>
    %75 = tpu.matmul %18, %74, %cst_84 {dimension_numbers = #tpu.dot_dimension_numbers<[1], [0], [0], [1], [0, 0, 1, 1], [], []>} : vector<14x32xbf16>, vector<32x84xbf16>, vector<14x84xf32> -> vector<14x84xf32>
    %76 = arith.addf %72, %75 : vector<14x84xf32>
    %c0_85 = arith.constant 0 : index
    %c3_86 = arith.constant 3 : index
    %c0_87 = arith.constant 0 : index
    %c0_88 = arith.constant 0 : index
    %77 = vector.load %arg2[%c0_85, %c3_86, %c0_87, %c0_88] : memref<2x5x32x84xbf16, #tpu.memory_space<vmem>>, vector<1x1x32x84xbf16>
    %78 = vector.shape_cast %77 : vector<1x1x32x84xbf16> to vector<32x84xbf16>
    %cst_89 = arith.constant dense<0.000000e+00> : vector<14x84xf32>
    %79 = tpu.matmul %22, %78, %cst_89 {dimension_numbers = #tpu.dot_dimension_numbers<[1], [0], [0], [1], [0, 0, 1, 1], [], []>} : vector<14x32xbf16>, vector<32x84xbf16>, vector<14x84xf32> -> vector<14x84xf32>
    %80 = arith.addf %76, %79 : vector<14x84xf32>
    %c0_90 = arith.constant 0 : index
    %c4_91 = arith.constant 4 : index
    %c0_92 = arith.constant 0 : index
    %c0_93 = arith.constant 0 : index
    %81 = vector.load %arg2[%c0_90, %c4_91, %c0_92, %c0_93] : memref<2x5x32x84xbf16, #tpu.memory_space<vmem>>, vector<1x1x32x84xbf16>
    %82 = vector.shape_cast %81 : vector<1x1x32x84xbf16> to vector<32x84xbf16>
    %cst_94 = arith.constant dense<0.000000e+00> : vector<14x84xf32>
    %83 = tpu.matmul %26, %82, %cst_94 {dimension_numbers = #tpu.dot_dimension_numbers<[1], [0], [0], [1], [0, 0, 1, 1], [], []>} : vector<14x32xbf16>, vector<32x84xbf16>, vector<14x84xf32> -> vector<14x84xf32>
    %84 = arith.addf %80, %83 : vector<14x84xf32>
    %85 = arith.maximumf %65, %84 : vector<14x84xf32>
    %c1_95 = arith.constant 1 : index
    %c0_96 = arith.constant 0 : index
    %c0_97 = arith.constant 0 : index
    %c0_98 = arith.constant 0 : index
    %86 = vector.load %arg2[%c1_95, %c0_96, %c0_97, %c0_98] : memref<2x5x32x84xbf16, #tpu.memory_space<vmem>>, vector<1x1x32x84xbf16>
    %87 = vector.shape_cast %86 : vector<1x1x32x84xbf16> to vector<32x84xbf16>
    %cst_99 = arith.constant dense<0.000000e+00> : vector<14x84xf32>
    %88 = tpu.matmul %10, %87, %cst_99 {dimension_numbers = #tpu.dot_dimension_numbers<[1], [0], [0], [1], [0, 0, 1, 1], [], []>} : vector<14x32xbf16>, vector<32x84xbf16>, vector<14x84xf32> -> vector<14x84xf32>
    %c1_100 = arith.constant 1 : index
    %c1_101 = arith.constant 1 : index
    %c0_102 = arith.constant 0 : index
    %c0_103 = arith.constant 0 : index
    %89 = vector.load %arg2[%c1_100, %c1_101, %c0_102, %c0_103] : memref<2x5x32x84xbf16, #tpu.memory_space<vmem>>, vector<1x1x32x84xbf16>
    %90 = vector.shape_cast %89 : vector<1x1x32x84xbf16> to vector<32x84xbf16>
    %cst_104 = arith.constant dense<0.000000e+00> : vector<14x84xf32>
    %91 = tpu.matmul %14, %90, %cst_104 {dimension_numbers = #tpu.dot_dimension_numbers<[1], [0], [0], [1], [0, 0, 1, 1], [], []>} : vector<14x32xbf16>, vector<32x84xbf16>, vector<14x84xf32> -> vector<14x84xf32>
    %92 = arith.addf %88, %91 : vector<14x84xf32>
    %c1_105 = arith.constant 1 : index
    %c2_106 = arith.constant 2 : index
    %c0_107 = arith.constant 0 : index
    %c0_108 = arith.constant 0 : index
    %93 = vector.load %arg2[%c1_105, %c2_106, %c0_107, %c0_108] : memref<2x5x32x84xbf16, #tpu.memory_space<vmem>>, vector<1x1x32x84xbf16>
    %94 = vector.shape_cast %93 : vector<1x1x32x84xbf16> to vector<32x84xbf16>
    %cst_109 = arith.constant dense<0.000000e+00> : vector<14x84xf32>
    %95 = tpu.matmul %18, %94, %cst_109 {dimension_numbers = #tpu.dot_dimension_numbers<[1], [0], [0], [1], [0, 0, 1, 1], [], []>} : vector<14x32xbf16>, vector<32x84xbf16>, vector<14x84xf32> -> vector<14x84xf32>
    %96 = arith.addf %92, %95 : vector<14x84xf32>
    %c1_110 = arith.constant 1 : index
    %c3_111 = arith.constant 3 : index
    %c0_112 = arith.constant 0 : index
    %c0_113 = arith.constant 0 : index
    %97 = vector.load %arg2[%c1_110, %c3_111, %c0_112, %c0_113] : memref<2x5x32x84xbf16, #tpu.memory_space<vmem>>, vector<1x1x32x84xbf16>
    %98 = vector.shape_cast %97 : vector<1x1x32x84xbf16> to vector<32x84xbf16>
    %cst_114 = arith.constant dense<0.000000e+00> : vector<14x84xf32>
    %99 = tpu.matmul %22, %98, %cst_114 {dimension_numbers = #tpu.dot_dimension_numbers<[1], [0], [0], [1], [0, 0, 1, 1], [], []>} : vector<14x32xbf16>, vector<32x84xbf16>, vector<14x84xf32> -> vector<14x84xf32>
    %100 = arith.addf %96, %99 : vector<14x84xf32>
    %c1_115 = arith.constant 1 : index
    %c4_116 = arith.constant 4 : index
    %c0_117 = arith.constant 0 : index
    %c0_118 = arith.constant 0 : index
    %101 = vector.load %arg2[%c1_115, %c4_116, %c0_117, %c0_118] : memref<2x5x32x84xbf16, #tpu.memory_space<vmem>>, vector<1x1x32x84xbf16>
    %102 = vector.shape_cast %101 : vector<1x1x32x84xbf16> to vector<32x84xbf16>
    %cst_119 = arith.constant dense<0.000000e+00> : vector<14x84xf32>
    %103 = tpu.matmul %26, %102, %cst_119 {dimension_numbers = #tpu.dot_dimension_numbers<[1], [0], [0], [1], [0, 0, 1, 1], [], []>} : vector<14x32xbf16>, vector<32x84xbf16>, vector<14x84xf32> -> vector<14x84xf32>
    %104 = arith.addf %100, %103 : vector<14x84xf32>
    %105 = arith.maximumf %85, %104 : vector<14x84xf32>
    %c0_120 = arith.constant 0 : index
    %c0_121 = arith.constant 0 : index
    %106 = vector.load %arg3[%c0_120, %c0_121] : memref<1x84xf32, #tpu.memory_space<vmem>>, vector<1x84xf32>
    %107 = vector.broadcast %106 : vector<1x84xf32> to vector<14x84xf32>
    %108 = arith.addf %105, %107 : vector<14x84xf32>
    %cst_122 = arith.constant 0.000000e+00 : f32
    %109 = vector.broadcast %cst_122 : f32 to vector<14x84xf32>
    %110 = arith.maximumf %108, %109 : vector<14x84xf32>
    %111 = arith.truncf %110 : vector<14x84xf32> to vector<14x84xbf16>
    %c0_123 = arith.constant 0 : index
    %c0_124 = arith.constant 0 : index
    %c0_125 = arith.constant 0 : index
    %112 = vector.load %arg4[%c0_123, %c0_124, %c0_125] : memref<6x5x14xbf16, #tpu.memory_space<vmem>>, vector<1x5x14xbf16>
    %113 = vector.shape_cast %112 : vector<1x5x14xbf16> to vector<5x14xbf16>
    %cst_126 = arith.constant dense<0.000000e+00> : vector<5x84xf32>
    %114 = tpu.matmul %113, %111, %cst_126 {dimension_numbers = #tpu.dot_dimension_numbers<[1], [0], [0], [1], [0, 0, 1, 1], [], []>} : vector<5x14xbf16>, vector<14x84xbf16>, vector<5x84xf32> -> vector<5x84xf32>
    %115 = arith.truncf %114 : vector<5x84xf32> to vector<5x84xbf16>
    %c1_127 = arith.constant 1 : index
    %c0_128 = arith.constant 0 : index
    %c0_129 = arith.constant 0 : index
    %116 = vector.load %arg4[%c1_127, %c0_128, %c0_129] : memref<6x5x14xbf16, #tpu.memory_space<vmem>>, vector<1x5x14xbf16>
    %117 = vector.shape_cast %116 : vector<1x5x14xbf16> to vector<5x14xbf16>
    %cst_130 = arith.constant dense<0.000000e+00> : vector<5x84xf32>
    %118 = tpu.matmul %117, %111, %cst_130 {dimension_numbers = #tpu.dot_dimension_numbers<[1], [0], [0], [1], [0, 0, 1, 1], [], []>} : vector<5x14xbf16>, vector<14x84xbf16>, vector<5x84xf32> -> vector<5x84xf32>
    %119 = arith.truncf %118 : vector<5x84xf32> to vector<5x84xbf16>
    %c2_131 = arith.constant 2 : index
    %c0_132 = arith.constant 0 : index
    %c0_133 = arith.constant 0 : index
    %120 = vector.load %arg4[%c2_131, %c0_132, %c0_133] : memref<6x5x14xbf16, #tpu.memory_space<vmem>>, vector<1x5x14xbf16>
    %121 = vector.shape_cast %120 : vector<1x5x14xbf16> to vector<5x14xbf16>
    %cst_134 = arith.constant dense<0.000000e+00> : vector<5x84xf32>
    %122 = tpu.matmul %121, %111, %cst_134 {dimension_numbers = #tpu.dot_dimension_numbers<[1], [0], [0], [1], [0, 0, 1, 1], [], []>} : vector<5x14xbf16>, vector<14x84xbf16>, vector<5x84xf32> -> vector<5x84xf32>
    %123 = arith.truncf %122 : vector<5x84xf32> to vector<5x84xbf16>
    %c3_135 = arith.constant 3 : index
    %c0_136 = arith.constant 0 : index
    %c0_137 = arith.constant 0 : index
    %124 = vector.load %arg4[%c3_135, %c0_136, %c0_137] : memref<6x5x14xbf16, #tpu.memory_space<vmem>>, vector<1x5x14xbf16>
    %125 = vector.shape_cast %124 : vector<1x5x14xbf16> to vector<5x14xbf16>
    %cst_138 = arith.constant dense<0.000000e+00> : vector<5x84xf32>
    %126 = tpu.matmul %125, %111, %cst_138 {dimension_numbers = #tpu.dot_dimension_numbers<[1], [0], [0], [1], [0, 0, 1, 1], [], []>} : vector<5x14xbf16>, vector<14x84xbf16>, vector<5x84xf32> -> vector<5x84xf32>
    %127 = arith.truncf %126 : vector<5x84xf32> to vector<5x84xbf16>
    %c4_139 = arith.constant 4 : index
    %c0_140 = arith.constant 0 : index
    %c0_141 = arith.constant 0 : index
    %128 = vector.load %arg4[%c4_139, %c0_140, %c0_141] : memref<6x5x14xbf16, #tpu.memory_space<vmem>>, vector<1x5x14xbf16>
    %129 = vector.shape_cast %128 : vector<1x5x14xbf16> to vector<5x14xbf16>
    %cst_142 = arith.constant dense<0.000000e+00> : vector<5x84xf32>
    %130 = tpu.matmul %129, %111, %cst_142 {dimension_numbers = #tpu.dot_dimension_numbers<[1], [0], [0], [1], [0, 0, 1, 1], [], []>} : vector<5x14xbf16>, vector<14x84xbf16>, vector<5x84xf32> -> vector<5x84xf32>
    %131 = arith.truncf %130 : vector<5x84xf32> to vector<5x84xbf16>
    %c5_143 = arith.constant 5 : index
    %c0_144 = arith.constant 0 : index
    %c0_145 = arith.constant 0 : index
    %132 = vector.load %arg4[%c5_143, %c0_144, %c0_145] : memref<6x5x14xbf16, #tpu.memory_space<vmem>>, vector<1x5x14xbf16>
    %133 = vector.shape_cast %132 : vector<1x5x14xbf16> to vector<5x14xbf16>
    %cst_146 = arith.constant dense<0.000000e+00> : vector<5x84xf32>
    %134 = tpu.matmul %133, %111, %cst_146 {dimension_numbers = #tpu.dot_dimension_numbers<[1], [0], [0], [1], [0, 0, 1, 1], [], []>} : vector<5x14xbf16>, vector<14x84xbf16>, vector<5x84xf32> -> vector<5x84xf32>
    %135 = arith.truncf %134 : vector<5x84xf32> to vector<5x84xbf16>
    %c0_147 = arith.constant 0 : index
    %c0_148 = arith.constant 0 : index
    %c0_149 = arith.constant 0 : index
    %c0_150 = arith.constant 0 : index
    %136 = vector.load %arg5[%c0_147, %c0_148, %c0_149, %c0_150] : memref<2x5x84x80xbf16, #tpu.memory_space<vmem>>, vector<1x1x84x80xbf16>
    %137 = vector.shape_cast %136 : vector<1x1x84x80xbf16> to vector<84x80xbf16>
    %cst_151 = arith.constant dense<0.000000e+00> : vector<5x80xf32>
    %138 = tpu.matmul %115, %137, %cst_151 {dimension_numbers = #tpu.dot_dimension_numbers<[1], [0], [0], [1], [0, 0, 1, 1], [], []>} : vector<5x84xbf16>, vector<84x80xbf16>, vector<5x80xf32> -> vector<5x80xf32>
    %c0_152 = arith.constant 0 : index
    %c1_153 = arith.constant 1 : index
    %c0_154 = arith.constant 0 : index
    %c0_155 = arith.constant 0 : index
    %139 = vector.load %arg5[%c0_152, %c1_153, %c0_154, %c0_155] : memref<2x5x84x80xbf16, #tpu.memory_space<vmem>>, vector<1x1x84x80xbf16>
    %140 = vector.shape_cast %139 : vector<1x1x84x80xbf16> to vector<84x80xbf16>
    %cst_156 = arith.constant dense<0.000000e+00> : vector<5x80xf32>
    %141 = tpu.matmul %119, %140, %cst_156 {dimension_numbers = #tpu.dot_dimension_numbers<[1], [0], [0], [1], [0, 0, 1, 1], [], []>} : vector<5x84xbf16>, vector<84x80xbf16>, vector<5x80xf32> -> vector<5x80xf32>
    %142 = arith.addf %138, %141 : vector<5x80xf32>
    %c0_157 = arith.constant 0 : index
    %c2_158 = arith.constant 2 : index
    %c0_159 = arith.constant 0 : index
    %c0_160 = arith.constant 0 : index
    %143 = vector.load %arg5[%c0_157, %c2_158, %c0_159, %c0_160] : memref<2x5x84x80xbf16, #tpu.memory_space<vmem>>, vector<1x1x84x80xbf16>
    %144 = vector.shape_cast %143 : vector<1x1x84x80xbf16> to vector<84x80xbf16>
    %cst_161 = arith.constant dense<0.000000e+00> : vector<5x80xf32>
    %145 = tpu.matmul %123, %144, %cst_161 {dimension_numbers = #tpu.dot_dimension_numbers<[1], [0], [0], [1], [0, 0, 1, 1], [], []>} : vector<5x84xbf16>, vector<84x80xbf16>, vector<5x80xf32> -> vector<5x80xf32>
    %146 = arith.addf %142, %145 : vector<5x80xf32>
    %c0_162 = arith.constant 0 : index
    %c3_163 = arith.constant 3 : index
    %c0_164 = arith.constant 0 : index
    %c0_165 = arith.constant 0 : index
    %147 = vector.load %arg5[%c0_162, %c3_163, %c0_164, %c0_165] : memref<2x5x84x80xbf16, #tpu.memory_space<vmem>>, vector<1x1x84x80xbf16>
    %148 = vector.shape_cast %147 : vector<1x1x84x80xbf16> to vector<84x80xbf16>
    %cst_166 = arith.constant dense<0.000000e+00> : vector<5x80xf32>
    %149 = tpu.matmul %127, %148, %cst_166 {dimension_numbers = #tpu.dot_dimension_numbers<[1], [0], [0], [1], [0, 0, 1, 1], [], []>} : vector<5x84xbf16>, vector<84x80xbf16>, vector<5x80xf32> -> vector<5x80xf32>
    %150 = arith.addf %146, %149 : vector<5x80xf32>
    %c0_167 = arith.constant 0 : index
    %c4_168 = arith.constant 4 : index
    %c0_169 = arith.constant 0 : index
    %c0_170 = arith.constant 0 : index
    %151 = vector.load %arg5[%c0_167, %c4_168, %c0_169, %c0_170] : memref<2x5x84x80xbf16, #tpu.memory_space<vmem>>, vector<1x1x84x80xbf16>
    %152 = vector.shape_cast %151 : vector<1x1x84x80xbf16> to vector<84x80xbf16>
    %cst_171 = arith.constant dense<0.000000e+00> : vector<5x80xf32>
    %153 = tpu.matmul %131, %152, %cst_171 {dimension_numbers = #tpu.dot_dimension_numbers<[1], [0], [0], [1], [0, 0, 1, 1], [], []>} : vector<5x84xbf16>, vector<84x80xbf16>, vector<5x80xf32> -> vector<5x80xf32>
    %154 = arith.addf %150, %153 : vector<5x80xf32>
    %c1_172 = arith.constant 1 : index
    %c0_173 = arith.constant 0 : index
    %c0_174 = arith.constant 0 : index
    %c0_175 = arith.constant 0 : index
    %155 = vector.load %arg5[%c1_172, %c0_173, %c0_174, %c0_175] : memref<2x5x84x80xbf16, #tpu.memory_space<vmem>>, vector<1x1x84x80xbf16>
    %156 = vector.shape_cast %155 : vector<1x1x84x80xbf16> to vector<84x80xbf16>
    %cst_176 = arith.constant dense<0.000000e+00> : vector<5x80xf32>
    %157 = tpu.matmul %115, %156, %cst_176 {dimension_numbers = #tpu.dot_dimension_numbers<[1], [0], [0], [1], [0, 0, 1, 1], [], []>} : vector<5x84xbf16>, vector<84x80xbf16>, vector<5x80xf32> -> vector<5x80xf32>
    %c1_177 = arith.constant 1 : index
    %c1_178 = arith.constant 1 : index
    %c0_179 = arith.constant 0 : index
    %c0_180 = arith.constant 0 : index
    %158 = vector.load %arg5[%c1_177, %c1_178, %c0_179, %c0_180] : memref<2x5x84x80xbf16, #tpu.memory_space<vmem>>, vector<1x1x84x80xbf16>
    %159 = vector.shape_cast %158 : vector<1x1x84x80xbf16> to vector<84x80xbf16>
    %cst_181 = arith.constant dense<0.000000e+00> : vector<5x80xf32>
    %160 = tpu.matmul %119, %159, %cst_181 {dimension_numbers = #tpu.dot_dimension_numbers<[1], [0], [0], [1], [0, 0, 1, 1], [], []>} : vector<5x84xbf16>, vector<84x80xbf16>, vector<5x80xf32> -> vector<5x80xf32>
    %161 = arith.addf %157, %160 : vector<5x80xf32>
    %c1_182 = arith.constant 1 : index
    %c2_183 = arith.constant 2 : index
    %c0_184 = arith.constant 0 : index
    %c0_185 = arith.constant 0 : index
    %162 = vector.load %arg5[%c1_182, %c2_183, %c0_184, %c0_185] : memref<2x5x84x80xbf16, #tpu.memory_space<vmem>>, vector<1x1x84x80xbf16>
    %163 = vector.shape_cast %162 : vector<1x1x84x80xbf16> to vector<84x80xbf16>
    %cst_186 = arith.constant dense<0.000000e+00> : vector<5x80xf32>
    %164 = tpu.matmul %123, %163, %cst_186 {dimension_numbers = #tpu.dot_dimension_numbers<[1], [0], [0], [1], [0, 0, 1, 1], [], []>} : vector<5x84xbf16>, vector<84x80xbf16>, vector<5x80xf32> -> vector<5x80xf32>
    %165 = arith.addf %161, %164 : vector<5x80xf32>
    %c1_187 = arith.constant 1 : index
    %c3_188 = arith.constant 3 : index
    %c0_189 = arith.constant 0 : index
    %c0_190 = arith.constant 0 : index
    %166 = vector.load %arg5[%c1_187, %c3_188, %c0_189, %c0_190] : memref<2x5x84x80xbf16, #tpu.memory_space<vmem>>, vector<1x1x84x80xbf16>
    %167 = vector.shape_cast %166 : vector<1x1x84x80xbf16> to vector<84x80xbf16>
    %cst_191 = arith.constant dense<0.000000e+00> : vector<5x80xf32>
    %168 = tpu.matmul %127, %167, %cst_191 {dimension_numbers = #tpu.dot_dimension_numbers<[1], [0], [0], [1], [0, 0, 1, 1], [], []>} : vector<5x84xbf16>, vector<84x80xbf16>, vector<5x80xf32> -> vector<5x80xf32>
    %169 = arith.addf %165, %168 : vector<5x80xf32>
    %c1_192 = arith.constant 1 : index
    %c4_193 = arith.constant 4 : index
    %c0_194 = arith.constant 0 : index
    %c0_195 = arith.constant 0 : index
    %170 = vector.load %arg5[%c1_192, %c4_193, %c0_194, %c0_195] : memref<2x5x84x80xbf16, #tpu.memory_space<vmem>>, vector<1x1x84x80xbf16>
    %171 = vector.shape_cast %170 : vector<1x1x84x80xbf16> to vector<84x80xbf16>
    %cst_196 = arith.constant dense<0.000000e+00> : vector<5x80xf32>
    %172 = tpu.matmul %131, %171, %cst_196 {dimension_numbers = #tpu.dot_dimension_numbers<[1], [0], [0], [1], [0, 0, 1, 1], [], []>} : vector<5x84xbf16>, vector<84x80xbf16>, vector<5x80xf32> -> vector<5x80xf32>
    %173 = arith.addf %169, %172 : vector<5x80xf32>
    %174 = arith.maximumf %154, %173 : vector<5x80xf32>
    %c0_197 = arith.constant 0 : index
    %c0_198 = arith.constant 0 : index
    %c0_199 = arith.constant 0 : index
    %c0_200 = arith.constant 0 : index
    %175 = vector.load %arg5[%c0_197, %c0_198, %c0_199, %c0_200] : memref<2x5x84x80xbf16, #tpu.memory_space<vmem>>, vector<1x1x84x80xbf16>
    %176 = vector.shape_cast %175 : vector<1x1x84x80xbf16> to vector<84x80xbf16>
    %cst_201 = arith.constant dense<0.000000e+00> : vector<5x80xf32>
    %177 = tpu.matmul %119, %176, %cst_201 {dimension_numbers = #tpu.dot_dimension_numbers<[1], [0], [0], [1], [0, 0, 1, 1], [], []>} : vector<5x84xbf16>, vector<84x80xbf16>, vector<5x80xf32> -> vector<5x80xf32>
    %c0_202 = arith.constant 0 : index
    %c1_203 = arith.constant 1 : index
    %c0_204 = arith.constant 0 : index
    %c0_205 = arith.constant 0 : index
    %178 = vector.load %arg5[%c0_202, %c1_203, %c0_204, %c0_205] : memref<2x5x84x80xbf16, #tpu.memory_space<vmem>>, vector<1x1x84x80xbf16>
    %179 = vector.shape_cast %178 : vector<1x1x84x80xbf16> to vector<84x80xbf16>
    %cst_206 = arith.constant dense<0.000000e+00> : vector<5x80xf32>
    %180 = tpu.matmul %123, %179, %cst_206 {dimension_numbers = #tpu.dot_dimension_numbers<[1], [0], [0], [1], [0, 0, 1, 1], [], []>} : vector<5x84xbf16>, vector<84x80xbf16>, vector<5x80xf32> -> vector<5x80xf32>
    %181 = arith.addf %177, %180 : vector<5x80xf32>
    %c0_207 = arith.constant 0 : index
    %c2_208 = arith.constant 2 : index
    %c0_209 = arith.constant 0 : index
    %c0_210 = arith.constant 0 : index
    %182 = vector.load %arg5[%c0_207, %c2_208, %c0_209, %c0_210] : memref<2x5x84x80xbf16, #tpu.memory_space<vmem>>, vector<1x1x84x80xbf16>
    %183 = vector.shape_cast %182 : vector<1x1x84x80xbf16> to vector<84x80xbf16>
    %cst_211 = arith.constant dense<0.000000e+00> : vector<5x80xf32>
    %184 = tpu.matmul %127, %183, %cst_211 {dimension_numbers = #tpu.dot_dimension_numbers<[1], [0], [0], [1], [0, 0, 1, 1], [], []>} : vector<5x84xbf16>, vector<84x80xbf16>, vector<5x80xf32> -> vector<5x80xf32>
    %185 = arith.addf %181, %184 : vector<5x80xf32>
    %c0_212 = arith.constant 0 : index
    %c3_213 = arith.constant 3 : index
    %c0_214 = arith.constant 0 : index
    %c0_215 = arith.constant 0 : index
    %186 = vector.load %arg5[%c0_212, %c3_213, %c0_214, %c0_215] : memref<2x5x84x80xbf16, #tpu.memory_space<vmem>>, vector<1x1x84x80xbf16>
    %187 = vector.shape_cast %186 : vector<1x1x84x80xbf16> to vector<84x80xbf16>
    %cst_216 = arith.constant dense<0.000000e+00> : vector<5x80xf32>
    %188 = tpu.matmul %131, %187, %cst_216 {dimension_numbers = #tpu.dot_dimension_numbers<[1], [0], [0], [1], [0, 0, 1, 1], [], []>} : vector<5x84xbf16>, vector<84x80xbf16>, vector<5x80xf32> -> vector<5x80xf32>
    %189 = arith.addf %185, %188 : vector<5x80xf32>
    %c0_217 = arith.constant 0 : index
    %c4_218 = arith.constant 4 : index
    %c0_219 = arith.constant 0 : index
    %c0_220 = arith.constant 0 : index
    %190 = vector.load %arg5[%c0_217, %c4_218, %c0_219, %c0_220] : memref<2x5x84x80xbf16, #tpu.memory_space<vmem>>, vector<1x1x84x80xbf16>
    %191 = vector.shape_cast %190 : vector<1x1x84x80xbf16> to vector<84x80xbf16>
    %cst_221 = arith.constant dense<0.000000e+00> : vector<5x80xf32>
    %192 = tpu.matmul %135, %191, %cst_221 {dimension_numbers = #tpu.dot_dimension_numbers<[1], [0], [0], [1], [0, 0, 1, 1], [], []>} : vector<5x84xbf16>, vector<84x80xbf16>, vector<5x80xf32> -> vector<5x80xf32>
    %193 = arith.addf %189, %192 : vector<5x80xf32>
    %194 = arith.maximumf %174, %193 : vector<5x80xf32>
    %c1_222 = arith.constant 1 : index
    %c0_223 = arith.constant 0 : index
    %c0_224 = arith.constant 0 : index
    %c0_225 = arith.constant 0 : index
    %195 = vector.load %arg5[%c1_222, %c0_223, %c0_224, %c0_225] : memref<2x5x84x80xbf16, #tpu.memory_space<vmem>>, vector<1x1x84x80xbf16>
    %196 = vector.shape_cast %195 : vector<1x1x84x80xbf16> to vector<84x80xbf16>
    %cst_226 = arith.constant dense<0.000000e+00> : vector<5x80xf32>
    %197 = tpu.matmul %119, %196, %cst_226 {dimension_numbers = #tpu.dot_dimension_numbers<[1], [0], [0], [1], [0, 0, 1, 1], [], []>} : vector<5x84xbf16>, vector<84x80xbf16>, vector<5x80xf32> -> vector<5x80xf32>
    %c1_227 = arith.constant 1 : index
    %c1_228 = arith.constant 1 : index
    %c0_229 = arith.constant 0 : index
    %c0_230 = arith.constant 0 : index
    %198 = vector.load %arg5[%c1_227, %c1_228, %c0_229, %c0_230] : memref<2x5x84x80xbf16, #tpu.memory_space<vmem>>, vector<1x1x84x80xbf16>
    %199 = vector.shape_cast %198 : vector<1x1x84x80xbf16> to vector<84x80xbf16>
    %cst_231 = arith.constant dense<0.000000e+00> : vector<5x80xf32>
    %200 = tpu.matmul %123, %199, %cst_231 {dimension_numbers = #tpu.dot_dimension_numbers<[1], [0], [0], [1], [0, 0, 1, 1], [], []>} : vector<5x84xbf16>, vector<84x80xbf16>, vector<5x80xf32> -> vector<5x80xf32>
    %201 = arith.addf %197, %200 : vector<5x80xf32>
    %c1_232 = arith.constant 1 : index
    %c2_233 = arith.constant 2 : index
    %c0_234 = arith.constant 0 : index
    %c0_235 = arith.constant 0 : index
    %202 = vector.load %arg5[%c1_232, %c2_233, %c0_234, %c0_235] : memref<2x5x84x80xbf16, #tpu.memory_space<vmem>>, vector<1x1x84x80xbf16>
    %203 = vector.shape_cast %202 : vector<1x1x84x80xbf16> to vector<84x80xbf16>
    %cst_236 = arith.constant dense<0.000000e+00> : vector<5x80xf32>
    %204 = tpu.matmul %127, %203, %cst_236 {dimension_numbers = #tpu.dot_dimension_numbers<[1], [0], [0], [1], [0, 0, 1, 1], [], []>} : vector<5x84xbf16>, vector<84x80xbf16>, vector<5x80xf32> -> vector<5x80xf32>
    %205 = arith.addf %201, %204 : vector<5x80xf32>
    %c1_237 = arith.constant 1 : index
    %c3_238 = arith.constant 3 : index
    %c0_239 = arith.constant 0 : index
    %c0_240 = arith.constant 0 : index
    %206 = vector.load %arg5[%c1_237, %c3_238, %c0_239, %c0_240] : memref<2x5x84x80xbf16, #tpu.memory_space<vmem>>, vector<1x1x84x80xbf16>
    %207 = vector.shape_cast %206 : vector<1x1x84x80xbf16> to vector<84x80xbf16>
    %cst_241 = arith.constant dense<0.000000e+00> : vector<5x80xf32>
    %208 = tpu.matmul %131, %207, %cst_241 {dimension_numbers = #tpu.dot_dimension_numbers<[1], [0], [0], [1], [0, 0, 1, 1], [], []>} : vector<5x84xbf16>, vector<84x80xbf16>, vector<5x80xf32> -> vector<5x80xf32>
    %209 = arith.addf %205, %208 : vector<5x80xf32>
    %c1_242 = arith.constant 1 : index
    %c4_243 = arith.constant 4 : index
    %c0_244 = arith.constant 0 : index
    %c0_245 = arith.constant 0 : index
    %210 = vector.load %arg5[%c1_242, %c4_243, %c0_244, %c0_245] : memref<2x5x84x80xbf16, #tpu.memory_space<vmem>>, vector<1x1x84x80xbf16>
    %211 = vector.shape_cast %210 : vector<1x1x84x80xbf16> to vector<84x80xbf16>
    %cst_246 = arith.constant dense<0.000000e+00> : vector<5x80xf32>
    %212 = tpu.matmul %135, %211, %cst_246 {dimension_numbers = #tpu.dot_dimension_numbers<[1], [0], [0], [1], [0, 0, 1, 1], [], []>} : vector<5x84xbf16>, vector<84x80xbf16>, vector<5x80xf32> -> vector<5x80xf32>
    %213 = arith.addf %209, %212 : vector<5x80xf32>
    %214 = arith.maximumf %194, %213 : vector<5x80xf32>
    %c0_247 = arith.constant 0 : index
    %c0_248 = arith.constant 0 : index
    %215 = vector.load %arg6[%c0_247, %c0_248] : memref<1x80xf32, #tpu.memory_space<vmem>>, vector<1x80xf32>
    %216 = vector.broadcast %215 : vector<1x80xf32> to vector<5x80xf32>
    %217 = arith.addf %214, %216 : vector<5x80xf32>
    %cst_249 = arith.constant 0.000000e+00 : f32
    %218 = vector.broadcast %cst_249 : f32 to vector<5x80xf32>
    %219 = arith.maximumf %217, %218 : vector<5x80xf32>
    %220 = vector.extract_strided_slice %219 {offsets = [0, 0], sizes = [1, 80], strides = [1, 1]} : vector<5x80xf32> to vector<1x80xf32>
    %221 = arith.truncf %220 : vector<1x80xf32> to vector<1x80xbf16>
    %c0_250 = arith.constant 0 : index
    %c0_251 = arith.constant 0 : index
    %c0_252 = arith.constant 0 : index
    %222 = vector.load %arg7[%c0_250, %c0_251, %c0_252] : memref<5x80x128xbf16, #tpu.memory_space<vmem>>, vector<1x80x128xbf16>
    %223 = vector.shape_cast %222 : vector<1x80x128xbf16> to vector<80x128xbf16>
    %cst_253 = arith.constant dense<0.000000e+00> : vector<1x128xf32>
    %224 = tpu.matmul %221, %223, %cst_253 {dimension_numbers = #tpu.dot_dimension_numbers<[1], [0], [0], [1], [0, 0, 1, 1], [], []>} : vector<1x80xbf16>, vector<80x128xbf16>, vector<1x128xf32> -> vector<1x128xf32>
    %225 = vector.extract_strided_slice %219 {offsets = [1, 0], sizes = [1, 80], strides = [1, 1]} : vector<5x80xf32> to vector<1x80xf32>
    %226 = arith.truncf %225 : vector<1x80xf32> to vector<1x80xbf16>
    %c1_254 = arith.constant 1 : index
    %c0_255 = arith.constant 0 : index
    %c0_256 = arith.constant 0 : index
    %227 = vector.load %arg7[%c1_254, %c0_255, %c0_256] : memref<5x80x128xbf16, #tpu.memory_space<vmem>>, vector<1x80x128xbf16>
    %228 = vector.shape_cast %227 : vector<1x80x128xbf16> to vector<80x128xbf16>
    %cst_257 = arith.constant dense<0.000000e+00> : vector<1x128xf32>
    %229 = tpu.matmul %226, %228, %cst_257 {dimension_numbers = #tpu.dot_dimension_numbers<[1], [0], [0], [1], [0, 0, 1, 1], [], []>} : vector<1x80xbf16>, vector<80x128xbf16>, vector<1x128xf32> -> vector<1x128xf32>
    %230 = arith.addf %224, %229 : vector<1x128xf32>
    %231 = vector.extract_strided_slice %219 {offsets = [2, 0], sizes = [1, 80], strides = [1, 1]} : vector<5x80xf32> to vector<1x80xf32>
    %232 = arith.truncf %231 : vector<1x80xf32> to vector<1x80xbf16>
    %c2_258 = arith.constant 2 : index
    %c0_259 = arith.constant 0 : index
    %c0_260 = arith.constant 0 : index
    %233 = vector.load %arg7[%c2_258, %c0_259, %c0_260] : memref<5x80x128xbf16, #tpu.memory_space<vmem>>, vector<1x80x128xbf16>
    %234 = vector.shape_cast %233 : vector<1x80x128xbf16> to vector<80x128xbf16>
    %cst_261 = arith.constant dense<0.000000e+00> : vector<1x128xf32>
    %235 = tpu.matmul %232, %234, %cst_261 {dimension_numbers = #tpu.dot_dimension_numbers<[1], [0], [0], [1], [0, 0, 1, 1], [], []>} : vector<1x80xbf16>, vector<80x128xbf16>, vector<1x128xf32> -> vector<1x128xf32>
    %236 = arith.addf %230, %235 : vector<1x128xf32>
    %237 = vector.extract_strided_slice %219 {offsets = [3, 0], sizes = [1, 80], strides = [1, 1]} : vector<5x80xf32> to vector<1x80xf32>
    %238 = arith.truncf %237 : vector<1x80xf32> to vector<1x80xbf16>
    %c3_262 = arith.constant 3 : index
    %c0_263 = arith.constant 0 : index
    %c0_264 = arith.constant 0 : index
    %239 = vector.load %arg7[%c3_262, %c0_263, %c0_264] : memref<5x80x128xbf16, #tpu.memory_space<vmem>>, vector<1x80x128xbf16>
    %240 = vector.shape_cast %239 : vector<1x80x128xbf16> to vector<80x128xbf16>
    %cst_265 = arith.constant dense<0.000000e+00> : vector<1x128xf32>
    %241 = tpu.matmul %238, %240, %cst_265 {dimension_numbers = #tpu.dot_dimension_numbers<[1], [0], [0], [1], [0, 0, 1, 1], [], []>} : vector<1x80xbf16>, vector<80x128xbf16>, vector<1x128xf32> -> vector<1x128xf32>
    %242 = arith.addf %236, %241 : vector<1x128xf32>
    %243 = vector.extract_strided_slice %219 {offsets = [4, 0], sizes = [1, 80], strides = [1, 1]} : vector<5x80xf32> to vector<1x80xf32>
    %244 = arith.truncf %243 : vector<1x80xf32> to vector<1x80xbf16>
    %c4_266 = arith.constant 4 : index
    %c0_267 = arith.constant 0 : index
    %c0_268 = arith.constant 0 : index
    %245 = vector.load %arg7[%c4_266, %c0_267, %c0_268] : memref<5x80x128xbf16, #tpu.memory_space<vmem>>, vector<1x80x128xbf16>
    %246 = vector.shape_cast %245 : vector<1x80x128xbf16> to vector<80x128xbf16>
    %cst_269 = arith.constant dense<0.000000e+00> : vector<1x128xf32>
    %247 = tpu.matmul %244, %246, %cst_269 {dimension_numbers = #tpu.dot_dimension_numbers<[1], [0], [0], [1], [0, 0, 1, 1], [], []>} : vector<1x80xbf16>, vector<80x128xbf16>, vector<1x128xf32> -> vector<1x128xf32>
    %248 = arith.addf %242, %247 : vector<1x128xf32>
    %c0_270 = arith.constant 0 : index
    %c0_271 = arith.constant 0 : index
    %249 = vector.load %arg8[%c0_270, %c0_271] : memref<1x128xf32, #tpu.memory_space<vmem>>, vector<1x128xf32>
    %250 = arith.addf %248, %249 : vector<1x128xf32>
    %cst_272 = arith.constant 0.000000e+00 : f32
    %251 = vector.broadcast %cst_272 : f32 to vector<1x128xf32>
    %252 = arith.maximumf %250, %251 : vector<1x128xf32>
    %253 = arith.truncf %252 : vector<1x128xf32> to vector<1x128xbf16>
    %c0_273 = arith.constant 0 : index
    %c0_274 = arith.constant 0 : index
    %254 = vector.load %arg9[%c0_273, %c0_274] : memref<128x128xbf16, #tpu.memory_space<vmem>>, vector<128x128xbf16>
    %cst_275 = arith.constant dense<0.000000e+00> : vector<1x128xf32>
    %255 = tpu.matmul %253, %254, %cst_275 {dimension_numbers = #tpu.dot_dimension_numbers<[1], [0], [0], [1], [0, 0, 1, 1], [], []>} : vector<1x128xbf16>, vector<128x128xbf16>, vector<1x128xf32> -> vector<1x128xf32>
    %c0_276 = arith.constant 0 : index
    %c0_277 = arith.constant 0 : index
    %256 = vector.load %arg10[%c0_276, %c0_277] : memref<1x128xf32, #tpu.memory_space<vmem>>, vector<1x128xf32>
    %257 = arith.addf %255, %256 : vector<1x128xf32>
    %cst_278 = arith.constant 0.000000e+00 : f32
    %258 = vector.broadcast %cst_278 : f32 to vector<1x128xf32>
    %259 = arith.maximumf %257, %258 : vector<1x128xf32>
    %260 = arith.truncf %259 : vector<1x128xf32> to vector<1x128xbf16>
    %c0_279 = arith.constant 0 : index
    %c0_280 = arith.constant 0 : index
    %261 = vector.load %arg11[%c0_279, %c0_280] : memref<128x128xbf16, #tpu.memory_space<vmem>>, vector<128x128xbf16>
    %cst_281 = arith.constant dense<0.000000e+00> : vector<1x128xf32>
    %262 = tpu.matmul %260, %261, %cst_281 {dimension_numbers = #tpu.dot_dimension_numbers<[1], [0], [0], [1], [0, 0, 1, 1], [], []>} : vector<1x128xbf16>, vector<128x128xbf16>, vector<1x128xf32> -> vector<1x128xf32>
    %c0_282 = arith.constant 0 : index
    %c0_283 = arith.constant 0 : index
    %263 = vector.load %arg12[%c0_282, %c0_283] : memref<1x128xf32, #tpu.memory_space<vmem>>, vector<1x128xf32>
    %264 = arith.addf %262, %263 : vector<1x128xf32>
    %c0_284 = arith.constant 0 : index
    %c0_285 = arith.constant 0 : index
    %265 = vector.load %arg13[%c0_284, %c0_285] : memref<2x128xf32, #tpu.memory_space<vmem>>, vector<1x128xf32>
    tpu.vector_store %arg13[%c0_284, %c0_285], %264 {strides = array<i32>} : memref<2x128xf32, #tpu.memory_space<vmem>>, vector<1x128xf32>,
    %c1_286 = arith.constant 1 : index
    %c0_287 = arith.constant 0 : index
    %c0_288 = arith.constant 0 : index
    %266 = vector.load %arg0[%c1_286, %c0_287, %c0_288] : memref<2x32x32xf32, #tpu.memory_space<vmem>>, vector<1x32x32xf32>
    %267 = vector.shape_cast %266 : vector<1x32x32xf32> to vector<32x32xf32>
    %268 = arith.truncf %267 : vector<32x32xf32> to vector<32x32xbf16>
    %c0_289 = arith.constant 0 : index
    %c0_290 = arith.constant 0 : index
    %c0_291 = arith.constant 0 : index
    %269 = vector.load %arg1[%c0_289, %c0_290, %c0_291] : memref<6x14x32xbf16, #tpu.memory_space<vmem>>, vector<1x14x32xbf16>
    %270 = vector.shape_cast %269 : vector<1x14x32xbf16> to vector<14x32xbf16>
    %cst_292 = arith.constant dense<0.000000e+00> : vector<14x32xf32>
    %271 = tpu.matmul %270, %268, %cst_292 {dimension_numbers = #tpu.dot_dimension_numbers<[1], [0], [0], [1], [0, 0, 1, 1], [], []>} : vector<14x32xbf16>, vector<32x32xbf16>, vector<14x32xf32> -> vector<14x32xf32>
    %272 = arith.truncf %271 : vector<14x32xf32> to vector<14x32xbf16>
    %c1_293 = arith.constant 1 : index
    %c0_294 = arith.constant 0 : index
    %c0_295 = arith.constant 0 : index
    %273 = vector.load %arg1[%c1_293, %c0_294, %c0_295] : memref<6x14x32xbf16, #tpu.memory_space<vmem>>, vector<1x14x32xbf16>
    %274 = vector.shape_cast %273 : vector<1x14x32xbf16> to vector<14x32xbf16>
    %cst_296 = arith.constant dense<0.000000e+00> : vector<14x32xf32>
    %275 = tpu.matmul %274, %268, %cst_296 {dimension_numbers = #tpu.dot_dimension_numbers<[1], [0], [0], [1], [0, 0, 1, 1], [], []>} : vector<14x32xbf16>, vector<32x32xbf16>, vector<14x32xf32> -> vector<14x32xf32>
    %276 = arith.truncf %275 : vector<14x32xf32> to vector<14x32xbf16>
    %c2_297 = arith.constant 2 : index
    %c0_298 = arith.constant 0 : index
    %c0_299 = arith.constant 0 : index
    %277 = vector.load %arg1[%c2_297, %c0_298, %c0_299] : memref<6x14x32xbf16, #tpu.memory_space<vmem>>, vector<1x14x32xbf16>
    %278 = vector.shape_cast %277 : vector<1x14x32xbf16> to vector<14x32xbf16>
    %cst_300 = arith.constant dense<0.000000e+00> : vector<14x32xf32>
    %279 = tpu.matmul %278, %268, %cst_300 {dimension_numbers = #tpu.dot_dimension_numbers<[1], [0], [0], [1], [0, 0, 1, 1], [], []>} : vector<14x32xbf16>, vector<32x32xbf16>, vector<14x32xf32> -> vector<14x32xf32>
    %280 = arith.truncf %279 : vector<14x32xf32> to vector<14x32xbf16>
    %c3_301 = arith.constant 3 : index
    %c0_302 = arith.constant 0 : index
    %c0_303 = arith.constant 0 : index
    %281 = vector.load %arg1[%c3_301, %c0_302, %c0_303] : memref<6x14x32xbf16, #tpu.memory_space<vmem>>, vector<1x14x32xbf16>
    %282 = vector.shape_cast %281 : vector<1x14x32xbf16> to vector<14x32xbf16>
    %cst_304 = arith.constant dense<0.000000e+00> : vector<14x32xf32>
    %283 = tpu.matmul %282, %268, %cst_304 {dimension_numbers = #tpu.dot_dimension_numbers<[1], [0], [0], [1], [0, 0, 1, 1], [], []>} : vector<14x32xbf16>, vector<32x32xbf16>, vector<14x32xf32> -> vector<14x32xf32>
    %284 = arith.truncf %283 : vector<14x32xf32> to vector<14x32xbf16>
    %c4_305 = arith.constant 4 : index
    %c0_306 = arith.constant 0 : index
    %c0_307 = arith.constant 0 : index
    %285 = vector.load %arg1[%c4_305, %c0_306, %c0_307] : memref<6x14x32xbf16, #tpu.memory_space<vmem>>, vector<1x14x32xbf16>
    %286 = vector.shape_cast %285 : vector<1x14x32xbf16> to vector<14x32xbf16>
    %cst_308 = arith.constant dense<0.000000e+00> : vector<14x32xf32>
    %287 = tpu.matmul %286, %268, %cst_308 {dimension_numbers = #tpu.dot_dimension_numbers<[1], [0], [0], [1], [0, 0, 1, 1], [], []>} : vector<14x32xbf16>, vector<32x32xbf16>, vector<14x32xf32> -> vector<14x32xf32>
    %288 = arith.truncf %287 : vector<14x32xf32> to vector<14x32xbf16>
    %c5_309 = arith.constant 5 : index
    %c0_310 = arith.constant 0 : index
    %c0_311 = arith.constant 0 : index
    %289 = vector.load %arg1[%c5_309, %c0_310, %c0_311] : memref<6x14x32xbf16, #tpu.memory_space<vmem>>, vector<1x14x32xbf16>
    %290 = vector.shape_cast %289 : vector<1x14x32xbf16> to vector<14x32xbf16>
    %cst_312 = arith.constant dense<0.000000e+00> : vector<14x32xf32>
    %291 = tpu.matmul %290, %268, %cst_312 {dimension_numbers = #tpu.dot_dimension_numbers<[1], [0], [0], [1], [0, 0, 1, 1], [], []>} : vector<14x32xbf16>, vector<32x32xbf16>, vector<14x32xf32> -> vector<14x32xf32>
    %292 = arith.truncf %291 : vector<14x32xf32> to vector<14x32xbf16>
    %c0_313 = arith.constant 0 : index
    %c0_314 = arith.constant 0 : index
    %c0_315 = arith.constant 0 : index
    %c0_316 = arith.constant 0 : index
    %293 = vector.load %arg2[%c0_313, %c0_314, %c0_315, %c0_316] : memref<2x5x32x84xbf16, #tpu.memory_space<vmem>>, vector<1x1x32x84xbf16>
    %294 = vector.shape_cast %293 : vector<1x1x32x84xbf16> to vector<32x84xbf16>
    %cst_317 = arith.constant dense<0.000000e+00> : vector<14x84xf32>
    %295 = tpu.matmul %272, %294, %cst_317 {dimension_numbers = #tpu.dot_dimension_numbers<[1], [0], [0], [1], [0, 0, 1, 1], [], []>} : vector<14x32xbf16>, vector<32x84xbf16>, vector<14x84xf32> -> vector<14x84xf32>
    %c0_318 = arith.constant 0 : index
    %c1_319 = arith.constant 1 : index
    %c0_320 = arith.constant 0 : index
    %c0_321 = arith.constant 0 : index
    %296 = vector.load %arg2[%c0_318, %c1_319, %c0_320, %c0_321] : memref<2x5x32x84xbf16, #tpu.memory_space<vmem>>, vector<1x1x32x84xbf16>
    %297 = vector.shape_cast %296 : vector<1x1x32x84xbf16> to vector<32x84xbf16>
    %cst_322 = arith.constant dense<0.000000e+00> : vector<14x84xf32>
    %298 = tpu.matmul %276, %297, %cst_322 {dimension_numbers = #tpu.dot_dimension_numbers<[1], [0], [0], [1], [0, 0, 1, 1], [], []>} : vector<14x32xbf16>, vector<32x84xbf16>, vector<14x84xf32> -> vector<14x84xf32>
    %299 = arith.addf %295, %298 : vector<14x84xf32>
    %c0_323 = arith.constant 0 : index
    %c2_324 = arith.constant 2 : index
    %c0_325 = arith.constant 0 : index
    %c0_326 = arith.constant 0 : index
    %300 = vector.load %arg2[%c0_323, %c2_324, %c0_325, %c0_326] : memref<2x5x32x84xbf16, #tpu.memory_space<vmem>>, vector<1x1x32x84xbf16>
    %301 = vector.shape_cast %300 : vector<1x1x32x84xbf16> to vector<32x84xbf16>
    %cst_327 = arith.constant dense<0.000000e+00> : vector<14x84xf32>
    %302 = tpu.matmul %280, %301, %cst_327 {dimension_numbers = #tpu.dot_dimension_numbers<[1], [0], [0], [1], [0, 0, 1, 1], [], []>} : vector<14x32xbf16>, vector<32x84xbf16>, vector<14x84xf32> -> vector<14x84xf32>
    %303 = arith.addf %299, %302 : vector<14x84xf32>
    %c0_328 = arith.constant 0 : index
    %c3_329 = arith.constant 3 : index
    %c0_330 = arith.constant 0 : index
    %c0_331 = arith.constant 0 : index
    %304 = vector.load %arg2[%c0_328, %c3_329, %c0_330, %c0_331] : memref<2x5x32x84xbf16, #tpu.memory_space<vmem>>, vector<1x1x32x84xbf16>
    %305 = vector.shape_cast %304 : vector<1x1x32x84xbf16> to vector<32x84xbf16>
    %cst_332 = arith.constant dense<0.000000e+00> : vector<14x84xf32>
    %306 = tpu.matmul %284, %305, %cst_332 {dimension_numbers = #tpu.dot_dimension_numbers<[1], [0], [0], [1], [0, 0, 1, 1], [], []>} : vector<14x32xbf16>, vector<32x84xbf16>, vector<14x84xf32> -> vector<14x84xf32>
    %307 = arith.addf %303, %306 : vector<14x84xf32>
    %c0_333 = arith.constant 0 : index
    %c4_334 = arith.constant 4 : index
    %c0_335 = arith.constant 0 : index
    %c0_336 = arith.constant 0 : index
    %308 = vector.load %arg2[%c0_333, %c4_334, %c0_335, %c0_336] : memref<2x5x32x84xbf16, #tpu.memory_space<vmem>>, vector<1x1x32x84xbf16>
    %309 = vector.shape_cast %308 : vector<1x1x32x84xbf16> to vector<32x84xbf16>
    %cst_337 = arith.constant dense<0.000000e+00> : vector<14x84xf32>
    %310 = tpu.matmul %288, %309, %cst_337 {dimension_numbers = #tpu.dot_dimension_numbers<[1], [0], [0], [1], [0, 0, 1, 1], [], []>} : vector<14x32xbf16>, vector<32x84xbf16>, vector<14x84xf32> -> vector<14x84xf32>
    %311 = arith.addf %307, %310 : vector<14x84xf32>
    %c1_338 = arith.constant 1 : index
    %c0_339 = arith.constant 0 : index
    %c0_340 = arith.constant 0 : index
    %c0_341 = arith.constant 0 : index
    %312 = vector.load %arg2[%c1_338, %c0_339, %c0_340, %c0_341] : memref<2x5x32x84xbf16, #tpu.memory_space<vmem>>, vector<1x1x32x84xbf16>
    %313 = vector.shape_cast %312 : vector<1x1x32x84xbf16> to vector<32x84xbf16>
    %cst_342 = arith.constant dense<0.000000e+00> : vector<14x84xf32>
    %314 = tpu.matmul %272, %313, %cst_342 {dimension_numbers = #tpu.dot_dimension_numbers<[1], [0], [0], [1], [0, 0, 1, 1], [], []>} : vector<14x32xbf16>, vector<32x84xbf16>, vector<14x84xf32> -> vector<14x84xf32>
    %c1_343 = arith.constant 1 : index
    %c1_344 = arith.constant 1 : index
    %c0_345 = arith.constant 0 : index
    %c0_346 = arith.constant 0 : index
    %315 = vector.load %arg2[%c1_343, %c1_344, %c0_345, %c0_346] : memref<2x5x32x84xbf16, #tpu.memory_space<vmem>>, vector<1x1x32x84xbf16>
    %316 = vector.shape_cast %315 : vector<1x1x32x84xbf16> to vector<32x84xbf16>
    %cst_347 = arith.constant dense<0.000000e+00> : vector<14x84xf32>
    %317 = tpu.matmul %276, %316, %cst_347 {dimension_numbers = #tpu.dot_dimension_numbers<[1], [0], [0], [1], [0, 0, 1, 1], [], []>} : vector<14x32xbf16>, vector<32x84xbf16>, vector<14x84xf32> -> vector<14x84xf32>
    %318 = arith.addf %314, %317 : vector<14x84xf32>
    %c1_348 = arith.constant 1 : index
    %c2_349 = arith.constant 2 : index
    %c0_350 = arith.constant 0 : index
    %c0_351 = arith.constant 0 : index
    %319 = vector.load %arg2[%c1_348, %c2_349, %c0_350, %c0_351] : memref<2x5x32x84xbf16, #tpu.memory_space<vmem>>, vector<1x1x32x84xbf16>
    %320 = vector.shape_cast %319 : vector<1x1x32x84xbf16> to vector<32x84xbf16>
    %cst_352 = arith.constant dense<0.000000e+00> : vector<14x84xf32>
    %321 = tpu.matmul %280, %320, %cst_352 {dimension_numbers = #tpu.dot_dimension_numbers<[1], [0], [0], [1], [0, 0, 1, 1], [], []>} : vector<14x32xbf16>, vector<32x84xbf16>, vector<14x84xf32> -> vector<14x84xf32>
    %322 = arith.addf %318, %321 : vector<14x84xf32>
    %c1_353 = arith.constant 1 : index
    %c3_354 = arith.constant 3 : index
    %c0_355 = arith.constant 0 : index
    %c0_356 = arith.constant 0 : index
    %323 = vector.load %arg2[%c1_353, %c3_354, %c0_355, %c0_356] : memref<2x5x32x84xbf16, #tpu.memory_space<vmem>>, vector<1x1x32x84xbf16>
    %324 = vector.shape_cast %323 : vector<1x1x32x84xbf16> to vector<32x84xbf16>
    %cst_357 = arith.constant dense<0.000000e+00> : vector<14x84xf32>
    %325 = tpu.matmul %284, %324, %cst_357 {dimension_numbers = #tpu.dot_dimension_numbers<[1], [0], [0], [1], [0, 0, 1, 1], [], []>} : vector<14x32xbf16>, vector<32x84xbf16>, vector<14x84xf32> -> vector<14x84xf32>
    %326 = arith.addf %322, %325 : vector<14x84xf32>
    %c1_358 = arith.constant 1 : index
    %c4_359 = arith.constant 4 : index
    %c0_360 = arith.constant 0 : index
    %c0_361 = arith.constant 0 : index
    %327 = vector.load %arg2[%c1_358, %c4_359, %c0_360, %c0_361] : memref<2x5x32x84xbf16, #tpu.memory_space<vmem>>, vector<1x1x32x84xbf16>
    %328 = vector.shape_cast %327 : vector<1x1x32x84xbf16> to vector<32x84xbf16>
    %cst_362 = arith.constant dense<0.000000e+00> : vector<14x84xf32>
    %329 = tpu.matmul %288, %328, %cst_362 {dimension_numbers = #tpu.dot_dimension_numbers<[1], [0], [0], [1], [0, 0, 1, 1], [], []>} : vector<14x32xbf16>, vector<32x84xbf16>, vector<14x84xf32> -> vector<14x84xf32>
    %330 = arith.addf %326, %329 : vector<14x84xf32>
    %331 = arith.maximumf %311, %330 : vector<14x84xf32>
    %c0_363 = arith.constant 0 : index
    %c0_364 = arith.constant 0 : index
    %c0_365 = arith.constant 0 : index
    %c0_366 = arith.constant 0 : index
    %332 = vector.load %arg2[%c0_363, %c0_364, %c0_365, %c0_366] : memref<2x5x32x84xbf16, #tpu.memory_space<vmem>>, vector<1x1x32x84xbf16>
    %333 = vector.shape_cast %332 : vector<1x1x32x84xbf16> to vector<32x84xbf16>
    %cst_367 = arith.constant dense<0.000000e+00> : vector<14x84xf32>
    %334 = tpu.matmul %276, %333, %cst_367 {dimension_numbers = #tpu.dot_dimension_numbers<[1], [0], [0], [1], [0, 0, 1, 1], [], []>} : vector<14x32xbf16>, vector<32x84xbf16>, vector<14x84xf32> -> vector<14x84xf32>
    %c0_368 = arith.constant 0 : index
    %c1_369 = arith.constant 1 : index
    %c0_370 = arith.constant 0 : index
    %c0_371 = arith.constant 0 : index
    %335 = vector.load %arg2[%c0_368, %c1_369, %c0_370, %c0_371] : memref<2x5x32x84xbf16, #tpu.memory_space<vmem>>, vector<1x1x32x84xbf16>
    %336 = vector.shape_cast %335 : vector<1x1x32x84xbf16> to vector<32x84xbf16>
    %cst_372 = arith.constant dense<0.000000e+00> : vector<14x84xf32>
    %337 = tpu.matmul %280, %336, %cst_372 {dimension_numbers = #tpu.dot_dimension_numbers<[1], [0], [0], [1], [0, 0, 1, 1], [], []>} : vector<14x32xbf16>, vector<32x84xbf16>, vector<14x84xf32> -> vector<14x84xf32>
    %338 = arith.addf %334, %337 : vector<14x84xf32>
    %c0_373 = arith.constant 0 : index
    %c2_374 = arith.constant 2 : index
    %c0_375 = arith.constant 0 : index
    %c0_376 = arith.constant 0 : index
    %339 = vector.load %arg2[%c0_373, %c2_374, %c0_375, %c0_376] : memref<2x5x32x84xbf16, #tpu.memory_space<vmem>>, vector<1x1x32x84xbf16>
    %340 = vector.shape_cast %339 : vector<1x1x32x84xbf16> to vector<32x84xbf16>
    %cst_377 = arith.constant dense<0.000000e+00> : vector<14x84xf32>
    %341 = tpu.matmul %284, %340, %cst_377 {dimension_numbers = #tpu.dot_dimension_numbers<[1], [0], [0], [1], [0, 0, 1, 1], [], []>} : vector<14x32xbf16>, vector<32x84xbf16>, vector<14x84xf32> -> vector<14x84xf32>
    %342 = arith.addf %338, %341 : vector<14x84xf32>
    %c0_378 = arith.constant 0 : index
    %c3_379 = arith.constant 3 : index
    %c0_380 = arith.constant 0 : index
    %c0_381 = arith.constant 0 : index
    %343 = vector.load %arg2[%c0_378, %c3_379, %c0_380, %c0_381] : memref<2x5x32x84xbf16, #tpu.memory_space<vmem>>, vector<1x1x32x84xbf16>
    %344 = vector.shape_cast %343 : vector<1x1x32x84xbf16> to vector<32x84xbf16>
    %cst_382 = arith.constant dense<0.000000e+00> : vector<14x84xf32>
    %345 = tpu.matmul %288, %344, %cst_382 {dimension_numbers = #tpu.dot_dimension_numbers<[1], [0], [0], [1], [0, 0, 1, 1], [], []>} : vector<14x32xbf16>, vector<32x84xbf16>, vector<14x84xf32> -> vector<14x84xf32>
    %346 = arith.addf %342, %345 : vector<14x84xf32>
    %c0_383 = arith.constant 0 : index
    %c4_384 = arith.constant 4 : index
    %c0_385 = arith.constant 0 : index
    %c0_386 = arith.constant 0 : index
    %347 = vector.load %arg2[%c0_383, %c4_384, %c0_385, %c0_386] : memref<2x5x32x84xbf16, #tpu.memory_space<vmem>>, vector<1x1x32x84xbf16>
    %348 = vector.shape_cast %347 : vector<1x1x32x84xbf16> to vector<32x84xbf16>
    %cst_387 = arith.constant dense<0.000000e+00> : vector<14x84xf32>
    %349 = tpu.matmul %292, %348, %cst_387 {dimension_numbers = #tpu.dot_dimension_numbers<[1], [0], [0], [1], [0, 0, 1, 1], [], []>} : vector<14x32xbf16>, vector<32x84xbf16>, vector<14x84xf32> -> vector<14x84xf32>
    %350 = arith.addf %346, %349 : vector<14x84xf32>
    %351 = arith.maximumf %331, %350 : vector<14x84xf32>
    %c1_388 = arith.constant 1 : index
    %c0_389 = arith.constant 0 : index
    %c0_390 = arith.constant 0 : index
    %c0_391 = arith.constant 0 : index
    %352 = vector.load %arg2[%c1_388, %c0_389, %c0_390, %c0_391] : memref<2x5x32x84xbf16, #tpu.memory_space<vmem>>, vector<1x1x32x84xbf16>
    %353 = vector.shape_cast %352 : vector<1x1x32x84xbf16> to vector<32x84xbf16>
    %cst_392 = arith.constant dense<0.000000e+00> : vector<14x84xf32>
    %354 = tpu.matmul %276, %353, %cst_392 {dimension_numbers = #tpu.dot_dimension_numbers<[1], [0], [0], [1], [0, 0, 1, 1], [], []>} : vector<14x32xbf16>, vector<32x84xbf16>, vector<14x84xf32> -> vector<14x84xf32>
    %c1_393 = arith.constant 1 : index
    %c1_394 = arith.constant 1 : index
    %c0_395 = arith.constant 0 : index
    %c0_396 = arith.constant 0 : index
    %355 = vector.load %arg2[%c1_393, %c1_394, %c0_395, %c0_396] : memref<2x5x32x84xbf16, #tpu.memory_space<vmem>>, vector<1x1x32x84xbf16>
    %356 = vector.shape_cast %355 : vector<1x1x32x84xbf16> to vector<32x84xbf16>
    %cst_397 = arith.constant dense<0.000000e+00> : vector<14x84xf32>
    %357 = tpu.matmul %280, %356, %cst_397 {dimension_numbers = #tpu.dot_dimension_numbers<[1], [0], [0], [1], [0, 0, 1, 1], [], []>} : vector<14x32xbf16>, vector<32x84xbf16>, vector<14x84xf32> -> vector<14x84xf32>
    %358 = arith.addf %354, %357 : vector<14x84xf32>
    %c1_398 = arith.constant 1 : index
    %c2_399 = arith.constant 2 : index
    %c0_400 = arith.constant 0 : index
    %c0_401 = arith.constant 0 : index
    %359 = vector.load %arg2[%c1_398, %c2_399, %c0_400, %c0_401] : memref<2x5x32x84xbf16, #tpu.memory_space<vmem>>, vector<1x1x32x84xbf16>
    %360 = vector.shape_cast %359 : vector<1x1x32x84xbf16> to vector<32x84xbf16>
    %cst_402 = arith.constant dense<0.000000e+00> : vector<14x84xf32>
    %361 = tpu.matmul %284, %360, %cst_402 {dimension_numbers = #tpu.dot_dimension_numbers<[1], [0], [0], [1], [0, 0, 1, 1], [], []>} : vector<14x32xbf16>, vector<32x84xbf16>, vector<14x84xf32> -> vector<14x84xf32>
    %362 = arith.addf %358, %361 : vector<14x84xf32>
    %c1_403 = arith.constant 1 : index
    %c3_404 = arith.constant 3 : index
    %c0_405 = arith.constant 0 : index
    %c0_406 = arith.constant 0 : index
    %363 = vector.load %arg2[%c1_403, %c3_404, %c0_405, %c0_406] : memref<2x5x32x84xbf16, #tpu.memory_space<vmem>>, vector<1x1x32x84xbf16>
    %364 = vector.shape_cast %363 : vector<1x1x32x84xbf16> to vector<32x84xbf16>
    %cst_407 = arith.constant dense<0.000000e+00> : vector<14x84xf32>
    %365 = tpu.matmul %288, %364, %cst_407 {dimension_numbers = #tpu.dot_dimension_numbers<[1], [0], [0], [1], [0, 0, 1, 1], [], []>} : vector<14x32xbf16>, vector<32x84xbf16>, vector<14x84xf32> -> vector<14x84xf32>
    %366 = arith.addf %362, %365 : vector<14x84xf32>
    %c1_408 = arith.constant 1 : index
    %c4_409 = arith.constant 4 : index
    %c0_410 = arith.constant 0 : index
    %c0_411 = arith.constant 0 : index
    %367 = vector.load %arg2[%c1_408, %c4_409, %c0_410, %c0_411] : memref<2x5x32x84xbf16, #tpu.memory_space<vmem>>, vector<1x1x32x84xbf16>
    %368 = vector.shape_cast %367 : vector<1x1x32x84xbf16> to vector<32x84xbf16>
    %cst_412 = arith.constant dense<0.000000e+00> : vector<14x84xf32>
    %369 = tpu.matmul %292, %368, %cst_412 {dimension_numbers = #tpu.dot_dimension_numbers<[1], [0], [0], [1], [0, 0, 1, 1], [], []>} : vector<14x32xbf16>, vector<32x84xbf16>, vector<14x84xf32> -> vector<14x84xf32>
    %370 = arith.addf %366, %369 : vector<14x84xf32>
    %371 = arith.maximumf %351, %370 : vector<14x84xf32>
    %c0_413 = arith.constant 0 : index
    %c0_414 = arith.constant 0 : index
    %372 = vector.load %arg3[%c0_413, %c0_414] : memref<1x84xf32, #tpu.memory_space<vmem>>, vector<1x84xf32>
    %373 = vector.broadcast %372 : vector<1x84xf32> to vector<14x84xf32>
    %374 = arith.addf %371, %373 : vector<14x84xf32>
    %cst_415 = arith.constant 0.000000e+00 : f32
    %375 = vector.broadcast %cst_415 : f32 to vector<14x84xf32>
    %376 = arith.maximumf %374, %375 : vector<14x84xf32>
    %377 = arith.truncf %376 : vector<14x84xf32> to vector<14x84xbf16>
    %c0_416 = arith.constant 0 : index
    %c0_417 = arith.constant 0 : index
    %c0_418 = arith.constant 0 : index
    %378 = vector.load %arg4[%c0_416, %c0_417, %c0_418] : memref<6x5x14xbf16, #tpu.memory_space<vmem>>, vector<1x5x14xbf16>
    %379 = vector.shape_cast %378 : vector<1x5x14xbf16> to vector<5x14xbf16>
    %cst_419 = arith.constant dense<0.000000e+00> : vector<5x84xf32>
    %380 = tpu.matmul %379, %377, %cst_419 {dimension_numbers = #tpu.dot_dimension_numbers<[1], [0], [0], [1], [0, 0, 1, 1], [], []>} : vector<5x14xbf16>, vector<14x84xbf16>, vector<5x84xf32> -> vector<5x84xf32>
    %381 = arith.truncf %380 : vector<5x84xf32> to vector<5x84xbf16>
    %c1_420 = arith.constant 1 : index
    %c0_421 = arith.constant 0 : index
    %c0_422 = arith.constant 0 : index
    %382 = vector.load %arg4[%c1_420, %c0_421, %c0_422] : memref<6x5x14xbf16, #tpu.memory_space<vmem>>, vector<1x5x14xbf16>
    %383 = vector.shape_cast %382 : vector<1x5x14xbf16> to vector<5x14xbf16>
    %cst_423 = arith.constant dense<0.000000e+00> : vector<5x84xf32>
    %384 = tpu.matmul %383, %377, %cst_423 {dimension_numbers = #tpu.dot_dimension_numbers<[1], [0], [0], [1], [0, 0, 1, 1], [], []>} : vector<5x14xbf16>, vector<14x84xbf16>, vector<5x84xf32> -> vector<5x84xf32>
    %385 = arith.truncf %384 : vector<5x84xf32> to vector<5x84xbf16>
    %c2_424 = arith.constant 2 : index
    %c0_425 = arith.constant 0 : index
    %c0_426 = arith.constant 0 : index
    %386 = vector.load %arg4[%c2_424, %c0_425, %c0_426] : memref<6x5x14xbf16, #tpu.memory_space<vmem>>, vector<1x5x14xbf16>
    %387 = vector.shape_cast %386 : vector<1x5x14xbf16> to vector<5x14xbf16>
    %cst_427 = arith.constant dense<0.000000e+00> : vector<5x84xf32>
    %388 = tpu.matmul %387, %377, %cst_427 {dimension_numbers = #tpu.dot_dimension_numbers<[1], [0], [0], [1], [0, 0, 1, 1], [], []>} : vector<5x14xbf16>, vector<14x84xbf16>, vector<5x84xf32> -> vector<5x84xf32>
    %389 = arith.truncf %388 : vector<5x84xf32> to vector<5x84xbf16>
    %c3_428 = arith.constant 3 : index
    %c0_429 = arith.constant 0 : index
    %c0_430 = arith.constant 0 : index
    %390 = vector.load %arg4[%c3_428, %c0_429, %c0_430] : memref<6x5x14xbf16, #tpu.memory_space<vmem>>, vector<1x5x14xbf16>
    %391 = vector.shape_cast %390 : vector<1x5x14xbf16> to vector<5x14xbf16>
    %cst_431 = arith.constant dense<0.000000e+00> : vector<5x84xf32>
    %392 = tpu.matmul %391, %377, %cst_431 {dimension_numbers = #tpu.dot_dimension_numbers<[1], [0], [0], [1], [0, 0, 1, 1], [], []>} : vector<5x14xbf16>, vector<14x84xbf16>, vector<5x84xf32> -> vector<5x84xf32>
    %393 = arith.truncf %392 : vector<5x84xf32> to vector<5x84xbf16>
    %c4_432 = arith.constant 4 : index
    %c0_433 = arith.constant 0 : index
    %c0_434 = arith.constant 0 : index
    %394 = vector.load %arg4[%c4_432, %c0_433, %c0_434] : memref<6x5x14xbf16, #tpu.memory_space<vmem>>, vector<1x5x14xbf16>
    %395 = vector.shape_cast %394 : vector<1x5x14xbf16> to vector<5x14xbf16>
    %cst_435 = arith.constant dense<0.000000e+00> : vector<5x84xf32>
    %396 = tpu.matmul %395, %377, %cst_435 {dimension_numbers = #tpu.dot_dimension_numbers<[1], [0], [0], [1], [0, 0, 1, 1], [], []>} : vector<5x14xbf16>, vector<14x84xbf16>, vector<5x84xf32> -> vector<5x84xf32>
    %397 = arith.truncf %396 : vector<5x84xf32> to vector<5x84xbf16>
    %c5_436 = arith.constant 5 : index
    %c0_437 = arith.constant 0 : index
    %c0_438 = arith.constant 0 : index
    %398 = vector.load %arg4[%c5_436, %c0_437, %c0_438] : memref<6x5x14xbf16, #tpu.memory_space<vmem>>, vector<1x5x14xbf16>
    %399 = vector.shape_cast %398 : vector<1x5x14xbf16> to vector<5x14xbf16>
    %cst_439 = arith.constant dense<0.000000e+00> : vector<5x84xf32>
    %400 = tpu.matmul %399, %377, %cst_439 {dimension_numbers = #tpu.dot_dimension_numbers<[1], [0], [0], [1], [0, 0, 1, 1], [], []>} : vector<5x14xbf16>, vector<14x84xbf16>, vector<5x84xf32> -> vector<5x84xf32>
    %401 = arith.truncf %400 : vector<5x84xf32> to vector<5x84xbf16>
    %c0_440 = arith.constant 0 : index
    %c0_441 = arith.constant 0 : index
    %c0_442 = arith.constant 0 : index
    %c0_443 = arith.constant 0 : index
    %402 = vector.load %arg5[%c0_440, %c0_441, %c0_442, %c0_443] : memref<2x5x84x80xbf16, #tpu.memory_space<vmem>>, vector<1x1x84x80xbf16>
    %403 = vector.shape_cast %402 : vector<1x1x84x80xbf16> to vector<84x80xbf16>
    %cst_444 = arith.constant dense<0.000000e+00> : vector<5x80xf32>
    %404 = tpu.matmul %381, %403, %cst_444 {dimension_numbers = #tpu.dot_dimension_numbers<[1], [0], [0], [1], [0, 0, 1, 1], [], []>} : vector<5x84xbf16>, vector<84x80xbf16>, vector<5x80xf32> -> vector<5x80xf32>
    %c0_445 = arith.constant 0 : index
    %c1_446 = arith.constant 1 : index
    %c0_447 = arith.constant 0 : index
    %c0_448 = arith.constant 0 : index
    %405 = vector.load %arg5[%c0_445, %c1_446, %c0_447, %c0_448] : memref<2x5x84x80xbf16, #tpu.memory_space<vmem>>, vector<1x1x84x80xbf16>
    %406 = vector.shape_cast %405 : vector<1x1x84x80xbf16> to vector<84x80xbf16>
    %cst_449 = arith.constant dense<0.000000e+00> : vector<5x80xf32>
    %407 = tpu.matmul %385, %406, %cst_449 {dimension_numbers = #tpu.dot_dimension_numbers<[1], [0], [0], [1], [0, 0, 1, 1], [], []>} : vector<5x84xbf16>, vector<84x80xbf16>, vector<5x80xf32> -> vector<5x80xf32>
    %408 = arith.addf %404, %407 : vector<5x80xf32>
    %c0_450 = arith.constant 0 : index
    %c2_451 = arith.constant 2 : index
    %c0_452 = arith.constant 0 : index
    %c0_453 = arith.constant 0 : index
    %409 = vector.load %arg5[%c0_450, %c2_451, %c0_452, %c0_453] : memref<2x5x84x80xbf16, #tpu.memory_space<vmem>>, vector<1x1x84x80xbf16>
    %410 = vector.shape_cast %409 : vector<1x1x84x80xbf16> to vector<84x80xbf16>
    %cst_454 = arith.constant dense<0.000000e+00> : vector<5x80xf32>
    %411 = tpu.matmul %389, %410, %cst_454 {dimension_numbers = #tpu.dot_dimension_numbers<[1], [0], [0], [1], [0, 0, 1, 1], [], []>} : vector<5x84xbf16>, vector<84x80xbf16>, vector<5x80xf32> -> vector<5x80xf32>
    %412 = arith.addf %408, %411 : vector<5x80xf32>
    %c0_455 = arith.constant 0 : index
    %c3_456 = arith.constant 3 : index
    %c0_457 = arith.constant 0 : index
    %c0_458 = arith.constant 0 : index
    %413 = vector.load %arg5[%c0_455, %c3_456, %c0_457, %c0_458] : memref<2x5x84x80xbf16, #tpu.memory_space<vmem>>, vector<1x1x84x80xbf16>
    %414 = vector.shape_cast %413 : vector<1x1x84x80xbf16> to vector<84x80xbf16>
    %cst_459 = arith.constant dense<0.000000e+00> : vector<5x80xf32>
    %415 = tpu.matmul %393, %414, %cst_459 {dimension_numbers = #tpu.dot_dimension_numbers<[1], [0], [0], [1], [0, 0, 1, 1], [], []>} : vector<5x84xbf16>, vector<84x80xbf16>, vector<5x80xf32> -> vector<5x80xf32>
    %416 = arith.addf %412, %415 : vector<5x80xf32>
    %c0_460 = arith.constant 0 : index
    %c4_461 = arith.constant 4 : index
    %c0_462 = arith.constant 0 : index
    %c0_463 = arith.constant 0 : index
    %417 = vector.load %arg5[%c0_460, %c4_461, %c0_462, %c0_463] : memref<2x5x84x80xbf16, #tpu.memory_space<vmem>>, vector<1x1x84x80xbf16>
    %418 = vector.shape_cast %417 : vector<1x1x84x80xbf16> to vector<84x80xbf16>
    %cst_464 = arith.constant dense<0.000000e+00> : vector<5x80xf32>
    %419 = tpu.matmul %397, %418, %cst_464 {dimension_numbers = #tpu.dot_dimension_numbers<[1], [0], [0], [1], [0, 0, 1, 1], [], []>} : vector<5x84xbf16>, vector<84x80xbf16>, vector<5x80xf32> -> vector<5x80xf32>
    %420 = arith.addf %416, %419 : vector<5x80xf32>
    %c1_465 = arith.constant 1 : index
    %c0_466 = arith.constant 0 : index
    %c0_467 = arith.constant 0 : index
    %c0_468 = arith.constant 0 : index
    %421 = vector.load %arg5[%c1_465, %c0_466, %c0_467, %c0_468] : memref<2x5x84x80xbf16, #tpu.memory_space<vmem>>, vector<1x1x84x80xbf16>
    %422 = vector.shape_cast %421 : vector<1x1x84x80xbf16> to vector<84x80xbf16>
    %cst_469 = arith.constant dense<0.000000e+00> : vector<5x80xf32>
    %423 = tpu.matmul %381, %422, %cst_469 {dimension_numbers = #tpu.dot_dimension_numbers<[1], [0], [0], [1], [0, 0, 1, 1], [], []>} : vector<5x84xbf16>, vector<84x80xbf16>, vector<5x80xf32> -> vector<5x80xf32>
    %c1_470 = arith.constant 1 : index
    %c1_471 = arith.constant 1 : index
    %c0_472 = arith.constant 0 : index
    %c0_473 = arith.constant 0 : index
    %424 = vector.load %arg5[%c1_470, %c1_471, %c0_472, %c0_473] : memref<2x5x84x80xbf16, #tpu.memory_space<vmem>>, vector<1x1x84x80xbf16>
    %425 = vector.shape_cast %424 : vector<1x1x84x80xbf16> to vector<84x80xbf16>
    %cst_474 = arith.constant dense<0.000000e+00> : vector<5x80xf32>
    %426 = tpu.matmul %385, %425, %cst_474 {dimension_numbers = #tpu.dot_dimension_numbers<[1], [0], [0], [1], [0, 0, 1, 1], [], []>} : vector<5x84xbf16>, vector<84x80xbf16>, vector<5x80xf32> -> vector<5x80xf32>
    %427 = arith.addf %423, %426 : vector<5x80xf32>
    %c1_475 = arith.constant 1 : index
    %c2_476 = arith.constant 2 : index
    %c0_477 = arith.constant 0 : index
    %c0_478 = arith.constant 0 : index
    %428 = vector.load %arg5[%c1_475, %c2_476, %c0_477, %c0_478] : memref<2x5x84x80xbf16, #tpu.memory_space<vmem>>, vector<1x1x84x80xbf16>
    %429 = vector.shape_cast %428 : vector<1x1x84x80xbf16> to vector<84x80xbf16>
    %cst_479 = arith.constant dense<0.000000e+00> : vector<5x80xf32>
    %430 = tpu.matmul %389, %429, %cst_479 {dimension_numbers = #tpu.dot_dimension_numbers<[1], [0], [0], [1], [0, 0, 1, 1], [], []>} : vector<5x84xbf16>, vector<84x80xbf16>, vector<5x80xf32> -> vector<5x80xf32>
    %431 = arith.addf %427, %430 : vector<5x80xf32>
    %c1_480 = arith.constant 1 : index
    %c3_481 = arith.constant 3 : index
    %c0_482 = arith.constant 0 : index
    %c0_483 = arith.constant 0 : index
    %432 = vector.load %arg5[%c1_480, %c3_481, %c0_482, %c0_483] : memref<2x5x84x80xbf16, #tpu.memory_space<vmem>>, vector<1x1x84x80xbf16>
    %433 = vector.shape_cast %432 : vector<1x1x84x80xbf16> to vector<84x80xbf16>
    %cst_484 = arith.constant dense<0.000000e+00> : vector<5x80xf32>
    %434 = tpu.matmul %393, %433, %cst_484 {dimension_numbers = #tpu.dot_dimension_numbers<[1], [0], [0], [1], [0, 0, 1, 1], [], []>} : vector<5x84xbf16>, vector<84x80xbf16>, vector<5x80xf32> -> vector<5x80xf32>
    %435 = arith.addf %431, %434 : vector<5x80xf32>
    %c1_485 = arith.constant 1 : index
    %c4_486 = arith.constant 4 : index
    %c0_487 = arith.constant 0 : index
    %c0_488 = arith.constant 0 : index
    %436 = vector.load %arg5[%c1_485, %c4_486, %c0_487, %c0_488] : memref<2x5x84x80xbf16, #tpu.memory_space<vmem>>, vector<1x1x84x80xbf16>
    %437 = vector.shape_cast %436 : vector<1x1x84x80xbf16> to vector<84x80xbf16>
    %cst_489 = arith.constant dense<0.000000e+00> : vector<5x80xf32>
    %438 = tpu.matmul %397, %437, %cst_489 {dimension_numbers = #tpu.dot_dimension_numbers<[1], [0], [0], [1], [0, 0, 1, 1], [], []>} : vector<5x84xbf16>, vector<84x80xbf16>, vector<5x80xf32> -> vector<5x80xf32>
    %439 = arith.addf %435, %438 : vector<5x80xf32>
    %440 = arith.maximumf %420, %439 : vector<5x80xf32>
    %c0_490 = arith.constant 0 : index
    %c0_491 = arith.constant 0 : index
    %c0_492 = arith.constant 0 : index
    %c0_493 = arith.constant 0 : index
    %441 = vector.load %arg5[%c0_490, %c0_491, %c0_492, %c0_493] : memref<2x5x84x80xbf16, #tpu.memory_space<vmem>>, vector<1x1x84x80xbf16>
    %442 = vector.shape_cast %441 : vector<1x1x84x80xbf16> to vector<84x80xbf16>
    %cst_494 = arith.constant dense<0.000000e+00> : vector<5x80xf32>
    %443 = tpu.matmul %385, %442, %cst_494 {dimension_numbers = #tpu.dot_dimension_numbers<[1], [0], [0], [1], [0, 0, 1, 1], [], []>} : vector<5x84xbf16>, vector<84x80xbf16>, vector<5x80xf32> -> vector<5x80xf32>
    %c0_495 = arith.constant 0 : index
    %c1_496 = arith.constant 1 : index
    %c0_497 = arith.constant 0 : index
    %c0_498 = arith.constant 0 : index
    %444 = vector.load %arg5[%c0_495, %c1_496, %c0_497, %c0_498] : memref<2x5x84x80xbf16, #tpu.memory_space<vmem>>, vector<1x1x84x80xbf16>
    %445 = vector.shape_cast %444 : vector<1x1x84x80xbf16> to vector<84x80xbf16>
    %cst_499 = arith.constant dense<0.000000e+00> : vector<5x80xf32>
    %446 = tpu.matmul %389, %445, %cst_499 {dimension_numbers = #tpu.dot_dimension_numbers<[1], [0], [0], [1], [0, 0, 1, 1], [], []>} : vector<5x84xbf16>, vector<84x80xbf16>, vector<5x80xf32> -> vector<5x80xf32>
    %447 = arith.addf %443, %446 : vector<5x80xf32>
    %c0_500 = arith.constant 0 : index
    %c2_501 = arith.constant 2 : index
    %c0_502 = arith.constant 0 : index
    %c0_503 = arith.constant 0 : index
    %448 = vector.load %arg5[%c0_500, %c2_501, %c0_502, %c0_503] : memref<2x5x84x80xbf16, #tpu.memory_space<vmem>>, vector<1x1x84x80xbf16>
    %449 = vector.shape_cast %448 : vector<1x1x84x80xbf16> to vector<84x80xbf16>
    %cst_504 = arith.constant dense<0.000000e+00> : vector<5x80xf32>
    %450 = tpu.matmul %393, %449, %cst_504 {dimension_numbers = #tpu.dot_dimension_numbers<[1], [0], [0], [1], [0, 0, 1, 1], [], []>} : vector<5x84xbf16>, vector<84x80xbf16>, vector<5x80xf32> -> vector<5x80xf32>
    %451 = arith.addf %447, %450 : vector<5x80xf32>
    %c0_505 = arith.constant 0 : index
    %c3_506 = arith.constant 3 : index
    %c0_507 = arith.constant 0 : index
    %c0_508 = arith.constant 0 : index
    %452 = vector.load %arg5[%c0_505, %c3_506, %c0_507, %c0_508] : memref<2x5x84x80xbf16, #tpu.memory_space<vmem>>, vector<1x1x84x80xbf16>
    %453 = vector.shape_cast %452 : vector<1x1x84x80xbf16> to vector<84x80xbf16>
    %cst_509 = arith.constant dense<0.000000e+00> : vector<5x80xf32>
    %454 = tpu.matmul %397, %453, %cst_509 {dimension_numbers = #tpu.dot_dimension_numbers<[1], [0], [0], [1], [0, 0, 1, 1], [], []>} : vector<5x84xbf16>, vector<84x80xbf16>, vector<5x80xf32> -> vector<5x80xf32>
    %455 = arith.addf %451, %454 : vector<5x80xf32>
    %c0_510 = arith.constant 0 : index
    %c4_511 = arith.constant 4 : index
    %c0_512 = arith.constant 0 : index
    %c0_513 = arith.constant 0 : index
    %456 = vector.load %arg5[%c0_510, %c4_511, %c0_512, %c0_513] : memref<2x5x84x80xbf16, #tpu.memory_space<vmem>>, vector<1x1x84x80xbf16>
    %457 = vector.shape_cast %456 : vector<1x1x84x80xbf16> to vector<84x80xbf16>
    %cst_514 = arith.constant dense<0.000000e+00> : vector<5x80xf32>
    %458 = tpu.matmul %401, %457, %cst_514 {dimension_numbers = #tpu.dot_dimension_numbers<[1], [0], [0], [1], [0, 0, 1, 1], [], []>} : vector<5x84xbf16>, vector<84x80xbf16>, vector<5x80xf32> -> vector<5x80xf32>
    %459 = arith.addf %455, %458 : vector<5x80xf32>
    %460 = arith.maximumf %440, %459 : vector<5x80xf32>
    %c1_515 = arith.constant 1 : index
    %c0_516 = arith.constant 0 : index
    %c0_517 = arith.constant 0 : index
    %c0_518 = arith.constant 0 : index
    %461 = vector.load %arg5[%c1_515, %c0_516, %c0_517, %c0_518] : memref<2x5x84x80xbf16, #tpu.memory_space<vmem>>, vector<1x1x84x80xbf16>
    %462 = vector.shape_cast %461 : vector<1x1x84x80xbf16> to vector<84x80xbf16>
    %cst_519 = arith.constant dense<0.000000e+00> : vector<5x80xf32>
    %463 = tpu.matmul %385, %462, %cst_519 {dimension_numbers = #tpu.dot_dimension_numbers<[1], [0], [0], [1], [0, 0, 1, 1], [], []>} : vector<5x84xbf16>, vector<84x80xbf16>, vector<5x80xf32> -> vector<5x80xf32>
    %c1_520 = arith.constant 1 : index
    %c1_521 = arith.constant 1 : index
    %c0_522 = arith.constant 0 : index
    %c0_523 = arith.constant 0 : index
    %464 = vector.load %arg5[%c1_520, %c1_521, %c0_522, %c0_523] : memref<2x5x84x80xbf16, #tpu.memory_space<vmem>>, vector<1x1x84x80xbf16>
    %465 = vector.shape_cast %464 : vector<1x1x84x80xbf16> to vector<84x80xbf16>
    %cst_524 = arith.constant dense<0.000000e+00> : vector<5x80xf32>
    %466 = tpu.matmul %389, %465, %cst_524 {dimension_numbers = #tpu.dot_dimension_numbers<[1], [0], [0], [1], [0, 0, 1, 1], [], []>} : vector<5x84xbf16>, vector<84x80xbf16>, vector<5x80xf32> -> vector<5x80xf32>
    %467 = arith.addf %463, %466 : vector<5x80xf32>
    %c1_525 = arith.constant 1 : index
    %c2_526 = arith.constant 2 : index
    %c0_527 = arith.constant 0 : index
    %c0_528 = arith.constant 0 : index
    %468 = vector.load %arg5[%c1_525, %c2_526, %c0_527, %c0_528] : memref<2x5x84x80xbf16, #tpu.memory_space<vmem>>, vector<1x1x84x80xbf16>
    %469 = vector.shape_cast %468 : vector<1x1x84x80xbf16> to vector<84x80xbf16>
    %cst_529 = arith.constant dense<0.000000e+00> : vector<5x80xf32>
    %470 = tpu.matmul %393, %469, %cst_529 {dimension_numbers = #tpu.dot_dimension_numbers<[1], [0], [0], [1], [0, 0, 1, 1], [], []>} : vector<5x84xbf16>, vector<84x80xbf16>, vector<5x80xf32> -> vector<5x80xf32>
    %471 = arith.addf %467, %470 : vector<5x80xf32>
    %c1_530 = arith.constant 1 : index
    %c3_531 = arith.constant 3 : index
    %c0_532 = arith.constant 0 : index
    %c0_533 = arith.constant 0 : index
    %472 = vector.load %arg5[%c1_530, %c3_531, %c0_532, %c0_533] : memref<2x5x84x80xbf16, #tpu.memory_space<vmem>>, vector<1x1x84x80xbf16>
    %473 = vector.shape_cast %472 : vector<1x1x84x80xbf16> to vector<84x80xbf16>
    %cst_534 = arith.constant dense<0.000000e+00> : vector<5x80xf32>
    %474 = tpu.matmul %397, %473, %cst_534 {dimension_numbers = #tpu.dot_dimension_numbers<[1], [0], [0], [1], [0, 0, 1, 1], [], []>} : vector<5x84xbf16>, vector<84x80xbf16>, vector<5x80xf32> -> vector<5x80xf32>
    %475 = arith.addf %471, %474 : vector<5x80xf32>
    %c1_535 = arith.constant 1 : index
    %c4_536 = arith.constant 4 : index
    %c0_537 = arith.constant 0 : index
    %c0_538 = arith.constant 0 : index
    %476 = vector.load %arg5[%c1_535, %c4_536, %c0_537, %c0_538] : memref<2x5x84x80xbf16, #tpu.memory_space<vmem>>, vector<1x1x84x80xbf16>
    %477 = vector.shape_cast %476 : vector<1x1x84x80xbf16> to vector<84x80xbf16>
    %cst_539 = arith.constant dense<0.000000e+00> : vector<5x80xf32>
    %478 = tpu.matmul %401, %477, %cst_539 {dimension_numbers = #tpu.dot_dimension_numbers<[1], [0], [0], [1], [0, 0, 1, 1], [], []>} : vector<5x84xbf16>, vector<84x80xbf16>, vector<5x80xf32> -> vector<5x80xf32>
    %479 = arith.addf %475, %478 : vector<5x80xf32>
    %480 = arith.maximumf %460, %479 : vector<5x80xf32>
    %c0_540 = arith.constant 0 : index
    %c0_541 = arith.constant 0 : index
    %481 = vector.load %arg6[%c0_540, %c0_541] : memref<1x80xf32, #tpu.memory_space<vmem>>, vector<1x80xf32>
    %482 = vector.broadcast %481 : vector<1x80xf32> to vector<5x80xf32>
    %483 = arith.addf %480, %482 : vector<5x80xf32>
    %cst_542 = arith.constant 0.000000e+00 : f32
    %484 = vector.broadcast %cst_542 : f32 to vector<5x80xf32>
    %485 = arith.maximumf %483, %484 : vector<5x80xf32>
    %486 = vector.extract_strided_slice %485 {offsets = [0, 0], sizes = [1, 80], strides = [1, 1]} : vector<5x80xf32> to vector<1x80xf32>
    %487 = arith.truncf %486 : vector<1x80xf32> to vector<1x80xbf16>
    %c0_543 = arith.constant 0 : index
    %c0_544 = arith.constant 0 : index
    %c0_545 = arith.constant 0 : index
    %488 = vector.load %arg7[%c0_543, %c0_544, %c0_545] : memref<5x80x128xbf16, #tpu.memory_space<vmem>>, vector<1x80x128xbf16>
    %489 = vector.shape_cast %488 : vector<1x80x128xbf16> to vector<80x128xbf16>
    %cst_546 = arith.constant dense<0.000000e+00> : vector<1x128xf32>
    %490 = tpu.matmul %487, %489, %cst_546 {dimension_numbers = #tpu.dot_dimension_numbers<[1], [0], [0], [1], [0, 0, 1, 1], [], []>} : vector<1x80xbf16>, vector<80x128xbf16>, vector<1x128xf32> -> vector<1x128xf32>
    %491 = vector.extract_strided_slice %485 {offsets = [1, 0], sizes = [1, 80], strides = [1, 1]} : vector<5x80xf32> to vector<1x80xf32>
    %492 = arith.truncf %491 : vector<1x80xf32> to vector<1x80xbf16>
    %c1_547 = arith.constant 1 : index
    %c0_548 = arith.constant 0 : index
    %c0_549 = arith.constant 0 : index
    %493 = vector.load %arg7[%c1_547, %c0_548, %c0_549] : memref<5x80x128xbf16, #tpu.memory_space<vmem>>, vector<1x80x128xbf16>
    %494 = vector.shape_cast %493 : vector<1x80x128xbf16> to vector<80x128xbf16>
    %cst_550 = arith.constant dense<0.000000e+00> : vector<1x128xf32>
    %495 = tpu.matmul %492, %494, %cst_550 {dimension_numbers = #tpu.dot_dimension_numbers<[1], [0], [0], [1], [0, 0, 1, 1], [], []>} : vector<1x80xbf16>, vector<80x128xbf16>, vector<1x128xf32> -> vector<1x128xf32>
    %496 = arith.addf %490, %495 : vector<1x128xf32>
    %497 = vector.extract_strided_slice %485 {offsets = [2, 0], sizes = [1, 80], strides = [1, 1]} : vector<5x80xf32> to vector<1x80xf32>
    %498 = arith.truncf %497 : vector<1x80xf32> to vector<1x80xbf16>
    %c2_551 = arith.constant 2 : index
    %c0_552 = arith.constant 0 : index
    %c0_553 = arith.constant 0 : index
    %499 = vector.load %arg7[%c2_551, %c0_552, %c0_553] : memref<5x80x128xbf16, #tpu.memory_space<vmem>>, vector<1x80x128xbf16>
    %500 = vector.shape_cast %499 : vector<1x80x128xbf16> to vector<80x128xbf16>
    %cst_554 = arith.constant dense<0.000000e+00> : vector<1x128xf32>
    %501 = tpu.matmul %498, %500, %cst_554 {dimension_numbers = #tpu.dot_dimension_numbers<[1], [0], [0], [1], [0, 0, 1, 1], [], []>} : vector<1x80xbf16>, vector<80x128xbf16>, vector<1x128xf32> -> vector<1x128xf32>
    %502 = arith.addf %496, %501 : vector<1x128xf32>
    %503 = vector.extract_strided_slice %485 {offsets = [3, 0], sizes = [1, 80], strides = [1, 1]} : vector<5x80xf32> to vector<1x80xf32>
    %504 = arith.truncf %503 : vector<1x80xf32> to vector<1x80xbf16>
    %c3_555 = arith.constant 3 : index
    %c0_556 = arith.constant 0 : index
    %c0_557 = arith.constant 0 : index
    %505 = vector.load %arg7[%c3_555, %c0_556, %c0_557] : memref<5x80x128xbf16, #tpu.memory_space<vmem>>, vector<1x80x128xbf16>
    %506 = vector.shape_cast %505 : vector<1x80x128xbf16> to vector<80x128xbf16>
    %cst_558 = arith.constant dense<0.000000e+00> : vector<1x128xf32>
    %507 = tpu.matmul %504, %506, %cst_558 {dimension_numbers = #tpu.dot_dimension_numbers<[1], [0], [0], [1], [0, 0, 1, 1], [], []>} : vector<1x80xbf16>, vector<80x128xbf16>, vector<1x128xf32> -> vector<1x128xf32>
    %508 = arith.addf %502, %507 : vector<1x128xf32>
    %509 = vector.extract_strided_slice %485 {offsets = [4, 0], sizes = [1, 80], strides = [1, 1]} : vector<5x80xf32> to vector<1x80xf32>
    %510 = arith.truncf %509 : vector<1x80xf32> to vector<1x80xbf16>
    %c4_559 = arith.constant 4 : index
    %c0_560 = arith.constant 0 : index
    %c0_561 = arith.constant 0 : index
    %511 = vector.load %arg7[%c4_559, %c0_560, %c0_561] : memref<5x80x128xbf16, #tpu.memory_space<vmem>>, vector<1x80x128xbf16>
    %512 = vector.shape_cast %511 : vector<1x80x128xbf16> to vector<80x128xbf16>
    %cst_562 = arith.constant dense<0.000000e+00> : vector<1x128xf32>
    %513 = tpu.matmul %510, %512, %cst_562 {dimension_numbers = #tpu.dot_dimension_numbers<[1], [0], [0], [1], [0, 0, 1, 1], [], []>} : vector<1x80xbf16>, vector<80x128xbf16>, vector<1x128xf32> -> vector<1x128xf32>
    %514 = arith.addf %508, %513 : vector<1x128xf32>
    %c0_563 = arith.constant 0 : index
    %c0_564 = arith.constant 0 : index
    %515 = vector.load %arg8[%c0_563, %c0_564] : memref<1x128xf32, #tpu.memory_space<vmem>>, vector<1x128xf32>
    %516 = arith.addf %514, %515 : vector<1x128xf32>
    %cst_565 = arith.constant 0.000000e+00 : f32
    %517 = vector.broadcast %cst_565 : f32 to vector<1x128xf32>
    %518 = arith.maximumf %516, %517 : vector<1x128xf32>
    %519 = arith.truncf %518 : vector<1x128xf32> to vector<1x128xbf16>
    %c0_566 = arith.constant 0 : index
    %c0_567 = arith.constant 0 : index
    %520 = vector.load %arg9[%c0_566, %c0_567] : memref<128x128xbf16, #tpu.memory_space<vmem>>, vector<128x128xbf16>
    %cst_568 = arith.constant dense<0.000000e+00> : vector<1x128xf32>
    %521 = tpu.matmul %519, %520, %cst_568 {dimension_numbers = #tpu.dot_dimension_numbers<[1], [0], [0], [1], [0, 0, 1, 1], [], []>} : vector<1x128xbf16>, vector<128x128xbf16>, vector<1x128xf32> -> vector<1x128xf32>
    %c0_569 = arith.constant 0 : index
    %c0_570 = arith.constant 0 : index
    %522 = vector.load %arg10[%c0_569, %c0_570] : memref<1x128xf32, #tpu.memory_space<vmem>>, vector<1x128xf32>
    %523 = arith.addf %521, %522 : vector<1x128xf32>
    %cst_571 = arith.constant 0.000000e+00 : f32
    %524 = vector.broadcast %cst_571 : f32 to vector<1x128xf32>
    %525 = arith.maximumf %523, %524 : vector<1x128xf32>
    %526 = arith.truncf %525 : vector<1x128xf32> to vector<1x128xbf16>
    %c0_572 = arith.constant 0 : index
    %c0_573 = arith.constant 0 : index
    %527 = vector.load %arg11[%c0_572, %c0_573] : memref<128x128xbf16, #tpu.memory_space<vmem>>, vector<128x128xbf16>
    %cst_574 = arith.constant dense<0.000000e+00> : vector<1x128xf32>
    %528 = tpu.matmul %526, %527, %cst_574 {dimension_numbers = #tpu.dot_dimension_numbers<[1], [0], [0], [1], [0, 0, 1, 1], [], []>} : vector<1x128xbf16>, vector<128x128xbf16>, vector<1x128xf32> -> vector<1x128xf32>
    %c0_575 = arith.constant 0 : index
    %c0_576 = arith.constant 0 : index
    %529 = vector.load %arg12[%c0_575, %c0_576] : memref<1x128xf32, #tpu.memory_space<vmem>>, vector<1x128xf32>
    %530 = arith.addf %528, %529 : vector<1x128xf32>
    %c1_577 = arith.constant 1 : index
    %c0_578 = arith.constant 0 : index
    %531 = vector.load %arg13[%c1_577, %c0_578] : memref<2x128xf32, #tpu.memory_space<vmem>>, vector<1x128xf32>
    tpu.vector_store %arg13[%c1_577, %c0_578], %530 {strides = array<i32>} : memref<2x128xf32, #tpu.memory_space<vmem>>, vector<1x128xf32>,
    return
  }
}

</mosaic_0001>

<llo_original>
// kernel: net_forward.1
$region0: #{net_forward.1}
  #allocation0 [shape = 'u32[]', space=smem, size = 0x4, offset = 0x4, fixed_abs, tag = 'smem constant byte address 0x4 - core index']
  #allocation1 [shape = 'u32[144,128]{1,0:T(1,128)}', space=vmem, size = 0x12000, scoped, tag = 'internal scratch']
  %s0 = inlined_call_operand.vmem [shape: f32[2,32,32], index: 0, kind: input, shape index: {}]
  %s1 = inlined_call_operand.vmem [shape: bf16[6,14,32], index: 1, kind: input, shape index: {}]
  %s2 = inlined_call_operand.vmem [shape: bf16[2,5,32,84], index: 2, kind: input, shape index: {}]
  %s3 = inlined_call_operand.vmem [shape: f32[1,84], index: 3, kind: input, shape index: {}]
  %s4 = inlined_call_operand.vmem [shape: bf16[6,5,14], index: 4, kind: input, shape index: {}]
  %s5 = inlined_call_operand.vmem [shape: bf16[2,5,84,80], index: 5, kind: input, shape index: {}]
  %s6 = inlined_call_operand.vmem [shape: f32[1,80], index: 6, kind: input, shape index: {}]
  %s7 = inlined_call_operand.vmem [shape: bf16[5,80,128], index: 7, kind: input, shape index: {}]
  %s8 = inlined_call_operand.vmem [shape: f32[1,128], index: 8, kind: input, shape index: {}]
  %s9 = inlined_call_operand.vmem [shape: bf16[128,128], index: 9, kind: input, shape index: {}]
  %s10 = inlined_call_operand.vmem [shape: f32[1,128], index: 10, kind: input, shape index: {}]
  %s11 = inlined_call_operand.vmem [shape: bf16[128,128], index: 11, kind: input, shape index: {}]
  %s12 = inlined_call_operand.vmem [shape: f32[1,128], index: 12, kind: input, shape index: {}]
  %s13 = inlined_call_operand.hbm [shape: f32[2,128], index: 13, kind: output, shape index: {}]
  %s14 = sld [smem:[#allocation0]]
  $region62: #{net_forward.1} parent=0
    _
  %s16 = ssub.s32 1, %s14
  %s17 = scalar_select 0, %s16, %s14
  $region1: #{net_forward.1} parent=0
    #allocation2 [shape = 'u8[1024]{0}', space=vmem, size = 0x400, scoped, tag = 'output window, operand 0, single buffered']
    #allocation3 [shape = 's32[1]{0}', space=sflag, size = 0x4, scoped, tag = 'scoped memory for net_forward.1']
    %18 = vsyncpa [#allocation3], 0
    // Predicated region
    $region2: #{net_forward.1} parent=1 // pred_check
      _
    $region3: #{net_forward.1} parent=1 // pred_check_branch
      %20 = sbr.rel (0) target = $region5
    $region4: #{net_forward.1} parent=1 // pred_region
      _
    $region5: #{net_forward.1} parent=1 // pred_fallthru
      _
    // Predicated region
    $region6: #{net_forward.1} parent=1 // pred_check
      _
    $region7: #{net_forward.1} parent=1 // pred_check_branch
      %22 = sbr.rel (0) target = $region9
    $region8: #{net_forward.1} parent=1 // pred_region
      _
    $region9: #{net_forward.1} parent=1 // pred_fallthru
      _
    // Predicated region
    $region10: #{net_forward.1} parent=1 // pred_check
      _
    $region11: #{net_forward.1} parent=1 // pred_check_branch
      %24 = sbr.rel (0) target = $region13
    $region12: #{net_forward.1} parent=1 // pred_region
      _
    $region13: #{net_forward.1} parent=1 // pred_fallthru
      _
    // Predicated region
    $region14: #{net_forward.1} parent=1 // pred_check
      _
    $region15: #{net_forward.1} parent=1 // pred_check_branch
      %26 = sbr.rel (0) target = $region17
    $region16: #{net_forward.1} parent=1 // pred_region
      _
    $region17: #{net_forward.1} parent=1 // pred_fallthru
      _
    // Predicated region
    $region18: #{net_forward.1} parent=1 // pred_check
      _
    $region19: #{net_forward.1} parent=1 // pred_check_branch
      %28 = sbr.rel (0) target = $region21
    $region20: #{net_forward.1} parent=1 // pred_region
      _
    $region21: #{net_forward.1} parent=1 // pred_fallthru
      _
    // Predicated region
    $region22: #{net_forward.1} parent=1 // pred_check
      _
    $region23: #{net_forward.1} parent=1 // pred_check_branch
      %30 = sbr.rel (0) target = $region25
    $region24: #{net_forward.1} parent=1 // pred_region
      _
    $region25: #{net_forward.1} parent=1 // pred_fallthru
      _
    // Predicated region
    $region26: #{net_forward.1} parent=1 // pred_check
      _
    $region27: #{net_forward.1} parent=1 // pred_check_branch
      %32 = sbr.rel (0) target = $region29
    $region28: #{net_forward.1} parent=1 // pred_region
      _
    $region29: #{net_forward.1} parent=1 // pred_fallthru
      _
    // Predicated region
    $region30: #{net_forward.1} parent=1 // pred_check
      _
    $region31: #{net_forward.1} parent=1 // pred_check_branch
      %34 = sbr.rel (0) target = $region33
    $region32: #{net_forward.1} parent=1 // pred_region
      _
    $region33: #{net_forward.1} parent=1 // pred_fallthru
      _
    // Predicated region
    $region34: #{net_forward.1} parent=1 // pred_check
      _
    $region35: #{net_forward.1} parent=1 // pred_check_branch
      %36 = sbr.rel (0) target = $region37
    $region36: #{net_forward.1} parent=1 // pred_region
      _
    $region37: #{net_forward.1} parent=1 // pred_fallthru
      _
    // Predicated region
    $region38: #{net_forward.1} parent=1 // pred_check
      _
    $region39: #{net_forward.1} parent=1 // pred_check_branch
      %38 = sbr.rel (0) target = $region41
    $region40: #{net_forward.1} parent=1 // pred_region
      _
    $region41: #{net_forward.1} parent=1 // pred_fallthru
      _
    // Predicated region
    $region42: #{net_forward.1} parent=1 // pred_check
      _
    $region43: #{net_forward.1} parent=1 // pred_check_branch
      %40 = sbr.rel (0) target = $region45
    $region44: #{net_forward.1} parent=1 // pred_region
      _
    $region45: #{net_forward.1} parent=1 // pred_fallthru
      _
    // Predicated region
    $region46: #{net_forward.1} parent=1 // pred_check
      _
    $region47: #{net_forward.1} parent=1 // pred_check_branch
      %42 = sbr.rel (0) target = $region49
    $region48: #{net_forward.1} parent=1 // pred_region
      _
    $region49: #{net_forward.1} parent=1 // pred_fallthru
      _
    // Predicated region
    $region50: #{net_forward.1} parent=1 // pred_check
      _
    $region51: #{net_forward.1} parent=1 // pred_check_branch
      %44 = sbr.rel (0) target = $region53
    $region52: #{net_forward.1} parent=1 // pred_region
      _
    $region53: #{net_forward.1} parent=1 // pred_fallthru
      _
    %v46 = vld [vmem:[%s0] sm:$0xff]
    %v47 = vld [vmem:[%s0 + $0x8] sm:$0xff]
    %v48 = vld [vmem:[%s0 + $0x10] sm:$0xff]
    %v49 = vld [vmem:[%s0 + $0x18] sm:$0xff]
    %v50 = vpack.c.bf16 %v47, %v46
    %v51 = vpack.c.bf16 %v49, %v48
    %v52 = vld [vmem:[%s1] sm:$0xf]
    %v53 = vld [vmem:[%s1 + $0x4] sm:$0x7]
    %v56 = vunpack.c.l.b16 %v52
    %v57 = vunpack.c.l.b16 %v53
    %v58 = vpack.c.b16 %v57, %v56
    %vm59 = vcmask 261120
    %v61 = vsel %vm59, %v58, 0
    %63 = vmatprep.subr.bf16.mxu0 0
    %64 = vmatpush1.bf16.msra.mxu0 0
    %65 = vmatprep.subr.bf16.mxu0 0
    %66 = vmatpush1.bf16.msra.mxu0 0
    %67 = vmatprep.subr.bf16.mxu0 0
    %68 = vmatpush1.bf16.msra.mxu0 0
    %69 = vmatprep.subr.bf16.mxu0 0
    %70 = vmatpush1.bf16.msra.mxu0 0
    %71 = vmatprep.subr.bf16.mxu0 0
    %72 = vmatpush1.bf16.msra.mxu0 0
    %73 = vmatprep.subr.bf16.mxu0 0
    %74 = vmatpush1.bf16.msra.mxu0 0
    %75 = vmatprep.subr.bf16.mxu0 0
    %76 = vmatpush1.bf16.msra.mxu0 %v51
    %77 = vmatprep.subr.bf16.mxu0 0
    %78 = vmatpush1.bf16.msra.mxu0 %v50
    %79 = vmatprep.subr.bf16.mxu0 0
    %80 = vmatpush2.bf16.msra.mxu0 0
    %81 = vmatprep.subr.bf16.mxu0 0
    %82 = vmatpush2.bf16.msra.mxu0 0
    %83 = vmatprep.subr.bf16.mxu0 0
    %84 = vmatpush2.bf16.msra.mxu0 0
    %85 = vmatprep.subr.bf16.mxu0 0
    %86 = vmatpush2.bf16.msra.mxu0 0
    %87 = vmatprep.subr.bf16.mxu0 0
    %88 = vmatpush2.bf16.msra.mxu0 0
    %89 = vmatprep.subr.bf16.mxu0 0
    %90 = vmatpush2.bf16.msra.mxu0 0
    %91 = vmatprep.subr.bf16.mxu0 0
    %92 = vmatpush2.bf16.msra.mxu0 0
    %93 = vmatprep.subr.bf16.mxu0 0
    %94 = vmatpush2.bf16.msra.mxu0 0
    %95 = vmatprep.mubr.bf16.mxu0 0
    %96 = vmatmul.mubr.bf16.gmra.mxu0 %v61
    %v97 = vpop.f32.mrf.mxu0
    %v98 = vadd.f32 0.0, %v97
    %v99 = vpop.f32.mrf.mxu0
    %v100 = vpop.f32.mrf.mxu0
    %v101 = vadd.f32 0.0, %v100
    %v102 = vpop.f32.mrf.mxu0
    %103 = vdwg.mxu0
    %v104 = vpack.c.bf16 %v101, %v98
    %s105 = scalar_lea.vmem %s1, 8
    %v106 = vld [vmem:[%s105] sm:$0xf]
    %v107 = vld [vmem:[%s105 + $0x4] sm:$0x7]
    %v110 = vunpack.c.l.b16 %v106
    %v111 = vunpack.c.l.b16 %v107
    %v112 = vpack.c.b16 %v111, %v110
    %v114 = vsel %vm59, %v112, 0
    %116 = vmatprep.subr.bf16.mxu0 0
    %117 = vmatpush1.bf16.msra.mxu0 0
    %118 = vmatprep.subr.bf16.mxu0 0
    %119 = vmatpush1.bf16.msra.mxu0 0
    %120 = vmatprep.subr.bf16.mxu0 0
    %121 = vmatpush1.bf16.msra.mxu0 0
    %122 = vmatprep.subr.bf16.mxu0 0
    %123 = vmatpush1.bf16.msra.mxu0 0
    %124 = vmatprep.subr.bf16.mxu0 0
    %125 = vmatpush1.bf16.msra.mxu0 0
    %126 = vmatprep.subr.bf16.mxu0 0
    %127 = vmatpush1.bf16.msra.mxu0 0
    %128 = vmatprep.subr.bf16.mxu0 0
    %129 = vmatpush1.bf16.msra.mxu0 %v51
    %130 = vmatprep.subr.bf16.mxu0 0
    %131 = vmatpush1.bf16.msra.mxu0 %v50
    %132 = vmatprep.subr.bf16.mxu0 0
    %133 = vmatpush2.bf16.msra.mxu0 0
    %134 = vmatprep.subr.bf16.mxu0 0
    %135 = vmatpush2.bf16.msra.mxu0 0
    %136 = vmatprep.subr.bf16.mxu0 0
    %137 = vmatpush2.bf16.msra.mxu0 0
    %138 = vmatprep.subr.bf16.mxu0 0
    %139 = vmatpush2.bf16.msra.mxu0 0
    %140 = vmatprep.subr.bf16.mxu0 0
    %141 = vmatpush2.bf16.msra.mxu0 0
    %142 = vmatprep.subr.bf16.mxu0 0
    %143 = vmatpush2.bf16.msra.mxu0 0
    %144 = vmatprep.subr.bf16.mxu0 0
    %145 = vmatpush2.bf16.msra.mxu0 0
    %146 = vmatprep.subr.bf16.mxu0 0
    %147 = vmatpush2.bf16.msra.mxu0 0
    %148 = vmatprep.mubr.bf16.mxu0 0
    %149 = vmatmul.mubr.bf16.gmra.mxu0 %v114
    %v150 = vpop.f32.mrf.mxu0
    %v151 = vadd.f32 0.0, %v150
    %v152 = vpop.f32.mrf.mxu0
    %v153 = vpop.f32.mrf.mxu0
    %v154 = vadd.f32 0.0, %v153
    %v155 = vpop.f32.mrf.mxu0
    %156 = vdwg.mxu0
    %v157 = vpack.c.bf16 %v154, %v151
    %s158 = scalar_lea.vmem %s1, 16
    %v159 = vld [vmem:[%s158] sm:$0xf]
    %v160 = vld [vmem:[%s158 + $0x4] sm:$0x7]
    %v163 = vunpack.c.l.b16 %v159
    %v164 = vunpack.c.l.b16 %v160
    %v165 = vpack.c.b16 %v164, %v163
    %v167 = vsel %vm59, %v165, 0
    %169 = vmatprep.subr.bf16.mxu0 0
    %170 = vmatpush1.bf16.msra.mxu0 0
    %171 = vmatprep.subr.bf16.mxu0 0
    %172 = vmatpush1.bf16.msra.mxu0 0
    %173 = vmatprep.subr.bf16.mxu0 0
    %174 = vmatpush1.bf16.msra.mxu0 0
    %175 = vmatprep.subr.bf16.mxu0 0
    %176 = vmatpush1.bf16.msra.mxu0 0
    %177 = vmatprep.subr.bf16.mxu0 0
    %178 = vmatpush1.bf16.msra.mxu0 0
    %179 = vmatprep.subr.bf16.mxu0 0
    %180 = vmatpush1.bf16.msra.mxu0 0
    %181 = vmatprep.subr.bf16.mxu0 0
    %182 = vmatpush1.bf16.msra.mxu0 %v51
    %183 = vmatprep.subr.bf16.mxu0 0
    %184 = vmatpush1.bf16.msra.mxu0 %v50
    %185 = vmatprep.subr.bf16.mxu0 0
    %186 = vmatpush2.bf16.msra.mxu0 0
    %187 = vmatprep.subr.bf16.mxu0 0
    %188 = vmatpush2.bf16.msra.mxu0 0
    %189 = vmatprep.subr.bf16.mxu0 0
    %190 = vmatpush2.bf16.msra.mxu0 0
    %191 = vmatprep.subr.bf16.mxu0 0
    %192 = vmatpush2.bf16.msra.mxu0 0
    %193 = vmatprep.subr.bf16.mxu0 0
    %194 = vmatpush2.bf16.msra.mxu0 0
    %195 = vmatprep.subr.bf16.mxu0 0
    %196 = vmatpush2.bf16.msra.mxu0 0
    %197 = vmatprep.subr.bf16.mxu0 0
    %198 = vmatpush2.bf16.msra.mxu0 0
    %199 = vmatprep.subr.bf16.mxu0 0
    %200 = vmatpush2.bf16.msra.mxu0 0
    %201 = vmatprep.mubr.bf16.mxu0 0
    %202 = vmatmul.mubr.bf16.gmra.mxu0 %v167
    %v203 = vpop.f32.mrf.mxu0
    %v204 = vadd.f32 0.0, %v203
    %v205 = vpop.f32.mrf.mxu0
    %v206 = vpop.f32.mrf.mxu0
    %v207 = vadd.f32 0.0, %v206
    %v208 = vpop.f32.mrf.mxu0
    %209 = vdwg.mxu0
    %v210 = vpack.c.bf16 %v207, %v204
    %s211 = scalar_lea.vmem %s1, 24
    %v212 = vld [vmem:[%s211] sm:$0xf]
    %v213 = vld [vmem:[%s211 + $0x4] sm:$0x7]
    %v216 = vunpack.c.l.b16 %v212
    %v217 = vunpack.c.l.b16 %v213
    %v218 = vpack.c.b16 %v217, %v216
    %v220 = vsel %vm59, %v218, 0
    %222 = vmatprep.subr.bf16.mxu0 0
    %223 = vmatpush1.bf16.msra.mxu0 0
    %224 = vmatprep.subr.bf16.mxu0 0
    %225 = vmatpush1.bf16.msra.mxu0 0
    %226 = vmatprep.subr.bf16.mxu0 0
    %227 = vmatpush1.bf16.msra.mxu0 0
    %228 = vmatprep.subr.bf16.mxu0 0
    %229 = vmatpush1.bf16.msra.mxu0 0
    %230 = vmatprep.subr.bf16.mxu0 0
    %231 = vmatpush1.bf16.msra.mxu0 0
    %232 = vmatprep.subr.bf16.mxu0 0
    %233 = vmatpush1.bf16.msra.mxu0 0
    %234 = vmatprep.subr.bf16.mxu0 0
    %235 = vmatpush1.bf16.msra.mxu0 %v51
    %236 = vmatprep.subr.bf16.mxu0 0
    %237 = vmatpush1.bf16.msra.mxu0 %v50
    %238 = vmatprep.subr.bf16.mxu0 0
    %239 = vmatpush2.bf16.msra.mxu0 0
    %240 = vmatprep.subr.bf16.mxu0 0
    %241 = vmatpush2.bf16.msra.mxu0 0
    %242 = vmatprep.subr.bf16.mxu0 0
    %243 = vmatpush2.bf16.msra.mxu0 0
    %244 = vmatprep.subr.bf16.mxu0 0
    %245 = vmatpush2.bf16.msra.mxu0 0
    %246 = vmatprep.subr.bf16.mxu0 0
    %247 = vmatpush2.bf16.msra.mxu0 0
    %248 = vmatprep.subr.bf16.mxu0 0
    %249 = vmatpush2.bf16.msra.mxu0 0
    %250 = vmatprep.subr.bf16.mxu0 0
    %251 = vmatpush2.bf16.msra.mxu0 0
    %252 = vmatprep.subr.bf16.mxu0 0
    %253 = vmatpush2.bf16.msra.mxu0 0
    %254 = vmatprep.mubr.bf16.mxu0 0
    %255 = vmatmul.mubr.bf16.gmra.mxu0 %v220
    %v256 = vpop.f32.mrf.mxu0
    %v257 = vadd.f32 0.0, %v256
    %v258 = vpop.f32.mrf.mxu0
    %v259 = vpop.f32.mrf.mxu0
    %v260 = vadd.f32 0.0, %v259
    %v261 = vpop.f32.mrf.mxu0
    %262 = vdwg.mxu0
    %v263 = vpack.c.bf16 %v260, %v257
    %s264 = scalar_lea.vmem %s1, 32
    %v265 = vld [vmem:[%s264] sm:$0xf]
    %v266 = vld [vmem:[%s264 + $0x4] sm:$0x7]
    %v269 = vunpack.c.l.b16 %v265
    %v270 = vunpack.c.l.b16 %v266
    %v271 = vpack.c.b16 %v270, %v269
    %v273 = vsel %vm59, %v271, 0
    %275 = vmatprep.subr.bf16.mxu0 0
    %276 = vmatpush1.bf16.msra.mxu0 0
    %277 = vmatprep.subr.bf16.mxu0 0
    %278 = vmatpush1.bf16.msra.mxu0 0
    %279 = vmatprep.subr.bf16.mxu0 0
    %280 = vmatpush1.bf16.msra.mxu0 0
    %281 = vmatprep.subr.bf16.mxu0 0
    %282 = vmatpush1.bf16.msra.mxu0 0
    %283 = vmatprep.subr.bf16.mxu0 0
    %284 = vmatpush1.bf16.msra.mxu0 0
    %285 = vmatprep.subr.bf16.mxu0 0
    %286 = vmatpush1.bf16.msra.mxu0 0
    %287 = vmatprep.subr.bf16.mxu0 0
    %288 = vmatpush1.bf16.msra.mxu0 %v51
    %289 = vmatprep.subr.bf16.mxu0 0
    %290 = vmatpush1.bf16.msra.mxu0 %v50
    %291 = vmatprep.subr.bf16.mxu0 0
    %292 = vmatpush2.bf16.msra.mxu0 0
    %293 = vmatprep.subr.bf16.mxu0 0
    %294 = vmatpush2.bf16.msra.mxu0 0
    %295 = vmatprep.subr.bf16.mxu0 0
    %296 = vmatpush2.bf16.msra.mxu0 0
    %297 = vmatprep.subr.bf16.mxu0 0
    %298 = vmatpush2.bf16.msra.mxu0 0
    %299 = vmatprep.subr.bf16.mxu0 0
    %300 = vmatpush2.bf16.msra.mxu0 0
    %301 = vmatprep.subr.bf16.mxu0 0
    %302 = vmatpush2.bf16.msra.mxu0 0
    %303 = vmatprep.subr.bf16.mxu0 0
    %304 = vmatpush2.bf16.msra.mxu0 0
    %305 = vmatprep.subr.bf16.mxu0 0
    %306 = vmatpush2.bf16.msra.mxu0 0
    %307 = vmatprep.mubr.bf16.mxu0 0
    %308 = vmatmul.mubr.bf16.gmra.mxu0 %v273
    %v309 = vpop.f32.mrf.mxu0
    %v310 = vadd.f32 0.0, %v309
    %v311 = vpop.f32.mrf.mxu0
    %v312 = vpop.f32.mrf.mxu0
    %v313 = vadd.f32 0.0, %v312
    %v314 = vpop.f32.mrf.mxu0
    %315 = vdwg.mxu0
    %v316 = vpack.c.bf16 %v313, %v310
    %s317 = scalar_lea.vmem %s1, 40
    %v318 = vld [vmem:[%s317] sm:$0xf]
    %v319 = vld [vmem:[%s317 + $0x4] sm:$0x7]
    %v322 = vunpack.c.l.b16 %v318
    %v323 = vunpack.c.l.b16 %v319
    %v324 = vpack.c.b16 %v323, %v322
    %v326 = vsel %vm59, %v324, 0
    %328 = vmatprep.subr.bf16.mxu0 0
    %329 = vmatpush1.bf16.msra.mxu0 0
    %330 = vmatprep.subr.bf16.mxu0 0
    %331 = vmatpush1.bf16.msra.mxu0 0
    %332 = vmatprep.subr.bf16.mxu0 0
    %333 = vmatpush1.bf16.msra.mxu0 0
    %334 = vmatprep.subr.bf16.mxu0 0
    %335 = vmatpush1.bf16.msra.mxu0 0
    %336 = vmatprep.subr.bf16.mxu0 0
    %337 = vmatpush1.bf16.msra.mxu0 0
    %338 = vmatprep.subr.bf16.mxu0 0
    %339 = vmatpush1.bf16.msra.mxu0 0
    %340 = vmatprep.subr.bf16.mxu0 0
    %341 = vmatpush1.bf16.msra.mxu0 %v51
    %342 = vmatprep.subr.bf16.mxu0 0
    %343 = vmatpush1.bf16.msra.mxu0 %v50
    %344 = vmatprep.subr.bf16.mxu0 0
    %345 = vmatpush2.bf16.msra.mxu0 0
    %346 = vmatprep.subr.bf16.mxu0 0
    %347 = vmatpush2.bf16.msra.mxu0 0
    %348 = vmatprep.subr.bf16.mxu0 0
    %349 = vmatpush2.bf16.msra.mxu0 0
    %350 = vmatprep.subr.bf16.mxu0 0
    %351 = vmatpush2.bf16.msra.mxu0 0
    %352 = vmatprep.subr.bf16.mxu0 0
    %353 = vmatpush2.bf16.msra.mxu0 0
    %354 = vmatprep.subr.bf16.mxu0 0
    %355 = vmatpush2.bf16.msra.mxu0 0
    %356 = vmatprep.subr.bf16.mxu0 0
    %357 = vmatpush2.bf16.msra.mxu0 0
    %358 = vmatprep.subr.bf16.mxu0 0
    %359 = vmatpush2.bf16.msra.mxu0 0
    %360 = vmatprep.mubr.bf16.mxu0 0
    %361 = vmatmul.mubr.bf16.gmra.mxu0 %v326
    %v362 = vpop.f32.mrf.mxu0
    %v363 = vadd.f32 0.0, %v362
    %v364 = vpop.f32.mrf.mxu0
    %v365 = vpop.f32.mrf.mxu0
    %v366 = vadd.f32 0.0, %v365
    %v367 = vpop.f32.mrf.mxu0
    %368 = vdwg.mxu0
    %v369 = vpack.c.bf16 %v366, %v363
    %v370 = vld [vmem:[%s2] sm:$0xf]
    %v371 = vld [vmem:[%s2 + $0x4] sm:$0xf]
    %v372 = vld [vmem:[%s2 + $0x8] sm:$0xf]
    %v373 = vld [vmem:[%s2 + $0xc] sm:$0xf]
    %s374 = scalar_lea.vmem %s2, 16
    %v375 = vld [vmem:[%s374] sm:$0xf]
    %v376 = vld [vmem:[%s374 + $0x4] sm:$0xf]
    %v377 = vld [vmem:[%s374 + $0x8] sm:$0xf]
    %v378 = vld [vmem:[%s374 + $0xc] sm:$0xf]
    %v383 = vunpack.c.l.b16 %v375
    %v384 = vunpack.c.l.b16 %v376
    %v385 = vunpack.c.l.b16 %v377
    %v386 = vunpack.c.l.b16 %v378
    %v387 = vpack.c.b16 %v384, %v383
    %v388 = vpack.c.b16 %v386, %v385
    %v392 = vsel %vm59, %v157, 0
    %394 = vmatprep.subr.bf16.mxu0 0
    %395 = vmatpush1.bf16.msra.mxu0 0
    %396 = vmatprep.subr.bf16.mxu0 0
    %397 = vmatpush1.bf16.msra.mxu0 0
    %398 = vmatprep.subr.bf16.mxu0 0
    %399 = vmatpush1.bf16.msra.mxu0 0
    %400 = vmatprep.subr.bf16.mxu0 0
    %401 = vmatpush1.bf16.msra.mxu0 0
    %402 = vmatprep.subr.bf16.mxu0 0
    %403 = vmatpush1.bf16.msra.mxu0 0
    %404 = vmatprep.subr.bf16.mxu0 0
    %405 = vmatpush1.bf16.msra.mxu0 0
    %406 = vmatprep.subr.bf16.mxu0 0
    %407 = vmatpush1.bf16.msra.mxu0 %v388
    %408 = vmatprep.subr.bf16.mxu0 0
    %409 = vmatpush1.bf16.msra.mxu0 %v387
    %410 = vmatprep.subr.bf16.mxu0 0
    %411 = vmatpush2.bf16.msra.mxu0 0
    %412 = vmatprep.subr.bf16.mxu0 0
    %413 = vmatpush2.bf16.msra.mxu0 0
    %414 = vmatprep.subr.bf16.mxu0 0
    %415 = vmatpush2.bf16.msra.mxu0 0
    %416 = vmatprep.subr.bf16.mxu0 0
    %417 = vmatpush2.bf16.msra.mxu0 0
    %418 = vmatprep.subr.bf16.mxu0 0
    %419 = vmatpush2.bf16.msra.mxu0 0
    %420 = vmatprep.subr.bf16.mxu0 0
    %421 = vmatpush2.bf16.msra.mxu0 0
    %422 = vmatprep.subr.bf16.mxu0 0
    %423 = vmatpush2.bf16.msra.mxu0 0
    %424 = vmatprep.subr.bf16.mxu0 0
    %425 = vmatpush2.bf16.msra.mxu0 0
    %426 = vmatprep.mubr.bf16.mxu0 0
    %427 = vmatmul.mubr.bf16.gmra.mxu0 %v392
    %v428 = vpop.f32.mrf.mxu0
    %v429 = vadd.f32 0.0, %v428
    %v430 = vpop.f32.mrf.mxu0
    %v431 = vpop.f32.mrf.mxu0
    %v432 = vadd.f32 0.0, %v431
    %v433 = vpop.f32.mrf.mxu0
    %434 = vdwg.mxu0
    %v439 = vunpack.c.l.b16 %v370
    %v440 = vunpack.c.l.b16 %v371
    %v441 = vunpack.c.l.b16 %v372
    %v442 = vunpack.c.l.b16 %v373
    %v443 = vpack.c.b16 %v440, %v439
    %v444 = vpack.c.b16 %v442, %v441
    %v448 = vsel %vm59, %v104, 0
    %450 = vmatprep.subr.bf16.mxu0 0
    %451 = vmatpush1.bf16.msra.mxu0 0
    %452 = vmatprep.subr.bf16.mxu0 0
    %453 = vmatpush1.bf16.msra.mxu0 0
    %454 = vmatprep.subr.bf16.mxu0 0
    %455 = vmatpush1.bf16.msra.mxu0 0
    %456 = vmatprep.subr.bf16.mxu0 0
    %457 = vmatpush1.bf16.msra.mxu0 0
    %458 = vmatprep.subr.bf16.mxu0 0
    %459 = vmatpush1.bf16.msra.mxu0 0
    %460 = vmatprep.subr.bf16.mxu0 0
    %461 = vmatpush1.bf16.msra.mxu0 0
    %462 = vmatprep.subr.bf16.mxu0 0
    %463 = vmatpush1.bf16.msra.mxu0 %v444
    %464 = vmatprep.subr.bf16.mxu0 0
    %465 = vmatpush1.bf16.msra.mxu0 %v443
    %466 = vmatprep.subr.bf16.mxu0 0
    %467 = vmatpush2.bf16.msra.mxu0 0
    %468 = vmatprep.subr.bf16.mxu0 0
    %469 = vmatpush2.bf16.msra.mxu0 0
    %470 = vmatprep.subr.bf16.mxu0 0
    %471 = vmatpush2.bf16.msra.mxu0 0
    %472 = vmatprep.subr.bf16.mxu0 0
    %473 = vmatpush2.bf16.msra.mxu0 0
    %474 = vmatprep.subr.bf16.mxu0 0
    %475 = vmatpush2.bf16.msra.mxu0 0
    %476 = vmatprep.subr.bf16.mxu0 0
    %477 = vmatpush2.bf16.msra.mxu0 0
    %478 = vmatprep.subr.bf16.mxu0 0
    %479 = vmatpush2.bf16.msra.mxu0 0
    %480 = vmatprep.subr.bf16.mxu0 0
    %481 = vmatpush2.bf16.msra.mxu0 0
    %482 = vmatprep.mubr.bf16.mxu0 0
    %483 = vmatmul.mubr.bf16.gmra.mxu0 %v448
    %v484 = vpop.f32.mrf.mxu0
    %v485 = vadd.f32 %v429, %v484
    %v486 = vpop.f32.mrf.mxu0
    %v487 = vpop.f32.mrf.mxu0
    %v488 = vadd.f32 %v432, %v487
    %v489 = vpop.f32.mrf.mxu0
    %490 = vdwg.mxu0
    %s491 = scalar_lea.vmem %s2, 32
    %v492 = vld [vmem:[%s491] sm:$0xf]
    %v493 = vld [vmem:[%s491 + $0x4] sm:$0xf]
    %v494 = vld [vmem:[%s491 + $0x8] sm:$0xf]
    %v495 = vld [vmem:[%s491 + $0xc] sm:$0xf]
    %v500 = vunpack.c.l.b16 %v492
    %v501 = vunpack.c.l.b16 %v493
    %v502 = vunpack.c.l.b16 %v494
    %v503 = vunpack.c.l.b16 %v495
    %v504 = vpack.c.b16 %v501, %v500
    %v505 = vpack.c.b16 %v503, %v502
    %v509 = vsel %vm59, %v210, 0
    %511 = vmatprep.subr.bf16.mxu0 0
    %512 = vmatpush1.bf16.msra.mxu0 0
    %513 = vmatprep.subr.bf16.mxu0 0
    %514 = vmatpush1.bf16.msra.mxu0 0
    %515 = vmatprep.subr.bf16.mxu0 0
    %516 = vmatpush1.bf16.msra.mxu0 0
    %517 = vmatprep.subr.bf16.mxu0 0
    %518 = vmatpush1.bf16.msra.mxu0 0
    %519 = vmatprep.subr.bf16.mxu0 0
    %520 = vmatpush1.bf16.msra.mxu0 0
    %521 = vmatprep.subr.bf16.mxu0 0
    %522 = vmatpush1.bf16.msra.mxu0 0
    %523 = vmatprep.subr.bf16.mxu0 0
    %524 = vmatpush1.bf16.msra.mxu0 %v505
    %525 = vmatprep.subr.bf16.mxu0 0
    %526 = vmatpush1.bf16.msra.mxu0 %v504
    %527 = vmatprep.subr.bf16.mxu0 0
    %528 = vmatpush2.bf16.msra.mxu0 0
    %529 = vmatprep.subr.bf16.mxu0 0
    %530 = vmatpush2.bf16.msra.mxu0 0
    %531 = vmatprep.subr.bf16.mxu0 0
    %532 = vmatpush2.bf16.msra.mxu0 0
    %533 = vmatprep.subr.bf16.mxu0 0
    %534 = vmatpush2.bf16.msra.mxu0 0
    %535 = vmatprep.subr.bf16.mxu0 0
    %536 = vmatpush2.bf16.msra.mxu0 0
    %537 = vmatprep.subr.bf16.mxu0 0
    %538 = vmatpush2.bf16.msra.mxu0 0
    %539 = vmatprep.subr.bf16.mxu0 0
    %540 = vmatpush2.bf16.msra.mxu0 0
    %541 = vmatprep.subr.bf16.mxu0 0
    %542 = vmatpush2.bf16.msra.mxu0 0
    %543 = vmatprep.mubr.bf16.mxu0 0
    %544 = vmatmul.mubr.bf16.gmra.mxu0 %v509
    %v545 = vpop.f32.mrf.mxu0
    %v546 = vadd.f32 0.0, %v545
    %v547 = vpop.f32.mrf.mxu0
    %v548 = vpop.f32.mrf.mxu0
    %v549 = vadd.f32 0.0, %v548
    %v550 = vpop.f32.mrf.mxu0
    %551 = vdwg.mxu0
    %v552 = vadd.f32 %v485, %v546
    %v553 = vadd.f32 %v488, %v549
    %s554 = scalar_lea.vmem %s2, 48
    %v555 = vld [vmem:[%s554] sm:$0xf]
    %v556 = vld [vmem:[%s554 + $0x4] sm:$0xf]
    %v557 = vld [vmem:[%s554 + $0x8] sm:$0xf]
    %v558 = vld [vmem:[%s554 + $0xc] sm:$0xf]
    %v563 = vunpack.c.l.b16 %v555
    %v564 = vunpack.c.l.b16 %v556
    %v565 = vunpack.c.l.b16 %v557
    %v566 = vunpack.c.l.b16 %v558
    %v567 = vpack.c.b16 %v564, %v563
    %v568 = vpack.c.b16 %v566, %v565
    %v572 = vsel %vm59, %v263, 0
    %574 = vmatprep.subr.bf16.mxu0 0
    %575 = vmatpush1.bf16.msra.mxu0 0
    %576 = vmatprep.subr.bf16.mxu0 0
    %577 = vmatpush1.bf16.msra.mxu0 0
    %578 = vmatprep.subr.bf16.mxu0 0
    %579 = vmatpush1.bf16.msra.mxu0 0
    %580 = vmatprep.subr.bf16.mxu0 0
    %581 = vmatpush1.bf16.msra.mxu0 0
    %582 = vmatprep.subr.bf16.mxu0 0
    %583 = vmatpush1.bf16.msra.mxu0 0
    %584 = vmatprep.subr.bf16.mxu0 0
    %585 = vmatpush1.bf16.msra.mxu0 0
    %586 = vmatprep.subr.bf16.mxu0 0
    %587 = vmatpush1.bf16.msra.mxu0 %v568
    %588 = vmatprep.subr.bf16.mxu0 0
    %589 = vmatpush1.bf16.msra.mxu0 %v567
    %590 = vmatprep.subr.bf16.mxu0 0
    %591 = vmatpush2.bf16.msra.mxu0 0
    %592 = vmatprep.subr.bf16.mxu0 0
    %593 = vmatpush2.bf16.msra.mxu0 0
    %594 = vmatprep.subr.bf16.mxu0 0
    %595 = vmatpush2.bf16.msra.mxu0 0
    %596 = vmatprep.subr.bf16.mxu0 0
    %597 = vmatpush2.bf16.msra.mxu0 0
    %598 = vmatprep.subr.bf16.mxu0 0
    %599 = vmatpush2.bf16.msra.mxu0 0
    %600 = vmatprep.subr.bf16.mxu0 0
    %601 = vmatpush2.bf16.msra.mxu0 0
    %602 = vmatprep.subr.bf16.mxu0 0
    %603 = vmatpush2.bf16.msra.mxu0 0
    %604 = vmatprep.subr.bf16.mxu0 0
    %605 = vmatpush2.bf16.msra.mxu0 0
    %606 = vmatprep.mubr.bf16.mxu0 0
    %607 = vmatmul.mubr.bf16.gmra.mxu0 %v572
    %v608 = vpop.f32.mrf.mxu0
    %v609 = vadd.f32 0.0, %v608
    %v610 = vpop.f32.mrf.mxu0
    %v611 = vpop.f32.mrf.mxu0
    %v612 = vadd.f32 0.0, %v611
    %v613 = vpop.f32.mrf.mxu0
    %614 = vdwg.mxu0
    %v615 = vadd.f32 %v552, %v609
    %v616 = vadd.f32 %v553, %v612
    %s617 = scalar_lea.vmem %s2, 64
    %v618 = vld [vmem:[%s617] sm:$0xf]
    %v619 = vld [vmem:[%s617 + $0x4] sm:$0xf]
    %v620 = vld [vmem:[%s617 + $0x8] sm:$0xf]
    %v621 = vld [vmem:[%s617 + $0xc] sm:$0xf]
    %v626 = vunpack.c.l.b16 %v618
    %v627 = vunpack.c.l.b16 %v619
    %v628 = vunpack.c.l.b16 %v620
    %v629 = vunpack.c.l.b16 %v621
    %v630 = vpack.c.b16 %v627, %v626
    %v631 = vpack.c.b16 %v629, %v628
    %v635 = vsel %vm59, %v316, 0
    %637 = vmatprep.subr.bf16.mxu0 0
    %638 = vmatpush1.bf16.msra.mxu0 0
    %639 = vmatprep.subr.bf16.mxu0 0
    %640 = vmatpush1.bf16.msra.mxu0 0
    %641 = vmatprep.subr.bf16.mxu0 0
    %642 = vmatpush1.bf16.msra.mxu0 0
    %643 = vmatprep.subr.bf16.mxu0 0
    %644 = vmatpush1.bf16.msra.mxu0 0
    %645 = vmatprep.subr.bf16.mxu0 0
    %646 = vmatpush1.bf16.msra.mxu0 0
    %647 = vmatprep.subr.bf16.mxu0 0
    %648 = vmatpush1.bf16.msra.mxu0 0
    %649 = vmatprep.subr.bf16.mxu0 0
    %650 = vmatpush1.bf16.msra.mxu0 %v631
    %651 = vmatprep.subr.bf16.mxu0 0
    %652 = vmatpush1.bf16.msra.mxu0 %v630
    %653 = vmatprep.subr.bf16.mxu0 0
    %654 = vmatpush2.bf16.msra.mxu0 0
    %655 = vmatprep.subr.bf16.mxu0 0
    %656 = vmatpush2.bf16.msra.mxu0 0
    %657 = vmatprep.subr.bf16.mxu0 0
    %658 = vmatpush2.bf16.msra.mxu0 0
    %659 = vmatprep.subr.bf16.mxu0 0
    %660 = vmatpush2.bf16.msra.mxu0 0
    %661 = vmatprep.subr.bf16.mxu0 0
    %662 = vmatpush2.bf16.msra.mxu0 0
    %663 = vmatprep.subr.bf16.mxu0 0
    %664 = vmatpush2.bf16.msra.mxu0 0
    %665 = vmatprep.subr.bf16.mxu0 0
    %666 = vmatpush2.bf16.msra.mxu0 0
    %667 = vmatprep.subr.bf16.mxu0 0
    %668 = vmatpush2.bf16.msra.mxu0 0
    %669 = vmatprep.mubr.bf16.mxu0 0
    %670 = vmatmul.mubr.bf16.gmra.mxu0 %v635
    %v671 = vpop.f32.mrf.mxu0
    %v672 = vadd.f32 0.0, %v671
    %v673 = vpop.f32.mrf.mxu0
    %v674 = vpop.f32.mrf.mxu0
    %v675 = vadd.f32 0.0, %v674
    %v676 = vpop.f32.mrf.mxu0
    %677 = vdwg.mxu0
    %v678 = vadd.f32 %v615, %v672
    %v679 = vadd.f32 %v616, %v675
    %s680 = scalar_lea.vmem %s2, 80
    %v681 = vld [vmem:[%s680] sm:$0xf]
    %v682 = vld [vmem:[%s680 + $0x4] sm:$0xf]
    %v683 = vld [vmem:[%s680 + $0x8] sm:$0xf]
    %v684 = vld [vmem:[%s680 + $0xc] sm:$0xf]
    %s685 = scalar_lea.vmem %s2, 96
    %v686 = vld [vmem:[%s685] sm:$0xf]
    %v687 = vld [vmem:[%s685 + $0x4] sm:$0xf]
    %v688 = vld [vmem:[%s685 + $0x8] sm:$0xf]
    %v689 = vld [vmem:[%s685 + $0xc] sm:$0xf]
    %v694 = vunpack.c.l.b16 %v686
    %v695 = vunpack.c.l.b16 %v687
    %v696 = vunpack.c.l.b16 %v688
    %v697 = vunpack.c.l.b16 %v689
    %v698 = vpack.c.b16 %v695, %v694
    %v699 = vpack.c.b16 %v697, %v696
    %702 = vmatprep.subr.bf16.mxu0 0
    %703 = vmatpush1.bf16.msra.mxu0 0
    %704 = vmatprep.subr.bf16.mxu0 0
    %705 = vmatpush1.bf16.msra.mxu0 0
    %706 = vmatprep.subr.bf16.mxu0 0
    %707 = vmatpush1.bf16.msra.mxu0 0
    %708 = vmatprep.subr.bf16.mxu0 0
    %709 = vmatpush1.bf16.msra.mxu0 0
    %710 = vmatprep.subr.bf16.mxu0 0
    %711 = vmatpush1.bf16.msra.mxu0 0
    %712 = vmatprep.subr.bf16.mxu0 0
    %713 = vmatpush1.bf16.msra.mxu0 0
    %714 = vmatprep.subr.bf16.mxu0 0
    %715 = vmatpush1.bf16.msra.mxu0 %v699
    %716 = vmatprep.subr.bf16.mxu0 0
    %717 = vmatpush1.bf16.msra.mxu0 %v698
    %718 = vmatprep.subr.bf16.mxu0 0
    %719 = vmatpush2.bf16.msra.mxu0 0
    %720 = vmatprep.subr.bf16.mxu0 0
    %721 = vmatpush2.bf16.msra.mxu0 0
    %722 = vmatprep.subr.bf16.mxu0 0
    %723 = vmatpush2.bf16.msra.mxu0 0
    %724 = vmatprep.subr.bf16.mxu0 0
    %725 = vmatpush2.bf16.msra.mxu0 0
    %726 = vmatprep.subr.bf16.mxu0 0
    %727 = vmatpush2.bf16.msra.mxu0 0
    %728 = vmatprep.subr.bf16.mxu0 0
    %729 = vmatpush2.bf16.msra.mxu0 0
    %730 = vmatprep.subr.bf16.mxu0 0
    %731 = vmatpush2.bf16.msra.mxu0 0
    %732 = vmatprep.subr.bf16.mxu0 0
    %733 = vmatpush2.bf16.msra.mxu0 0
    %734 = vmatprep.mubr.bf16.mxu0 0
    %735 = vmatmul.mubr.bf16.gmra.mxu0 %v392
    %v736 = vpop.f32.mrf.mxu0
    %v737 = vadd.f32 0.0, %v736
    %v738 = vpop.f32.mrf.mxu0
    %v739 = vpop.f32.mrf.mxu0
    %v740 = vadd.f32 0.0, %v739
    %v741 = vpop.f32.mrf.mxu0
    %742 = vdwg.mxu0
    %v747 = vunpack.c.l.b16 %v681
    %v748 = vunpack.c.l.b16 %v682
    %v749 = vunpack.c.l.b16 %v683
    %v750 = vunpack.c.l.b16 %v684
    %v751 = vpack.c.b16 %v748, %v747
    %v752 = vpack.c.b16 %v750, %v749
    %755 = vmatprep.subr.bf16.mxu0 0
    %756 = vmatpush1.bf16.msra.mxu0 0
    %757 = vmatprep.subr.bf16.mxu0 0
    %758 = vmatpush1.bf16.msra.mxu0 0
    %759 = vmatprep.subr.bf16.mxu0 0
    %760 = vmatpush1.bf16.msra.mxu0 0
    %761 = vmatprep.subr.bf16.mxu0 0
    %762 = vmatpush1.bf16.msra.mxu0 0
    %763 = vmatprep.subr.bf16.mxu0 0
    %764 = vmatpush1.bf16.msra.mxu0 0
    %765 = vmatprep.subr.bf16.mxu0 0
    %766 = vmatpush1.bf16.msra.mxu0 0
    %767 = vmatprep.subr.bf16.mxu0 0
    %768 = vmatpush1.bf16.msra.mxu0 %v752
    %769 = vmatprep.subr.bf16.mxu0 0
    %770 = vmatpush1.bf16.msra.mxu0 %v751
    %771 = vmatprep.subr.bf16.mxu0 0
    %772 = vmatpush2.bf16.msra.mxu0 0
    %773 = vmatprep.subr.bf16.mxu0 0
    %774 = vmatpush2.bf16.msra.mxu0 0
    %775 = vmatprep.subr.bf16.mxu0 0
    %776 = vmatpush2.bf16.msra.mxu0 0
    %777 = vmatprep.subr.bf16.mxu0 0
    %778 = vmatpush2.bf16.msra.mxu0 0
    %779 = vmatprep.subr.bf16.mxu0 0
    %780 = vmatpush2.bf16.msra.mxu0 0
    %781 = vmatprep.subr.bf16.mxu0 0
    %782 = vmatpush2.bf16.msra.mxu0 0
    %783 = vmatprep.subr.bf16.mxu0 0
    %784 = vmatpush2.bf16.msra.mxu0 0
    %785 = vmatprep.subr.bf16.mxu0 0
    %786 = vmatpush2.bf16.msra.mxu0 0
    %787 = vmatprep.mubr.bf16.mxu0 0
    %788 = vmatmul.mubr.bf16.gmra.mxu0 %v448
    %v789 = vpop.f32.mrf.mxu0
    %v790 = vadd.f32 %v737, %v789
    %v791 = vpop.f32.mrf.mxu0
    %v792 = vpop.f32.mrf.mxu0
    %v793 = vadd.f32 %v740, %v792
    %v794 = vpop.f32.mrf.mxu0
    %795 = vdwg.mxu0
    %s796 = scalar_lea.vmem %s2, 112
    %v797 = vld [vmem:[%s796] sm:$0xf]
    %v798 = vld [vmem:[%s796 + $0x4] sm:$0xf]
    %v799 = vld [vmem:[%s796 + $0x8] sm:$0xf]
    %v800 = vld [vmem:[%s796 + $0xc] sm:$0xf]
    %v805 = vunpack.c.l.b16 %v797
    %v806 = vunpack.c.l.b16 %v798
    %v807 = vunpack.c.l.b16 %v799
    %v808 = vunpack.c.l.b16 %v800
    %v809 = vpack.c.b16 %v806, %v805
    %v810 = vpack.c.b16 %v808, %v807
    %813 = vmatprep.subr.bf16.mxu0 0
    %814 = vmatpush1.bf16.msra.mxu0 0
    %815 = vmatprep.subr.bf16.mxu0 0
    %816 = vmatpush1.bf16.msra.mxu0 0
    %817 = vmatprep.subr.bf16.mxu0 0
    %818 = vmatpush1.bf16.msra.mxu0 0
    %819 = vmatprep.subr.bf16.mxu0 0
    %820 = vmatpush1.bf16.msra.mxu0 0
    %821 = vmatprep.subr.bf16.mxu0 0
    %822 = vmatpush1.bf16.msra.mxu0 0
    %823 = vmatprep.subr.bf16.mxu0 0
    %824 = vmatpush1.bf16.msra.mxu0 0
    %825 = vmatprep.subr.bf16.mxu0 0
    %826 = vmatpush1.bf16.msra.mxu0 %v810
    %827 = vmatprep.subr.bf16.mxu0 0
    %828 = vmatpush1.bf16.msra.mxu0 %v809
    %829 = vmatprep.subr.bf16.mxu0 0
    %830 = vmatpush2.bf16.msra.mxu0 0
    %831 = vmatprep.subr.bf16.mxu0 0
    %832 = vmatpush2.bf16.msra.mxu0 0
    %833 = vmatprep.subr.bf16.mxu0 0
    %834 = vmatpush2.bf16.msra.mxu0 0
    %835 = vmatprep.subr.bf16.mxu0 0
    %836 = vmatpush2.bf16.msra.mxu0 0
    %837 = vmatprep.subr.bf16.mxu0 0
    %838 = vmatpush2.bf16.msra.mxu0 0
    %839 = vmatprep.subr.bf16.mxu0 0
    %840 = vmatpush2.bf16.msra.mxu0 0
    %841 = vmatprep.subr.bf16.mxu0 0
    %842 = vmatpush2.bf16.msra.mxu0 0
    %843 = vmatprep.subr.bf16.mxu0 0
    %844 = vmatpush2.bf16.msra.mxu0 0
    %845 = vmatprep.mubr.bf16.mxu0 0
    %846 = vmatmul.mubr.bf16.gmra.mxu0 %v509
    %v847 = vpop.f32.mrf.mxu0
    %v848 = vadd.f32 0.0, %v847
    %v849 = vpop.f32.mrf.mxu0
    %v850 = vpop.f32.mrf.mxu0
    %v851 = vadd.f32 0.0, %v850
    %v852 = vpop.f32.mrf.mxu0
    %853 = vdwg.mxu0
    %v854 = vadd.f32 %v790, %v848
    %v855 = vadd.f32 %v793, %v851
    %s856 = scalar_lea.vmem %s2, 128
    %v857 = vld [vmem:[%s856] sm:$0xf]
    %v858 = vld [vmem:[%s856 + $0x4] sm:$0xf]
    %v859 = vld [vmem:[%s856 + $0x8] sm:$0xf]
    %v860 = vld [vmem:[%s856 + $0xc] sm:$0xf]
    %v865 = vunpack.c.l.b16 %v857
    %v866 = vunpack.c.l.b16 %v858
    %v867 = vunpack.c.l.b16 %v859
    %v868 = vunpack.c.l.b16 %v860
    %v869 = vpack.c.b16 %v866, %v865
    %v870 = vpack.c.b16 %v868, %v867
    %873 = vmatprep.subr.bf16.mxu0 0
    %874 = vmatpush1.bf16.msra.mxu0 0
    %875 = vmatprep.subr.bf16.mxu0 0
    %876 = vmatpush1.bf16.msra.mxu0 0
    %877 = vmatprep.subr.bf16.mxu0 0
    %878 = vmatpush1.bf16.msra.mxu0 0
    %879 = vmatprep.subr.bf16.mxu0 0
    %880 = vmatpush1.bf16.msra.mxu0 0
    %881 = vmatprep.subr.bf16.mxu0 0
    %882 = vmatpush1.bf16.msra.mxu0 0
    %883 = vmatprep.subr.bf16.mxu0 0
    %884 = vmatpush1.bf16.msra.mxu0 0
    %885 = vmatprep.subr.bf16.mxu0 0
    %886 = vmatpush1.bf16.msra.mxu0 %v870
    %887 = vmatprep.subr.bf16.mxu0 0
    %888 = vmatpush1.bf16.msra.mxu0 %v869
    %889 = vmatprep.subr.bf16.mxu0 0
    %890 = vmatpush2.bf16.msra.mxu0 0
    %891 = vmatprep.subr.bf16.mxu0 0
    %892 = vmatpush2.bf16.msra.mxu0 0
    %893 = vmatprep.subr.bf16.mxu0 0
    %894 = vmatpush2.bf16.msra.mxu0 0
    %895 = vmatprep.subr.bf16.mxu0 0
    %896 = vmatpush2.bf16.msra.mxu0 0
    %897 = vmatprep.subr.bf16.mxu0 0
    %898 = vmatpush2.bf16.msra.mxu0 0
    %899 = vmatprep.subr.bf16.mxu0 0
    %900 = vmatpush2.bf16.msra.mxu0 0
    %901 = vmatprep.subr.bf16.mxu0 0
    %902 = vmatpush2.bf16.msra.mxu0 0
    %903 = vmatprep.subr.bf16.mxu0 0
    %904 = vmatpush2.bf16.msra.mxu0 0
    %905 = vmatprep.mubr.bf16.mxu0 0
    %906 = vmatmul.mubr.bf16.gmra.mxu0 %v572
    %v907 = vpop.f32.mrf.mxu0
    %v908 = vadd.f32 0.0, %v907
    %v909 = vpop.f32.mrf.mxu0
    %v910 = vpop.f32.mrf.mxu0
    %v911 = vadd.f32 0.0, %v910
    %v912 = vpop.f32.mrf.mxu0
    %913 = vdwg.mxu0
    %v914 = vadd.f32 %v854, %v908
    %v915 = vadd.f32 %v855, %v911
    %s916 = scalar_lea.vmem %s2, 144
    %v917 = vld [vmem:[%s916] sm:$0xf]
    %v918 = vld [vmem:[%s916 + $0x4] sm:$0xf]
    %v919 = vld [vmem:[%s916 + $0x8] sm:$0xf]
    %v920 = vld [vmem:[%s916 + $0xc] sm:$0xf]
    %v925 = vunpack.c.l.b16 %v917
    %v926 = vunpack.c.l.b16 %v918
    %v927 = vunpack.c.l.b16 %v919
    %v928 = vunpack.c.l.b16 %v920
    %v929 = vpack.c.b16 %v926, %v925
    %v930 = vpack.c.b16 %v928, %v927
    %933 = vmatprep.subr.bf16.mxu0 0
    %934 = vmatpush1.bf16.msra.mxu0 0
    %935 = vmatprep.subr.bf16.mxu0 0
    %936 = vmatpush1.bf16.msra.mxu0 0
    %937 = vmatprep.subr.bf16.mxu0 0
    %938 = vmatpush1.bf16.msra.mxu0 0
    %939 = vmatprep.subr.bf16.mxu0 0
    %940 = vmatpush1.bf16.msra.mxu0 0
    %941 = vmatprep.subr.bf16.mxu0 0
    %942 = vmatpush1.bf16.msra.mxu0 0
    %943 = vmatprep.subr.bf16.mxu0 0
    %944 = vmatpush1.bf16.msra.mxu0 0
    %945 = vmatprep.subr.bf16.mxu0 0
    %946 = vmatpush1.bf16.msra.mxu0 %v930
    %947 = vmatprep.subr.bf16.mxu0 0
    %948 = vmatpush1.bf16.msra.mxu0 %v929
    %949 = vmatprep.subr.bf16.mxu0 0
    %950 = vmatpush2.bf16.msra.mxu0 0
    %951 = vmatprep.subr.bf16.mxu0 0
    %952 = vmatpush2.bf16.msra.mxu0 0
    %953 = vmatprep.subr.bf16.mxu0 0
    %954 = vmatpush2.bf16.msra.mxu0 0
    %955 = vmatprep.subr.bf16.mxu0 0
    %956 = vmatpush2.bf16.msra.mxu0 0
    %957 = vmatprep.subr.bf16.mxu0 0
    %958 = vmatpush2.bf16.msra.mxu0 0
    %959 = vmatprep.subr.bf16.mxu0 0
    %960 = vmatpush2.bf16.msra.mxu0 0
    %961 = vmatprep.subr.bf16.mxu0 0
    %962 = vmatpush2.bf16.msra.mxu0 0
    %963 = vmatprep.subr.bf16.mxu0 0
    %964 = vmatpush2.bf16.msra.mxu0 0
    %965 = vmatprep.mubr.bf16.mxu0 0
    %966 = vmatmul.mubr.bf16.gmra.mxu0 %v635
    %v967 = vpop.f32.mrf.mxu0
    %v968 = vadd.f32 0.0, %v967
    %v969 = vpop.f32.mrf.mxu0
    %v970 = vpop.f32.mrf.mxu0
    %v971 = vadd.f32 0.0, %v970
    %v972 = vpop.f32.mrf.mxu0
    %973 = vdwg.mxu0
    %v974 = vadd.f32 %v914, %v968
    %v975 = vadd.f32 %v915, %v971
    %v976 = vmax.f32 %v678, %v974
    %v977 = vmax.f32 %v679, %v975
    %978 = vmatprep.subr.bf16.mxu0 0
    %979 = vmatpush1.bf16.msra.mxu0 0
    %980 = vmatprep.subr.bf16.mxu0 0
    %981 = vmatpush1.bf16.msra.mxu0 0
    %982 = vmatprep.subr.bf16.mxu0 0
    %983 = vmatpush1.bf16.msra.mxu0 0
    %984 = vmatprep.subr.bf16.mxu0 0
    %985 = vmatpush1.bf16.msra.mxu0 0
    %986 = vmatprep.subr.bf16.mxu0 0
    %987 = vmatpush1.bf16.msra.mxu0 0
    %988 = vmatprep.subr.bf16.mxu0 0
    %989 = vmatpush1.bf16.msra.mxu0 0
    %990 = vmatprep.subr.bf16.mxu0 0
    %991 = vmatpush1.bf16.msra.mxu0 %v388
    %992 = vmatprep.subr.bf16.mxu0 0
    %993 = vmatpush1.bf16.msra.mxu0 %v387
    %994 = vmatprep.subr.bf16.mxu0 0
    %995 = vmatpush2.bf16.msra.mxu0 0
    %996 = vmatprep.subr.bf16.mxu0 0
    %997 = vmatpush2.bf16.msra.mxu0 0
    %998 = vmatprep.subr.bf16.mxu0 0
    %999 = vmatpush2.bf16.msra.mxu0 0
    %1000 = vmatprep.subr.bf16.mxu0 0
    %1001 = vmatpush2.bf16.msra.mxu0 0
    %1002 = vmatprep.subr.bf16.mxu0 0
    %1003 = vmatpush2.bf16.msra.mxu0 0
    %1004 = vmatprep.subr.bf16.mxu0 0
    %1005 = vmatpush2.bf16.msra.mxu0 0
    %1006 = vmatprep.subr.bf16.mxu0 0
    %1007 = vmatpush2.bf16.msra.mxu0 0
    %1008 = vmatprep.subr.bf16.mxu0 0
    %1009 = vmatpush2.bf16.msra.mxu0 0
    %1010 = vmatprep.mubr.bf16.mxu0 0
    %1011 = vmatmul.mubr.bf16.gmra.mxu0 %v509
    %v1012 = vpop.f32.mrf.mxu0
    %v1013 = vadd.f32 0.0, %v1012
    %v1014 = vpop.f32.mrf.mxu0
    %v1015 = vpop.f32.mrf.mxu0
    %v1016 = vadd.f32 0.0, %v1015
    %v1017 = vpop.f32.mrf.mxu0
    %1018 = vdwg.mxu0
    %1019 = vmatprep.subr.bf16.mxu0 0
    %1020 = vmatpush1.bf16.msra.mxu0 0
    %1021 = vmatprep.subr.bf16.mxu0 0
    %1022 = vmatpush1.bf16.msra.mxu0 0
    %1023 = vmatprep.subr.bf16.mxu0 0
    %1024 = vmatpush1.bf16.msra.mxu0 0
    %1025 = vmatprep.subr.bf16.mxu0 0
    %1026 = vmatpush1.bf16.msra.mxu0 0
    %1027 = vmatprep.subr.bf16.mxu0 0
    %1028 = vmatpush1.bf16.msra.mxu0 0
    %1029 = vmatprep.subr.bf16.mxu0 0
    %1030 = vmatpush1.bf16.msra.mxu0 0
    %1031 = vmatprep.subr.bf16.mxu0 0
    %1032 = vmatpush1.bf16.msra.mxu0 %v444
    %1033 = vmatprep.subr.bf16.mxu0 0
    %1034 = vmatpush1.bf16.msra.mxu0 %v443
    %1035 = vmatprep.subr.bf16.mxu0 0
    %1036 = vmatpush2.bf16.msra.mxu0 0
    %1037 = vmatprep.subr.bf16.mxu0 0
    %1038 = vmatpush2.bf16.msra.mxu0 0
    %1039 = vmatprep.subr.bf16.mxu0 0
    %1040 = vmatpush2.bf16.msra.mxu0 0
    %1041 = vmatprep.subr.bf16.mxu0 0
    %1042 = vmatpush2.bf16.msra.mxu0 0
    %1043 = vmatprep.subr.bf16.mxu0 0
    %1044 = vmatpush2.bf16.msra.mxu0 0
    %1045 = vmatprep.subr.bf16.mxu0 0
    %1046 = vmatpush2.bf16.msra.mxu0 0
    %1047 = vmatprep.subr.bf16.mxu0 0
    %1048 = vmatpush2.bf16.msra.mxu0 0
    %1049 = vmatprep.subr.bf16.mxu0 0
    %1050 = vmatpush2.bf16.msra.mxu0 0
    %1051 = vmatprep.mubr.bf16.mxu0 0
    %1052 = vmatmul.mubr.bf16.gmra.mxu0 %v392
    %v1053 = vpop.f32.mrf.mxu0
    %v1054 = vadd.f32 %v1013, %v1053
    %v1055 = vpop.f32.mrf.mxu0
    %v1056 = vpop.f32.mrf.mxu0
    %v1057 = vadd.f32 %v1016, %v1056
    %v1058 = vpop.f32.mrf.mxu0
    %1059 = vdwg.mxu0
    %1060 = vmatprep.subr.bf16.mxu0 0
    %1061 = vmatpush1.bf16.msra.mxu0 0
    %1062 = vmatprep.subr.bf16.mxu0 0
    %1063 = vmatpush1.bf16.msra.mxu0 0
    %1064 = vmatprep.subr.bf16.mxu0 0
    %1065 = vmatpush1.bf16.msra.mxu0 0
    %1066 = vmatprep.subr.bf16.mxu0 0
    %1067 = vmatpush1.bf16.msra.mxu0 0
    %1068 = vmatprep.subr.bf16.mxu0 0
    %1069 = vmatpush1.bf16.msra.mxu0 0
    %1070 = vmatprep.subr.bf16.mxu0 0
    %1071 = vmatpush1.bf16.msra.mxu0 0
    %1072 = vmatprep.subr.bf16.mxu0 0
    %1073 = vmatpush1.bf16.msra.mxu0 %v505
    %1074 = vmatprep.subr.bf16.mxu0 0
    %1075 = vmatpush1.bf16.msra.mxu0 %v504
    %1076 = vmatprep.subr.bf16.mxu0 0
    %1077 = vmatpush2.bf16.msra.mxu0 0
    %1078 = vmatprep.subr.bf16.mxu0 0
    %1079 = vmatpush2.bf16.msra.mxu0 0
    %1080 = vmatprep.subr.bf16.mxu0 0
    %1081 = vmatpush2.bf16.msra.mxu0 0
    %1082 = vmatprep.subr.bf16.mxu0 0
    %1083 = vmatpush2.bf16.msra.mxu0 0
    %1084 = vmatprep.subr.bf16.mxu0 0
    %1085 = vmatpush2.bf16.msra.mxu0 0
    %1086 = vmatprep.subr.bf16.mxu0 0
    %1087 = vmatpush2.bf16.msra.mxu0 0
    %1088 = vmatprep.subr.bf16.mxu0 0
    %1089 = vmatpush2.bf16.msra.mxu0 0
    %1090 = vmatprep.subr.bf16.mxu0 0
    %1091 = vmatpush2.bf16.msra.mxu0 0
    %1092 = vmatprep.mubr.bf16.mxu0 0
    %1093 = vmatmul.mubr.bf16.gmra.mxu0 %v572
    %v1094 = vpop.f32.mrf.mxu0
    %v1095 = vadd.f32 0.0, %v1094
    %v1096 = vpop.f32.mrf.mxu0
    %v1097 = vpop.f32.mrf.mxu0
    %v1098 = vadd.f32 0.0, %v1097
    %v1099 = vpop.f32.mrf.mxu0
    %1100 = vdwg.mxu0
    %v1101 = vadd.f32 %v1054, %v1095
    %v1102 = vadd.f32 %v1057, %v1098
    %1103 = vmatprep.subr.bf16.mxu0 0
    %1104 = vmatpush1.bf16.msra.mxu0 0
    %1105 = vmatprep.subr.bf16.mxu0 0
    %1106 = vmatpush1.bf16.msra.mxu0 0
    %1107 = vmatprep.subr.bf16.mxu0 0
    %1108 = vmatpush1.bf16.msra.mxu0 0
    %1109 = vmatprep.subr.bf16.mxu0 0
    %1110 = vmatpush1.bf16.msra.mxu0 0
    %1111 = vmatprep.subr.bf16.mxu0 0
    %1112 = vmatpush1.bf16.msra.mxu0 0
    %1113 = vmatprep.subr.bf16.mxu0 0
    %1114 = vmatpush1.bf16.msra.mxu0 0
    %1115 = vmatprep.subr.bf16.mxu0 0
    %1116 = vmatpush1.bf16.msra.mxu0 %v568
    %1117 = vmatprep.subr.bf16.mxu0 0
    %1118 = vmatpush1.bf16.msra.mxu0 %v567
    %1119 = vmatprep.subr.bf16.mxu0 0
    %1120 = vmatpush2.bf16.msra.mxu0 0
    %1121 = vmatprep.subr.bf16.mxu0 0
    %1122 = vmatpush2.bf16.msra.mxu0 0
    %1123 = vmatprep.subr.bf16.mxu0 0
    %1124 = vmatpush2.bf16.msra.mxu0 0
    %1125 = vmatprep.subr.bf16.mxu0 0
    %1126 = vmatpush2.bf16.msra.mxu0 0
    %1127 = vmatprep.subr.bf16.mxu0 0
    %1128 = vmatpush2.bf16.msra.mxu0 0
    %1129 = vmatprep.subr.bf16.mxu0 0
    %1130 = vmatpush2.bf16.msra.mxu0 0
    %1131 = vmatprep.subr.bf16.mxu0 0
    %1132 = vmatpush2.bf16.msra.mxu0 0
    %1133 = vmatprep.subr.bf16.mxu0 0
    %1134 = vmatpush2.bf16.msra.mxu0 0
    %1135 = vmatprep.mubr.bf16.mxu0 0
    %1136 = vmatmul.mubr.bf16.gmra.mxu0 %v635
    %v1137 = vpop.f32.mrf.mxu0
    %v1138 = vadd.f32 0.0, %v1137
    %v1139 = vpop.f32.mrf.mxu0
    %v1140 = vpop.f32.mrf.mxu0
    %v1141 = vadd.f32 0.0, %v1140
    %v1142 = vpop.f32.mrf.mxu0
    %1143 = vdwg.mxu0
    %v1144 = vadd.f32 %v1101, %v1138
    %v1145 = vadd.f32 %v1102, %v1141
    %v1147 = vsel %vm59, %v369, 0
    %1149 = vmatprep.subr.bf16.mxu0 0
    %1150 = vmatpush1.bf16.msra.mxu0 0
    %1151 = vmatprep.subr.bf16.mxu0 0
    %1152 = vmatpush1.bf16.msra.mxu0 0
    %1153 = vmatprep.subr.bf16.mxu0 0
    %1154 = vmatpush1.bf16.msra.mxu0 0
    %1155 = vmatprep.subr.bf16.mxu0 0
    %1156 = vmatpush1.bf16.msra.mxu0 0
    %1157 = vmatprep.subr.bf16.mxu0 0
    %1158 = vmatpush1.bf16.msra.mxu0 0
    %1159 = vmatprep.subr.bf16.mxu0 0
    %1160 = vmatpush1.bf16.msra.mxu0 0
    %1161 = vmatprep.subr.bf16.mxu0 0
    %1162 = vmatpush1.bf16.msra.mxu0 %v631
    %1163 = vmatprep.subr.bf16.mxu0 0
    %1164 = vmatpush1.bf16.msra.mxu0 %v630
    %1165 = vmatprep.subr.bf16.mxu0 0
    %1166 = vmatpush2.bf16.msra.mxu0 0
    %1167 = vmatprep.subr.bf16.mxu0 0
    %1168 = vmatpush2.bf16.msra.mxu0 0
    %1169 = vmatprep.subr.bf16.mxu0 0
    %1170 = vmatpush2.bf16.msra.mxu0 0
    %1171 = vmatprep.subr.bf16.mxu0 0
    %1172 = vmatpush2.bf16.msra.mxu0 0
    %1173 = vmatprep.subr.bf16.mxu0 0
    %1174 = vmatpush2.bf16.msra.mxu0 0
    %1175 = vmatprep.subr.bf16.mxu0 0
    %1176 = vmatpush2.bf16.msra.mxu0 0
    %1177 = vmatprep.subr.bf16.mxu0 0
    %1178 = vmatpush2.bf16.msra.mxu0 0
    %1179 = vmatprep.subr.bf16.mxu0 0
    %1180 = vmatpush2.bf16.msra.mxu0 0
    %1181 = vmatprep.mubr.bf16.mxu0 0
    %1182 = vmatmul.mubr.bf16.gmra.mxu0 %v1147
    %v1183 = vpop.f32.mrf.mxu0
    %v1184 = vadd.f32 0.0, %v1183
    %v1185 = vpop.f32.mrf.mxu0
    %v1186 = vpop.f32.mrf.mxu0
    %v1187 = vadd.f32 0.0, %v1186
    %v1188 = vpop.f32.mrf.mxu0
    %1189 = vdwg.mxu0
    %v1190 = vadd.f32 %v1144, %v1184
    %v1191 = vadd.f32 %v1145, %v1187
    %v1192 = vmax.f32 %v976, %v1190
    %v1193 = vmax.f32 %v977, %v1191
    %1194 = vmatprep.subr.bf16.mxu0 0
    %1195 = vmatpush1.bf16.msra.mxu0 0
    %1196 = vmatprep.subr.bf16.mxu0 0
    %1197 = vmatpush1.bf16.msra.mxu0 0
    %1198 = vmatprep.subr.bf16.mxu0 0
    %1199 = vmatpush1.bf16.msra.mxu0 0
    %1200 = vmatprep.subr.bf16.mxu0 0
    %1201 = vmatpush1.bf16.msra.mxu0 0
    %1202 = vmatprep.subr.bf16.mxu0 0
    %1203 = vmatpush1.bf16.msra.mxu0 0
    %1204 = vmatprep.subr.bf16.mxu0 0
    %1205 = vmatpush1.bf16.msra.mxu0 0
    %1206 = vmatprep.subr.bf16.mxu0 0
    %1207 = vmatpush1.bf16.msra.mxu0 %v699
    %1208 = vmatprep.subr.bf16.mxu0 0
    %1209 = vmatpush1.bf16.msra.mxu0 %v698
    %1210 = vmatprep.subr.bf16.mxu0 0
    %1211 = vmatpush2.bf16.msra.mxu0 0
    %1212 = vmatprep.subr.bf16.mxu0 0
    %1213 = vmatpush2.bf16.msra.mxu0 0
    %1214 = vmatprep.subr.bf16.mxu0 0
    %1215 = vmatpush2.bf16.msra.mxu0 0
    %1216 = vmatprep.subr.bf16.mxu0 0
    %1217 = vmatpush2.bf16.msra.mxu0 0
    %1218 = vmatprep.subr.bf16.mxu0 0
    %1219 = vmatpush2.bf16.msra.mxu0 0
    %1220 = vmatprep.subr.bf16.mxu0 0
    %1221 = vmatpush2.bf16.msra.mxu0 0
    %1222 = vmatprep.subr.bf16.mxu0 0
    %1223 = vmatpush2.bf16.msra.mxu0 0
    %1224 = vmatprep.subr.bf16.mxu0 0
    %1225 = vmatpush2.bf16.msra.mxu0 0
    %1226 = vmatprep.mubr.bf16.mxu0 0
    %1227 = vmatmul.mubr.bf16.gmra.mxu0 %v509
    %v1228 = vpop.f32.mrf.mxu0
    %v1229 = vadd.f32 0.0, %v1228
    %v1230 = vpop.f32.mrf.mxu0
    %v1231 = vpop.f32.mrf.mxu0
    %v1232 = vadd.f32 0.0, %v1231
    %v1233 = vpop.f32.mrf.mxu0
    %1234 = vdwg.mxu0
    %1235 = vmatprep.subr.bf16.mxu0 0
    %1236 = vmatpush1.bf16.msra.mxu0 0
    %1237 = vmatprep.subr.bf16.mxu0 0
    %1238 = vmatpush1.bf16.msra.mxu0 0
    %1239 = vmatprep.subr.bf16.mxu0 0
    %1240 = vmatpush1.bf16.msra.mxu0 0
    %1241 = vmatprep.subr.bf16.mxu0 0
    %1242 = vmatpush1.bf16.msra.mxu0 0
    %1243 = vmatprep.subr.bf16.mxu0 0
    %1244 = vmatpush1.bf16.msra.mxu0 0
    %1245 = vmatprep.subr.bf16.mxu0 0
    %1246 = vmatpush1.bf16.msra.mxu0 0
    %1247 = vmatprep.subr.bf16.mxu0 0
    %1248 = vmatpush1.bf16.msra.mxu0 %v752
    %1249 = vmatprep.subr.bf16.mxu0 0
    %1250 = vmatpush1.bf16.msra.mxu0 %v751
    %1251 = vmatprep.subr.bf16.mxu0 0
    %1252 = vmatpush2.bf16.msra.mxu0 0
    %1253 = vmatprep.subr.bf16.mxu0 0
    %1254 = vmatpush2.bf16.msra.mxu0 0
    %1255 = vmatprep.subr.bf16.mxu0 0
    %1256 = vmatpush2.bf16.msra.mxu0 0
    %1257 = vmatprep.subr.bf16.mxu0 0
    %1258 = vmatpush2.bf16.msra.mxu0 0
    %1259 = vmatprep.subr.bf16.mxu0 0
    %1260 = vmatpush2.bf16.msra.mxu0 0
    %1261 = vmatprep.subr.bf16.mxu0 0
    %1262 = vmatpush2.bf16.msra.mxu0 0
    %1263 = vmatprep.subr.bf16.mxu0 0
    %1264 = vmatpush2.bf16.msra.mxu0 0
    %1265 = vmatprep.subr.bf16.mxu0 0
    %1266 = vmatpush2.bf16.msra.mxu0 0
    %1267 = vmatprep.mubr.bf16.mxu0 0
    %1268 = vmatmul.mubr.bf16.gmra.mxu0 %v392
    %v1269 = vpop.f32.mrf.mxu0
    %v1270 = vadd.f32 %v1229, %v1269
    %v1271 = vpop.f32.mrf.mxu0
    %v1272 = vpop.f32.mrf.mxu0
    %v1273 = vadd.f32 %v1232, %v1272
    %v1274 = vpop.f32.mrf.mxu0
    %1275 = vdwg.mxu0
    %1276 = vmatprep.subr.bf16.mxu0 0
    %1277 = vmatpush1.bf16.msra.mxu0 0
    %1278 = vmatprep.subr.bf16.mxu0 0
    %1279 = vmatpush1.bf16.msra.mxu0 0
    %1280 = vmatprep.subr.bf16.mxu0 0
    %1281 = vmatpush1.bf16.msra.mxu0 0
    %1282 = vmatprep.subr.bf16.mxu0 0
    %1283 = vmatpush1.bf16.msra.mxu0 0
    %1284 = vmatprep.subr.bf16.mxu0 0
    %1285 = vmatpush1.bf16.msra.mxu0 0
    %1286 = vmatprep.subr.bf16.mxu0 0
    %1287 = vmatpush1.bf16.msra.mxu0 0
    %1288 = vmatprep.subr.bf16.mxu0 0
    %1289 = vmatpush1.bf16.msra.mxu0 %v810
    %1290 = vmatprep.subr.bf16.mxu0 0
    %1291 = vmatpush1.bf16.msra.mxu0 %v809
    %1292 = vmatprep.subr.bf16.mxu0 0
    %1293 = vmatpush2.bf16.msra.mxu0 0
    %1294 = vmatprep.subr.bf16.mxu0 0
    %1295 = vmatpush2.bf16.msra.mxu0 0
    %1296 = vmatprep.subr.bf16.mxu0 0
    %1297 = vmatpush2.bf16.msra.mxu0 0
    %1298 = vmatprep.subr.bf16.mxu0 0
    %1299 = vmatpush2.bf16.msra.mxu0 0
    %1300 = vmatprep.subr.bf16.mxu0 0
    %1301 = vmatpush2.bf16.msra.mxu0 0
    %1302 = vmatprep.subr.bf16.mxu0 0
    %1303 = vmatpush2.bf16.msra.mxu0 0
    %1304 = vmatprep.subr.bf16.mxu0 0
    %1305 = vmatpush2.bf16.msra.mxu0 0
    %1306 = vmatprep.subr.bf16.mxu0 0
    %1307 = vmatpush2.bf16.msra.mxu0 0
    %1308 = vmatprep.mubr.bf16.mxu0 0
    %1309 = vmatmul.mubr.bf16.gmra.mxu0 %v572
    %v1310 = vpop.f32.mrf.mxu0
    %v1311 = vadd.f32 0.0, %v1310
    %v1312 = vpop.f32.mrf.mxu0
    %v1313 = vpop.f32.mrf.mxu0
    %v1314 = vadd.f32 0.0, %v1313
    %v1315 = vpop.f32.mrf.mxu0
    %1316 = vdwg.mxu0
    %v1317 = vadd.f32 %v1270, %v1311
    %v1318 = vadd.f32 %v1273, %v1314
    %1319 = vmatprep.subr.bf16.mxu0 0
    %1320 = vmatpush1.bf16.msra.mxu0 0
    %1321 = vmatprep.subr.bf16.mxu0 0
    %1322 = vmatpush1.bf16.msra.mxu0 0
    %1323 = vmatprep.subr.bf16.mxu0 0
    %1324 = vmatpush1.bf16.msra.mxu0 0
    %1325 = vmatprep.subr.bf16.mxu0 0
    %1326 = vmatpush1.bf16.msra.mxu0 0
    %1327 = vmatprep.subr.bf16.mxu0 0
    %1328 = vmatpush1.bf16.msra.mxu0 0
    %1329 = vmatprep.subr.bf16.mxu0 0
    %1330 = vmatpush1.bf16.msra.mxu0 0
    %1331 = vmatprep.subr.bf16.mxu0 0
    %1332 = vmatpush1.bf16.msra.mxu0 %v870
    %1333 = vmatprep.subr.bf16.mxu0 0
    %1334 = vmatpush1.bf16.msra.mxu0 %v869
    %1335 = vmatprep.subr.bf16.mxu0 0
    %1336 = vmatpush2.bf16.msra.mxu0 0
    %1337 = vmatprep.subr.bf16.mxu0 0
    %1338 = vmatpush2.bf16.msra.mxu0 0
    %1339 = vmatprep.subr.bf16.mxu0 0
    %1340 = vmatpush2.bf16.msra.mxu0 0
    %1341 = vmatprep.subr.bf16.mxu0 0
    %1342 = vmatpush2.bf16.msra.mxu0 0
    %1343 = vmatprep.subr.bf16.mxu0 0
    %1344 = vmatpush2.bf16.msra.mxu0 0
    %1345 = vmatprep.subr.bf16.mxu0 0
    %1346 = vmatpush2.bf16.msra.mxu0 0
    %1347 = vmatprep.subr.bf16.mxu0 0
    %1348 = vmatpush2.bf16.msra.mxu0 0
    %1349 = vmatprep.subr.bf16.mxu0 0
    %1350 = vmatpush2.bf16.msra.mxu0 0
    %1351 = vmatprep.mubr.bf16.mxu0 0
    %1352 = vmatmul.mubr.bf16.gmra.mxu0 %v635
    %v1353 = vpop.f32.mrf.mxu0
    %v1354 = vadd.f32 0.0, %v1353
    %v1355 = vpop.f32.mrf.mxu0
    %v1356 = vpop.f32.mrf.mxu0
    %v1357 = vadd.f32 0.0, %v1356
    %v1358 = vpop.f32.mrf.mxu0
    %1359 = vdwg.mxu0
    %v1360 = vadd.f32 %v1317, %v1354
    %v1361 = vadd.f32 %v1318, %v1357
    %1362 = vmatprep.subr.bf16.mxu0 0
    %1363 = vmatpush1.bf16.msra.mxu0 0
    %1364 = vmatprep.subr.bf16.mxu0 0
    %1365 = vmatpush1.bf16.msra.mxu0 0
    %1366 = vmatprep.subr.bf16.mxu0 0
    %1367 = vmatpush1.bf16.msra.mxu0 0
    %1368 = vmatprep.subr.bf16.mxu0 0
    %1369 = vmatpush1.bf16.msra.mxu0 0
    %1370 = vmatprep.subr.bf16.mxu0 0
    %1371 = vmatpush1.bf16.msra.mxu0 0
    %1372 = vmatprep.subr.bf16.mxu0 0
    %1373 = vmatpush1.bf16.msra.mxu0 0
    %1374 = vmatprep.subr.bf16.mxu0 0
    %1375 = vmatpush1.bf16.msra.mxu0 %v930
    %1376 = vmatprep.subr.bf16.mxu0 0
    %1377 = vmatpush1.bf16.msra.mxu0 %v929
    %1378 = vmatprep.subr.bf16.mxu0 0
    %1379 = vmatpush2.bf16.msra.mxu0 0
    %1380 = vmatprep.subr.bf16.mxu0 0
    %1381 = vmatpush2.bf16.msra.mxu0 0
    %1382 = vmatprep.subr.bf16.mxu0 0
    %1383 = vmatpush2.bf16.msra.mxu0 0
    %1384 = vmatprep.subr.bf16.mxu0 0
    %1385 = vmatpush2.bf16.msra.mxu0 0
    %1386 = vmatprep.subr.bf16.mxu0 0
    %1387 = vmatpush2.bf16.msra.mxu0 0
    %1388 = vmatprep.subr.bf16.mxu0 0
    %1389 = vmatpush2.bf16.msra.mxu0 0
    %1390 = vmatprep.subr.bf16.mxu0 0
    %1391 = vmatpush2.bf16.msra.mxu0 0
    %1392 = vmatprep.subr.bf16.mxu0 0
    %1393 = vmatpush2.bf16.msra.mxu0 0
    %1394 = vmatprep.mubr.bf16.mxu0 0
    %1395 = vmatmul.mubr.bf16.gmra.mxu0 %v1147
    %v1396 = vpop.f32.mrf.mxu0
    %v1397 = vadd.f32 0.0, %v1396
    %v1398 = vpop.f32.mrf.mxu0
    %v1399 = vpop.f32.mrf.mxu0
    %v1400 = vadd.f32 0.0, %v1399
    %v1401 = vpop.f32.mrf.mxu0
    %1402 = vdwg.mxu0
    %v1403 = vadd.f32 %v1360, %v1397
    %v1404 = vadd.f32 %v1361, %v1400
    %v1405 = vmax.f32 %v1192, %v1403
    %v1406 = vmax.f32 %v1193, %v1404
    %v1407 = vld [vmem:[%s3] sm:$0x1]
    %v1409 = vlaneseq
    %v1410 = vshrl.u32 %v1409, 7
    %v1411 = vsub.s32 0, %v1410
    %v1412 = vrot.slane %v1407, %v1411
    %v1414 = vadd.f32 %v1405, %v1412
    %v1415 = vadd.f32 %v1406, %v1412
    %v1416 = vmax.f32 %v1414, 0.0
    %v1417 = vmax.f32 %v1415, 0.0
    %v1418 = vpack.c.bf16 %v1417, %v1416
    %v1419 = vld [vmem:[%s4] sm:$0x7]
    %vm1420 = vcmask 113664
    %v1422 = vsel %vm1420, %v1419, 0
    %vm1424 = vcmask 1046528
    %v1426 = vsel %vm1424, %v1418, 0
    %1428 = vmatprep.subr.bf16.mxu0 0
    %1429 = vmatpush1.bf16.msra.mxu0 0
    %1430 = vmatprep.subr.bf16.mxu0 0
    %1431 = vmatpush1.bf16.msra.mxu0 0
    %1432 = vmatprep.subr.bf16.mxu0 0
    %1433 = vmatpush1.bf16.msra.mxu0 0
    %1434 = vmatprep.subr.bf16.mxu0 0
    %1435 = vmatpush1.bf16.msra.mxu0 0
    %1436 = vmatprep.subr.bf16.mxu0 0
    %1437 = vmatpush1.bf16.msra.mxu0 0
    %1438 = vmatprep.subr.bf16.mxu0 0
    %1439 = vmatpush1.bf16.msra.mxu0 0
    %1440 = vmatprep.subr.bf16.mxu0 0
    %1441 = vmatpush1.bf16.msra.mxu0 0
    %1442 = vmatprep.subr.bf16.mxu0 0
    %1443 = vmatpush1.bf16.msra.mxu0 %v1426
    %1444 = vmatprep.subr.bf16.mxu0 0
    %1445 = vmatpush2.bf16.msra.mxu0 0
    %1446 = vmatprep.subr.bf16.mxu0 0
    %1447 = vmatpush2.bf16.msra.mxu0 0
    %1448 = vmatprep.subr.bf16.mxu0 0
    %1449 = vmatpush2.bf16.msra.mxu0 0
    %1450 = vmatprep.subr.bf16.mxu0 0
    %1451 = vmatpush2.bf16.msra.mxu0 0
    %1452 = vmatprep.subr.bf16.mxu0 0
    %1453 = vmatpush2.bf16.msra.mxu0 0
    %1454 = vmatprep.subr.bf16.mxu0 0
    %1455 = vmatpush2.bf16.msra.mxu0 0
    %1456 = vmatprep.subr.bf16.mxu0 0
    %1457 = vmatpush2.bf16.msra.mxu0 0
    %1458 = vmatprep.subr.bf16.mxu0 0
    %1459 = vmatpush2.bf16.msra.mxu0 0
    %1460 = vmatprep.mubr.bf16.mxu0 0
    %1461 = vmatmul.mubr.bf16.gmra.mxu0 %v1422
    %v1462 = vpop.f32.mrf.mxu0
    %v1463 = vadd.f32 0.0, %v1462
    %v1464 = vpop.f32.mrf.mxu0
    %v1465 = vpop.f32.mrf.mxu0
    %v1466 = vpop.f32.mrf.mxu0
    %1467 = vdwg.mxu0
    %v1468 = vpack.c.bf16 %v1463, %v1463
    %s1469 = scalar_lea.vmem %s4, 4
    %v1470 = vld [vmem:[%s1469] sm:$0x7]
    %v1472 = vsel %vm1420, %v1470, 0
    %1474 = vmatprep.subr.bf16.mxu0 0
    %1475 = vmatpush1.bf16.msra.mxu0 0
    %1476 = vmatprep.subr.bf16.mxu0 0
    %1477 = vmatpush1.bf16.msra.mxu0 0
    %1478 = vmatprep.subr.bf16.mxu0 0
    %1479 = vmatpush1.bf16.msra.mxu0 0
    %1480 = vmatprep.subr.bf16.mxu0 0
    %1481 = vmatpush1.bf16.msra.mxu0 0
    %1482 = vmatprep.subr.bf16.mxu0 0
    %1483 = vmatpush1.bf16.msra.mxu0 0
    %1484 = vmatprep.subr.bf16.mxu0 0
    %1485 = vmatpush1.bf16.msra.mxu0 0
    %1486 = vmatprep.subr.bf16.mxu0 0
    %1487 = vmatpush1.bf16.msra.mxu0 0
    %1488 = vmatprep.subr.bf16.mxu0 0
    %1489 = vmatpush1.bf16.msra.mxu0 %v1426
    %1490 = vmatprep.subr.bf16.mxu0 0
    %1491 = vmatpush2.bf16.msra.mxu0 0
    %1492 = vmatprep.subr.bf16.mxu0 0
    %1493 = vmatpush2.bf16.msra.mxu0 0
    %1494 = vmatprep.subr.bf16.mxu0 0
    %1495 = vmatpush2.bf16.msra.mxu0 0
    %1496 = vmatprep.subr.bf16.mxu0 0
    %1497 = vmatpush2.bf16.msra.mxu0 0
    %1498 = vmatprep.subr.bf16.mxu0 0
    %1499 = vmatpush2.bf16.msra.mxu0 0
    %1500 = vmatprep.subr.bf16.mxu0 0
    %1501 = vmatpush2.bf16.msra.mxu0 0
    %1502 = vmatprep.subr.bf16.mxu0 0
    %1503 = vmatpush2.bf16.msra.mxu0 0
    %1504 = vmatprep.subr.bf16.mxu0 0
    %1505 = vmatpush2.bf16.msra.mxu0 0
    %1506 = vmatprep.mubr.bf16.mxu0 0
    %1507 = vmatmul.mubr.bf16.gmra.mxu0 %v1472
    %v1508 = vpop.f32.mrf.mxu0
    %v1509 = vadd.f32 0.0, %v1508
    %v1510 = vpop.f32.mrf.mxu0
    %v1511 = vpop.f32.mrf.mxu0
    %v1512 = vpop.f32.mrf.mxu0
    %1513 = vdwg.mxu0
    %v1514 = vpack.c.bf16 %v1509, %v1509
    %s1515 = scalar_lea.vmem %s4, 8
    %v1516 = vld [vmem:[%s1515] sm:$0x7]
    %v1518 = vsel %vm1420, %v1516, 0
    %1520 = vmatprep.subr.bf16.mxu0 0
    %1521 = vmatpush1.bf16.msra.mxu0 0
    %1522 = vmatprep.subr.bf16.mxu0 0
    %1523 = vmatpush1.bf16.msra.mxu0 0
    %1524 = vmatprep.subr.bf16.mxu0 0
    %1525 = vmatpush1.bf16.msra.mxu0 0
    %1526 = vmatprep.subr.bf16.mxu0 0
    %1527 = vmatpush1.bf16.msra.mxu0 0
    %1528 = vmatprep.subr.bf16.mxu0 0
    %1529 = vmatpush1.bf16.msra.mxu0 0
    %1530 = vmatprep.subr.bf16.mxu0 0
    %1531 = vmatpush1.bf16.msra.mxu0 0
    %1532 = vmatprep.subr.bf16.mxu0 0
    %1533 = vmatpush1.bf16.msra.mxu0 0
    %1534 = vmatprep.subr.bf16.mxu0 0
    %1535 = vmatpush1.bf16.msra.mxu0 %v1426
    %1536 = vmatprep.subr.bf16.mxu0 0
    %1537 = vmatpush2.bf16.msra.mxu0 0
    %1538 = vmatprep.subr.bf16.mxu0 0
    %1539 = vmatpush2.bf16.msra.mxu0 0
    %1540 = vmatprep.subr.bf16.mxu0 0
    %1541 = vmatpush2.bf16.msra.mxu0 0
    %1542 = vmatprep.subr.bf16.mxu0 0
    %1543 = vmatpush2.bf16.msra.mxu0 0
    %1544 = vmatprep.subr.bf16.mxu0 0
    %1545 = vmatpush2.bf16.msra.mxu0 0
    %1546 = vmatprep.subr.bf16.mxu0 0
    %1547 = vmatpush2.bf16.msra.mxu0 0
    %1548 = vmatprep.subr.bf16.mxu0 0
    %1549 = vmatpush2.bf16.msra.mxu0 0
    %1550 = vmatprep.subr.bf16.mxu0 0
    %1551 = vmatpush2.bf16.msra.mxu0 0
    %1552 = vmatprep.mubr.bf16.mxu0 0
    %1553 = vmatmul.mubr.bf16.gmra.mxu0 %v1518
    %v1554 = vpop.f32.mrf.mxu0
    %v1555 = vadd.f32 0.0, %v1554
    %v1556 = vpop.f32.mrf.mxu0
    %v1557 = vpop.f32.mrf.mxu0
    %v1558 = vpop.f32.mrf.mxu0
    %1559 = vdwg.mxu0
    %v1560 = vpack.c.bf16 %v1555, %v1555
    %s1561 = scalar_lea.vmem %s4, 12
    %v1562 = vld [vmem:[%s1561] sm:$0x7]
    %v1564 = vsel %vm1420, %v1562, 0
    %1566 = vmatprep.subr.bf16.mxu0 0
    %1567 = vmatpush1.bf16.msra.mxu0 0
    %1568 = vmatprep.subr.bf16.mxu0 0
    %1569 = vmatpush1.bf16.msra.mxu0 0
    %1570 = vmatprep.subr.bf16.mxu0 0
    %1571 = vmatpush1.bf16.msra.mxu0 0
    %1572 = vmatprep.subr.bf16.mxu0 0
    %1573 = vmatpush1.bf16.msra.mxu0 0
    %1574 = vmatprep.subr.bf16.mxu0 0
    %1575 = vmatpush1.bf16.msra.mxu0 0
    %1576 = vmatprep.subr.bf16.mxu0 0
    %1577 = vmatpush1.bf16.msra.mxu0 0
    %1578 = vmatprep.subr.bf16.mxu0 0
    %1579 = vmatpush1.bf16.msra.mxu0 0
    %1580 = vmatprep.subr.bf16.mxu0 0
    %1581 = vmatpush1.bf16.msra.mxu0 %v1426
    %1582 = vmatprep.subr.bf16.mxu0 0
    %1583 = vmatpush2.bf16.msra.mxu0 0
    %1584 = vmatprep.subr.bf16.mxu0 0
    %1585 = vmatpush2.bf16.msra.mxu0 0
    %1586 = vmatprep.subr.bf16.mxu0 0
    %1587 = vmatpush2.bf16.msra.mxu0 0
    %1588 = vmatprep.subr.bf16.mxu0 0
    %1589 = vmatpush2.bf16.msra.mxu0 0
    %1590 = vmatprep.subr.bf16.mxu0 0
    %1591 = vmatpush2.bf16.msra.mxu0 0
    %1592 = vmatprep.subr.bf16.mxu0 0
    %1593 = vmatpush2.bf16.msra.mxu0 0
    %1594 = vmatprep.subr.bf16.mxu0 0
    %1595 = vmatpush2.bf16.msra.mxu0 0
    %1596 = vmatprep.subr.bf16.mxu0 0
    %1597 = vmatpush2.bf16.msra.mxu0 0
    %1598 = vmatprep.mubr.bf16.mxu0 0
    %1599 = vmatmul.mubr.bf16.gmra.mxu0 %v1564
    %v1600 = vpop.f32.mrf.mxu0
    %v1601 = vadd.f32 0.0, %v1600
    %v1602 = vpop.f32.mrf.mxu0
    %v1603 = vpop.f32.mrf.mxu0
    %v1604 = vpop.f32.mrf.mxu0
    %1605 = vdwg.mxu0
    %v1606 = vpack.c.bf16 %v1601, %v1601
    %s1607 = scalar_lea.vmem %s4, 16
    %v1608 = vld [vmem:[%s1607] sm:$0x7]
    %v1610 = vsel %vm1420, %v1608, 0
    %1612 = vmatprep.subr.bf16.mxu0 0
    %1613 = vmatpush1.bf16.msra.mxu0 0
    %1614 = vmatprep.subr.bf16.mxu0 0
    %1615 = vmatpush1.bf16.msra.mxu0 0
    %1616 = vmatprep.subr.bf16.mxu0 0
    %1617 = vmatpush1.bf16.msra.mxu0 0
    %1618 = vmatprep.subr.bf16.mxu0 0
    %1619 = vmatpush1.bf16.msra.mxu0 0
    %1620 = vmatprep.subr.bf16.mxu0 0
    %1621 = vmatpush1.bf16.msra.mxu0 0
    %1622 = vmatprep.subr.bf16.mxu0 0
    %1623 = vmatpush1.bf16.msra.mxu0 0
    %1624 = vmatprep.subr.bf16.mxu0 0
    %1625 = vmatpush1.bf16.msra.mxu0 0
    %1626 = vmatprep.subr.bf16.mxu0 0
    %1627 = vmatpush1.bf16.msra.mxu0 %v1426
    %1628 = vmatprep.subr.bf16.mxu0 0
    %1629 = vmatpush2.bf16.msra.mxu0 0
    %1630 = vmatprep.subr.bf16.mxu0 0
    %1631 = vmatpush2.bf16.msra.mxu0 0
    %1632 = vmatprep.subr.bf16.mxu0 0
    %1633 = vmatpush2.bf16.msra.mxu0 0
    %1634 = vmatprep.subr.bf16.mxu0 0
    %1635 = vmatpush2.bf16.msra.mxu0 0
    %1636 = vmatprep.subr.bf16.mxu0 0
    %1637 = vmatpush2.bf16.msra.mxu0 0
    %1638 = vmatprep.subr.bf16.mxu0 0
    %1639 = vmatpush2.bf16.msra.mxu0 0
    %1640 = vmatprep.subr.bf16.mxu0 0
    %1641 = vmatpush2.bf16.msra.mxu0 0
    %1642 = vmatprep.subr.bf16.mxu0 0
    %1643 = vmatpush2.bf16.msra.mxu0 0
    %1644 = vmatprep.mubr.bf16.mxu0 0
    %1645 = vmatmul.mubr.bf16.gmra.mxu0 %v1610
    %v1646 = vpop.f32.mrf.mxu0
    %v1647 = vadd.f32 0.0, %v1646
    %v1648 = vpop.f32.mrf.mxu0
    %v1649 = vpop.f32.mrf.mxu0
    %v1650 = vpop.f32.mrf.mxu0
    %1651 = vdwg.mxu0
    %v1652 = vpack.c.bf16 %v1647, %v1647
    %s1653 = scalar_lea.vmem %s4, 20
    %v1654 = vld [vmem:[%s1653] sm:$0x7]
    %v1656 = vsel %vm1420, %v1654, 0
    %1658 = vmatprep.subr.bf16.mxu0 0
    %1659 = vmatpush1.bf16.msra.mxu0 0
    %1660 = vmatprep.subr.bf16.mxu0 0
    %1661 = vmatpush1.bf16.msra.mxu0 0
    %1662 = vmatprep.subr.bf16.mxu0 0
    %1663 = vmatpush1.bf16.msra.mxu0 0
    %1664 = vmatprep.subr.bf16.mxu0 0
    %1665 = vmatpush1.bf16.msra.mxu0 0
    %1666 = vmatprep.subr.bf16.mxu0 0
    %1667 = vmatpush1.bf16.msra.mxu0 0
    %1668 = vmatprep.subr.bf16.mxu0 0
    %1669 = vmatpush1.bf16.msra.mxu0 0
    %1670 = vmatprep.subr.bf16.mxu0 0
    %1671 = vmatpush1.bf16.msra.mxu0 0
    %1672 = vmatprep.subr.bf16.mxu0 0
    %1673 = vmatpush1.bf16.msra.mxu0 %v1426
    %1674 = vmatprep.subr.bf16.mxu0 0
    %1675 = vmatpush2.bf16.msra.mxu0 0
    %1676 = vmatprep.subr.bf16.mxu0 0
    %1677 = vmatpush2.bf16.msra.mxu0 0
    %1678 = vmatprep.subr.bf16.mxu0 0
    %1679 = vmatpush2.bf16.msra.mxu0 0
    %1680 = vmatprep.subr.bf16.mxu0 0
    %1681 = vmatpush2.bf16.msra.mxu0 0
    %1682 = vmatprep.subr.bf16.mxu0 0
    %1683 = vmatpush2.bf16.msra.mxu0 0
    %1684 = vmatprep.subr.bf16.mxu0 0
    %1685 = vmatpush2.bf16.msra.mxu0 0
    %1686 = vmatprep.subr.bf16.mxu0 0
    %1687 = vmatpush2.bf16.msra.mxu0 0
    %1688 = vmatprep.subr.bf16.mxu0 0
    %1689 = vmatpush2.bf16.msra.mxu0 0
    %1690 = vmatprep.mubr.bf16.mxu0 0
    %1691 = vmatmul.mubr.bf16.gmra.mxu0 %v1656
    %v1692 = vpop.f32.mrf.mxu0
    %v1693 = vadd.f32 0.0, %v1692
    %v1694 = vpop.f32.mrf.mxu0
    %v1695 = vpop.f32.mrf.mxu0
    %v1696 = vpop.f32.mrf.mxu0
    %1697 = vdwg.mxu0
    %v1698 = vpack.c.bf16 %v1693, %v1693
    %v1699 = vld [vmem:[%s5] sm:$0xf]
    %v1700 = vld [vmem:[%s5 + $0x4] sm:$0xf]
    %v1701 = vld [vmem:[%s5 + $0x8] sm:$0xf]
    %v1702 = vld [vmem:[%s5 + $0xc] sm:$0xf]
    %v1703 = vld [vmem:[%s5 + $0x10] sm:$0xf]
    %v1704 = vld [vmem:[%s5 + $0x14] sm:$0xf]
    %v1705 = vld [vmem:[%s5 + $0x18] sm:$0xf]
    %v1706 = vld [vmem:[%s5 + $0x1c] sm:$0xf]
    %v1707 = vld [vmem:[%s5 + $0x20] sm:$0xf]
    %v1708 = vld [vmem:[%s5 + $0x24] sm:$0xf]
    %v1709 = vld [vmem:[%s5 + $0x28] sm:$0x3]
    %s1710 = scalar_lea.vmem %s5, 44
    %v1711 = vld [vmem:[%s1710] sm:$0xf]
    %v1712 = vld [vmem:[%s1710 + $0x4] sm:$0xf]
    %v1713 = vld [vmem:[%s1710 + $0x8] sm:$0xf]
    %v1714 = vld [vmem:[%s1710 + $0xc] sm:$0xf]
    %v1715 = vld [vmem:[%s1710 + $0x10] sm:$0xf]
    %v1716 = vld [vmem:[%s1710 + $0x14] sm:$0xf]
    %v1717 = vld [vmem:[%s1710 + $0x18] sm:$0xf]
    %v1718 = vld [vmem:[%s1710 + $0x1c] sm:$0xf]
    %v1719 = vld [vmem:[%s1710 + $0x20] sm:$0xf]
    %v1720 = vld [vmem:[%s1710 + $0x24] sm:$0xf]
    %v1721 = vld [vmem:[%s1710 + $0x28] sm:$0x3]
    %v1733 = vunpack.c.l.b16 %v1711
    %v1734 = vunpack.c.l.b16 %v1712
    %v1735 = vunpack.c.l.b16 %v1713
    %v1736 = vunpack.c.l.b16 %v1714
    %v1737 = vunpack.c.l.b16 %v1715
    %v1738 = vunpack.c.l.b16 %v1716
    %v1739 = vunpack.c.l.b16 %v1717
    %v1740 = vunpack.c.l.b16 %v1718
    %v1741 = vunpack.c.l.b16 %v1719
    %v1742 = vunpack.c.l.b16 %v1720
    %v1743 = vunpack.c.l.b16 %v1721
    %v1744 = vpack.c.b16 %v1734, %v1733
    %v1745 = vpack.c.b16 %v1736, %v1735
    %v1746 = vpack.c.b16 %v1738, %v1737
    %v1747 = vpack.c.b16 %v1740, %v1739
    %v1748 = vpack.c.b16 %v1742, %v1741
    %v1749 = vpack.c.b16 %v1743, %v1743
    %vm1755 = vcmask 687104
    %v1757 = vsel %vm1755, %v1514, 0
    %vm1759 = vcmask 1041408
    %v1761 = vsel %vm1759, %v1749, 0
    %1763 = vmatprep.subr.bf16.mxu0 0
    %1764 = vmatpush1.bf16.msra.mxu0 0
    %1765 = vmatprep.subr.bf16.mxu0 0
    %1766 = vmatpush1.bf16.msra.mxu0 0
    %1767 = vmatprep.subr.bf16.mxu0 0
    %1768 = vmatpush1.bf16.msra.mxu0 %v1761
    %1769 = vmatprep.subr.bf16.mxu0 0
    %1770 = vmatpush1.bf16.msra.mxu0 %v1748
    %1771 = vmatprep.subr.bf16.mxu0 0
    %1772 = vmatpush1.bf16.msra.mxu0 %v1747
    %1773 = vmatprep.subr.bf16.mxu0 0
    %1774 = vmatpush1.bf16.msra.mxu0 %v1746
    %1775 = vmatprep.subr.bf16.mxu0 0
    %1776 = vmatpush1.bf16.msra.mxu0 %v1745
    %1777 = vmatprep.subr.bf16.mxu0 0
    %1778 = vmatpush1.bf16.msra.mxu0 %v1744
    %1779 = vmatprep.subr.bf16.mxu0 0
    %1780 = vmatpush2.bf16.msra.mxu0 0
    %1781 = vmatprep.subr.bf16.mxu0 0
    %1782 = vmatpush2.bf16.msra.mxu0 0
    %1783 = vmatprep.subr.bf16.mxu0 0
    %1784 = vmatpush2.bf16.msra.mxu0 0
    %1785 = vmatprep.subr.bf16.mxu0 0
    %1786 = vmatpush2.bf16.msra.mxu0 0
    %1787 = vmatprep.subr.bf16.mxu0 0
    %1788 = vmatpush2.bf16.msra.mxu0 0
    %1789 = vmatprep.subr.bf16.mxu0 0
    %1790 = vmatpush2.bf16.msra.mxu0 0
    %1791 = vmatprep.subr.bf16.mxu0 0
    %1792 = vmatpush2.bf16.msra.mxu0 0
    %1793 = vmatprep.subr.bf16.mxu0 0
    %1794 = vmatpush2.bf16.msra.mxu0 0
    %1795 = vmatprep.mubr.bf16.mxu0 0
    %1796 = vmatmul.mubr.bf16.gmra.mxu0 %v1757
    %v1797 = vpop.f32.mrf.mxu0
    %v1798 = vadd.f32 0.0, %v1797
    %v1799 = vpop.f32.mrf.mxu0
    %v1800 = vpop.f32.mrf.mxu0
    %v1801 = vpop.f32.mrf.mxu0
    %1802 = vdwg.mxu0
    %v1814 = vunpack.c.l.b16 %v1699
    %v1815 = vunpack.c.l.b16 %v1700
    %v1816 = vunpack.c.l.b16 %v1701
    %v1817 = vunpack.c.l.b16 %v1702
    %v1818 = vunpack.c.l.b16 %v1703
    %v1819 = vunpack.c.l.b16 %v1704
    %v1820 = vunpack.c.l.b16 %v1705
    %v1821 = vunpack.c.l.b16 %v1706
    %v1822 = vunpack.c.l.b16 %v1707
    %v1823 = vunpack.c.l.b16 %v1708
    %v1824 = vunpack.c.l.b16 %v1709
    %v1825 = vpack.c.b16 %v1815, %v1814
    %v1826 = vpack.c.b16 %v1817, %v1816
    %v1827 = vpack.c.b16 %v1819, %v1818
    %v1828 = vpack.c.b16 %v1821, %v1820
    %v1829 = vpack.c.b16 %v1823, %v1822
    %v1830 = vpack.c.b16 %v1824, %v1824
    %v1837 = vsel %vm1755, %v1468, 0
    %v1840 = vsel %vm1759, %v1830, 0
    %1842 = vmatprep.subr.bf16.mxu0 0
    %1843 = vmatpush1.bf16.msra.mxu0 0
    %1844 = vmatprep.subr.bf16.mxu0 0
    %1845 = vmatpush1.bf16.msra.mxu0 0
    %1846 = vmatprep.subr.bf16.mxu0 0
    %1847 = vmatpush1.bf16.msra.mxu0 %v1840
    %1848 = vmatprep.subr.bf16.mxu0 0
    %1849 = vmatpush1.bf16.msra.mxu0 %v1829
    %1850 = vmatprep.subr.bf16.mxu0 0
    %1851 = vmatpush1.bf16.msra.mxu0 %v1828
    %1852 = vmatprep.subr.bf16.mxu0 0
    %1853 = vmatpush1.bf16.msra.mxu0 %v1827
    %1854 = vmatprep.subr.bf16.mxu0 0
    %1855 = vmatpush1.bf16.msra.mxu0 %v1826
    %1856 = vmatprep.subr.bf16.mxu0 0
    %1857 = vmatpush1.bf16.msra.mxu0 %v1825
    %1858 = vmatprep.subr.bf16.mxu0 0
    %1859 = vmatpush2.bf16.msra.mxu0 0
    %1860 = vmatprep.subr.bf16.mxu0 0
    %1861 = vmatpush2.bf16.msra.mxu0 0
    %1862 = vmatprep.subr.bf16.mxu0 0
    %1863 = vmatpush2.bf16.msra.mxu0 0
    %1864 = vmatprep.subr.bf16.mxu0 0
    %1865 = vmatpush2.bf16.msra.mxu0 0
    %1866 = vmatprep.subr.bf16.mxu0 0
    %1867 = vmatpush2.bf16.msra.mxu0 0
    %1868 = vmatprep.subr.bf16.mxu0 0
    %1869 = vmatpush2.bf16.msra.mxu0 0
    %1870 = vmatprep.subr.bf16.mxu0 0
    %1871 = vmatpush2.bf16.msra.mxu0 0
    %1872 = vmatprep.subr.bf16.mxu0 0
    %1873 = vmatpush2.bf16.msra.mxu0 0
    %1874 = vmatprep.mubr.bf16.mxu0 0
    %1875 = vmatmul.mubr.bf16.gmra.mxu0 %v1837
    %v1876 = vpop.f32.mrf.mxu0
    %v1877 = vadd.f32 %v1798, %v1876
    %v1878 = vpop.f32.mrf.mxu0
    %v1879 = vpop.f32.mrf.mxu0
    %v1880 = vpop.f32.mrf.mxu0
    %1881 = vdwg.mxu0
    %s1882 = scalar_lea.vmem %s5, 88
    %v1883 = vld [vmem:[%s1882] sm:$0xf]
    %v1884 = vld [vmem:[%s1882 + $0x4] sm:$0xf]
    %v1885 = vld [vmem:[%s1882 + $0x8] sm:$0xf]
    %v1886 = vld [vmem:[%s1882 + $0xc] sm:$0xf]
    %v1887 = vld [vmem:[%s1882 + $0x10] sm:$0xf]
    %v1888 = vld [vmem:[%s1882 + $0x14] sm:$0xf]
    %v1889 = vld [vmem:[%s1882 + $0x18] sm:$0xf]
    %v1890 = vld [vmem:[%s1882 + $0x1c] sm:$0xf]
    %v1891 = vld [vmem:[%s1882 + $0x20] sm:$0xf]
    %v1892 = vld [vmem:[%s1882 + $0x24] sm:$0xf]
    %v1893 = vld [vmem:[%s1882 + $0x28] sm:$0x3]
    %v1905 = vunpack.c.l.b16 %v1883
    %v1906 = vunpack.c.l.b16 %v1884
    %v1907 = vunpack.c.l.b16 %v1885
    %v1908 = vunpack.c.l.b16 %v1886
    %v1909 = vunpack.c.l.b16 %v1887
    %v1910 = vunpack.c.l.b16 %v1888
    %v1911 = vunpack.c.l.b16 %v1889
    %v1912 = vunpack.c.l.b16 %v1890
    %v1913 = vunpack.c.l.b16 %v1891
    %v1914 = vunpack.c.l.b16 %v1892
    %v1915 = vunpack.c.l.b16 %v1893
    %v1916 = vpack.c.b16 %v1906, %v1905
    %v1917 = vpack.c.b16 %v1908, %v1907
    %v1918 = vpack.c.b16 %v1910, %v1909
    %v1919 = vpack.c.b16 %v1912, %v1911
    %v1920 = vpack.c.b16 %v1914, %v1913
    %v1921 = vpack.c.b16 %v1915, %v1915
    %v1928 = vsel %vm1755, %v1560, 0
    %v1931 = vsel %vm1759, %v1921, 0
    %1933 = vmatprep.subr.bf16.mxu0 0
    %1934 = vmatpush1.bf16.msra.mxu0 0
    %1935 = vmatprep.subr.bf16.mxu0 0
    %1936 = vmatpush1.bf16.msra.mxu0 0
    %1937 = vmatprep.subr.bf16.mxu0 0
    %1938 = vmatpush1.bf16.msra.mxu0 %v1931
    %1939 = vmatprep.subr.bf16.mxu0 0
    %1940 = vmatpush1.bf16.msra.mxu0 %v1920
    %1941 = vmatprep.subr.bf16.mxu0 0
    %1942 = vmatpush1.bf16.msra.mxu0 %v1919
    %1943 = vmatprep.subr.bf16.mxu0 0
    %1944 = vmatpush1.bf16.msra.mxu0 %v1918
    %1945 = vmatprep.subr.bf16.mxu0 0
    %1946 = vmatpush1.bf16.msra.mxu0 %v1917
    %1947 = vmatprep.subr.bf16.mxu0 0
    %1948 = vmatpush1.bf16.msra.mxu0 %v1916
    %1949 = vmatprep.subr.bf16.mxu0 0
    %1950 = vmatpush2.bf16.msra.mxu0 0
    %1951 = vmatprep.subr.bf16.mxu0 0
    %1952 = vmatpush2.bf16.msra.mxu0 0
    %1953 = vmatprep.subr.bf16.mxu0 0
    %1954 = vmatpush2.bf16.msra.mxu0 0
    %1955 = vmatprep.subr.bf16.mxu0 0
    %1956 = vmatpush2.bf16.msra.mxu0 0
    %1957 = vmatprep.subr.bf16.mxu0 0
    %1958 = vmatpush2.bf16.msra.mxu0 0
    %1959 = vmatprep.subr.bf16.mxu0 0
    %1960 = vmatpush2.bf16.msra.mxu0 0
    %1961 = vmatprep.subr.bf16.mxu0 0
    %1962 = vmatpush2.bf16.msra.mxu0 0
    %1963 = vmatprep.subr.bf16.mxu0 0
    %1964 = vmatpush2.bf16.msra.mxu0 0
    %1965 = vmatprep.mubr.bf16.mxu0 0
    %1966 = vmatmul.mubr.bf16.gmra.mxu0 %v1928
    %v1967 = vpop.f32.mrf.mxu0
    %v1968 = vadd.f32 0.0, %v1967
    %v1969 = vpop.f32.mrf.mxu0
    %v1970 = vpop.f32.mrf.mxu0
    %v1971 = vpop.f32.mrf.mxu0
    %1972 = vdwg.mxu0
    %v1973 = vadd.f32 %v1877, %v1968
    %s1974 = scalar_lea.vmem %s5, 132
    %v1975 = vld [vmem:[%s1974] sm:$0xf]
    %v1976 = vld [vmem:[%s1974 + $0x4] sm:$0xf]
    %v1977 = vld [vmem:[%s1974 + $0x8] sm:$0xf]
    %v1978 = vld [vmem:[%s1974 + $0xc] sm:$0xf]
    %v1979 = vld [vmem:[%s1974 + $0x10] sm:$0xf]
    %v1980 = vld [vmem:[%s1974 + $0x14] sm:$0xf]
    %v1981 = vld [vmem:[%s1974 + $0x18] sm:$0xf]
    %v1982 = vld [vmem:[%s1974 + $0x1c] sm:$0xf]
    %v1983 = vld [vmem:[%s1974 + $0x20] sm:$0xf]
    %v1984 = vld [vmem:[%s1974 + $0x24] sm:$0xf]
    %v1985 = vld [vmem:[%s1974 + $0x28] sm:$0x3]
    %v1997 = vunpack.c.l.b16 %v1975
    %v1998 = vunpack.c.l.b16 %v1976
    %v1999 = vunpack.c.l.b16 %v1977
    %v2000 = vunpack.c.l.b16 %v1978
    %v2001 = vunpack.c.l.b16 %v1979
    %v2002 = vunpack.c.l.b16 %v1980
    %v2003 = vunpack.c.l.b16 %v1981
    %v2004 = vunpack.c.l.b16 %v1982
    %v2005 = vunpack.c.l.b16 %v1983
    %v2006 = vunpack.c.l.b16 %v1984
    %v2007 = vunpack.c.l.b16 %v1985
    %v2008 = vpack.c.b16 %v1998, %v1997
    %v2009 = vpack.c.b16 %v2000, %v1999
    %v2010 = vpack.c.b16 %v2002, %v2001
    %v2011 = vpack.c.b16 %v2004, %v2003
    %v2012 = vpack.c.b16 %v2006, %v2005
    %v2013 = vpack.c.b16 %v2007, %v2007
    %v2020 = vsel %vm1755, %v1606, 0
    %v2023 = vsel %vm1759, %v2013, 0
    %2025 = vmatprep.subr.bf16.mxu0 0
    %2026 = vmatpush1.bf16.msra.mxu0 0
    %2027 = vmatprep.subr.bf16.mxu0 0
    %2028 = vmatpush1.bf16.msra.mxu0 0
    %2029 = vmatprep.subr.bf16.mxu0 0
    %2030 = vmatpush1.bf16.msra.mxu0 %v2023
    %2031 = vmatprep.subr.bf16.mxu0 0
    %2032 = vmatpush1.bf16.msra.mxu0 %v2012
    %2033 = vmatprep.subr.bf16.mxu0 0
    %2034 = vmatpush1.bf16.msra.mxu0 %v2011
    %2035 = vmatprep.subr.bf16.mxu0 0
    %2036 = vmatpush1.bf16.msra.mxu0 %v2010
    %2037 = vmatprep.subr.bf16.mxu0 0
    %2038 = vmatpush1.bf16.msra.mxu0 %v2009
    %2039 = vmatprep.subr.bf16.mxu0 0
    %2040 = vmatpush1.bf16.msra.mxu0 %v2008
    %2041 = vmatprep.subr.bf16.mxu0 0
    %2042 = vmatpush2.bf16.msra.mxu0 0
    %2043 = vmatprep.subr.bf16.mxu0 0
    %2044 = vmatpush2.bf16.msra.mxu0 0
    %2045 = vmatprep.subr.bf16.mxu0 0
    %2046 = vmatpush2.bf16.msra.mxu0 0
    %2047 = vmatprep.subr.bf16.mxu0 0
    %2048 = vmatpush2.bf16.msra.mxu0 0
    %2049 = vmatprep.subr.bf16.mxu0 0
    %2050 = vmatpush2.bf16.msra.mxu0 0
    %2051 = vmatprep.subr.bf16.mxu0 0
    %2052 = vmatpush2.bf16.msra.mxu0 0
    %2053 = vmatprep.subr.bf16.mxu0 0
    %2054 = vmatpush2.bf16.msra.mxu0 0
    %2055 = vmatprep.subr.bf16.mxu0 0
    %2056 = vmatpush2.bf16.msra.mxu0 0
    %2057 = vmatprep.mubr.bf16.mxu0 0
    %2058 = vmatmul.mubr.bf16.gmra.mxu0 %v2020
    %v2059 = vpop.f32.mrf.mxu0
    %v2060 = vadd.f32 0.0, %v2059
    %v2061 = vpop.f32.mrf.mxu0
    %v2062 = vpop.f32.mrf.mxu0
    %v2063 = vpop.f32.mrf.mxu0
    %2064 = vdwg.mxu0
    %v2065 = vadd.f32 %v1973, %v2060
    %s2066 = scalar_lea.vmem %s5, 176
    %v2067 = vld [vmem:[%s2066] sm:$0xf]
    %v2068 = vld [vmem:[%s2066 + $0x4] sm:$0xf]
    %v2069 = vld [vmem:[%s2066 + $0x8] sm:$0xf]
    %v2070 = vld [vmem:[%s2066 + $0xc] sm:$0xf]
    %v2071 = vld [vmem:[%s2066 + $0x10] sm:$0xf]
    %v2072 = vld [vmem:[%s2066 + $0x14] sm:$0xf]
    %v2073 = vld [vmem:[%s2066 + $0x18] sm:$0xf]
    %v2074 = vld [vmem:[%s2066 + $0x1c] sm:$0xf]
    %v2075 = vld [vmem:[%s2066 + $0x20] sm:$0xf]
    %v2076 = vld [vmem:[%s2066 + $0x24] sm:$0xf]
    %v2077 = vld [vmem:[%s2066 + $0x28] sm:$0x3]
    %v2089 = vunpack.c.l.b16 %v2067
    %v2090 = vunpack.c.l.b16 %v2068
    %v2091 = vunpack.c.l.b16 %v2069
    %v2092 = vunpack.c.l.b16 %v2070
    %v2093 = vunpack.c.l.b16 %v2071
    %v2094 = vunpack.c.l.b16 %v2072
    %v2095 = vunpack.c.l.b16 %v2073
    %v2096 = vunpack.c.l.b16 %v2074
    %v2097 = vunpack.c.l.b16 %v2075
    %v2098 = vunpack.c.l.b16 %v2076
    %v2099 = vunpack.c.l.b16 %v2077
    %v2100 = vpack.c.b16 %v2090, %v2089
    %v2101 = vpack.c.b16 %v2092, %v2091
    %v2102 = vpack.c.b16 %v2094, %v2093
    %v2103 = vpack.c.b16 %v2096, %v2095
    %v2104 = vpack.c.b16 %v2098, %v2097
    %v2105 = vpack.c.b16 %v2099, %v2099
    %v2112 = vsel %vm1755, %v1652, 0
    %v2115 = vsel %vm1759, %v2105, 0
    %2117 = vmatprep.subr.bf16.mxu0 0
    %2118 = vmatpush1.bf16.msra.mxu0 0
    %2119 = vmatprep.subr.bf16.mxu0 0
    %2120 = vmatpush1.bf16.msra.mxu0 0
    %2121 = vmatprep.subr.bf16.mxu0 0
    %2122 = vmatpush1.bf16.msra.mxu0 %v2115
    %2123 = vmatprep.subr.bf16.mxu0 0
    %2124 = vmatpush1.bf16.msra.mxu0 %v2104
    %2125 = vmatprep.subr.bf16.mxu0 0
    %2126 = vmatpush1.bf16.msra.mxu0 %v2103
    %2127 = vmatprep.subr.bf16.mxu0 0
    %2128 = vmatpush1.bf16.msra.mxu0 %v2102
    %2129 = vmatprep.subr.bf16.mxu0 0
    %2130 = vmatpush1.bf16.msra.mxu0 %v2101
    %2131 = vmatprep.subr.bf16.mxu0 0
    %2132 = vmatpush1.bf16.msra.mxu0 %v2100
    %2133 = vmatprep.subr.bf16.mxu0 0
    %2134 = vmatpush2.bf16.msra.mxu0 0
    %2135 = vmatprep.subr.bf16.mxu0 0
    %2136 = vmatpush2.bf16.msra.mxu0 0
    %2137 = vmatprep.subr.bf16.mxu0 0
    %2138 = vmatpush2.bf16.msra.mxu0 0
    %2139 = vmatprep.subr.bf16.mxu0 0
    %2140 = vmatpush2.bf16.msra.mxu0 0
    %2141 = vmatprep.subr.bf16.mxu0 0
    %2142 = vmatpush2.bf16.msra.mxu0 0
    %2143 = vmatprep.subr.bf16.mxu0 0
    %2144 = vmatpush2.bf16.msra.mxu0 0
    %2145 = vmatprep.subr.bf16.mxu0 0
    %2146 = vmatpush2.bf16.msra.mxu0 0
    %2147 = vmatprep.subr.bf16.mxu0 0
    %2148 = vmatpush2.bf16.msra.mxu0 0
    %2149 = vmatprep.mubr.bf16.mxu0 0
    %2150 = vmatmul.mubr.bf16.gmra.mxu0 %v2112
    %v2151 = vpop.f32.mrf.mxu0
    %v2152 = vadd.f32 0.0, %v2151
    %v2153 = vpop.f32.mrf.mxu0
    %v2154 = vpop.f32.mrf.mxu0
    %v2155 = vpop.f32.mrf.mxu0
    %2156 = vdwg.mxu0
    %v2157 = vadd.f32 %v2065, %v2152
    %s2158 = scalar_lea.vmem %s5, 220
    %v2159 = vld [vmem:[%s2158] sm:$0xf]
    %v2160 = vld [vmem:[%s2158 + $0x4] sm:$0xf]
    %v2161 = vld [vmem:[%s2158 + $0x8] sm:$0xf]
    %v2162 = vld [vmem:[%s2158 + $0xc] sm:$0xf]
    %v2163 = vld [vmem:[%s2158 + $0x10] sm:$0xf]
    %v2164 = vld [vmem:[%s2158 + $0x14] sm:$0xf]
    %v2165 = vld [vmem:[%s2158 + $0x18] sm:$0xf]
    %v2166 = vld [vmem:[%s2158 + $0x1c] sm:$0xf]
    %v2167 = vld [vmem:[%s2158 + $0x20] sm:$0xf]
    %v2168 = vld [vmem:[%s2158 + $0x24] sm:$0xf]
    %v2169 = vld [vmem:[%s2158 + $0x28] sm:$0x3]
    %s2170 = scalar_lea.vmem %s5, 264
    %v2171 = vld [vmem:[%s2170] sm:$0xf]
    %v2172 = vld [vmem:[%s2170 + $0x4] sm:$0xf]
    %v2173 = vld [vmem:[%s2170 + $0x8] sm:$0xf]
    %v2174 = vld [vmem:[%s2170 + $0xc] sm:$0xf]
    %v2175 = vld [vmem:[%s2170 + $0x10] sm:$0xf]
    %v2176 = vld [vmem:[%s2170 + $0x14] sm:$0xf]
    %v2177 = vld [vmem:[%s2170 + $0x18] sm:$0xf]
    %v2178 = vld [vmem:[%s2170 + $0x1c] sm:$0xf]
    %v2179 = vld [vmem:[%s2170 + $0x20] sm:$0xf]
    %v2180 = vld [vmem:[%s2170 + $0x24] sm:$0xf]
    %v2181 = vld [vmem:[%s2170 + $0x28] sm:$0x3]
    %v2193 = vunpack.c.l.b16 %v2171
    %v2194 = vunpack.c.l.b16 %v2172
    %v2195 = vunpack.c.l.b16 %v2173
    %v2196 = vunpack.c.l.b16 %v2174
    %v2197 = vunpack.c.l.b16 %v2175
    %v2198 = vunpack.c.l.b16 %v2176
    %v2199 = vunpack.c.l.b16 %v2177
    %v2200 = vunpack.c.l.b16 %v2178
    %v2201 = vunpack.c.l.b16 %v2179
    %v2202 = vunpack.c.l.b16 %v2180
    %v2203 = vunpack.c.l.b16 %v2181
    %v2204 = vpack.c.b16 %v2194, %v2193
    %v2205 = vpack.c.b16 %v2196, %v2195
    %v2206 = vpack.c.b16 %v2198, %v2197
    %v2207 = vpack.c.b16 %v2200, %v2199
    %v2208 = vpack.c.b16 %v2202, %v2201
    %v2209 = vpack.c.b16 %v2203, %v2203
    %v2216 = vsel %vm1759, %v2209, 0
    %2218 = vmatprep.subr.bf16.mxu0 0
    %2219 = vmatpush1.bf16.msra.mxu0 0
    %2220 = vmatprep.subr.bf16.mxu0 0
    %2221 = vmatpush1.bf16.msra.mxu0 0
    %2222 = vmatprep.subr.bf16.mxu0 0
    %2223 = vmatpush1.bf16.msra.mxu0 %v2216
    %2224 = vmatprep.subr.bf16.mxu0 0
    %2225 = vmatpush1.bf16.msra.mxu0 %v2208
    %2226 = vmatprep.subr.bf16.mxu0 0
    %2227 = vmatpush1.bf16.msra.mxu0 %v2207
    %2228 = vmatprep.subr.bf16.mxu0 0
    %2229 = vmatpush1.bf16.msra.mxu0 %v2206
    %2230 = vmatprep.subr.bf16.mxu0 0
    %2231 = vmatpush1.bf16.msra.mxu0 %v2205
    %2232 = vmatprep.subr.bf16.mxu0 0
    %2233 = vmatpush1.bf16.msra.mxu0 %v2204
    %2234 = vmatprep.subr.bf16.mxu0 0
    %2235 = vmatpush2.bf16.msra.mxu0 0
    %2236 = vmatprep.subr.bf16.mxu0 0
    %2237 = vmatpush2.bf16.msra.mxu0 0
    %2238 = vmatprep.subr.bf16.mxu0 0
    %2239 = vmatpush2.bf16.msra.mxu0 0
    %2240 = vmatprep.subr.bf16.mxu0 0
    %2241 = vmatpush2.bf16.msra.mxu0 0
    %2242 = vmatprep.subr.bf16.mxu0 0
    %2243 = vmatpush2.bf16.msra.mxu0 0
    %2244 = vmatprep.subr.bf16.mxu0 0
    %2245 = vmatpush2.bf16.msra.mxu0 0
    %2246 = vmatprep.subr.bf16.mxu0 0
    %2247 = vmatpush2.bf16.msra.mxu0 0
    %2248 = vmatprep.subr.bf16.mxu0 0
    %2249 = vmatpush2.bf16.msra.mxu0 0
    %2250 = vmatprep.mubr.bf16.mxu0 0
    %2251 = vmatmul.mubr.bf16.gmra.mxu0 %v1757
    %v2252 = vpop.f32.mrf.mxu0
    %v2253 = vadd.f32 0.0, %v2252
    %v2254 = vpop.f32.mrf.mxu0
    %v2255 = vpop.f32.mrf.mxu0
    %v2256 = vpop.f32.mrf.mxu0
    %2257 = vdwg.mxu0
    %v2269 = vunpack.c.l.b16 %v2159
    %v2270 = vunpack.c.l.b16 %v2160
    %v2271 = vunpack.c.l.b16 %v2161
    %v2272 = vunpack.c.l.b16 %v2162
    %v2273 = vunpack.c.l.b16 %v2163
    %v2274 = vunpack.c.l.b16 %v2164
    %v2275 = vunpack.c.l.b16 %v2165
    %v2276 = vunpack.c.l.b16 %v2166
    %v2277 = vunpack.c.l.b16 %v2167
    %v2278 = vunpack.c.l.b16 %v2168
    %v2279 = vunpack.c.l.b16 %v2169
    %v2280 = vpack.c.b16 %v2270, %v2269
    %v2281 = vpack.c.b16 %v2272, %v2271
    %v2282 = vpack.c.b16 %v2274, %v2273
    %v2283 = vpack.c.b16 %v2276, %v2275
    %v2284 = vpack.c.b16 %v2278, %v2277
    %v2285 = vpack.c.b16 %v2279, %v2279
    %v2292 = vsel %vm1759, %v2285, 0
    %2294 = vmatprep.subr.bf16.mxu0 0
    %2295 = vmatpush1.bf16.msra.mxu0 0
    %2296 = vmatprep.subr.bf16.mxu0 0
    %2297 = vmatpush1.bf16.msra.mxu0 0
    %2298 = vmatprep.subr.bf16.mxu0 0
    %2299 = vmatpush1.bf16.msra.mxu0 %v2292
    %2300 = vmatprep.subr.bf16.mxu0 0
    %2301 = vmatpush1.bf16.msra.mxu0 %v2284
    %2302 = vmatprep.subr.bf16.mxu0 0
    %2303 = vmatpush1.bf16.msra.mxu0 %v2283
    %2304 = vmatprep.subr.bf16.mxu0 0
    %2305 = vmatpush1.bf16.msra.mxu0 %v2282
    %2306 = vmatprep.subr.bf16.mxu0 0
    %2307 = vmatpush1.bf16.msra.mxu0 %v2281
    %2308 = vmatprep.subr.bf16.mxu0 0
    %2309 = vmatpush1.bf16.msra.mxu0 %v2280
    %2310 = vmatprep.subr.bf16.mxu0 0
    %2311 = vmatpush2.bf16.msra.mxu0 0
    %2312 = vmatprep.subr.bf16.mxu0 0
    %2313 = vmatpush2.bf16.msra.mxu0 0
    %2314 = vmatprep.subr.bf16.mxu0 0
    %2315 = vmatpush2.bf16.msra.mxu0 0
    %2316 = vmatprep.subr.bf16.mxu0 0
    %2317 = vmatpush2.bf16.msra.mxu0 0
    %2318 = vmatprep.subr.bf16.mxu0 0
    %2319 = vmatpush2.bf16.msra.mxu0 0
    %2320 = vmatprep.subr.bf16.mxu0 0
    %2321 = vmatpush2.bf16.msra.mxu0 0
    %2322 = vmatprep.subr.bf16.mxu0 0
    %2323 = vmatpush2.bf16.msra.mxu0 0
    %2324 = vmatprep.subr.bf16.mxu0 0
    %2325 = vmatpush2.bf16.msra.mxu0 0
    %2326 = vmatprep.mubr.bf16.mxu0 0
    %2327 = vmatmul.mubr.bf16.gmra.mxu0 %v1837
    %v2328 = vpop.f32.mrf.mxu0
    %v2329 = vadd.f32 %v2253, %v2328
    %v2330 = vpop.f32.mrf.mxu0
    %v2331 = vpop.f32.mrf.mxu0
    %v2332 = vpop.f32.mrf.mxu0
    %2333 = vdwg.mxu0
    %s2334 = scalar_lea.vmem %s5, 308
    %v2335 = vld [vmem:[%s2334] sm:$0xf]
    %v2336 = vld [vmem:[%s2334 + $0x4] sm:$0xf]
    %v2337 = vld [vmem:[%s2334 + $0x8] sm:$0xf]
    %v2338 = vld [vmem:[%s2334 + $0xc] sm:$0xf]
    %v2339 = vld [vmem:[%s2334 + $0x10] sm:$0xf]
    %v2340 = vld [vmem:[%s2334 + $0x14] sm:$0xf]
    %v2341 = vld [vmem:[%s2334 + $0x18] sm:$0xf]
    %v2342 = vld [vmem:[%s2334 + $0x1c] sm:$0xf]
    %v2343 = vld [vmem:[%s2334 + $0x20] sm:$0xf]
    %v2344 = vld [vmem:[%s2334 + $0x24] sm:$0xf]
    %v2345 = vld [vmem:[%s2334 + $0x28] sm:$0x3]
    %v2357 = vunpack.c.l.b16 %v2335
    %v2358 = vunpack.c.l.b16 %v2336
    %v2359 = vunpack.c.l.b16 %v2337
    %v2360 = vunpack.c.l.b16 %v2338
    %v2361 = vunpack.c.l.b16 %v2339
    %v2362 = vunpack.c.l.b16 %v2340
    %v2363 = vunpack.c.l.b16 %v2341
    %v2364 = vunpack.c.l.b16 %v2342
    %v2365 = vunpack.c.l.b16 %v2343
    %v2366 = vunpack.c.l.b16 %v2344
    %v2367 = vunpack.c.l.b16 %v2345
    %v2368 = vpack.c.b16 %v2358, %v2357
    %v2369 = vpack.c.b16 %v2360, %v2359
    %v2370 = vpack.c.b16 %v2362, %v2361
    %v2371 = vpack.c.b16 %v2364, %v2363
    %v2372 = vpack.c.b16 %v2366, %v2365
    %v2373 = vpack.c.b16 %v2367, %v2367
    %v2380 = vsel %vm1759, %v2373, 0
    %2382 = vmatprep.subr.bf16.mxu0 0
    %2383 = vmatpush1.bf16.msra.mxu0 0
    %2384 = vmatprep.subr.bf16.mxu0 0
    %2385 = vmatpush1.bf16.msra.mxu0 0
    %2386 = vmatprep.subr.bf16.mxu0 0
    %2387 = vmatpush1.bf16.msra.mxu0 %v2380
    %2388 = vmatprep.subr.bf16.mxu0 0
    %2389 = vmatpush1.bf16.msra.mxu0 %v2372
    %2390 = vmatprep.subr.bf16.mxu0 0
    %2391 = vmatpush1.bf16.msra.mxu0 %v2371
    %2392 = vmatprep.subr.bf16.mxu0 0
    %2393 = vmatpush1.bf16.msra.mxu0 %v2370
    %2394 = vmatprep.subr.bf16.mxu0 0
    %2395 = vmatpush1.bf16.msra.mxu0 %v2369
    %2396 = vmatprep.subr.bf16.mxu0 0
    %2397 = vmatpush1.bf16.msra.mxu0 %v2368
    %2398 = vmatprep.subr.bf16.mxu0 0
    %2399 = vmatpush2.bf16.msra.mxu0 0
    %2400 = vmatprep.subr.bf16.mxu0 0
    %2401 = vmatpush2.bf16.msra.mxu0 0
    %2402 = vmatprep.subr.bf16.mxu0 0
    %2403 = vmatpush2.bf16.msra.mxu0 0
    %2404 = vmatprep.subr.bf16.mxu0 0
    %2405 = vmatpush2.bf16.msra.mxu0 0
    %2406 = vmatprep.subr.bf16.mxu0 0
    %2407 = vmatpush2.bf16.msra.mxu0 0
    %2408 = vmatprep.subr.bf16.mxu0 0
    %2409 = vmatpush2.bf16.msra.mxu0 0
    %2410 = vmatprep.subr.bf16.mxu0 0
    %2411 = vmatpush2.bf16.msra.mxu0 0
    %2412 = vmatprep.subr.bf16.mxu0 0
    %2413 = vmatpush2.bf16.msra.mxu0 0
    %2414 = vmatprep.mubr.bf16.mxu0 0
    %2415 = vmatmul.mubr.bf16.gmra.mxu0 %v1928
    %v2416 = vpop.f32.mrf.mxu0
    %v2417 = vadd.f32 0.0, %v2416
    %v2418 = vpop.f32.mrf.mxu0
    %v2419 = vpop.f32.mrf.mxu0
    %v2420 = vpop.f32.mrf.mxu0
    %2421 = vdwg.mxu0
    %v2422 = vadd.f32 %v2329, %v2417
    %s2423 = scalar_lea.vmem %s5, 352
    %v2424 = vld [vmem:[%s2423] sm:$0xf]
    %v2425 = vld [vmem:[%s2423 + $0x4] sm:$0xf]
    %v2426 = vld [vmem:[%s2423 + $0x8] sm:$0xf]
    %v2427 = vld [vmem:[%s2423 + $0xc] sm:$0xf]
    %v2428 = vld [vmem:[%s2423 + $0x10] sm:$0xf]
    %v2429 = vld [vmem:[%s2423 + $0x14] sm:$0xf]
    %v2430 = vld [vmem:[%s2423 + $0x18] sm:$0xf]
    %v2431 = vld [vmem:[%s2423 + $0x1c] sm:$0xf]
    %v2432 = vld [vmem:[%s2423 + $0x20] sm:$0xf]
    %v2433 = vld [vmem:[%s2423 + $0x24] sm:$0xf]
    %v2434 = vld [vmem:[%s2423 + $0x28] sm:$0x3]
    %v2446 = vunpack.c.l.b16 %v2424
    %v2447 = vunpack.c.l.b16 %v2425
    %v2448 = vunpack.c.l.b16 %v2426
    %v2449 = vunpack.c.l.b16 %v2427
    %v2450 = vunpack.c.l.b16 %v2428
    %v2451 = vunpack.c.l.b16 %v2429
    %v2452 = vunpack.c.l.b16 %v2430
    %v2453 = vunpack.c.l.b16 %v2431
    %v2454 = vunpack.c.l.b16 %v2432
    %v2455 = vunpack.c.l.b16 %v2433
    %v2456 = vunpack.c.l.b16 %v2434
    %v2457 = vpack.c.b16 %v2447, %v2446
    %v2458 = vpack.c.b16 %v2449, %v2448
    %v2459 = vpack.c.b16 %v2451, %v2450
    %v2460 = vpack.c.b16 %v2453, %v2452
    %v2461 = vpack.c.b16 %v2455, %v2454
    %v2462 = vpack.c.b16 %v2456, %v2456
    %v2469 = vsel %vm1759, %v2462, 0
    %2471 = vmatprep.subr.bf16.mxu0 0
    %2472 = vmatpush1.bf16.msra.mxu0 0
    %2473 = vmatprep.subr.bf16.mxu0 0
    %2474 = vmatpush1.bf16.msra.mxu0 0
    %2475 = vmatprep.subr.bf16.mxu0 0
    %2476 = vmatpush1.bf16.msra.mxu0 %v2469
    %2477 = vmatprep.subr.bf16.mxu0 0
    %2478 = vmatpush1.bf16.msra.mxu0 %v2461
    %2479 = vmatprep.subr.bf16.mxu0 0
    %2480 = vmatpush1.bf16.msra.mxu0 %v2460
    %2481 = vmatprep.subr.bf16.mxu0 0
    %2482 = vmatpush1.bf16.msra.mxu0 %v2459
    %2483 = vmatprep.subr.bf16.mxu0 0
    %2484 = vmatpush1.bf16.msra.mxu0 %v2458
    %2485 = vmatprep.subr.bf16.mxu0 0
    %2486 = vmatpush1.bf16.msra.mxu0 %v2457
    %2487 = vmatprep.subr.bf16.mxu0 0
    %2488 = vmatpush2.bf16.msra.mxu0 0
    %2489 = vmatprep.subr.bf16.mxu0 0
    %2490 = vmatpush2.bf16.msra.mxu0 0
    %2491 = vmatprep.subr.bf16.mxu0 0
    %2492 = vmatpush2.bf16.msra.mxu0 0
    %2493 = vmatprep.subr.bf16.mxu0 0
    %2494 = vmatpush2.bf16.msra.mxu0 0
    %2495 = vmatprep.subr.bf16.mxu0 0
    %2496 = vmatpush2.bf16.msra.mxu0 0
    %2497 = vmatprep.subr.bf16.mxu0 0
    %2498 = vmatpush2.bf16.msra.mxu0 0
    %2499 = vmatprep.subr.bf16.mxu0 0
    %2500 = vmatpush2.bf16.msra.mxu0 0
    %2501 = vmatprep.subr.bf16.mxu0 0
    %2502 = vmatpush2.bf16.msra.mxu0 0
    %2503 = vmatprep.mubr.bf16.mxu0 0
    %2504 = vmatmul.mubr.bf16.gmra.mxu0 %v2020
    %v2505 = vpop.f32.mrf.mxu0
    %v2506 = vadd.f32 0.0, %v2505
    %v2507 = vpop.f32.mrf.mxu0
    %v2508 = vpop.f32.mrf.mxu0
    %v2509 = vpop.f32.mrf.mxu0
    %2510 = vdwg.mxu0
    %v2511 = vadd.f32 %v2422, %v2506
    %s2512 = scalar_lea.vmem %s5, 396
    %v2513 = vld [vmem:[%s2512] sm:$0xf]
    %v2514 = vld [vmem:[%s2512 + $0x4] sm:$0xf]
    %v2515 = vld [vmem:[%s2512 + $0x8] sm:$0xf]
    %v2516 = vld [vmem:[%s2512 + $0xc] sm:$0xf]
    %v2517 = vld [vmem:[%s2512 + $0x10] sm:$0xf]
    %v2518 = vld [vmem:[%s2512 + $0x14] sm:$0xf]
    %v2519 = vld [vmem:[%s2512 + $0x18] sm:$0xf]
    %v2520 = vld [vmem:[%s2512 + $0x1c] sm:$0xf]
    %v2521 = vld [vmem:[%s2512 + $0x20] sm:$0xf]
    %v2522 = vld [vmem:[%s2512 + $0x24] sm:$0xf]
    %v2523 = vld [vmem:[%s2512 + $0x28] sm:$0x3]
    %v2535 = vunpack.c.l.b16 %v2513
    %v2536 = vunpack.c.l.b16 %v2514
    %v2537 = vunpack.c.l.b16 %v2515
    %v2538 = vunpack.c.l.b16 %v2516
    %v2539 = vunpack.c.l.b16 %v2517
    %v2540 = vunpack.c.l.b16 %v2518
    %v2541 = vunpack.c.l.b16 %v2519
    %v2542 = vunpack.c.l.b16 %v2520
    %v2543 = vunpack.c.l.b16 %v2521
    %v2544 = vunpack.c.l.b16 %v2522
    %v2545 = vunpack.c.l.b16 %v2523
    %v2546 = vpack.c.b16 %v2536, %v2535
    %v2547 = vpack.c.b16 %v2538, %v2537
    %v2548 = vpack.c.b16 %v2540, %v2539
    %v2549 = vpack.c.b16 %v2542, %v2541
    %v2550 = vpack.c.b16 %v2544, %v2543
    %v2551 = vpack.c.b16 %v2545, %v2545
    %v2558 = vsel %vm1759, %v2551, 0
    %2560 = vmatprep.subr.bf16.mxu0 0
    %2561 = vmatpush1.bf16.msra.mxu0 0
    %2562 = vmatprep.subr.bf16.mxu0 0
    %2563 = vmatpush1.bf16.msra.mxu0 0
    %2564 = vmatprep.subr.bf16.mxu0 0
    %2565 = vmatpush1.bf16.msra.mxu0 %v2558
    %2566 = vmatprep.subr.bf16.mxu0 0
    %2567 = vmatpush1.bf16.msra.mxu0 %v2550
    %2568 = vmatprep.subr.bf16.mxu0 0
    %2569 = vmatpush1.bf16.msra.mxu0 %v2549
    %2570 = vmatprep.subr.bf16.mxu0 0
    %2571 = vmatpush1.bf16.msra.mxu0 %v2548
    %2572 = vmatprep.subr.bf16.mxu0 0
    %2573 = vmatpush1.bf16.msra.mxu0 %v2547
    %2574 = vmatprep.subr.bf16.mxu0 0
    %2575 = vmatpush1.bf16.msra.mxu0 %v2546
    %2576 = vmatprep.subr.bf16.mxu0 0
    %2577 = vmatpush2.bf16.msra.mxu0 0
    %2578 = vmatprep.subr.bf16.mxu0 0
    %2579 = vmatpush2.bf16.msra.mxu0 0
    %2580 = vmatprep.subr.bf16.mxu0 0
    %2581 = vmatpush2.bf16.msra.mxu0 0
    %2582 = vmatprep.subr.bf16.mxu0 0
    %2583 = vmatpush2.bf16.msra.mxu0 0
    %2584 = vmatprep.subr.bf16.mxu0 0
    %2585 = vmatpush2.bf16.msra.mxu0 0
    %2586 = vmatprep.subr.bf16.mxu0 0
    %2587 = vmatpush2.bf16.msra.mxu0 0
    %2588 = vmatprep.subr.bf16.mxu0 0
    %2589 = vmatpush2.bf16.msra.mxu0 0
    %2590 = vmatprep.subr.bf16.mxu0 0
    %2591 = vmatpush2.bf16.msra.mxu0 0
    %2592 = vmatprep.mubr.bf16.mxu0 0
    %2593 = vmatmul.mubr.bf16.gmra.mxu0 %v2112
    %v2594 = vpop.f32.mrf.mxu0
    %v2595 = vadd.f32 0.0, %v2594
    %v2596 = vpop.f32.mrf.mxu0
    %v2597 = vpop.f32.mrf.mxu0
    %v2598 = vpop.f32.mrf.mxu0
    %2599 = vdwg.mxu0
    %v2600 = vadd.f32 %v2511, %v2595
    %v2601 = vmax.f32 %v2157, %v2600
    %2602 = vmatprep.subr.bf16.mxu0 0
    %2603 = vmatpush1.bf16.msra.mxu0 0
    %2604 = vmatprep.subr.bf16.mxu0 0
    %2605 = vmatpush1.bf16.msra.mxu0 0
    %2606 = vmatprep.subr.bf16.mxu0 0
    %2607 = vmatpush1.bf16.msra.mxu0 %v1761
    %2608 = vmatprep.subr.bf16.mxu0 0
    %2609 = vmatpush1.bf16.msra.mxu0 %v1748
    %2610 = vmatprep.subr.bf16.mxu0 0
    %2611 = vmatpush1.bf16.msra.mxu0 %v1747
    %2612 = vmatprep.subr.bf16.mxu0 0
    %2613 = vmatpush1.bf16.msra.mxu0 %v1746
    %2614 = vmatprep.subr.bf16.mxu0 0
    %2615 = vmatpush1.bf16.msra.mxu0 %v1745
    %2616 = vmatprep.subr.bf16.mxu0 0
    %2617 = vmatpush1.bf16.msra.mxu0 %v1744
    %2618 = vmatprep.subr.bf16.mxu0 0
    %2619 = vmatpush2.bf16.msra.mxu0 0
    %2620 = vmatprep.subr.bf16.mxu0 0
    %2621 = vmatpush2.bf16.msra.mxu0 0
    %2622 = vmatprep.subr.bf16.mxu0 0
    %2623 = vmatpush2.bf16.msra.mxu0 0
    %2624 = vmatprep.subr.bf16.mxu0 0
    %2625 = vmatpush2.bf16.msra.mxu0 0
    %2626 = vmatprep.subr.bf16.mxu0 0
    %2627 = vmatpush2.bf16.msra.mxu0 0
    %2628 = vmatprep.subr.bf16.mxu0 0
    %2629 = vmatpush2.bf16.msra.mxu0 0
    %2630 = vmatprep.subr.bf16.mxu0 0
    %2631 = vmatpush2.bf16.msra.mxu0 0
    %2632 = vmatprep.subr.bf16.mxu0 0
    %2633 = vmatpush2.bf16.msra.mxu0 0
    %2634 = vmatprep.mubr.bf16.mxu0 0
    %2635 = vmatmul.mubr.bf16.gmra.mxu0 %v1928
    %v2636 = vpop.f32.mrf.mxu0
    %v2637 = vadd.f32 0.0, %v2636
    %v2638 = vpop.f32.mrf.mxu0
    %v2639 = vpop.f32.mrf.mxu0
    %v2640 = vpop.f32.mrf.mxu0
    %2641 = vdwg.mxu0
    %2642 = vmatprep.subr.bf16.mxu0 0
    %2643 = vmatpush1.bf16.msra.mxu0 0
    %2644 = vmatprep.subr.bf16.mxu0 0
    %2645 = vmatpush1.bf16.msra.mxu0 0
    %2646 = vmatprep.subr.bf16.mxu0 0
    %2647 = vmatpush1.bf16.msra.mxu0 %v1840
    %2648 = vmatprep.subr.bf16.mxu0 0
    %2649 = vmatpush1.bf16.msra.mxu0 %v1829
    %2650 = vmatprep.subr.bf16.mxu0 0
    %2651 = vmatpush1.bf16.msra.mxu0 %v1828
    %2652 = vmatprep.subr.bf16.mxu0 0
    %2653 = vmatpush1.bf16.msra.mxu0 %v1827
    %2654 = vmatprep.subr.bf16.mxu0 0
    %2655 = vmatpush1.bf16.msra.mxu0 %v1826
    %2656 = vmatprep.subr.bf16.mxu0 0
    %2657 = vmatpush1.bf16.msra.mxu0 %v1825
    %2658 = vmatprep.subr.bf16.mxu0 0
    %2659 = vmatpush2.bf16.msra.mxu0 0
    %2660 = vmatprep.subr.bf16.mxu0 0
    %2661 = vmatpush2.bf16.msra.mxu0 0
    %2662 = vmatprep.subr.bf16.mxu0 0
    %2663 = vmatpush2.bf16.msra.mxu0 0
    %2664 = vmatprep.subr.bf16.mxu0 0
    %2665 = vmatpush2.bf16.msra.mxu0 0
    %2666 = vmatprep.subr.bf16.mxu0 0
    %2667 = vmatpush2.bf16.msra.mxu0 0
    %2668 = vmatprep.subr.bf16.mxu0 0
    %2669 = vmatpush2.bf16.msra.mxu0 0
    %2670 = vmatprep.subr.bf16.mxu0 0
    %2671 = vmatpush2.bf16.msra.mxu0 0
    %2672 = vmatprep.subr.bf16.mxu0 0
    %2673 = vmatpush2.bf16.msra.mxu0 0
    %2674 = vmatprep.mubr.bf16.mxu0 0
    %2675 = vmatmul.mubr.bf16.gmra.mxu0 %v1757
    %v2676 = vpop.f32.mrf.mxu0
    %v2677 = vadd.f32 %v2637, %v2676
    %v2678 = vpop.f32.mrf.mxu0
    %v2679 = vpop.f32.mrf.mxu0
    %v2680 = vpop.f32.mrf.mxu0
    %2681 = vdwg.mxu0
    %2682 = vmatprep.subr.bf16.mxu0 0
    %2683 = vmatpush1.bf16.msra.mxu0 0
    %2684 = vmatprep.subr.bf16.mxu0 0
    %2685 = vmatpush1.bf16.msra.mxu0 0
    %2686 = vmatprep.subr.bf16.mxu0 0
    %2687 = vmatpush1.bf16.msra.mxu0 %v1931
    %2688 = vmatprep.subr.bf16.mxu0 0
    %2689 = vmatpush1.bf16.msra.mxu0 %v1920
    %2690 = vmatprep.subr.bf16.mxu0 0
    %2691 = vmatpush1.bf16.msra.mxu0 %v1919
    %2692 = vmatprep.subr.bf16.mxu0 0
    %2693 = vmatpush1.bf16.msra.mxu0 %v1918
    %2694 = vmatprep.subr.bf16.mxu0 0
    %2695 = vmatpush1.bf16.msra.mxu0 %v1917
    %2696 = vmatprep.subr.bf16.mxu0 0
    %2697 = vmatpush1.bf16.msra.mxu0 %v1916
    %2698 = vmatprep.subr.bf16.mxu0 0
    %2699 = vmatpush2.bf16.msra.mxu0 0
    %2700 = vmatprep.subr.bf16.mxu0 0
    %2701 = vmatpush2.bf16.msra.mxu0 0
    %2702 = vmatprep.subr.bf16.mxu0 0
    %2703 = vmatpush2.bf16.msra.mxu0 0
    %2704 = vmatprep.subr.bf16.mxu0 0
    %2705 = vmatpush2.bf16.msra.mxu0 0
    %2706 = vmatprep.subr.bf16.mxu0 0
    %2707 = vmatpush2.bf16.msra.mxu0 0
    %2708 = vmatprep.subr.bf16.mxu0 0
    %2709 = vmatpush2.bf16.msra.mxu0 0
    %2710 = vmatprep.subr.bf16.mxu0 0
    %2711 = vmatpush2.bf16.msra.mxu0 0
    %2712 = vmatprep.subr.bf16.mxu0 0
    %2713 = vmatpush2.bf16.msra.mxu0 0
    %2714 = vmatprep.mubr.bf16.mxu0 0
    %2715 = vmatmul.mubr.bf16.gmra.mxu0 %v2020
    %v2716 = vpop.f32.mrf.mxu0
    %v2717 = vadd.f32 0.0, %v2716
    %v2718 = vpop.f32.mrf.mxu0
    %v2719 = vpop.f32.mrf.mxu0
    %v2720 = vpop.f32.mrf.mxu0
    %2721 = vdwg.mxu0
    %v2722 = vadd.f32 %v2677, %v2717
    %2723 = vmatprep.subr.bf16.mxu0 0
    %2724 = vmatpush1.bf16.msra.mxu0 0
    %2725 = vmatprep.subr.bf16.mxu0 0
    %2726 = vmatpush1.bf16.msra.mxu0 0
    %2727 = vmatprep.subr.bf16.mxu0 0
    %2728 = vmatpush1.bf16.msra.mxu0 %v2023
    %2729 = vmatprep.subr.bf16.mxu0 0
    %2730 = vmatpush1.bf16.msra.mxu0 %v2012
    %2731 = vmatprep.subr.bf16.mxu0 0
    %2732 = vmatpush1.bf16.msra.mxu0 %v2011
    %2733 = vmatprep.subr.bf16.mxu0 0
    %2734 = vmatpush1.bf16.msra.mxu0 %v2010
    %2735 = vmatprep.subr.bf16.mxu0 0
    %2736 = vmatpush1.bf16.msra.mxu0 %v2009
    %2737 = vmatprep.subr.bf16.mxu0 0
    %2738 = vmatpush1.bf16.msra.mxu0 %v2008
    %2739 = vmatprep.subr.bf16.mxu0 0
    %2740 = vmatpush2.bf16.msra.mxu0 0
    %2741 = vmatprep.subr.bf16.mxu0 0
    %2742 = vmatpush2.bf16.msra.mxu0 0
    %2743 = vmatprep.subr.bf16.mxu0 0
    %2744 = vmatpush2.bf16.msra.mxu0 0
    %2745 = vmatprep.subr.bf16.mxu0 0
    %2746 = vmatpush2.bf16.msra.mxu0 0
    %2747 = vmatprep.subr.bf16.mxu0 0
    %2748 = vmatpush2.bf16.msra.mxu0 0
    %2749 = vmatprep.subr.bf16.mxu0 0
    %2750 = vmatpush2.bf16.msra.mxu0 0
    %2751 = vmatprep.subr.bf16.mxu0 0
    %2752 = vmatpush2.bf16.msra.mxu0 0
    %2753 = vmatprep.subr.bf16.mxu0 0
    %2754 = vmatpush2.bf16.msra.mxu0 0
    %2755 = vmatprep.mubr.bf16.mxu0 0
    %2756 = vmatmul.mubr.bf16.gmra.mxu0 %v2112
    %v2757 = vpop.f32.mrf.mxu0
    %v2758 = vadd.f32 0.0, %v2757
    %v2759 = vpop.f32.mrf.mxu0
    %v2760 = vpop.f32.mrf.mxu0
    %v2761 = vpop.f32.mrf.mxu0
    %2762 = vdwg.mxu0
    %v2763 = vadd.f32 %v2722, %v2758
    %v2765 = vsel %vm1755, %v1698, 0
    %2767 = vmatprep.subr.bf16.mxu0 0
    %2768 = vmatpush1.bf16.msra.mxu0 0
    %2769 = vmatprep.subr.bf16.mxu0 0
    %2770 = vmatpush1.bf16.msra.mxu0 0
    %2771 = vmatprep.subr.bf16.mxu0 0
    %2772 = vmatpush1.bf16.msra.mxu0 %v2115
    %2773 = vmatprep.subr.bf16.mxu0 0
    %2774 = vmatpush1.bf16.msra.mxu0 %v2104
    %2775 = vmatprep.subr.bf16.mxu0 0
    %2776 = vmatpush1.bf16.msra.mxu0 %v2103
    %2777 = vmatprep.subr.bf16.mxu0 0
    %2778 = vmatpush1.bf16.msra.mxu0 %v2102
    %2779 = vmatprep.subr.bf16.mxu0 0
    %2780 = vmatpush1.bf16.msra.mxu0 %v2101
    %2781 = vmatprep.subr.bf16.mxu0 0
    %2782 = vmatpush1.bf16.msra.mxu0 %v2100
    %2783 = vmatprep.subr.bf16.mxu0 0
    %2784 = vmatpush2.bf16.msra.mxu0 0
    %2785 = vmatprep.subr.bf16.mxu0 0
    %2786 = vmatpush2.bf16.msra.mxu0 0
    %2787 = vmatprep.subr.bf16.mxu0 0
    %2788 = vmatpush2.bf16.msra.mxu0 0
    %2789 = vmatprep.subr.bf16.mxu0 0
    %2790 = vmatpush2.bf16.msra.mxu0 0
    %2791 = vmatprep.subr.bf16.mxu0 0
    %2792 = vmatpush2.bf16.msra.mxu0 0
    %2793 = vmatprep.subr.bf16.mxu0 0
    %2794 = vmatpush2.bf16.msra.mxu0 0
    %2795 = vmatprep.subr.bf16.mxu0 0
    %2796 = vmatpush2.bf16.msra.mxu0 0
    %2797 = vmatprep.subr.bf16.mxu0 0
    %2798 = vmatpush2.bf16.msra.mxu0 0
    %2799 = vmatprep.mubr.bf16.mxu0 0
    %2800 = vmatmul.mubr.bf16.gmra.mxu0 %v2765
    %v2801 = vpop.f32.mrf.mxu0
    %v2802 = vadd.f32 0.0, %v2801
    %v2803 = vpop.f32.mrf.mxu0
    %v2804 = vpop.f32.mrf.mxu0
    %v2805 = vpop.f32.mrf.mxu0
    %2806 = vdwg.mxu0
    %v2807 = vadd.f32 %v2763, %v2802
    %v2808 = vmax.f32 %v2601, %v2807
    %2809 = vmatprep.subr.bf16.mxu0 0
    %2810 = vmatpush1.bf16.msra.mxu0 0
    %2811 = vmatprep.subr.bf16.mxu0 0
    %2812 = vmatpush1.bf16.msra.mxu0 0
    %2813 = vmatprep.subr.bf16.mxu0 0
    %2814 = vmatpush1.bf16.msra.mxu0 %v2216
    %2815 = vmatprep.subr.bf16.mxu0 0
    %2816 = vmatpush1.bf16.msra.mxu0 %v2208
    %2817 = vmatprep.subr.bf16.mxu0 0
    %2818 = vmatpush1.bf16.msra.mxu0 %v2207
    %2819 = vmatprep.subr.bf16.mxu0 0
    %2820 = vmatpush1.bf16.msra.mxu0 %v2206
    %2821 = vmatprep.subr.bf16.mxu0 0
    %2822 = vmatpush1.bf16.msra.mxu0 %v2205
    %2823 = vmatprep.subr.bf16.mxu0 0
    %2824 = vmatpush1.bf16.msra.mxu0 %v2204
    %2825 = vmatprep.subr.bf16.mxu0 0
    %2826 = vmatpush2.bf16.msra.mxu0 0
    %2827 = vmatprep.subr.bf16.mxu0 0
    %2828 = vmatpush2.bf16.msra.mxu0 0
    %2829 = vmatprep.subr.bf16.mxu0 0
    %2830 = vmatpush2.bf16.msra.mxu0 0
    %2831 = vmatprep.subr.bf16.mxu0 0
    %2832 = vmatpush2.bf16.msra.mxu0 0
    %2833 = vmatprep.subr.bf16.mxu0 0
    %2834 = vmatpush2.bf16.msra.mxu0 0
    %2835 = vmatprep.subr.bf16.mxu0 0
    %2836 = vmatpush2.bf16.msra.mxu0 0
    %2837 = vmatprep.subr.bf16.mxu0 0
    %2838 = vmatpush2.bf16.msra.mxu0 0
    %2839 = vmatprep.subr.bf16.mxu0 0
    %2840 = vmatpush2.bf16.msra.mxu0 0
    %2841 = vmatprep.mubr.bf16.mxu0 0
    %2842 = vmatmul.mubr.bf16.gmra.mxu0 %v1928
    %v2843 = vpop.f32.mrf.mxu0
    %v2844 = vadd.f32 0.0, %v2843
    %v2845 = vpop.f32.mrf.mxu0
    %v2846 = vpop.f32.mrf.mxu0
    %v2847 = vpop.f32.mrf.mxu0
    %2848 = vdwg.mxu0
    %2849 = vmatprep.subr.bf16.mxu0 0
    %2850 = vmatpush1.bf16.msra.mxu0 0
    %2851 = vmatprep.subr.bf16.mxu0 0
    %2852 = vmatpush1.bf16.msra.mxu0 0
    %2853 = vmatprep.subr.bf16.mxu0 0
    %2854 = vmatpush1.bf16.msra.mxu0 %v2292
    %2855 = vmatprep.subr.bf16.mxu0 0
    %2856 = vmatpush1.bf16.msra.mxu0 %v2284
    %2857 = vmatprep.subr.bf16.mxu0 0
    %2858 = vmatpush1.bf16.msra.mxu0 %v2283
    %2859 = vmatprep.subr.bf16.mxu0 0
    %2860 = vmatpush1.bf16.msra.mxu0 %v2282
    %2861 = vmatprep.subr.bf16.mxu0 0
    %2862 = vmatpush1.bf16.msra.mxu0 %v2281
    %2863 = vmatprep.subr.bf16.mxu0 0
    %2864 = vmatpush1.bf16.msra.mxu0 %v2280
    %2865 = vmatprep.subr.bf16.mxu0 0
    %2866 = vmatpush2.bf16.msra.mxu0 0
    %2867 = vmatprep.subr.bf16.mxu0 0
    %2868 = vmatpush2.bf16.msra.mxu0 0
    %2869 = vmatprep.subr.bf16.mxu0 0
    %2870 = vmatpush2.bf16.msra.mxu0 0
    %2871 = vmatprep.subr.bf16.mxu0 0
    %2872 = vmatpush2.bf16.msra.mxu0 0
    %2873 = vmatprep.subr.bf16.mxu0 0
    %2874 = vmatpush2.bf16.msra.mxu0 0
    %2875 = vmatprep.subr.bf16.mxu0 0
    %2876 = vmatpush2.bf16.msra.mxu0 0
    %2877 = vmatprep.subr.bf16.mxu0 0
    %2878 = vmatpush2.bf16.msra.mxu0 0
    %2879 = vmatprep.subr.bf16.mxu0 0
    %2880 = vmatpush2.bf16.msra.mxu0 0
    %2881 = vmatprep.mubr.bf16.mxu0 0
    %2882 = vmatmul.mubr.bf16.gmra.mxu0 %v1757
    %v2883 = vpop.f32.mrf.mxu0
    %v2884 = vadd.f32 %v2844, %v2883
    %v2885 = vpop.f32.mrf.mxu0
    %v2886 = vpop.f32.mrf.mxu0
    %v2887 = vpop.f32.mrf.mxu0
    %2888 = vdwg.mxu0
    %2889 = vmatprep.subr.bf16.mxu0 0
    %2890 = vmatpush1.bf16.msra.mxu0 0
    %2891 = vmatprep.subr.bf16.mxu0 0
    %2892 = vmatpush1.bf16.msra.mxu0 0
    %2893 = vmatprep.subr.bf16.mxu0 0
    %2894 = vmatpush1.bf16.msra.mxu0 %v2380
    %2895 = vmatprep.subr.bf16.mxu0 0
    %2896 = vmatpush1.bf16.msra.mxu0 %v2372
    %2897 = vmatprep.subr.bf16.mxu0 0
    %2898 = vmatpush1.bf16.msra.mxu0 %v2371
    %2899 = vmatprep.subr.bf16.mxu0 0
    %2900 = vmatpush1.bf16.msra.mxu0 %v2370
    %2901 = vmatprep.subr.bf16.mxu0 0
    %2902 = vmatpush1.bf16.msra.mxu0 %v2369
    %2903 = vmatprep.subr.bf16.mxu0 0
    %2904 = vmatpush1.bf16.msra.mxu0 %v2368
    %2905 = vmatprep.subr.bf16.mxu0 0
    %2906 = vmatpush2.bf16.msra.mxu0 0
    %2907 = vmatprep.subr.bf16.mxu0 0
    %2908 = vmatpush2.bf16.msra.mxu0 0
    %2909 = vmatprep.subr.bf16.mxu0 0
    %2910 = vmatpush2.bf16.msra.mxu0 0
    %2911 = vmatprep.subr.bf16.mxu0 0
    %2912 = vmatpush2.bf16.msra.mxu0 0
    %2913 = vmatprep.subr.bf16.mxu0 0
    %2914 = vmatpush2.bf16.msra.mxu0 0
    %2915 = vmatprep.subr.bf16.mxu0 0
    %2916 = vmatpush2.bf16.msra.mxu0 0
    %2917 = vmatprep.subr.bf16.mxu0 0
    %2918 = vmatpush2.bf16.msra.mxu0 0
    %2919 = vmatprep.subr.bf16.mxu0 0
    %2920 = vmatpush2.bf16.msra.mxu0 0
    %2921 = vmatprep.mubr.bf16.mxu0 0
    %2922 = vmatmul.mubr.bf16.gmra.mxu0 %v2020
    %v2923 = vpop.f32.mrf.mxu0
    %v2924 = vadd.f32 0.0, %v2923
    %v2925 = vpop.f32.mrf.mxu0
    %v2926 = vpop.f32.mrf.mxu0
    %v2927 = vpop.f32.mrf.mxu0
    %2928 = vdwg.mxu0
    %v2929 = vadd.f32 %v2884, %v2924
    %2930 = vmatprep.subr.bf16.mxu0 0
    %2931 = vmatpush1.bf16.msra.mxu0 0
    %2932 = vmatprep.subr.bf16.mxu0 0
    %2933 = vmatpush1.bf16.msra.mxu0 0
    %2934 = vmatprep.subr.bf16.mxu0 0
    %2935 = vmatpush1.bf16.msra.mxu0 %v2469
    %2936 = vmatprep.subr.bf16.mxu0 0
    %2937 = vmatpush1.bf16.msra.mxu0 %v2461
    %2938 = vmatprep.subr.bf16.mxu0 0
    %2939 = vmatpush1.bf16.msra.mxu0 %v2460
    %2940 = vmatprep.subr.bf16.mxu0 0
    %2941 = vmatpush1.bf16.msra.mxu0 %v2459
    %2942 = vmatprep.subr.bf16.mxu0 0
    %2943 = vmatpush1.bf16.msra.mxu0 %v2458
    %2944 = vmatprep.subr.bf16.mxu0 0
    %2945 = vmatpush1.bf16.msra.mxu0 %v2457
    %2946 = vmatprep.subr.bf16.mxu0 0
    %2947 = vmatpush2.bf16.msra.mxu0 0
    %2948 = vmatprep.subr.bf16.mxu0 0
    %2949 = vmatpush2.bf16.msra.mxu0 0
    %2950 = vmatprep.subr.bf16.mxu0 0
    %2951 = vmatpush2.bf16.msra.mxu0 0
    %2952 = vmatprep.subr.bf16.mxu0 0
    %2953 = vmatpush2.bf16.msra.mxu0 0
    %2954 = vmatprep.subr.bf16.mxu0 0
    %2955 = vmatpush2.bf16.msra.mxu0 0
    %2956 = vmatprep.subr.bf16.mxu0 0
    %2957 = vmatpush2.bf16.msra.mxu0 0
    %2958 = vmatprep.subr.bf16.mxu0 0
    %2959 = vmatpush2.bf16.msra.mxu0 0
    %2960 = vmatprep.subr.bf16.mxu0 0
    %2961 = vmatpush2.bf16.msra.mxu0 0
    %2962 = vmatprep.mubr.bf16.mxu0 0
    %2963 = vmatmul.mubr.bf16.gmra.mxu0 %v2112
    %v2964 = vpop.f32.mrf.mxu0
    %v2965 = vadd.f32 0.0, %v2964
    %v2966 = vpop.f32.mrf.mxu0
    %v2967 = vpop.f32.mrf.mxu0
    %v2968 = vpop.f32.mrf.mxu0
    %2969 = vdwg.mxu0
    %v2970 = vadd.f32 %v2929, %v2965
    %2971 = vmatprep.subr.bf16.mxu0 0
    %2972 = vmatpush1.bf16.msra.mxu0 0
    %2973 = vmatprep.subr.bf16.mxu0 0
    %2974 = vmatpush1.bf16.msra.mxu0 0
    %2975 = vmatprep.subr.bf16.mxu0 0
    %2976 = vmatpush1.bf16.msra.mxu0 %v2558
    %2977 = vmatprep.subr.bf16.mxu0 0
    %2978 = vmatpush1.bf16.msra.mxu0 %v2550
    %2979 = vmatprep.subr.bf16.mxu0 0
    %2980 = vmatpush1.bf16.msra.mxu0 %v2549
    %2981 = vmatprep.subr.bf16.mxu0 0
    %2982 = vmatpush1.bf16.msra.mxu0 %v2548
    %2983 = vmatprep.subr.bf16.mxu0 0
    %2984 = vmatpush1.bf16.msra.mxu0 %v2547
    %2985 = vmatprep.subr.bf16.mxu0 0
    %2986 = vmatpush1.bf16.msra.mxu0 %v2546
    %2987 = vmatprep.subr.bf16.mxu0 0
    %2988 = vmatpush2.bf16.msra.mxu0 0
    %2989 = vmatprep.subr.bf16.mxu0 0
    %2990 = vmatpush2.bf16.msra.mxu0 0
    %2991 = vmatprep.subr.bf16.mxu0 0
    %2992 = vmatpush2.bf16.msra.mxu0 0
    %2993 = vmatprep.subr.bf16.mxu0 0
    %2994 = vmatpush2.bf16.msra.mxu0 0
    %2995 = vmatprep.subr.bf16.mxu0 0
    %2996 = vmatpush2.bf16.msra.mxu0 0
    %2997 = vmatprep.subr.bf16.mxu0 0
    %2998 = vmatpush2.bf16.msra.mxu0 0
    %2999 = vmatprep.subr.bf16.mxu0 0
    %3000 = vmatpush2.bf16.msra.mxu0 0
    %3001 = vmatprep.subr.bf16.mxu0 0
    %3002 = vmatpush2.bf16.msra.mxu0 0
    %3003 = vmatprep.mubr.bf16.mxu0 0
    %3004 = vmatmul.mubr.bf16.gmra.mxu0 %v2765
    %v3005 = vpop.f32.mrf.mxu0
    %v3006 = vadd.f32 0.0, %v3005
    %v3007 = vpop.f32.mrf.mxu0
    %v3008 = vpop.f32.mrf.mxu0
    %v3009 = vpop.f32.mrf.mxu0
    %3010 = vdwg.mxu0
    %v3011 = vadd.f32 %v2970, %v3006
    %v3012 = vmax.f32 %v2808, %v3011
    %v3013 = vld [vmem:[%s6] sm:$0x1]
    %v3015 = vlaneseq
    %v3016 = vshrl.u32 %v3015, 7
    %v3017 = vsub.s32 0, %v3016
    %v3018 = vrot.slane %v3013, %v3017
    %v3020 = vadd.f32 %v3012, %v3018
    %v3021 = vmax.f32 %v3020, 0.0
    %v3022 = vpack.c.bf16 %v3021, %v3021
    %v3023 = vld [vmem:[%s7] sm:$0xf]
    %v3024 = vld [vmem:[%s7 + $0x4] sm:$0xf]
    %v3025 = vld [vmem:[%s7 + $0x8] sm:$0xf]
    %v3026 = vld [vmem:[%s7 + $0xc] sm:$0xf]
    %v3027 = vld [vmem:[%s7 + $0x10] sm:$0xf]
    %v3028 = vld [vmem:[%s7 + $0x14] sm:$0xf]
    %v3029 = vld [vmem:[%s7 + $0x18] sm:$0xf]
    %v3030 = vld [vmem:[%s7 + $0x1c] sm:$0xf]
    %v3031 = vld [vmem:[%s7 + $0x20] sm:$0xf]
    %v3032 = vld [vmem:[%s7 + $0x24] sm:$0xf]
    %s3033 = scalar_lea.vmem %s7, 40
    %v3034 = vld [vmem:[%s3033] sm:$0xf]
    %v3035 = vld [vmem:[%s3033 + $0x4] sm:$0xf]
    %v3036 = vld [vmem:[%s3033 + $0x8] sm:$0xf]
    %v3037 = vld [vmem:[%s3033 + $0xc] sm:$0xf]
    %v3038 = vld [vmem:[%s3033 + $0x10] sm:$0xf]
    %v3039 = vld [vmem:[%s3033 + $0x14] sm:$0xf]
    %v3040 = vld [vmem:[%s3033 + $0x18] sm:$0xf]
    %v3041 = vld [vmem:[%s3033 + $0x1c] sm:$0xf]
    %v3042 = vld [vmem:[%s3033 + $0x20] sm:$0xf]
    %v3043 = vld [vmem:[%s3033 + $0x24] sm:$0xf]
    %v3045 = vshrl.u32 %v3022, 16
    %v3057 = vunpack.c.l.b16 %v3034
    %v3058 = vunpack.c.l.b16 %v3035
    %v3059 = vunpack.c.l.b16 %v3036
    %v3060 = vunpack.c.l.b16 %v3037
    %v3061 = vunpack.c.l.b16 %v3038
    %v3062 = vunpack.c.l.b16 %v3039
    %v3063 = vunpack.c.l.b16 %v3040
    %v3064 = vunpack.c.l.b16 %v3041
    %v3065 = vunpack.c.l.b16 %v3042
    %v3066 = vunpack.c.l.b16 %v3043
    %v3067 = vpack.c.b16 %v3058, %v3057
    %v3068 = vpack.c.b16 %v3060, %v3059
    %v3069 = vpack.c.b16 %v3062, %v3061
    %v3070 = vpack.c.b16 %v3064, %v3063
    %v3071 = vpack.c.b16 %v3066, %v3065
    %vm3077 = vcmask 654336
    %v3079 = vsel %vm3077, %v3045, 0
    %3081 = vmatprep.subr.bf16.mxu0 0
    %3082 = vmatpush1.bf16.msra.mxu0 0
    %3083 = vmatprep.subr.bf16.mxu0 0
    %3084 = vmatpush1.bf16.msra.mxu0 0
    %3085 = vmatprep.subr.bf16.mxu0 0
    %3086 = vmatpush1.bf16.msra.mxu0 0
    %3087 = vmatprep.subr.bf16.mxu0 0
    %3088 = vmatpush1.bf16.msra.mxu0 %v3071
    %3089 = vmatprep.subr.bf16.mxu0 0
    %3090 = vmatpush1.bf16.msra.mxu0 %v3070
    %3091 = vmatprep.subr.bf16.mxu0 0
    %3092 = vmatpush1.bf16.msra.mxu0 %v3069
    %3093 = vmatprep.subr.bf16.mxu0 0
    %3094 = vmatpush1.bf16.msra.mxu0 %v3068
    %3095 = vmatprep.subr.bf16.mxu0 0
    %3096 = vmatpush1.bf16.msra.mxu0 %v3067
    %3097 = vmatprep.subr.bf16.mxu0 0
    %3098 = vmatpush2.bf16.msra.mxu0 0
    %3099 = vmatprep.subr.bf16.mxu0 0
    %3100 = vmatpush2.bf16.msra.mxu0 0
    %3101 = vmatprep.subr.bf16.mxu0 0
    %3102 = vmatpush2.bf16.msra.mxu0 0
    %3103 = vmatprep.subr.bf16.mxu0 0
    %3104 = vmatpush2.bf16.msra.mxu0 0
    %3105 = vmatprep.subr.bf16.mxu0 0
    %3106 = vmatpush2.bf16.msra.mxu0 0
    %3107 = vmatprep.subr.bf16.mxu0 0
    %3108 = vmatpush2.bf16.msra.mxu0 0
    %3109 = vmatprep.subr.bf16.mxu0 0
    %3110 = vmatpush2.bf16.msra.mxu0 0
    %3111 = vmatprep.subr.bf16.mxu0 0
    %3112 = vmatpush2.bf16.msra.mxu0 0
    %3113 = vmatprep.mubr.bf16.mxu0 0
    %3114 = vmatmul.mubr.bf16.gmra.mxu0 %v3079
    %v3115 = vpop.f32.mrf.mxu0
    %v3116 = vadd.f32 0.0, %v3115
    %v3117 = vpop.f32.mrf.mxu0
    %v3118 = vpop.f32.mrf.mxu0
    %v3119 = vpop.f32.mrf.mxu0
    %3120 = vdwg.mxu0
    %v3131 = vunpack.c.l.b16 %v3023
    %v3132 = vunpack.c.l.b16 %v3024
    %v3133 = vunpack.c.l.b16 %v3025
    %v3134 = vunpack.c.l.b16 %v3026
    %v3135 = vunpack.c.l.b16 %v3027
    %v3136 = vunpack.c.l.b16 %v3028
    %v3137 = vunpack.c.l.b16 %v3029
    %v3138 = vunpack.c.l.b16 %v3030
    %v3139 = vunpack.c.l.b16 %v3031
    %v3140 = vunpack.c.l.b16 %v3032
    %v3141 = vpack.c.b16 %v3132, %v3131
    %v3142 = vpack.c.b16 %v3134, %v3133
    %v3143 = vpack.c.b16 %v3136, %v3135
    %v3144 = vpack.c.b16 %v3138, %v3137
    %v3145 = vpack.c.b16 %v3140, %v3139
    %v3151 = vsel %vm3077, %v3022, 0
    %3153 = vmatprep.subr.bf16.mxu0 0
    %3154 = vmatpush1.bf16.msra.mxu0 0
    %3155 = vmatprep.subr.bf16.mxu0 0
    %3156 = vmatpush1.bf16.msra.mxu0 0
    %3157 = vmatprep.subr.bf16.mxu0 0
    %3158 = vmatpush1.bf16.msra.mxu0 0
    %3159 = vmatprep.subr.bf16.mxu0 0
    %3160 = vmatpush1.bf16.msra.mxu0 %v3145
    %3161 = vmatprep.subr.bf16.mxu0 0
    %3162 = vmatpush1.bf16.msra.mxu0 %v3144
    %3163 = vmatprep.subr.bf16.mxu0 0
    %3164 = vmatpush1.bf16.msra.mxu0 %v3143
    %3165 = vmatprep.subr.bf16.mxu0 0
    %3166 = vmatpush1.bf16.msra.mxu0 %v3142
    %3167 = vmatprep.subr.bf16.mxu0 0
    %3168 = vmatpush1.bf16.msra.mxu0 %v3141
    %3169 = vmatprep.subr.bf16.mxu0 0
    %3170 = vmatpush2.bf16.msra.mxu0 0
    %3171 = vmatprep.subr.bf16.mxu0 0
    %3172 = vmatpush2.bf16.msra.mxu0 0
    %3173 = vmatprep.subr.bf16.mxu0 0
    %3174 = vmatpush2.bf16.msra.mxu0 0
    %3175 = vmatprep.subr.bf16.mxu0 0
    %3176 = vmatpush2.bf16.msra.mxu0 0
    %3177 = vmatprep.subr.bf16.mxu0 0
    %3178 = vmatpush2.bf16.msra.mxu0 0
    %3179 = vmatprep.subr.bf16.mxu0 0
    %3180 = vmatpush2.bf16.msra.mxu0 0
    %3181 = vmatprep.subr.bf16.mxu0 0
    %3182 = vmatpush2.bf16.msra.mxu0 0
    %3183 = vmatprep.subr.bf16.mxu0 0
    %3184 = vmatpush2.bf16.msra.mxu0 0
    %3185 = vmatprep.mubr.bf16.mxu0 0
    %3186 = vmatmul.mubr.bf16.gmra.mxu0 %v3151
    %v3187 = vpop.f32.mrf.mxu0
    %v3188 = vadd.f32 %v3116, %v3187
    %v3189 = vpop.f32.mrf.mxu0
    %v3190 = vpop.f32.mrf.mxu0
    %v3191 = vpop.f32.mrf.mxu0
    %3192 = vdwg.mxu0
    %s3193 = scalar_lea.vmem %s7, 80
    %v3194 = vld [vmem:[%s3193] sm:$0xf]
    %v3195 = vld [vmem:[%s3193 + $0x4] sm:$0xf]
    %v3196 = vld [vmem:[%s3193 + $0x8] sm:$0xf]
    %v3197 = vld [vmem:[%s3193 + $0xc] sm:$0xf]
    %v3198 = vld [vmem:[%s3193 + $0x10] sm:$0xf]
    %v3199 = vld [vmem:[%s3193 + $0x14] sm:$0xf]
    %v3200 = vld [vmem:[%s3193 + $0x18] sm:$0xf]
    %v3201 = vld [vmem:[%s3193 + $0x1c] sm:$0xf]
    %v3202 = vld [vmem:[%s3193 + $0x20] sm:$0xf]
    %v3203 = vld [vmem:[%s3193 + $0x24] sm:$0xf]
    %v3205 = vrot.slane %v3022, 1
    %v3216 = vunpack.c.l.b16 %v3194
    %v3217 = vunpack.c.l.b16 %v3195
    %v3218 = vunpack.c.l.b16 %v3196
    %v3219 = vunpack.c.l.b16 %v3197
    %v3220 = vunpack.c.l.b16 %v3198
    %v3221 = vunpack.c.l.b16 %v3199
    %v3222 = vunpack.c.l.b16 %v3200
    %v3223 = vunpack.c.l.b16 %v3201
    %v3224 = vunpack.c.l.b16 %v3202
    %v3225 = vunpack.c.l.b16 %v3203
    %v3226 = vpack.c.b16 %v3217, %v3216
    %v3227 = vpack.c.b16 %v3219, %v3218
    %v3228 = vpack.c.b16 %v3221, %v3220
    %v3229 = vpack.c.b16 %v3223, %v3222
    %v3230 = vpack.c.b16 %v3225, %v3224
    %v3237 = vsel %vm3077, %v3205, 0
    %3239 = vmatprep.subr.bf16.mxu0 0
    %3240 = vmatpush1.bf16.msra.mxu0 0
    %3241 = vmatprep.subr.bf16.mxu0 0
    %3242 = vmatpush1.bf16.msra.mxu0 0
    %3243 = vmatprep.subr.bf16.mxu0 0
    %3244 = vmatpush1.bf16.msra.mxu0 0
    %3245 = vmatprep.subr.bf16.mxu0 0
    %3246 = vmatpush1.bf16.msra.mxu0 %v3230
    %3247 = vmatprep.subr.bf16.mxu0 0
    %3248 = vmatpush1.bf16.msra.mxu0 %v3229
    %3249 = vmatprep.subr.bf16.mxu0 0
    %3250 = vmatpush1.bf16.msra.mxu0 %v3228
    %3251 = vmatprep.subr.bf16.mxu0 0
    %3252 = vmatpush1.bf16.msra.mxu0 %v3227
    %3253 = vmatprep.subr.bf16.mxu0 0
    %3254 = vmatpush1.bf16.msra.mxu0 %v3226
    %3255 = vmatprep.subr.bf16.mxu0 0
    %3256 = vmatpush2.bf16.msra.mxu0 0
    %3257 = vmatprep.subr.bf16.mxu0 0
    %3258 = vmatpush2.bf16.msra.mxu0 0
    %3259 = vmatprep.subr.bf16.mxu0 0
    %3260 = vmatpush2.bf16.msra.mxu0 0
    %3261 = vmatprep.subr.bf16.mxu0 0
    %3262 = vmatpush2.bf16.msra.mxu0 0
    %3263 = vmatprep.subr.bf16.mxu0 0
    %3264 = vmatpush2.bf16.msra.mxu0 0
    %3265 = vmatprep.subr.bf16.mxu0 0
    %3266 = vmatpush2.bf16.msra.mxu0 0
    %3267 = vmatprep.subr.bf16.mxu0 0
    %3268 = vmatpush2.bf16.msra.mxu0 0
    %3269 = vmatprep.subr.bf16.mxu0 0
    %3270 = vmatpush2.bf16.msra.mxu0 0
    %3271 = vmatprep.mubr.bf16.mxu0 0
    %3272 = vmatmul.mubr.bf16.gmra.mxu0 %v3237
    %v3273 = vpop.f32.mrf.mxu0
    %v3274 = vadd.f32 0.0, %v3273
    %v3275 = vpop.f32.mrf.mxu0
    %v3276 = vpop.f32.mrf.mxu0
    %v3277 = vpop.f32.mrf.mxu0
    %3278 = vdwg.mxu0
    %v3279 = vadd.f32 %v3188, %v3274
    %s3280 = scalar_lea.vmem %s7, 120
    %v3281 = vld [vmem:[%s3280] sm:$0xf]
    %v3282 = vld [vmem:[%s3280 + $0x4] sm:$0xf]
    %v3283 = vld [vmem:[%s3280 + $0x8] sm:$0xf]
    %v3284 = vld [vmem:[%s3280 + $0xc] sm:$0xf]
    %v3285 = vld [vmem:[%s3280 + $0x10] sm:$0xf]
    %v3286 = vld [vmem:[%s3280 + $0x14] sm:$0xf]
    %v3287 = vld [vmem:[%s3280 + $0x18] sm:$0xf]
    %v3288 = vld [vmem:[%s3280 + $0x1c] sm:$0xf]
    %v3289 = vld [vmem:[%s3280 + $0x20] sm:$0xf]
    %v3290 = vld [vmem:[%s3280 + $0x24] sm:$0xf]
    %v3291 = vrot.slane %v3045, 1
    %v3302 = vunpack.c.l.b16 %v3281
    %v3303 = vunpack.c.l.b16 %v3282
    %v3304 = vunpack.c.l.b16 %v3283
    %v3305 = vunpack.c.l.b16 %v3284
    %v3306 = vunpack.c.l.b16 %v3285
    %v3307 = vunpack.c.l.b16 %v3286
    %v3308 = vunpack.c.l.b16 %v3287
    %v3309 = vunpack.c.l.b16 %v3288
    %v3310 = vunpack.c.l.b16 %v3289
    %v3311 = vunpack.c.l.b16 %v3290
    %v3312 = vpack.c.b16 %v3303, %v3302
    %v3313 = vpack.c.b16 %v3305, %v3304
    %v3314 = vpack.c.b16 %v3307, %v3306
    %v3315 = vpack.c.b16 %v3309, %v3308
    %v3316 = vpack.c.b16 %v3311, %v3310
    %v3323 = vsel %vm3077, %v3291, 0
    %3325 = vmatprep.subr.bf16.mxu0 0
    %3326 = vmatpush1.bf16.msra.mxu0 0
    %3327 = vmatprep.subr.bf16.mxu0 0
    %3328 = vmatpush1.bf16.msra.mxu0 0
    %3329 = vmatprep.subr.bf16.mxu0 0
    %3330 = vmatpush1.bf16.msra.mxu0 0
    %3331 = vmatprep.subr.bf16.mxu0 0
    %3332 = vmatpush1.bf16.msra.mxu0 %v3316
    %3333 = vmatprep.subr.bf16.mxu0 0
    %3334 = vmatpush1.bf16.msra.mxu0 %v3315
    %3335 = vmatprep.subr.bf16.mxu0 0
    %3336 = vmatpush1.bf16.msra.mxu0 %v3314
    %3337 = vmatprep.subr.bf16.mxu0 0
    %3338 = vmatpush1.bf16.msra.mxu0 %v3313
    %3339 = vmatprep.subr.bf16.mxu0 0
    %3340 = vmatpush1.bf16.msra.mxu0 %v3312
    %3341 = vmatprep.subr.bf16.mxu0 0
    %3342 = vmatpush2.bf16.msra.mxu0 0
    %3343 = vmatprep.subr.bf16.mxu0 0
    %3344 = vmatpush2.bf16.msra.mxu0 0
    %3345 = vmatprep.subr.bf16.mxu0 0
    %3346 = vmatpush2.bf16.msra.mxu0 0
    %3347 = vmatprep.subr.bf16.mxu0 0
    %3348 = vmatpush2.bf16.msra.mxu0 0
    %3349 = vmatprep.subr.bf16.mxu0 0
    %3350 = vmatpush2.bf16.msra.mxu0 0
    %3351 = vmatprep.subr.bf16.mxu0 0
    %3352 = vmatpush2.bf16.msra.mxu0 0
    %3353 = vmatprep.subr.bf16.mxu0 0
    %3354 = vmatpush2.bf16.msra.mxu0 0
    %3355 = vmatprep.subr.bf16.mxu0 0
    %3356 = vmatpush2.bf16.msra.mxu0 0
    %3357 = vmatprep.mubr.bf16.mxu0 0
    %3358 = vmatmul.mubr.bf16.gmra.mxu0 %v3323
    %v3359 = vpop.f32.mrf.mxu0
    %v3360 = vadd.f32 0.0, %v3359
    %v3361 = vpop.f32.mrf.mxu0
    %v3362 = vpop.f32.mrf.mxu0
    %v3363 = vpop.f32.mrf.mxu0
    %3364 = vdwg.mxu0
    %v3365 = vadd.f32 %v3279, %v3360
    %s3366 = scalar_lea.vmem %s7, 160
    %v3367 = vld [vmem:[%s3366] sm:$0xf]
    %v3368 = vld [vmem:[%s3366 + $0x4] sm:$0xf]
    %v3369 = vld [vmem:[%s3366 + $0x8] sm:$0xf]
    %v3370 = vld [vmem:[%s3366 + $0xc] sm:$0xf]
    %v3371 = vld [vmem:[%s3366 + $0x10] sm:$0xf]
    %v3372 = vld [vmem:[%s3366 + $0x14] sm:$0xf]
    %v3373 = vld [vmem:[%s3366 + $0x18] sm:$0xf]
    %v3374 = vld [vmem:[%s3366 + $0x1c] sm:$0xf]
    %v3375 = vld [vmem:[%s3366 + $0x20] sm:$0xf]
    %v3376 = vld [vmem:[%s3366 + $0x24] sm:$0xf]
    %v3377 = vrot.slane %v3022, 2
    %v3388 = vunpack.c.l.b16 %v3367
    %v3389 = vunpack.c.l.b16 %v3368
    %v3390 = vunpack.c.l.b16 %v3369
    %v3391 = vunpack.c.l.b16 %v3370
    %v3392 = vunpack.c.l.b16 %v3371
    %v3393 = vunpack.c.l.b16 %v3372
    %v3394 = vunpack.c.l.b16 %v3373
    %v3395 = vunpack.c.l.b16 %v3374
    %v3396 = vunpack.c.l.b16 %v3375
    %v3397 = vunpack.c.l.b16 %v3376
    %v3398 = vpack.c.b16 %v3389, %v3388
    %v3399 = vpack.c.b16 %v3391, %v3390
    %v3400 = vpack.c.b16 %v3393, %v3392
    %v3401 = vpack.c.b16 %v3395, %v3394
    %v3402 = vpack.c.b16 %v3397, %v3396
    %v3409 = vsel %vm3077, %v3377, 0
    %3411 = vmatprep.subr.bf16.mxu0 0
    %3412 = vmatpush1.bf16.msra.mxu0 0
    %3413 = vmatprep.subr.bf16.mxu0 0
    %3414 = vmatpush1.bf16.msra.mxu0 0
    %3415 = vmatprep.subr.bf16.mxu0 0
    %3416 = vmatpush1.bf16.msra.mxu0 0
    %3417 = vmatprep.subr.bf16.mxu0 0
    %3418 = vmatpush1.bf16.msra.mxu0 %v3402
    %3419 = vmatprep.subr.bf16.mxu0 0
    %3420 = vmatpush1.bf16.msra.mxu0 %v3401
    %3421 = vmatprep.subr.bf16.mxu0 0
    %3422 = vmatpush1.bf16.msra.mxu0 %v3400
    %3423 = vmatprep.subr.bf16.mxu0 0
    %3424 = vmatpush1.bf16.msra.mxu0 %v3399
    %3425 = vmatprep.subr.bf16.mxu0 0
    %3426 = vmatpush1.bf16.msra.mxu0 %v3398
    %3427 = vmatprep.subr.bf16.mxu0 0
    %3428 = vmatpush2.bf16.msra.mxu0 0
    %3429 = vmatprep.subr.bf16.mxu0 0
    %3430 = vmatpush2.bf16.msra.mxu0 0
    %3431 = vmatprep.subr.bf16.mxu0 0
    %3432 = vmatpush2.bf16.msra.mxu0 0
    %3433 = vmatprep.subr.bf16.mxu0 0
    %3434 = vmatpush2.bf16.msra.mxu0 0
    %3435 = vmatprep.subr.bf16.mxu0 0
    %3436 = vmatpush2.bf16.msra.mxu0 0
    %3437 = vmatprep.subr.bf16.mxu0 0
    %3438 = vmatpush2.bf16.msra.mxu0 0
    %3439 = vmatprep.subr.bf16.mxu0 0
    %3440 = vmatpush2.bf16.msra.mxu0 0
    %3441 = vmatprep.subr.bf16.mxu0 0
    %3442 = vmatpush2.bf16.msra.mxu0 0
    %3443 = vmatprep.mubr.bf16.mxu0 0
    %3444 = vmatmul.mubr.bf16.gmra.mxu0 %v3409
    %v3445 = vpop.f32.mrf.mxu0
    %v3446 = vadd.f32 0.0, %v3445
    %v3447 = vpop.f32.mrf.mxu0
    %v3448 = vpop.f32.mrf.mxu0
    %v3449 = vpop.f32.mrf.mxu0
    %3450 = vdwg.mxu0
    %v3451 = vadd.f32 %v3365, %v3446
    %v3452 = vld [vmem:[%s8] sm:$0x1]
    %v3453 = vadd.f32 %v3451, %v3452
    %v3454 = vmax.f32 %v3453, 0.0
    %v3455 = vpack.c.bf16 %v3454, %v3454
    %v3456 = vld [vmem:[%s9] sm:$0xf]
    %v3457 = vld [vmem:[%s9 + $0x4] sm:$0xf]
    %v3458 = vld [vmem:[%s9 + $0x8] sm:$0xf]
    %v3459 = vld [vmem:[%s9 + $0xc] sm:$0xf]
    %v3460 = vld [vmem:[%s9 + $0x10] sm:$0xf]
    %v3461 = vld [vmem:[%s9 + $0x14] sm:$0xf]
    %v3462 = vld [vmem:[%s9 + $0x18] sm:$0xf]
    %v3463 = vld [vmem:[%s9 + $0x1c] sm:$0xf]
    %v3464 = vld [vmem:[%s9 + $0x20] sm:$0xf]
    %v3465 = vld [vmem:[%s9 + $0x24] sm:$0xf]
    %v3466 = vld [vmem:[%s9 + $0x28] sm:$0xf]
    %v3467 = vld [vmem:[%s9 + $0x2c] sm:$0xf]
    %v3468 = vld [vmem:[%s9 + $0x30] sm:$0xf]
    %v3469 = vld [vmem:[%s9 + $0x34] sm:$0xf]
    %v3470 = vld [vmem:[%s9 + $0x38] sm:$0xf]
    %v3471 = vld [vmem:[%s9 + $0x3c] sm:$0xf]
    %v3472 = vld [vmem:[%s10] sm:$0x1]
    %v3489 = vunpack.c.l.b16 %v3456
    %v3490 = vunpack.c.l.b16 %v3457
    %v3491 = vunpack.c.l.b16 %v3458
    %v3492 = vunpack.c.l.b16 %v3459
    %v3493 = vunpack.c.l.b16 %v3460
    %v3494 = vunpack.c.l.b16 %v3461
    %v3495 = vunpack.c.l.b16 %v3462
    %v3496 = vunpack.c.l.b16 %v3463
    %v3497 = vunpack.c.l.b16 %v3464
    %v3498 = vunpack.c.l.b16 %v3465
    %v3499 = vunpack.c.l.b16 %v3466
    %v3500 = vunpack.c.l.b16 %v3467
    %v3501 = vunpack.c.l.b16 %v3468
    %v3502 = vunpack.c.l.b16 %v3469
    %v3503 = vunpack.c.l.b16 %v3470
    %v3504 = vunpack.c.l.b16 %v3471
    %v3505 = vpack.c.b16 %v3490, %v3489
    %v3506 = vpack.c.b16 %v3492, %v3491
    %v3507 = vpack.c.b16 %v3494, %v3493
    %v3508 = vpack.c.b16 %v3496, %v3495
    %v3509 = vpack.c.b16 %v3498, %v3497
    %v3510 = vpack.c.b16 %v3500, %v3499
    %v3511 = vpack.c.b16 %v3502, %v3501
    %v3512 = vpack.c.b16 %v3504, %v3503
    %3521 = vmatprep.subr.bf16.mxu0 0
    %3522 = vmatpush1.bf16.msra.mxu0 %v3512
    %3523 = vmatprep.subr.bf16.mxu0 0
    %3524 = vmatpush1.bf16.msra.mxu0 %v3511
    %3525 = vmatprep.subr.bf16.mxu0 0
    %3526 = vmatpush1.bf16.msra.mxu0 %v3510
    %3527 = vmatprep.subr.bf16.mxu0 0
    %3528 = vmatpush1.bf16.msra.mxu0 %v3509
    %3529 = vmatprep.subr.bf16.mxu0 0
    %3530 = vmatpush1.bf16.msra.mxu0 %v3508
    %3531 = vmatprep.subr.bf16.mxu0 0
    %3532 = vmatpush1.bf16.msra.mxu0 %v3507
    %3533 = vmatprep.subr.bf16.mxu0 0
    %3534 = vmatpush1.bf16.msra.mxu0 %v3506
    %3535 = vmatprep.subr.bf16.mxu0 0
    %3536 = vmatpush1.bf16.msra.mxu0 %v3505
    %3537 = vmatprep.subr.bf16.mxu0 0
    %3538 = vmatpush2.bf16.msra.mxu0 0
    %3539 = vmatprep.subr.bf16.mxu0 0
    %3540 = vmatpush2.bf16.msra.mxu0 0
    %3541 = vmatprep.subr.bf16.mxu0 0
    %3542 = vmatpush2.bf16.msra.mxu0 0
    %3543 = vmatprep.subr.bf16.mxu0 0
    %3544 = vmatpush2.bf16.msra.mxu0 0
    %3545 = vmatprep.subr.bf16.mxu0 0
    %3546 = vmatpush2.bf16.msra.mxu0 0
    %3547 = vmatprep.subr.bf16.mxu0 0
    %3548 = vmatpush2.bf16.msra.mxu0 0
    %3549 = vmatprep.subr.bf16.mxu0 0
    %3550 = vmatpush2.bf16.msra.mxu0 0
    %3551 = vmatprep.subr.bf16.mxu0 0
    %3552 = vmatpush2.bf16.msra.mxu0 0
    %3553 = vmatprep.mubr.bf16.mxu0 0
    %3554 = vmatmul.mubr.bf16.gmra.mxu0 %v3455
    %v3555 = vpop.f32.mrf.mxu0
    %v3556 = vadd.f32 %v3472, %v3555
    %v3557 = vpop.f32.mrf.mxu0
    %v3558 = vpop.f32.mrf.mxu0
    %v3559 = vpop.f32.mrf.mxu0
    %3560 = vdwg.mxu0
    %v3561 = vmax.f32 %v3556, 0.0
    %v3562 = vpack.c.bf16 %v3561, %v3561
    %v3563 = vld [vmem:[%s11] sm:$0xf]
    %v3564 = vld [vmem:[%s11 + $0x4] sm:$0xf]
    %v3565 = vld [vmem:[%s11 + $0x8] sm:$0xf]
    %v3566 = vld [vmem:[%s11 + $0xc] sm:$0xf]
    %v3567 = vld [vmem:[%s11 + $0x10] sm:$0xf]
    %v3568 = vld [vmem:[%s11 + $0x14] sm:$0xf]
    %v3569 = vld [vmem:[%s11 + $0x18] sm:$0xf]
    %v3570 = vld [vmem:[%s11 + $0x1c] sm:$0xf]
    %v3571 = vld [vmem:[%s11 + $0x20] sm:$0xf]
    %v3572 = vld [vmem:[%s11 + $0x24] sm:$0xf]
    %v3573 = vld [vmem:[%s11 + $0x28] sm:$0xf]
    %v3574 = vld [vmem:[%s11 + $0x2c] sm:$0xf]
    %v3575 = vld [vmem:[%s11 + $0x30] sm:$0xf]
    %v3576 = vld [vmem:[%s11 + $0x34] sm:$0xf]
    %v3577 = vld [vmem:[%s11 + $0x38] sm:$0xf]
    %v3578 = vld [vmem:[%s11 + $0x3c] sm:$0xf]
    %v3579 = vld [vmem:[%s12] sm:$0x1]
    %v3596 = vunpack.c.l.b16 %v3563
    %v3597 = vunpack.c.l.b16 %v3564
    %v3598 = vunpack.c.l.b16 %v3565
    %v3599 = vunpack.c.l.b16 %v3566
    %v3600 = vunpack.c.l.b16 %v3567
    %v3601 = vunpack.c.l.b16 %v3568
    %v3602 = vunpack.c.l.b16 %v3569
    %v3603 = vunpack.c.l.b16 %v3570
    %v3604 = vunpack.c.l.b16 %v3571
    %v3605 = vunpack.c.l.b16 %v3572
    %v3606 = vunpack.c.l.b16 %v3573
    %v3607 = vunpack.c.l.b16 %v3574
    %v3608 = vunpack.c.l.b16 %v3575
    %v3609 = vunpack.c.l.b16 %v3576
    %v3610 = vunpack.c.l.b16 %v3577
    %v3611 = vunpack.c.l.b16 %v3578
    %v3612 = vpack.c.b16 %v3597, %v3596
    %v3613 = vpack.c.b16 %v3599, %v3598
    %v3614 = vpack.c.b16 %v3601, %v3600
    %v3615 = vpack.c.b16 %v3603, %v3602
    %v3616 = vpack.c.b16 %v3605, %v3604
    %v3617 = vpack.c.b16 %v3607, %v3606
    %v3618 = vpack.c.b16 %v3609, %v3608
    %v3619 = vpack.c.b16 %v3611, %v3610
    %3628 = vmatprep.subr.bf16.mxu0 0
    %3629 = vmatpush1.bf16.msra.mxu0 %v3619
    %3630 = vmatprep.subr.bf16.mxu0 0
    %3631 = vmatpush1.bf16.msra.mxu0 %v3618
    %3632 = vmatprep.subr.bf16.mxu0 0
    %3633 = vmatpush1.bf16.msra.mxu0 %v3617
    %3634 = vmatprep.subr.bf16.mxu0 0
    %3635 = vmatpush1.bf16.msra.mxu0 %v3616
    %3636 = vmatprep.subr.bf16.mxu0 0
    %3637 = vmatpush1.bf16.msra.mxu0 %v3615
    %3638 = vmatprep.subr.bf16.mxu0 0
    %3639 = vmatpush1.bf16.msra.mxu0 %v3614
    %3640 = vmatprep.subr.bf16.mxu0 0
    %3641 = vmatpush1.bf16.msra.mxu0 %v3613
    %3642 = vmatprep.subr.bf16.mxu0 0
    %3643 = vmatpush1.bf16.msra.mxu0 %v3612
    %3644 = vmatprep.subr.bf16.mxu0 0
    %3645 = vmatpush2.bf16.msra.mxu0 0
    %3646 = vmatprep.subr.bf16.mxu0 0
    %3647 = vmatpush2.bf16.msra.mxu0 0
    %3648 = vmatprep.subr.bf16.mxu0 0
    %3649 = vmatpush2.bf16.msra.mxu0 0
    %3650 = vmatprep.subr.bf16.mxu0 0
    %3651 = vmatpush2.bf16.msra.mxu0 0
    %3652 = vmatprep.subr.bf16.mxu0 0
    %3653 = vmatpush2.bf16.msra.mxu0 0
    %3654 = vmatprep.subr.bf16.mxu0 0
    %3655 = vmatpush2.bf16.msra.mxu0 0
    %3656 = vmatprep.subr.bf16.mxu0 0
    %3657 = vmatpush2.bf16.msra.mxu0 0
    %3658 = vmatprep.subr.bf16.mxu0 0
    %3659 = vmatpush2.bf16.msra.mxu0 0
    %3660 = vmatprep.mubr.bf16.mxu0 0
    %3661 = vmatmul.mubr.bf16.gmra.mxu0 %v3562
    %v3662 = vpop.f32.mrf.mxu0
    %v3663 = vadd.f32 %v3579, %v3662
    %v3664 = vpop.f32.mrf.mxu0
    %v3665 = vpop.f32.mrf.mxu0
    %v3666 = vpop.f32.mrf.mxu0
    %3667 = vdwg.mxu0
    %3668 = vst [vmem:[#allocation2] sm:$0x1] %v3663
    %s3669 = scalar_lea.vmem %s0, 32
    %v3670 = vld [vmem:[%s3669] sm:$0xff]
    %v3671 = vld [vmem:[%s3669 + $0x8] sm:$0xff]
    %v3672 = vld [vmem:[%s3669 + $0x10] sm:$0xff]
    %v3673 = vld [vmem:[%s3669 + $0x18] sm:$0xff]
    %v3674 = vpack.c.bf16 %v3671, %v3670
    %v3675 = vpack.c.bf16 %v3673, %v3672
    %v3676 = vld [vmem:[%s1] sm:$0xf]
    %v3677 = vld [vmem:[%s1 + $0x4] sm:$0x7]
    %v3680 = vunpack.c.l.b16 %v3676
    %v3681 = vunpack.c.l.b16 %v3677
    %v3682 = vpack.c.b16 %v3681, %v3680
    %v3684 = vsel %vm59, %v3682, 0
    %3686 = vmatprep.subr.bf16.mxu0 0
    %3687 = vmatpush1.bf16.msra.mxu0 0
    %3688 = vmatprep.subr.bf16.mxu0 0
    %3689 = vmatpush1.bf16.msra.mxu0 0
    %3690 = vmatprep.subr.bf16.mxu0 0
    %3691 = vmatpush1.bf16.msra.mxu0 0
    %3692 = vmatprep.subr.bf16.mxu0 0
    %3693 = vmatpush1.bf16.msra.mxu0 0
    %3694 = vmatprep.subr.bf16.mxu0 0
    %3695 = vmatpush1.bf16.msra.mxu0 0
    %3696 = vmatprep.subr.bf16.mxu0 0
    %3697 = vmatpush1.bf16.msra.mxu0 0
    %3698 = vmatprep.subr.bf16.mxu0 0
    %3699 = vmatpush1.bf16.msra.mxu0 %v3675
    %3700 = vmatprep.subr.bf16.mxu0 0
    %3701 = vmatpush1.bf16.msra.mxu0 %v3674
    %3702 = vmatprep.subr.bf16.mxu0 0
    %3703 = vmatpush2.bf16.msra.mxu0 0
    %3704 = vmatprep.subr.bf16.mxu0 0
    %3705 = vmatpush2.bf16.msra.mxu0 0
    %3706 = vmatprep.subr.bf16.mxu0 0
    %3707 = vmatpush2.bf16.msra.mxu0 0
    %3708 = vmatprep.subr.bf16.mxu0 0
    %3709 = vmatpush2.bf16.msra.mxu0 0
    %3710 = vmatprep.subr.bf16.mxu0 0
    %3711 = vmatpush2.bf16.msra.mxu0 0
    %3712 = vmatprep.subr.bf16.mxu0 0
    %3713 = vmatpush2.bf16.msra.mxu0 0
    %3714 = vmatprep.subr.bf16.mxu0 0
    %3715 = vmatpush2.bf16.msra.mxu0 0
    %3716 = vmatprep.subr.bf16.mxu0 0
    %3717 = vmatpush2.bf16.msra.mxu0 0
    %3718 = vmatprep.mubr.bf16.mxu0 0
    %3719 = vmatmul.mubr.bf16.gmra.mxu0 %v3684
    %v3720 = vpop.f32.mrf.mxu0
    %v3721 = vadd.f32 0.0, %v3720
    %v3722 = vpop.f32.mrf.mxu0
    %v3723 = vpop.f32.mrf.mxu0
    %v3724 = vadd.f32 0.0, %v3723
    %v3725 = vpop.f32.mrf.mxu0
    %3726 = vdwg.mxu0
    %v3727 = vpack.c.bf16 %v3724, %v3721
    %v3728 = vld [vmem:[%s105] sm:$0xf]
    %v3729 = vld [vmem:[%s105 + $0x4] sm:$0x7]
    %v3732 = vunpack.c.l.b16 %v3728
    %v3733 = vunpack.c.l.b16 %v3729
    %v3734 = vpack.c.b16 %v3733, %v3732
    %v3736 = vsel %vm59, %v3734, 0
    %3738 = vmatprep.subr.bf16.mxu0 0
    %3739 = vmatpush1.bf16.msra.mxu0 0
    %3740 = vmatprep.subr.bf16.mxu0 0
    %3741 = vmatpush1.bf16.msra.mxu0 0
    %3742 = vmatprep.subr.bf16.mxu0 0
    %3743 = vmatpush1.bf16.msra.mxu0 0
    %3744 = vmatprep.subr.bf16.mxu0 0
    %3745 = vmatpush1.bf16.msra.mxu0 0
    %3746 = vmatprep.subr.bf16.mxu0 0
    %3747 = vmatpush1.bf16.msra.mxu0 0
    %3748 = vmatprep.subr.bf16.mxu0 0
    %3749 = vmatpush1.bf16.msra.mxu0 0
    %3750 = vmatprep.subr.bf16.mxu0 0
    %3751 = vmatpush1.bf16.msra.mxu0 %v3675
    %3752 = vmatprep.subr.bf16.mxu0 0
    %3753 = vmatpush1.bf16.msra.mxu0 %v3674
    %3754 = vmatprep.subr.bf16.mxu0 0
    %3755 = vmatpush2.bf16.msra.mxu0 0
    %3756 = vmatprep.subr.bf16.mxu0 0
    %3757 = vmatpush2.bf16.msra.mxu0 0
    %3758 = vmatprep.subr.bf16.mxu0 0
    %3759 = vmatpush2.bf16.msra.mxu0 0
    %3760 = vmatprep.subr.bf16.mxu0 0
    %3761 = vmatpush2.bf16.msra.mxu0 0
    %3762 = vmatprep.subr.bf16.mxu0 0
    %3763 = vmatpush2.bf16.msra.mxu0 0
    %3764 = vmatprep.subr.bf16.mxu0 0
    %3765 = vmatpush2.bf16.msra.mxu0 0
    %3766 = vmatprep.subr.bf16.mxu0 0
    %3767 = vmatpush2.bf16.msra.mxu0 0
    %3768 = vmatprep.subr.bf16.mxu0 0
    %3769 = vmatpush2.bf16.msra.mxu0 0
    %3770 = vmatprep.mubr.bf16.mxu0 0
    %3771 = vmatmul.mubr.bf16.gmra.mxu0 %v3736
    %v3772 = vpop.f32.mrf.mxu0
    %v3773 = vadd.f32 0.0, %v3772
    %v3774 = vpop.f32.mrf.mxu0
    %v3775 = vpop.f32.mrf.mxu0
    %v3776 = vadd.f32 0.0, %v3775
    %v3777 = vpop.f32.mrf.mxu0
    %3778 = vdwg.mxu0
    %v3779 = vpack.c.bf16 %v3776, %v3773
    %v3780 = vld [vmem:[%s158] sm:$0xf]
    %v3781 = vld [vmem:[%s158 + $0x4] sm:$0x7]
    %v3784 = vunpack.c.l.b16 %v3780
    %v3785 = vunpack.c.l.b16 %v3781
    %v3786 = vpack.c.b16 %v3785, %v3784
    %v3788 = vsel %vm59, %v3786, 0
    %3790 = vmatprep.subr.bf16.mxu0 0
    %3791 = vmatpush1.bf16.msra.mxu0 0
    %3792 = vmatprep.subr.bf16.mxu0 0
    %3793 = vmatpush1.bf16.msra.mxu0 0
    %3794 = vmatprep.subr.bf16.mxu0 0
    %3795 = vmatpush1.bf16.msra.mxu0 0
    %3796 = vmatprep.subr.bf16.mxu0 0
    %3797 = vmatpush1.bf16.msra.mxu0 0
    %3798 = vmatprep.subr.bf16.mxu0 0
    %3799 = vmatpush1.bf16.msra.mxu0 0
    %3800 = vmatprep.subr.bf16.mxu0 0
    %3801 = vmatpush1.bf16.msra.mxu0 0
    %3802 = vmatprep.subr.bf16.mxu0 0
    %3803 = vmatpush1.bf16.msra.mxu0 %v3675
    %3804 = vmatprep.subr.bf16.mxu0 0
    %3805 = vmatpush1.bf16.msra.mxu0 %v3674
    %3806 = vmatprep.subr.bf16.mxu0 0
    %3807 = vmatpush2.bf16.msra.mxu0 0
    %3808 = vmatprep.subr.bf16.mxu0 0
    %3809 = vmatpush2.bf16.msra.mxu0 0
    %3810 = vmatprep.subr.bf16.mxu0 0
    %3811 = vmatpush2.bf16.msra.mxu0 0
    %3812 = vmatprep.subr.bf16.mxu0 0
    %3813 = vmatpush2.bf16.msra.mxu0 0
    %3814 = vmatprep.subr.bf16.mxu0 0
    %3815 = vmatpush2.bf16.msra.mxu0 0
    %3816 = vmatprep.subr.bf16.mxu0 0
    %3817 = vmatpush2.bf16.msra.mxu0 0
    %3818 = vmatprep.subr.bf16.mxu0 0
    %3819 = vmatpush2.bf16.msra.mxu0 0
    %3820 = vmatprep.subr.bf16.mxu0 0
    %3821 = vmatpush2.bf16.msra.mxu0 0
    %3822 = vmatprep.mubr.bf16.mxu0 0
    %3823 = vmatmul.mubr.bf16.gmra.mxu0 %v3788
    %v3824 = vpop.f32.mrf.mxu0
    %v3825 = vadd.f32 0.0, %v3824
    %v3826 = vpop.f32.mrf.mxu0
    %v3827 = vpop.f32.mrf.mxu0
    %v3828 = vadd.f32 0.0, %v3827
    %v3829 = vpop.f32.mrf.mxu0
    %3830 = vdwg.mxu0
    %v3831 = vpack.c.bf16 %v3828, %v3825
    %v3832 = vld [vmem:[%s211] sm:$0xf]
    %v3833 = vld [vmem:[%s211 + $0x4] sm:$0x7]
    %v3836 = vunpack.c.l.b16 %v3832
    %v3837 = vunpack.c.l.b16 %v3833
    %v3838 = vpack.c.b16 %v3837, %v3836
    %v3840 = vsel %vm59, %v3838, 0
    %3842 = vmatprep.subr.bf16.mxu0 0
    %3843 = vmatpush1.bf16.msra.mxu0 0
    %3844 = vmatprep.subr.bf16.mxu0 0
    %3845 = vmatpush1.bf16.msra.mxu0 0
    %3846 = vmatprep.subr.bf16.mxu0 0
    %3847 = vmatpush1.bf16.msra.mxu0 0
    %3848 = vmatprep.subr.bf16.mxu0 0
    %3849 = vmatpush1.bf16.msra.mxu0 0
    %3850 = vmatprep.subr.bf16.mxu0 0
    %3851 = vmatpush1.bf16.msra.mxu0 0
    %3852 = vmatprep.subr.bf16.mxu0 0
    %3853 = vmatpush1.bf16.msra.mxu0 0
    %3854 = vmatprep.subr.bf16.mxu0 0
    %3855 = vmatpush1.bf16.msra.mxu0 %v3675
    %3856 = vmatprep.subr.bf16.mxu0 0
    %3857 = vmatpush1.bf16.msra.mxu0 %v3674
    %3858 = vmatprep.subr.bf16.mxu0 0
    %3859 = vmatpush2.bf16.msra.mxu0 0
    %3860 = vmatprep.subr.bf16.mxu0 0
    %3861 = vmatpush2.bf16.msra.mxu0 0
    %3862 = vmatprep.subr.bf16.mxu0 0
    %3863 = vmatpush2.bf16.msra.mxu0 0
    %3864 = vmatprep.subr.bf16.mxu0 0
    %3865 = vmatpush2.bf16.msra.mxu0 0
    %3866 = vmatprep.subr.bf16.mxu0 0
    %3867 = vmatpush2.bf16.msra.mxu0 0
    %3868 = vmatprep.subr.bf16.mxu0 0
    %3869 = vmatpush2.bf16.msra.mxu0 0
    %3870 = vmatprep.subr.bf16.mxu0 0
    %3871 = vmatpush2.bf16.msra.mxu0 0
    %3872 = vmatprep.subr.bf16.mxu0 0
    %3873 = vmatpush2.bf16.msra.mxu0 0
    %3874 = vmatprep.mubr.bf16.mxu0 0
    %3875 = vmatmul.mubr.bf16.gmra.mxu0 %v3840
    %v3876 = vpop.f32.mrf.mxu0
    %v3877 = vadd.f32 0.0, %v3876
    %v3878 = vpop.f32.mrf.mxu0
    %v3879 = vpop.f32.mrf.mxu0
    %v3880 = vadd.f32 0.0, %v3879
    %v3881 = vpop.f32.mrf.mxu0
    %3882 = vdwg.mxu0
    %v3883 = vpack.c.bf16 %v3880, %v3877
    %v3884 = vld [vmem:[%s264] sm:$0xf]
    %v3885 = vld [vmem:[%s264 + $0x4] sm:$0x7]
    %v3888 = vunpack.c.l.b16 %v3884
    %v3889 = vunpack.c.l.b16 %v3885
    %v3890 = vpack.c.b16 %v3889, %v3888
    %v3892 = vsel %vm59, %v3890, 0
    %3894 = vmatprep.subr.bf16.mxu0 0
    %3895 = vmatpush1.bf16.msra.mxu0 0
    %3896 = vmatprep.subr.bf16.mxu0 0
    %3897 = vmatpush1.bf16.msra.mxu0 0
    %3898 = vmatprep.subr.bf16.mxu0 0
    %3899 = vmatpush1.bf16.msra.mxu0 0
    %3900 = vmatprep.subr.bf16.mxu0 0
    %3901 = vmatpush1.bf16.msra.mxu0 0
    %3902 = vmatprep.subr.bf16.mxu0 0
    %3903 = vmatpush1.bf16.msra.mxu0 0
    %3904 = vmatprep.subr.bf16.mxu0 0
    %3905 = vmatpush1.bf16.msra.mxu0 0
    %3906 = vmatprep.subr.bf16.mxu0 0
    %3907 = vmatpush1.bf16.msra.mxu0 %v3675
    %3908 = vmatprep.subr.bf16.mxu0 0
    %3909 = vmatpush1.bf16.msra.mxu0 %v3674
    %3910 = vmatprep.subr.bf16.mxu0 0
    %3911 = vmatpush2.bf16.msra.mxu0 0
    %3912 = vmatprep.subr.bf16.mxu0 0
    %3913 = vmatpush2.bf16.msra.mxu0 0
    %3914 = vmatprep.subr.bf16.mxu0 0
    %3915 = vmatpush2.bf16.msra.mxu0 0
    %3916 = vmatprep.subr.bf16.mxu0 0
    %3917 = vmatpush2.bf16.msra.mxu0 0
    %3918 = vmatprep.subr.bf16.mxu0 0
    %3919 = vmatpush2.bf16.msra.mxu0 0
    %3920 = vmatprep.subr.bf16.mxu0 0
    %3921 = vmatpush2.bf16.msra.mxu0 0
    %3922 = vmatprep.subr.bf16.mxu0 0
    %3923 = vmatpush2.bf16.msra.mxu0 0
    %3924 = vmatprep.subr.bf16.mxu0 0
    %3925 = vmatpush2.bf16.msra.mxu0 0
    %3926 = vmatprep.mubr.bf16.mxu0 0
    %3927 = vmatmul.mubr.bf16.gmra.mxu0 %v3892
    %v3928 = vpop.f32.mrf.mxu0
    %v3929 = vadd.f32 0.0, %v3928
    %v3930 = vpop.f32.mrf.mxu0
    %v3931 = vpop.f32.mrf.mxu0
    %v3932 = vadd.f32 0.0, %v3931
    %v3933 = vpop.f32.mrf.mxu0
    %3934 = vdwg.mxu0
    %v3935 = vpack.c.bf16 %v3932, %v3929
    %v3936 = vld [vmem:[%s317] sm:$0xf]
    %v3937 = vld [vmem:[%s317 + $0x4] sm:$0x7]
    %v3940 = vunpack.c.l.b16 %v3936
    %v3941 = vunpack.c.l.b16 %v3937
    %v3942 = vpack.c.b16 %v3941, %v3940
    %v3944 = vsel %vm59, %v3942, 0
    %3946 = vmatprep.subr.bf16.mxu0 0
    %3947 = vmatpush1.bf16.msra.mxu0 0
    %3948 = vmatprep.subr.bf16.mxu0 0
    %3949 = vmatpush1.bf16.msra.mxu0 0
    %3950 = vmatprep.subr.bf16.mxu0 0
    %3951 = vmatpush1.bf16.msra.mxu0 0
    %3952 = vmatprep.subr.bf16.mxu0 0
    %3953 = vmatpush1.bf16.msra.mxu0 0
    %3954 = vmatprep.subr.bf16.mxu0 0
    %3955 = vmatpush1.bf16.msra.mxu0 0
    %3956 = vmatprep.subr.bf16.mxu0 0
    %3957 = vmatpush1.bf16.msra.mxu0 0
    %3958 = vmatprep.subr.bf16.mxu0 0
    %3959 = vmatpush1.bf16.msra.mxu0 %v3675
    %3960 = vmatprep.subr.bf16.mxu0 0
    %3961 = vmatpush1.bf16.msra.mxu0 %v3674
    %3962 = vmatprep.subr.bf16.mxu0 0
    %3963 = vmatpush2.bf16.msra.mxu0 0
    %3964 = vmatprep.subr.bf16.mxu0 0
    %3965 = vmatpush2.bf16.msra.mxu0 0
    %3966 = vmatprep.subr.bf16.mxu0 0
    %3967 = vmatpush2.bf16.msra.mxu0 0
    %3968 = vmatprep.subr.bf16.mxu0 0
    %3969 = vmatpush2.bf16.msra.mxu0 0
    %3970 = vmatprep.subr.bf16.mxu0 0
    %3971 = vmatpush2.bf16.msra.mxu0 0
    %3972 = vmatprep.subr.bf16.mxu0 0
    %3973 = vmatpush2.bf16.msra.mxu0 0
    %3974 = vmatprep.subr.bf16.mxu0 0
    %3975 = vmatpush2.bf16.msra.mxu0 0
    %3976 = vmatprep.subr.bf16.mxu0 0
    %3977 = vmatpush2.bf16.msra.mxu0 0
    %3978 = vmatprep.mubr.bf16.mxu0 0
    %3979 = vmatmul.mubr.bf16.gmra.mxu0 %v3944
    %v3980 = vpop.f32.mrf.mxu0
    %v3981 = vadd.f32 0.0, %v3980
    %v3982 = vpop.f32.mrf.mxu0
    %v3983 = vpop.f32.mrf.mxu0
    %v3984 = vadd.f32 0.0, %v3983
    %v3985 = vpop.f32.mrf.mxu0
    %3986 = vdwg.mxu0
    %v3987 = vpack.c.bf16 %v3984, %v3981
    %v3988 = vld [vmem:[%s2] sm:$0xf]
    %v3989 = vld [vmem:[%s2 + $0x4] sm:$0xf]
    %v3990 = vld [vmem:[%s2 + $0x8] sm:$0xf]
    %v3991 = vld [vmem:[%s2 + $0xc] sm:$0xf]
    %v3992 = vld [vmem:[%s374] sm:$0xf]
    %v3993 = vld [vmem:[%s374 + $0x4] sm:$0xf]
    %v3994 = vld [vmem:[%s374 + $0x8] sm:$0xf]
    %v3995 = vld [vmem:[%s374 + $0xc] sm:$0xf]
    %v4000 = vunpack.c.l.b16 %v3992
    %v4001 = vunpack.c.l.b16 %v3993
    %v4002 = vunpack.c.l.b16 %v3994
    %v4003 = vunpack.c.l.b16 %v3995
    %v4004 = vpack.c.b16 %v4001, %v4000
    %v4005 = vpack.c.b16 %v4003, %v4002
    %v4009 = vsel %vm59, %v3779, 0
    %4011 = vmatprep.subr.bf16.mxu0 0
    %4012 = vmatpush1.bf16.msra.mxu0 0
    %4013 = vmatprep.subr.bf16.mxu0 0
    %4014 = vmatpush1.bf16.msra.mxu0 0
    %4015 = vmatprep.subr.bf16.mxu0 0
    %4016 = vmatpush1.bf16.msra.mxu0 0
    %4017 = vmatprep.subr.bf16.mxu0 0
    %4018 = vmatpush1.bf16.msra.mxu0 0
    %4019 = vmatprep.subr.bf16.mxu0 0
    %4020 = vmatpush1.bf16.msra.mxu0 0
    %4021 = vmatprep.subr.bf16.mxu0 0
    %4022 = vmatpush1.bf16.msra.mxu0 0
    %4023 = vmatprep.subr.bf16.mxu0 0
    %4024 = vmatpush1.bf16.msra.mxu0 %v4005
    %4025 = vmatprep.subr.bf16.mxu0 0
    %4026 = vmatpush1.bf16.msra.mxu0 %v4004
    %4027 = vmatprep.subr.bf16.mxu0 0
    %4028 = vmatpush2.bf16.msra.mxu0 0
    %4029 = vmatprep.subr.bf16.mxu0 0
    %4030 = vmatpush2.bf16.msra.mxu0 0
    %4031 = vmatprep.subr.bf16.mxu0 0
    %4032 = vmatpush2.bf16.msra.mxu0 0
    %4033 = vmatprep.subr.bf16.mxu0 0
    %4034 = vmatpush2.bf16.msra.mxu0 0
    %4035 = vmatprep.subr.bf16.mxu0 0
    %4036 = vmatpush2.bf16.msra.mxu0 0
    %4037 = vmatprep.subr.bf16.mxu0 0
    %4038 = vmatpush2.bf16.msra.mxu0 0
    %4039 = vmatprep.subr.bf16.mxu0 0
    %4040 = vmatpush2.bf16.msra.mxu0 0
    %4041 = vmatprep.subr.bf16.mxu0 0
    %4042 = vmatpush2.bf16.msra.mxu0 0
    %4043 = vmatprep.mubr.bf16.mxu0 0
    %4044 = vmatmul.mubr.bf16.gmra.mxu0 %v4009
    %v4045 = vpop.f32.mrf.mxu0
    %v4046 = vadd.f32 0.0, %v4045
    %v4047 = vpop.f32.mrf.mxu0
    %v4048 = vpop.f32.mrf.mxu0
    %v4049 = vadd.f32 0.0, %v4048
    %v4050 = vpop.f32.mrf.mxu0
    %4051 = vdwg.mxu0
    %v4056 = vunpack.c.l.b16 %v3988
    %v4057 = vunpack.c.l.b16 %v3989
    %v4058 = vunpack.c.l.b16 %v3990
    %v4059 = vunpack.c.l.b16 %v3991
    %v4060 = vpack.c.b16 %v4057, %v4056
    %v4061 = vpack.c.b16 %v4059, %v4058
    %v4065 = vsel %vm59, %v3727, 0
    %4067 = vmatprep.subr.bf16.mxu0 0
    %4068 = vmatpush1.bf16.msra.mxu0 0
    %4069 = vmatprep.subr.bf16.mxu0 0
    %4070 = vmatpush1.bf16.msra.mxu0 0
    %4071 = vmatprep.subr.bf16.mxu0 0
    %4072 = vmatpush1.bf16.msra.mxu0 0
    %4073 = vmatprep.subr.bf16.mxu0 0
    %4074 = vmatpush1.bf16.msra.mxu0 0
    %4075 = vmatprep.subr.bf16.mxu0 0
    %4076 = vmatpush1.bf16.msra.mxu0 0
    %4077 = vmatprep.subr.bf16.mxu0 0
    %4078 = vmatpush1.bf16.msra.mxu0 0
    %4079 = vmatprep.subr.bf16.mxu0 0
    %4080 = vmatpush1.bf16.msra.mxu0 %v4061
    %4081 = vmatprep.subr.bf16.mxu0 0
    %4082 = vmatpush1.bf16.msra.mxu0 %v4060
    %4083 = vmatprep.subr.bf16.mxu0 0
    %4084 = vmatpush2.bf16.msra.mxu0 0
    %4085 = vmatprep.subr.bf16.mxu0 0
    %4086 = vmatpush2.bf16.msra.mxu0 0
    %4087 = vmatprep.subr.bf16.mxu0 0
    %4088 = vmatpush2.bf16.msra.mxu0 0
    %4089 = vmatprep.subr.bf16.mxu0 0
    %4090 = vmatpush2.bf16.msra.mxu0 0
    %4091 = vmatprep.subr.bf16.mxu0 0
    %4092 = vmatpush2.bf16.msra.mxu0 0
    %4093 = vmatprep.subr.bf16.mxu0 0
    %4094 = vmatpush2.bf16.msra.mxu0 0
    %4095 = vmatprep.subr.bf16.mxu0 0
    %4096 = vmatpush2.bf16.msra.mxu0 0
    %4097 = vmatprep.subr.bf16.mxu0 0
    %4098 = vmatpush2.bf16.msra.mxu0 0
    %4099 = vmatprep.mubr.bf16.mxu0 0
    %4100 = vmatmul.mubr.bf16.gmra.mxu0 %v4065
    %v4101 = vpop.f32.mrf.mxu0
    %v4102 = vadd.f32 %v4046, %v4101
    %v4103 = vpop.f32.mrf.mxu0
    %v4104 = vpop.f32.mrf.mxu0
    %v4105 = vadd.f32 %v4049, %v4104
    %v4106 = vpop.f32.mrf.mxu0
    %4107 = vdwg.mxu0
    %v4108 = vld [vmem:[%s491] sm:$0xf]
    %v4109 = vld [vmem:[%s491 + $0x4] sm:$0xf]
    %v4110 = vld [vmem:[%s491 + $0x8] sm:$0xf]
    %v4111 = vld [vmem:[%s491 + $0xc] sm:$0xf]
    %v4116 = vunpack.c.l.b16 %v4108
    %v4117 = vunpack.c.l.b16 %v4109
    %v4118 = vunpack.c.l.b16 %v4110
    %v4119 = vunpack.c.l.b16 %v4111
    %v4120 = vpack.c.b16 %v4117, %v4116
    %v4121 = vpack.c.b16 %v4119, %v4118
    %v4125 = vsel %vm59, %v3831, 0
    %4127 = vmatprep.subr.bf16.mxu0 0
    %4128 = vmatpush1.bf16.msra.mxu0 0
    %4129 = vmatprep.subr.bf16.mxu0 0
    %4130 = vmatpush1.bf16.msra.mxu0 0
    %4131 = vmatprep.subr.bf16.mxu0 0
    %4132 = vmatpush1.bf16.msra.mxu0 0
    %4133 = vmatprep.subr.bf16.mxu0 0
    %4134 = vmatpush1.bf16.msra.mxu0 0
    %4135 = vmatprep.subr.bf16.mxu0 0
    %4136 = vmatpush1.bf16.msra.mxu0 0
    %4137 = vmatprep.subr.bf16.mxu0 0
    %4138 = vmatpush1.bf16.msra.mxu0 0
    %4139 = vmatprep.subr.bf16.mxu0 0
    %4140 = vmatpush1.bf16.msra.mxu0 %v4121
    %4141 = vmatprep.subr.bf16.mxu0 0
    %4142 = vmatpush1.bf16.msra.mxu0 %v4120
    %4143 = vmatprep.subr.bf16.mxu0 0
    %4144 = vmatpush2.bf16.msra.mxu0 0
    %4145 = vmatprep.subr.bf16.mxu0 0
    %4146 = vmatpush2.bf16.msra.mxu0 0
    %4147 = vmatprep.subr.bf16.mxu0 0
    %4148 = vmatpush2.bf16.msra.mxu0 0
    %4149 = vmatprep.subr.bf16.mxu0 0
    %4150 = vmatpush2.bf16.msra.mxu0 0
    %4151 = vmatprep.subr.bf16.mxu0 0
    %4152 = vmatpush2.bf16.msra.mxu0 0
    %4153 = vmatprep.subr.bf16.mxu0 0
    %4154 = vmatpush2.bf16.msra.mxu0 0
    %4155 = vmatprep.subr.bf16.mxu0 0
    %4156 = vmatpush2.bf16.msra.mxu0 0
    %4157 = vmatprep.subr.bf16.mxu0 0
    %4158 = vmatpush2.bf16.msra.mxu0 0
    %4159 = vmatprep.mubr.bf16.mxu0 0
    %4160 = vmatmul.mubr.bf16.gmra.mxu0 %v4125
    %v4161 = vpop.f32.mrf.mxu0
    %v4162 = vadd.f32 0.0, %v4161
    %v4163 = vpop.f32.mrf.mxu0
    %v4164 = vpop.f32.mrf.mxu0
    %v4165 = vadd.f32 0.0, %v4164
    %v4166 = vpop.f32.mrf.mxu0
    %4167 = vdwg.mxu0
    %v4168 = vadd.f32 %v4102, %v4162
    %v4169 = vadd.f32 %v4105, %v4165
    %v4170 = vld [vmem:[%s554] sm:$0xf]
    %v4171 = vld [vmem:[%s554 + $0x4] sm:$0xf]
    %v4172 = vld [vmem:[%s554 + $0x8] sm:$0xf]
    %v4173 = vld [vmem:[%s554 + $0xc] sm:$0xf]
    %v4178 = vunpack.c.l.b16 %v4170
    %v4179 = vunpack.c.l.b16 %v4171
    %v4180 = vunpack.c.l.b16 %v4172
    %v4181 = vunpack.c.l.b16 %v4173
    %v4182 = vpack.c.b16 %v4179, %v4178
    %v4183 = vpack.c.b16 %v4181, %v4180
    %v4187 = vsel %vm59, %v3883, 0
    %4189 = vmatprep.subr.bf16.mxu0 0
    %4190 = vmatpush1.bf16.msra.mxu0 0
    %4191 = vmatprep.subr.bf16.mxu0 0
    %4192 = vmatpush1.bf16.msra.mxu0 0
    %4193 = vmatprep.subr.bf16.mxu0 0
    %4194 = vmatpush1.bf16.msra.mxu0 0
    %4195 = vmatprep.subr.bf16.mxu0 0
    %4196 = vmatpush1.bf16.msra.mxu0 0
    %4197 = vmatprep.subr.bf16.mxu0 0
    %4198 = vmatpush1.bf16.msra.mxu0 0
    %4199 = vmatprep.subr.bf16.mxu0 0
    %4200 = vmatpush1.bf16.msra.mxu0 0
    %4201 = vmatprep.subr.bf16.mxu0 0
    %4202 = vmatpush1.bf16.msra.mxu0 %v4183
    %4203 = vmatprep.subr.bf16.mxu0 0
    %4204 = vmatpush1.bf16.msra.mxu0 %v4182
    %4205 = vmatprep.subr.bf16.mxu0 0
    %4206 = vmatpush2.bf16.msra.mxu0 0
    %4207 = vmatprep.subr.bf16.mxu0 0
    %4208 = vmatpush2.bf16.msra.mxu0 0
    %4209 = vmatprep.subr.bf16.mxu0 0
    %4210 = vmatpush2.bf16.msra.mxu0 0
    %4211 = vmatprep.subr.bf16.mxu0 0
    %4212 = vmatpush2.bf16.msra.mxu0 0
    %4213 = vmatprep.subr.bf16.mxu0 0
    %4214 = vmatpush2.bf16.msra.mxu0 0
    %4215 = vmatprep.subr.bf16.mxu0 0
    %4216 = vmatpush2.bf16.msra.mxu0 0
    %4217 = vmatprep.subr.bf16.mxu0 0
    %4218 = vmatpush2.bf16.msra.mxu0 0
    %4219 = vmatprep.subr.bf16.mxu0 0
    %4220 = vmatpush2.bf16.msra.mxu0 0
    %4221 = vmatprep.mubr.bf16.mxu0 0
    %4222 = vmatmul.mubr.bf16.gmra.mxu0 %v4187
    %v4223 = vpop.f32.mrf.mxu0
    %v4224 = vadd.f32 0.0, %v4223
    %v4225 = vpop.f32.mrf.mxu0
    %v4226 = vpop.f32.mrf.mxu0
    %v4227 = vadd.f32 0.0, %v4226
    %v4228 = vpop.f32.mrf.mxu0
    %4229 = vdwg.mxu0
    %v4230 = vadd.f32 %v4168, %v4224
    %v4231 = vadd.f32 %v4169, %v4227
    %v4232 = vld [vmem:[%s617] sm:$0xf]
    %v4233 = vld [vmem:[%s617 + $0x4] sm:$0xf]
    %v4234 = vld [vmem:[%s617 + $0x8] sm:$0xf]
    %v4235 = vld [vmem:[%s617 + $0xc] sm:$0xf]
    %v4240 = vunpack.c.l.b16 %v4232
    %v4241 = vunpack.c.l.b16 %v4233
    %v4242 = vunpack.c.l.b16 %v4234
    %v4243 = vunpack.c.l.b16 %v4235
    %v4244 = vpack.c.b16 %v4241, %v4240
    %v4245 = vpack.c.b16 %v4243, %v4242
    %v4249 = vsel %vm59, %v3935, 0
    %4251 = vmatprep.subr.bf16.mxu0 0
    %4252 = vmatpush1.bf16.msra.mxu0 0
    %4253 = vmatprep.subr.bf16.mxu0 0
    %4254 = vmatpush1.bf16.msra.mxu0 0
    %4255 = vmatprep.subr.bf16.mxu0 0
    %4256 = vmatpush1.bf16.msra.mxu0 0
    %4257 = vmatprep.subr.bf16.mxu0 0
    %4258 = vmatpush1.bf16.msra.mxu0 0
    %4259 = vmatprep.subr.bf16.mxu0 0
    %4260 = vmatpush1.bf16.msra.mxu0 0
    %4261 = vmatprep.subr.bf16.mxu0 0
    %4262 = vmatpush1.bf16.msra.mxu0 0
    %4263 = vmatprep.subr.bf16.mxu0 0
    %4264 = vmatpush1.bf16.msra.mxu0 %v4245
    %4265 = vmatprep.subr.bf16.mxu0 0
    %4266 = vmatpush1.bf16.msra.mxu0 %v4244
    %4267 = vmatprep.subr.bf16.mxu0 0
    %4268 = vmatpush2.bf16.msra.mxu0 0
    %4269 = vmatprep.subr.bf16.mxu0 0
    %4270 = vmatpush2.bf16.msra.mxu0 0
    %4271 = vmatprep.subr.bf16.mxu0 0
    %4272 = vmatpush2.bf16.msra.mxu0 0
    %4273 = vmatprep.subr.bf16.mxu0 0
    %4274 = vmatpush2.bf16.msra.mxu0 0
    %4275 = vmatprep.subr.bf16.mxu0 0
    %4276 = vmatpush2.bf16.msra.mxu0 0
    %4277 = vmatprep.subr.bf16.mxu0 0
    %4278 = vmatpush2.bf16.msra.mxu0 0
    %4279 = vmatprep.subr.bf16.mxu0 0
    %4280 = vmatpush2.bf16.msra.mxu0 0
    %4281 = vmatprep.subr.bf16.mxu0 0
    %4282 = vmatpush2.bf16.msra.mxu0 0
    %4283 = vmatprep.mubr.bf16.mxu0 0
    %4284 = vmatmul.mubr.bf16.gmra.mxu0 %v4249
    %v4285 = vpop.f32.mrf.mxu0
    %v4286 = vadd.f32 0.0, %v4285
    %v4287 = vpop.f32.mrf.mxu0
    %v4288 = vpop.f32.mrf.mxu0
    %v4289 = vadd.f32 0.0, %v4288
    %v4290 = vpop.f32.mrf.mxu0
    %4291 = vdwg.mxu0
    %v4292 = vadd.f32 %v4230, %v4286
    %v4293 = vadd.f32 %v4231, %v4289
    %v4294 = vld [vmem:[%s680] sm:$0xf]
    %v4295 = vld [vmem:[%s680 + $0x4] sm:$0xf]
    %v4296 = vld [vmem:[%s680 + $0x8] sm:$0xf]
    %v4297 = vld [vmem:[%s680 + $0xc] sm:$0xf]
    %v4298 = vld [vmem:[%s685] sm:$0xf]
    %v4299 = vld [vmem:[%s685 + $0x4] sm:$0xf]
    %v4300 = vld [vmem:[%s685 + $0x8] sm:$0xf]
    %v4301 = vld [vmem:[%s685 + $0xc] sm:$0xf]
    %v4306 = vunpack.c.l.b16 %v4298
    %v4307 = vunpack.c.l.b16 %v4299
    %v4308 = vunpack.c.l.b16 %v4300
    %v4309 = vunpack.c.l.b16 %v4301
    %v4310 = vpack.c.b16 %v4307, %v4306
    %v4311 = vpack.c.b16 %v4309, %v4308
    %4314 = vmatprep.subr.bf16.mxu0 0
    %4315 = vmatpush1.bf16.msra.mxu0 0
    %4316 = vmatprep.subr.bf16.mxu0 0
    %4317 = vmatpush1.bf16.msra.mxu0 0
    %4318 = vmatprep.subr.bf16.mxu0 0
    %4319 = vmatpush1.bf16.msra.mxu0 0
    %4320 = vmatprep.subr.bf16.mxu0 0
    %4321 = vmatpush1.bf16.msra.mxu0 0
    %4322 = vmatprep.subr.bf16.mxu0 0
    %4323 = vmatpush1.bf16.msra.mxu0 0
    %4324 = vmatprep.subr.bf16.mxu0 0
    %4325 = vmatpush1.bf16.msra.mxu0 0
    %4326 = vmatprep.subr.bf16.mxu0 0
    %4327 = vmatpush1.bf16.msra.mxu0 %v4311
    %4328 = vmatprep.subr.bf16.mxu0 0
    %4329 = vmatpush1.bf16.msra.mxu0 %v4310
    %4330 = vmatprep.subr.bf16.mxu0 0
    %4331 = vmatpush2.bf16.msra.mxu0 0
    %4332 = vmatprep.subr.bf16.mxu0 0
    %4333 = vmatpush2.bf16.msra.mxu0 0
    %4334 = vmatprep.subr.bf16.mxu0 0
    %4335 = vmatpush2.bf16.msra.mxu0 0
    %4336 = vmatprep.subr.bf16.mxu0 0
    %4337 = vmatpush2.bf16.msra.mxu0 0
    %4338 = vmatprep.subr.bf16.mxu0 0
    %4339 = vmatpush2.bf16.msra.mxu0 0
    %4340 = vmatprep.subr.bf16.mxu0 0
    %4341 = vmatpush2.bf16.msra.mxu0 0
    %4342 = vmatprep.subr.bf16.mxu0 0
    %4343 = vmatpush2.bf16.msra.mxu0 0
    %4344 = vmatprep.subr.bf16.mxu0 0
    %4345 = vmatpush2.bf16.msra.mxu0 0
    %4346 = vmatprep.mubr.bf16.mxu0 0
    %4347 = vmatmul.mubr.bf16.gmra.mxu0 %v4009
    %v4348 = vpop.f32.mrf.mxu0
    %v4349 = vadd.f32 0.0, %v4348
    %v4350 = vpop.f32.mrf.mxu0
    %v4351 = vpop.f32.mrf.mxu0
    %v4352 = vadd.f32 0.0, %v4351
    %v4353 = vpop.f32.mrf.mxu0
    %4354 = vdwg.mxu0
    %v4359 = vunpack.c.l.b16 %v4294
    %v4360 = vunpack.c.l.b16 %v4295
    %v4361 = vunpack.c.l.b16 %v4296
    %v4362 = vunpack.c.l.b16 %v4297
    %v4363 = vpack.c.b16 %v4360, %v4359
    %v4364 = vpack.c.b16 %v4362, %v4361
    %4367 = vmatprep.subr.bf16.mxu0 0
    %4368 = vmatpush1.bf16.msra.mxu0 0
    %4369 = vmatprep.subr.bf16.mxu0 0
    %4370 = vmatpush1.bf16.msra.mxu0 0
    %4371 = vmatprep.subr.bf16.mxu0 0
    %4372 = vmatpush1.bf16.msra.mxu0 0
    %4373 = vmatprep.subr.bf16.mxu0 0
    %4374 = vmatpush1.bf16.msra.mxu0 0
    %4375 = vmatprep.subr.bf16.mxu0 0
    %4376 = vmatpush1.bf16.msra.mxu0 0
    %4377 = vmatprep.subr.bf16.mxu0 0
    %4378 = vmatpush1.bf16.msra.mxu0 0
    %4379 = vmatprep.subr.bf16.mxu0 0
    %4380 = vmatpush1.bf16.msra.mxu0 %v4364
    %4381 = vmatprep.subr.bf16.mxu0 0
    %4382 = vmatpush1.bf16.msra.mxu0 %v4363
    %4383 = vmatprep.subr.bf16.mxu0 0
    %4384 = vmatpush2.bf16.msra.mxu0 0
    %4385 = vmatprep.subr.bf16.mxu0 0
    %4386 = vmatpush2.bf16.msra.mxu0 0
    %4387 = vmatprep.subr.bf16.mxu0 0
    %4388 = vmatpush2.bf16.msra.mxu0 0
    %4389 = vmatprep.subr.bf16.mxu0 0
    %4390 = vmatpush2.bf16.msra.mxu0 0
    %4391 = vmatprep.subr.bf16.mxu0 0
    %4392 = vmatpush2.bf16.msra.mxu0 0
    %4393 = vmatprep.subr.bf16.mxu0 0
    %4394 = vmatpush2.bf16.msra.mxu0 0
    %4395 = vmatprep.subr.bf16.mxu0 0
    %4396 = vmatpush2.bf16.msra.mxu0 0
    %4397 = vmatprep.subr.bf16.mxu0 0
    %4398 = vmatpush2.bf16.msra.mxu0 0
    %4399 = vmatprep.mubr.bf16.mxu0 0
    %4400 = vmatmul.mubr.bf16.gmra.mxu0 %v4065
    %v4401 = vpop.f32.mrf.mxu0
    %v4402 = vadd.f32 %v4349, %v4401
    %v4403 = vpop.f32.mrf.mxu0
    %v4404 = vpop.f32.mrf.mxu0
    %v4405 = vadd.f32 %v4352, %v4404
    %v4406 = vpop.f32.mrf.mxu0
    %4407 = vdwg.mxu0
    %v4408 = vld [vmem:[%s796] sm:$0xf]
    %v4409 = vld [vmem:[%s796 + $0x4] sm:$0xf]
    %v4410 = vld [vmem:[%s796 + $0x8] sm:$0xf]
    %v4411 = vld [vmem:[%s796 + $0xc] sm:$0xf]
    %v4416 = vunpack.c.l.b16 %v4408
    %v4417 = vunpack.c.l.b16 %v4409
    %v4418 = vunpack.c.l.b16 %v4410
    %v4419 = vunpack.c.l.b16 %v4411
    %v4420 = vpack.c.b16 %v4417, %v4416
    %v4421 = vpack.c.b16 %v4419, %v4418
    %4424 = vmatprep.subr.bf16.mxu0 0
    %4425 = vmatpush1.bf16.msra.mxu0 0
    %4426 = vmatprep.subr.bf16.mxu0 0
    %4427 = vmatpush1.bf16.msra.mxu0 0
    %4428 = vmatprep.subr.bf16.mxu0 0
    %4429 = vmatpush1.bf16.msra.mxu0 0
    %4430 = vmatprep.subr.bf16.mxu0 0
    %4431 = vmatpush1.bf16.msra.mxu0 0
    %4432 = vmatprep.subr.bf16.mxu0 0
    %4433 = vmatpush1.bf16.msra.mxu0 0
    %4434 = vmatprep.subr.bf16.mxu0 0
    %4435 = vmatpush1.bf16.msra.mxu0 0
    %4436 = vmatprep.subr.bf16.mxu0 0
    %4437 = vmatpush1.bf16.msra.mxu0 %v4421
    %4438 = vmatprep.subr.bf16.mxu0 0
    %4439 = vmatpush1.bf16.msra.mxu0 %v4420
    %4440 = vmatprep.subr.bf16.mxu0 0
    %4441 = vmatpush2.bf16.msra.mxu0 0
    %4442 = vmatprep.subr.bf16.mxu0 0
    %4443 = vmatpush2.bf16.msra.mxu0 0
    %4444 = vmatprep.subr.bf16.mxu0 0
    %4445 = vmatpush2.bf16.msra.mxu0 0
    %4446 = vmatprep.subr.bf16.mxu0 0
    %4447 = vmatpush2.bf16.msra.mxu0 0
    %4448 = vmatprep.subr.bf16.mxu0 0
    %4449 = vmatpush2.bf16.msra.mxu0 0
    %4450 = vmatprep.subr.bf16.mxu0 0
    %4451 = vmatpush2.bf16.msra.mxu0 0
    %4452 = vmatprep.subr.bf16.mxu0 0
    %4453 = vmatpush2.bf16.msra.mxu0 0
    %4454 = vmatprep.subr.bf16.mxu0 0
    %4455 = vmatpush2.bf16.msra.mxu0 0
    %4456 = vmatprep.mubr.bf16.mxu0 0
    %4457 = vmatmul.mubr.bf16.gmra.mxu0 %v4125
    %v4458 = vpop.f32.mrf.mxu0
    %v4459 = vadd.f32 0.0, %v4458
    %v4460 = vpop.f32.mrf.mxu0
    %v4461 = vpop.f32.mrf.mxu0
    %v4462 = vadd.f32 0.0, %v4461
    %v4463 = vpop.f32.mrf.mxu0
    %4464 = vdwg.mxu0
    %v4465 = vadd.f32 %v4402, %v4459
    %v4466 = vadd.f32 %v4405, %v4462
    %v4467 = vld [vmem:[%s856] sm:$0xf]
    %v4468 = vld [vmem:[%s856 + $0x4] sm:$0xf]
    %v4469 = vld [vmem:[%s856 + $0x8] sm:$0xf]
    %v4470 = vld [vmem:[%s856 + $0xc] sm:$0xf]
    %v4475 = vunpack.c.l.b16 %v4467
    %v4476 = vunpack.c.l.b16 %v4468
    %v4477 = vunpack.c.l.b16 %v4469
    %v4478 = vunpack.c.l.b16 %v4470
    %v4479 = vpack.c.b16 %v4476, %v4475
    %v4480 = vpack.c.b16 %v4478, %v4477
    %4483 = vmatprep.subr.bf16.mxu0 0
    %4484 = vmatpush1.bf16.msra.mxu0 0
    %4485 = vmatprep.subr.bf16.mxu0 0
    %4486 = vmatpush1.bf16.msra.mxu0 0
    %4487 = vmatprep.subr.bf16.mxu0 0
    %4488 = vmatpush1.bf16.msra.mxu0 0
    %4489 = vmatprep.subr.bf16.mxu0 0
    %4490 = vmatpush1.bf16.msra.mxu0 0
    %4491 = vmatprep.subr.bf16.mxu0 0
    %4492 = vmatpush1.bf16.msra.mxu0 0
    %4493 = vmatprep.subr.bf16.mxu0 0
    %4494 = vmatpush1.bf16.msra.mxu0 0
    %4495 = vmatprep.subr.bf16.mxu0 0
    %4496 = vmatpush1.bf16.msra.mxu0 %v4480
    %4497 = vmatprep.subr.bf16.mxu0 0
    %4498 = vmatpush1.bf16.msra.mxu0 %v4479
    %4499 = vmatprep.subr.bf16.mxu0 0
    %4500 = vmatpush2.bf16.msra.mxu0 0
    %4501 = vmatprep.subr.bf16.mxu0 0
    %4502 = vmatpush2.bf16.msra.mxu0 0
    %4503 = vmatprep.subr.bf16.mxu0 0
    %4504 = vmatpush2.bf16.msra.mxu0 0
    %4505 = vmatprep.subr.bf16.mxu0 0
    %4506 = vmatpush2.bf16.msra.mxu0 0
    %4507 = vmatprep.subr.bf16.mxu0 0
    %4508 = vmatpush2.bf16.msra.mxu0 0
    %4509 = vmatprep.subr.bf16.mxu0 0
    %4510 = vmatpush2.bf16.msra.mxu0 0
    %4511 = vmatprep.subr.bf16.mxu0 0
    %4512 = vmatpush2.bf16.msra.mxu0 0
    %4513 = vmatprep.subr.bf16.mxu0 0
    %4514 = vmatpush2.bf16.msra.mxu0 0
    %4515 = vmatprep.mubr.bf16.mxu0 0
    %4516 = vmatmul.mubr.bf16.gmra.mxu0 %v4187
    %v4517 = vpop.f32.mrf.mxu0
    %v4518 = vadd.f32 0.0, %v4517
    %v4519 = vpop.f32.mrf.mxu0
    %v4520 = vpop.f32.mrf.mxu0
    %v4521 = vadd.f32 0.0, %v4520
    %v4522 = vpop.f32.mrf.mxu0
    %4523 = vdwg.mxu0
    %v4524 = vadd.f32 %v4465, %v4518
    %v4525 = vadd.f32 %v4466, %v4521
    %v4526 = vld [vmem:[%s916] sm:$0xf]
    %v4527 = vld [vmem:[%s916 + $0x4] sm:$0xf]
    %v4528 = vld [vmem:[%s916 + $0x8] sm:$0xf]
    %v4529 = vld [vmem:[%s916 + $0xc] sm:$0xf]
    %v4534 = vunpack.c.l.b16 %v4526
    %v4535 = vunpack.c.l.b16 %v4527
    %v4536 = vunpack.c.l.b16 %v4528
    %v4537 = vunpack.c.l.b16 %v4529
    %v4538 = vpack.c.b16 %v4535, %v4534
    %v4539 = vpack.c.b16 %v4537, %v4536
    %4542 = vmatprep.subr.bf16.mxu0 0
    %4543 = vmatpush1.bf16.msra.mxu0 0
    %4544 = vmatprep.subr.bf16.mxu0 0
    %4545 = vmatpush1.bf16.msra.mxu0 0
    %4546 = vmatprep.subr.bf16.mxu0 0
    %4547 = vmatpush1.bf16.msra.mxu0 0
    %4548 = vmatprep.subr.bf16.mxu0 0
    %4549 = vmatpush1.bf16.msra.mxu0 0
    %4550 = vmatprep.subr.bf16.mxu0 0
    %4551 = vmatpush1.bf16.msra.mxu0 0
    %4552 = vmatprep.subr.bf16.mxu0 0
    %4553 = vmatpush1.bf16.msra.mxu0 0
    %4554 = vmatprep.subr.bf16.mxu0 0
    %4555 = vmatpush1.bf16.msra.mxu0 %v4539
    %4556 = vmatprep.subr.bf16.mxu0 0
    %4557 = vmatpush1.bf16.msra.mxu0 %v4538
    %4558 = vmatprep.subr.bf16.mxu0 0
    %4559 = vmatpush2.bf16.msra.mxu0 0
    %4560 = vmatprep.subr.bf16.mxu0 0
    %4561 = vmatpush2.bf16.msra.mxu0 0
    %4562 = vmatprep.subr.bf16.mxu0 0
    %4563 = vmatpush2.bf16.msra.mxu0 0
    %4564 = vmatprep.subr.bf16.mxu0 0
    %4565 = vmatpush2.bf16.msra.mxu0 0
    %4566 = vmatprep.subr.bf16.mxu0 0
    %4567 = vmatpush2.bf16.msra.mxu0 0
    %4568 = vmatprep.subr.bf16.mxu0 0
    %4569 = vmatpush2.bf16.msra.mxu0 0
    %4570 = vmatprep.subr.bf16.mxu0 0
    %4571 = vmatpush2.bf16.msra.mxu0 0
    %4572 = vmatprep.subr.bf16.mxu0 0
    %4573 = vmatpush2.bf16.msra.mxu0 0
    %4574 = vmatprep.mubr.bf16.mxu0 0
    %4575 = vmatmul.mubr.bf16.gmra.mxu0 %v4249
    %v4576 = vpop.f32.mrf.mxu0
    %v4577 = vadd.f32 0.0, %v4576
    %v4578 = vpop.f32.mrf.mxu0
    %v4579 = vpop.f32.mrf.mxu0
    %v4580 = vadd.f32 0.0, %v4579
    %v4581 = vpop.f32.mrf.mxu0
    %4582 = vdwg.mxu0
    %v4583 = vadd.f32 %v4524, %v4577
    %v4584 = vadd.f32 %v4525, %v4580
    %v4585 = vmax.f32 %v4292, %v4583
    %v4586 = vmax.f32 %v4293, %v4584
    %4587 = vmatprep.subr.bf16.mxu0 0
    %4588 = vmatpush1.bf16.msra.mxu0 0
    %4589 = vmatprep.subr.bf16.mxu0 0
    %4590 = vmatpush1.bf16.msra.mxu0 0
    %4591 = vmatprep.subr.bf16.mxu0 0
    %4592 = vmatpush1.bf16.msra.mxu0 0
    %4593 = vmatprep.subr.bf16.mxu0 0
    %4594 = vmatpush1.bf16.msra.mxu0 0
    %4595 = vmatprep.subr.bf16.mxu0 0
    %4596 = vmatpush1.bf16.msra.mxu0 0
    %4597 = vmatprep.subr.bf16.mxu0 0
    %4598 = vmatpush1.bf16.msra.mxu0 0
    %4599 = vmatprep.subr.bf16.mxu0 0
    %4600 = vmatpush1.bf16.msra.mxu0 %v4005
    %4601 = vmatprep.subr.bf16.mxu0 0
    %4602 = vmatpush1.bf16.msra.mxu0 %v4004
    %4603 = vmatprep.subr.bf16.mxu0 0
    %4604 = vmatpush2.bf16.msra.mxu0 0
    %4605 = vmatprep.subr.bf16.mxu0 0
    %4606 = vmatpush2.bf16.msra.mxu0 0
    %4607 = vmatprep.subr.bf16.mxu0 0
    %4608 = vmatpush2.bf16.msra.mxu0 0
    %4609 = vmatprep.subr.bf16.mxu0 0
    %4610 = vmatpush2.bf16.msra.mxu0 0
    %4611 = vmatprep.subr.bf16.mxu0 0
    %4612 = vmatpush2.bf16.msra.mxu0 0
    %4613 = vmatprep.subr.bf16.mxu0 0
    %4614 = vmatpush2.bf16.msra.mxu0 0
    %4615 = vmatprep.subr.bf16.mxu0 0
    %4616 = vmatpush2.bf16.msra.mxu0 0
    %4617 = vmatprep.subr.bf16.mxu0 0
    %4618 = vmatpush2.bf16.msra.mxu0 0
    %4619 = vmatprep.mubr.bf16.mxu0 0
    %4620 = vmatmul.mubr.bf16.gmra.mxu0 %v4125
    %v4621 = vpop.f32.mrf.mxu0
    %v4622 = vadd.f32 0.0, %v4621
    %v4623 = vpop.f32.mrf.mxu0
    %v4624 = vpop.f32.mrf.mxu0
    %v4625 = vadd.f32 0.0, %v4624
    %v4626 = vpop.f32.mrf.mxu0
    %4627 = vdwg.mxu0
    %4628 = vmatprep.subr.bf16.mxu0 0
    %4629 = vmatpush1.bf16.msra.mxu0 0
    %4630 = vmatprep.subr.bf16.mxu0 0
    %4631 = vmatpush1.bf16.msra.mxu0 0
    %4632 = vmatprep.subr.bf16.mxu0 0
    %4633 = vmatpush1.bf16.msra.mxu0 0
    %4634 = vmatprep.subr.bf16.mxu0 0
    %4635 = vmatpush1.bf16.msra.mxu0 0
    %4636 = vmatprep.subr.bf16.mxu0 0
    %4637 = vmatpush1.bf16.msra.mxu0 0
    %4638 = vmatprep.subr.bf16.mxu0 0
    %4639 = vmatpush1.bf16.msra.mxu0 0
    %4640 = vmatprep.subr.bf16.mxu0 0
    %4641 = vmatpush1.bf16.msra.mxu0 %v4061
    %4642 = vmatprep.subr.bf16.mxu0 0
    %4643 = vmatpush1.bf16.msra.mxu0 %v4060
    %4644 = vmatprep.subr.bf16.mxu0 0
    %4645 = vmatpush2.bf16.msra.mxu0 0
    %4646 = vmatprep.subr.bf16.mxu0 0
    %4647 = vmatpush2.bf16.msra.mxu0 0
    %4648 = vmatprep.subr.bf16.mxu0 0
    %4649 = vmatpush2.bf16.msra.mxu0 0
    %4650 = vmatprep.subr.bf16.mxu0 0
    %4651 = vmatpush2.bf16.msra.mxu0 0
    %4652 = vmatprep.subr.bf16.mxu0 0
    %4653 = vmatpush2.bf16.msra.mxu0 0
    %4654 = vmatprep.subr.bf16.mxu0 0
    %4655 = vmatpush2.bf16.msra.mxu0 0
    %4656 = vmatprep.subr.bf16.mxu0 0
    %4657 = vmatpush2.bf16.msra.mxu0 0
    %4658 = vmatprep.subr.bf16.mxu0 0
    %4659 = vmatpush2.bf16.msra.mxu0 0
    %4660 = vmatprep.mubr.bf16.mxu0 0
    %4661 = vmatmul.mubr.bf16.gmra.mxu0 %v4009
    %v4662 = vpop.f32.mrf.mxu0
    %v4663 = vadd.f32 %v4622, %v4662
    %v4664 = vpop.f32.mrf.mxu0
    %v4665 = vpop.f32.mrf.mxu0
    %v4666 = vadd.f32 %v4625, %v4665
    %v4667 = vpop.f32.mrf.mxu0
    %4668 = vdwg.mxu0
    %4669 = vmatprep.subr.bf16.mxu0 0
    %4670 = vmatpush1.bf16.msra.mxu0 0
    %4671 = vmatprep.subr.bf16.mxu0 0
    %4672 = vmatpush1.bf16.msra.mxu0 0
    %4673 = vmatprep.subr.bf16.mxu0 0
    %4674 = vmatpush1.bf16.msra.mxu0 0
    %4675 = vmatprep.subr.bf16.mxu0 0
    %4676 = vmatpush1.bf16.msra.mxu0 0
    %4677 = vmatprep.subr.bf16.mxu0 0
    %4678 = vmatpush1.bf16.msra.mxu0 0
    %4679 = vmatprep.subr.bf16.mxu0 0
    %4680 = vmatpush1.bf16.msra.mxu0 0
    %4681 = vmatprep.subr.bf16.mxu0 0
    %4682 = vmatpush1.bf16.msra.mxu0 %v4121
    %4683 = vmatprep.subr.bf16.mxu0 0
    %4684 = vmatpush1.bf16.msra.mxu0 %v4120
    %4685 = vmatprep.subr.bf16.mxu0 0
    %4686 = vmatpush2.bf16.msra.mxu0 0
    %4687 = vmatprep.subr.bf16.mxu0 0
    %4688 = vmatpush2.bf16.msra.mxu0 0
    %4689 = vmatprep.subr.bf16.mxu0 0
    %4690 = vmatpush2.bf16.msra.mxu0 0
    %4691 = vmatprep.subr.bf16.mxu0 0
    %4692 = vmatpush2.bf16.msra.mxu0 0
    %4693 = vmatprep.subr.bf16.mxu0 0
    %4694 = vmatpush2.bf16.msra.mxu0 0
    %4695 = vmatprep.subr.bf16.mxu0 0
    %4696 = vmatpush2.bf16.msra.mxu0 0
    %4697 = vmatprep.subr.bf16.mxu0 0
    %4698 = vmatpush2.bf16.msra.mxu0 0
    %4699 = vmatprep.subr.bf16.mxu0 0
    %4700 = vmatpush2.bf16.msra.mxu0 0
    %4701 = vmatprep.mubr.bf16.mxu0 0
    %4702 = vmatmul.mubr.bf16.gmra.mxu0 %v4187
    %v4703 = vpop.f32.mrf.mxu0
    %v4704 = vadd.f32 0.0, %v4703
    %v4705 = vpop.f32.mrf.mxu0
    %v4706 = vpop.f32.mrf.mxu0
    %v4707 = vadd.f32 0.0, %v4706
    %v4708 = vpop.f32.mrf.mxu0
    %4709 = vdwg.mxu0
    %v4710 = vadd.f32 %v4663, %v4704
    %v4711 = vadd.f32 %v4666, %v4707
    %4712 = vmatprep.subr.bf16.mxu0 0
    %4713 = vmatpush1.bf16.msra.mxu0 0
    %4714 = vmatprep.subr.bf16.mxu0 0
    %4715 = vmatpush1.bf16.msra.mxu0 0
    %4716 = vmatprep.subr.bf16.mxu0 0
    %4717 = vmatpush1.bf16.msra.mxu0 0
    %4718 = vmatprep.subr.bf16.mxu0 0
    %4719 = vmatpush1.bf16.msra.mxu0 0
    %4720 = vmatprep.subr.bf16.mxu0 0
    %4721 = vmatpush1.bf16.msra.mxu0 0
    %4722 = vmatprep.subr.bf16.mxu0 0
    %4723 = vmatpush1.bf16.msra.mxu0 0
    %4724 = vmatprep.subr.bf16.mxu0 0
    %4725 = vmatpush1.bf16.msra.mxu0 %v4183
    %4726 = vmatprep.subr.bf16.mxu0 0
    %4727 = vmatpush1.bf16.msra.mxu0 %v4182
    %4728 = vmatprep.subr.bf16.mxu0 0
    %4729 = vmatpush2.bf16.msra.mxu0 0
    %4730 = vmatprep.subr.bf16.mxu0 0
    %4731 = vmatpush2.bf16.msra.mxu0 0
    %4732 = vmatprep.subr.bf16.mxu0 0
    %4733 = vmatpush2.bf16.msra.mxu0 0
    %4734 = vmatprep.subr.bf16.mxu0 0
    %4735 = vmatpush2.bf16.msra.mxu0 0
    %4736 = vmatprep.subr.bf16.mxu0 0
    %4737 = vmatpush2.bf16.msra.mxu0 0
    %4738 = vmatprep.subr.bf16.mxu0 0
    %4739 = vmatpush2.bf16.msra.mxu0 0
    %4740 = vmatprep.subr.bf16.mxu0 0
    %4741 = vmatpush2.bf16.msra.mxu0 0
    %4742 = vmatprep.subr.bf16.mxu0 0
    %4743 = vmatpush2.bf16.msra.mxu0 0
    %4744 = vmatprep.mubr.bf16.mxu0 0
    %4745 = vmatmul.mubr.bf16.gmra.mxu0 %v4249
    %v4746 = vpop.f32.mrf.mxu0
    %v4747 = vadd.f32 0.0, %v4746
    %v4748 = vpop.f32.mrf.mxu0
    %v4749 = vpop.f32.mrf.mxu0
    %v4750 = vadd.f32 0.0, %v4749
    %v4751 = vpop.f32.mrf.mxu0
    %4752 = vdwg.mxu0
    %v4753 = vadd.f32 %v4710, %v4747
    %v4754 = vadd.f32 %v4711, %v4750
    %v4756 = vsel %vm59, %v3987, 0
    %4758 = vmatprep.subr.bf16.mxu0 0
    %4759 = vmatpush1.bf16.msra.mxu0 0
    %4760 = vmatprep.subr.bf16.mxu0 0
    %4761 = vmatpush1.bf16.msra.mxu0 0
    %4762 = vmatprep.subr.bf16.mxu0 0
    %4763 = vmatpush1.bf16.msra.mxu0 0
    %4764 = vmatprep.subr.bf16.mxu0 0
    %4765 = vmatpush1.bf16.msra.mxu0 0
    %4766 = vmatprep.subr.bf16.mxu0 0
    %4767 = vmatpush1.bf16.msra.mxu0 0
    %4768 = vmatprep.subr.bf16.mxu0 0
    %4769 = vmatpush1.bf16.msra.mxu0 0
    %4770 = vmatprep.subr.bf16.mxu0 0
    %4771 = vmatpush1.bf16.msra.mxu0 %v4245
    %4772 = vmatprep.subr.bf16.mxu0 0
    %4773 = vmatpush1.bf16.msra.mxu0 %v4244
    %4774 = vmatprep.subr.bf16.mxu0 0
    %4775 = vmatpush2.bf16.msra.mxu0 0
    %4776 = vmatprep.subr.bf16.mxu0 0
    %4777 = vmatpush2.bf16.msra.mxu0 0
    %4778 = vmatprep.subr.bf16.mxu0 0
    %4779 = vmatpush2.bf16.msra.mxu0 0
    %4780 = vmatprep.subr.bf16.mxu0 0
    %4781 = vmatpush2.bf16.msra.mxu0 0
    %4782 = vmatprep.subr.bf16.mxu0 0
    %4783 = vmatpush2.bf16.msra.mxu0 0
    %4784 = vmatprep.subr.bf16.mxu0 0
    %4785 = vmatpush2.bf16.msra.mxu0 0
    %4786 = vmatprep.subr.bf16.mxu0 0
    %4787 = vmatpush2.bf16.msra.mxu0 0
    %4788 = vmatprep.subr.bf16.mxu0 0
    %4789 = vmatpush2.bf16.msra.mxu0 0
    %4790 = vmatprep.mubr.bf16.mxu0 0
    %4791 = vmatmul.mubr.bf16.gmra.mxu0 %v4756
    %v4792 = vpop.f32.mrf.mxu0
    %v4793 = vadd.f32 0.0, %v4792
    %v4794 = vpop.f32.mrf.mxu0
    %v4795 = vpop.f32.mrf.mxu0
    %v4796 = vadd.f32 0.0, %v4795
    %v4797 = vpop.f32.mrf.mxu0
    %4798 = vdwg.mxu0
    %v4799 = vadd.f32 %v4753, %v4793
    %v4800 = vadd.f32 %v4754, %v4796
    %v4801 = vmax.f32 %v4585, %v4799
    %v4802 = vmax.f32 %v4586, %v4800
    %4803 = vmatprep.subr.bf16.mxu0 0
    %4804 = vmatpush1.bf16.msra.mxu0 0
    %4805 = vmatprep.subr.bf16.mxu0 0
    %4806 = vmatpush1.bf16.msra.mxu0 0
    %4807 = vmatprep.subr.bf16.mxu0 0
    %4808 = vmatpush1.bf16.msra.mxu0 0
    %4809 = vmatprep.subr.bf16.mxu0 0
    %4810 = vmatpush1.bf16.msra.mxu0 0
    %4811 = vmatprep.subr.bf16.mxu0 0
    %4812 = vmatpush1.bf16.msra.mxu0 0
    %4813 = vmatprep.subr.bf16.mxu0 0
    %4814 = vmatpush1.bf16.msra.mxu0 0
    %4815 = vmatprep.subr.bf16.mxu0 0
    %4816 = vmatpush1.bf16.msra.mxu0 %v4311
    %4817 = vmatprep.subr.bf16.mxu0 0
    %4818 = vmatpush1.bf16.msra.mxu0 %v4310
    %4819 = vmatprep.subr.bf16.mxu0 0
    %4820 = vmatpush2.bf16.msra.mxu0 0
    %4821 = vmatprep.subr.bf16.mxu0 0
    %4822 = vmatpush2.bf16.msra.mxu0 0
    %4823 = vmatprep.subr.bf16.mxu0 0
    %4824 = vmatpush2.bf16.msra.mxu0 0
    %4825 = vmatprep.subr.bf16.mxu0 0
    %4826 = vmatpush2.bf16.msra.mxu0 0
    %4827 = vmatprep.subr.bf16.mxu0 0
    %4828 = vmatpush2.bf16.msra.mxu0 0
    %4829 = vmatprep.subr.bf16.mxu0 0
    %4830 = vmatpush2.bf16.msra.mxu0 0
    %4831 = vmatprep.subr.bf16.mxu0 0
    %4832 = vmatpush2.bf16.msra.mxu0 0
    %4833 = vmatprep.subr.bf16.mxu0 0
    %4834 = vmatpush2.bf16.msra.mxu0 0
    %4835 = vmatprep.mubr.bf16.mxu0 0
    %4836 = vmatmul.mubr.bf16.gmra.mxu0 %v4125
    %v4837 = vpop.f32.mrf.mxu0
    %v4838 = vadd.f32 0.0, %v4837
    %v4839 = vpop.f32.mrf.mxu0
    %v4840 = vpop.f32.mrf.mxu0
    %v4841 = vadd.f32 0.0, %v4840
    %v4842 = vpop.f32.mrf.mxu0
    %4843 = vdwg.mxu0
    %4844 = vmatprep.subr.bf16.mxu0 0
    %4845 = vmatpush1.bf16.msra.mxu0 0
    %4846 = vmatprep.subr.bf16.mxu0 0
    %4847 = vmatpush1.bf16.msra.mxu0 0
    %4848 = vmatprep.subr.bf16.mxu0 0
    %4849 = vmatpush1.bf16.msra.mxu0 0
    %4850 = vmatprep.subr.bf16.mxu0 0
    %4851 = vmatpush1.bf16.msra.mxu0 0
    %4852 = vmatprep.subr.bf16.mxu0 0
    %4853 = vmatpush1.bf16.msra.mxu0 0
    %4854 = vmatprep.subr.bf16.mxu0 0
    %4855 = vmatpush1.bf16.msra.mxu0 0
    %4856 = vmatprep.subr.bf16.mxu0 0
    %4857 = vmatpush1.bf16.msra.mxu0 %v4364
    %4858 = vmatprep.subr.bf16.mxu0 0
    %4859 = vmatpush1.bf16.msra.mxu0 %v4363
    %4860 = vmatprep.subr.bf16.mxu0 0
    %4861 = vmatpush2.bf16.msra.mxu0 0
    %4862 = vmatprep.subr.bf16.mxu0 0
    %4863 = vmatpush2.bf16.msra.mxu0 0
    %4864 = vmatprep.subr.bf16.mxu0 0
    %4865 = vmatpush2.bf16.msra.mxu0 0
    %4866 = vmatprep.subr.bf16.mxu0 0
    %4867 = vmatpush2.bf16.msra.mxu0 0
    %4868 = vmatprep.subr.bf16.mxu0 0
    %4869 = vmatpush2.bf16.msra.mxu0 0
    %4870 = vmatprep.subr.bf16.mxu0 0
    %4871 = vmatpush2.bf16.msra.mxu0 0
    %4872 = vmatprep.subr.bf16.mxu0 0
    %4873 = vmatpush2.bf16.msra.mxu0 0
    %4874 = vmatprep.subr.bf16.mxu0 0
    %4875 = vmatpush2.bf16.msra.mxu0 0
    %4876 = vmatprep.mubr.bf16.mxu0 0
    %4877 = vmatmul.mubr.bf16.gmra.mxu0 %v4009
    %v4878 = vpop.f32.mrf.mxu0
    %v4879 = vadd.f32 %v4838, %v4878
    %v4880 = vpop.f32.mrf.mxu0
    %v4881 = vpop.f32.mrf.mxu0
    %v4882 = vadd.f32 %v4841, %v4881
    %v4883 = vpop.f32.mrf.mxu0
    %4884 = vdwg.mxu0
    %4885 = vmatprep.subr.bf16.mxu0 0
    %4886 = vmatpush1.bf16.msra.mxu0 0
    %4887 = vmatprep.subr.bf16.mxu0 0
    %4888 = vmatpush1.bf16.msra.mxu0 0
    %4889 = vmatprep.subr.bf16.mxu0 0
    %4890 = vmatpush1.bf16.msra.mxu0 0
    %4891 = vmatprep.subr.bf16.mxu0 0
    %4892 = vmatpush1.bf16.msra.mxu0 0
    %4893 = vmatprep.subr.bf16.mxu0 0
    %4894 = vmatpush1.bf16.msra.mxu0 0
    %4895 = vmatprep.subr.bf16.mxu0 0
    %4896 = vmatpush1.bf16.msra.mxu0 0
    %4897 = vmatprep.subr.bf16.mxu0 0
    %4898 = vmatpush1.bf16.msra.mxu0 %v4421
    %4899 = vmatprep.subr.bf16.mxu0 0
    %4900 = vmatpush1.bf16.msra.mxu0 %v4420
    %4901 = vmatprep.subr.bf16.mxu0 0
    %4902 = vmatpush2.bf16.msra.mxu0 0
    %4903 = vmatprep.subr.bf16.mxu0 0
    %4904 = vmatpush2.bf16.msra.mxu0 0
    %4905 = vmatprep.subr.bf16.mxu0 0
    %4906 = vmatpush2.bf16.msra.mxu0 0
    %4907 = vmatprep.subr.bf16.mxu0 0
    %4908 = vmatpush2.bf16.msra.mxu0 0
    %4909 = vmatprep.subr.bf16.mxu0 0
    %4910 = vmatpush2.bf16.msra.mxu0 0
    %4911 = vmatprep.subr.bf16.mxu0 0
    %4912 = vmatpush2.bf16.msra.mxu0 0
    %4913 = vmatprep.subr.bf16.mxu0 0
    %4914 = vmatpush2.bf16.msra.mxu0 0
    %4915 = vmatprep.subr.bf16.mxu0 0
    %4916 = vmatpush2.bf16.msra.mxu0 0
    %4917 = vmatprep.mubr.bf16.mxu0 0
    %4918 = vmatmul.mubr.bf16.gmra.mxu0 %v4187
    %v4919 = vpop.f32.mrf.mxu0
    %v4920 = vadd.f32 0.0, %v4919
    %v4921 = vpop.f32.mrf.mxu0
    %v4922 = vpop.f32.mrf.mxu0
    %v4923 = vadd.f32 0.0, %v4922
    %v4924 = vpop.f32.mrf.mxu0
    %4925 = vdwg.mxu0
    %v4926 = vadd.f32 %v4879, %v4920
    %v4927 = vadd.f32 %v4882, %v4923
    %4928 = vmatprep.subr.bf16.mxu0 0
    %4929 = vmatpush1.bf16.msra.mxu0 0
    %4930 = vmatprep.subr.bf16.mxu0 0
    %4931 = vmatpush1.bf16.msra.mxu0 0
    %4932 = vmatprep.subr.bf16.mxu0 0
    %4933 = vmatpush1.bf16.msra.mxu0 0
    %4934 = vmatprep.subr.bf16.mxu0 0
    %4935 = vmatpush1.bf16.msra.mxu0 0
    %4936 = vmatprep.subr.bf16.mxu0 0
    %4937 = vmatpush1.bf16.msra.mxu0 0
    %4938 = vmatprep.subr.bf16.mxu0 0
    %4939 = vmatpush1.bf16.msra.mxu0 0
    %4940 = vmatprep.subr.bf16.mxu0 0
    %4941 = vmatpush1.bf16.msra.mxu0 %v4480
    %4942 = vmatprep.subr.bf16.mxu0 0
    %4943 = vmatpush1.bf16.msra.mxu0 %v4479
    %4944 = vmatprep.subr.bf16.mxu0 0
    %4945 = vmatpush2.bf16.msra.mxu0 0
    %4946 = vmatprep.subr.bf16.mxu0 0
    %4947 = vmatpush2.bf16.msra.mxu0 0
    %4948 = vmatprep.subr.bf16.mxu0 0
    %4949 = vmatpush2.bf16.msra.mxu0 0
    %4950 = vmatprep.subr.bf16.mxu0 0
    %4951 = vmatpush2.bf16.msra.mxu0 0
    %4952 = vmatprep.subr.bf16.mxu0 0
    %4953 = vmatpush2.bf16.msra.mxu0 0
    %4954 = vmatprep.subr.bf16.mxu0 0
    %4955 = vmatpush2.bf16.msra.mxu0 0
    %4956 = vmatprep.subr.bf16.mxu0 0
    %4957 = vmatpush2.bf16.msra.mxu0 0
    %4958 = vmatprep.subr.bf16.mxu0 0
    %4959 = vmatpush2.bf16.msra.mxu0 0
    %4960 = vmatprep.mubr.bf16.mxu0 0
    %4961 = vmatmul.mubr.bf16.gmra.mxu0 %v4249
    %v4962 = vpop.f32.mrf.mxu0
    %v4963 = vadd.f32 0.0, %v4962
    %v4964 = vpop.f32.mrf.mxu0
    %v4965 = vpop.f32.mrf.mxu0
    %v4966 = vadd.f32 0.0, %v4965
    %v4967 = vpop.f32.mrf.mxu0
    %4968 = vdwg.mxu0
    %v4969 = vadd.f32 %v4926, %v4963
    %v4970 = vadd.f32 %v4927, %v4966
    %4971 = vmatprep.subr.bf16.mxu0 0
    %4972 = vmatpush1.bf16.msra.mxu0 0
    %4973 = vmatprep.subr.bf16.mxu0 0
    %4974 = vmatpush1.bf16.msra.mxu0 0
    %4975 = vmatprep.subr.bf16.mxu0 0
    %4976 = vmatpush1.bf16.msra.mxu0 0
    %4977 = vmatprep.subr.bf16.mxu0 0
    %4978 = vmatpush1.bf16.msra.mxu0 0
    %4979 = vmatprep.subr.bf16.mxu0 0
    %4980 = vmatpush1.bf16.msra.mxu0 0
    %4981 = vmatprep.subr.bf16.mxu0 0
    %4982 = vmatpush1.bf16.msra.mxu0 0
    %4983 = vmatprep.subr.bf16.mxu0 0
    %4984 = vmatpush1.bf16.msra.mxu0 %v4539
    %4985 = vmatprep.subr.bf16.mxu0 0
    %4986 = vmatpush1.bf16.msra.mxu0 %v4538
    %4987 = vmatprep.subr.bf16.mxu0 0
    %4988 = vmatpush2.bf16.msra.mxu0 0
    %4989 = vmatprep.subr.bf16.mxu0 0
    %4990 = vmatpush2.bf16.msra.mxu0 0
    %4991 = vmatprep.subr.bf16.mxu0 0
    %4992 = vmatpush2.bf16.msra.mxu0 0
    %4993 = vmatprep.subr.bf16.mxu0 0
    %4994 = vmatpush2.bf16.msra.mxu0 0
    %4995 = vmatprep.subr.bf16.mxu0 0
    %4996 = vmatpush2.bf16.msra.mxu0 0
    %4997 = vmatprep.subr.bf16.mxu0 0
    %4998 = vmatpush2.bf16.msra.mxu0 0
    %4999 = vmatprep.subr.bf16.mxu0 0
    %5000 = vmatpush2.bf16.msra.mxu0 0
    %5001 = vmatprep.subr.bf16.mxu0 0
    %5002 = vmatpush2.bf16.msra.mxu0 0
    %5003 = vmatprep.mubr.bf16.mxu0 0
    %5004 = vmatmul.mubr.bf16.gmra.mxu0 %v4756
    %v5005 = vpop.f32.mrf.mxu0
    %v5006 = vadd.f32 0.0, %v5005
    %v5007 = vpop.f32.mrf.mxu0
    %v5008 = vpop.f32.mrf.mxu0
    %v5009 = vadd.f32 0.0, %v5008
    %v5010 = vpop.f32.mrf.mxu0
    %5011 = vdwg.mxu0
    %v5012 = vadd.f32 %v4969, %v5006
    %v5013 = vadd.f32 %v4970, %v5009
    %v5014 = vmax.f32 %v4801, %v5012
    %v5015 = vmax.f32 %v4802, %v5013
    %v5016 = vld [vmem:[%s3] sm:$0x1]
    %v5018 = vlaneseq
    %v5019 = vshrl.u32 %v5018, 7
    %v5020 = vsub.s32 0, %v5019
    %v5021 = vrot.slane %v5016, %v5020
    %v5023 = vadd.f32 %v5014, %v5021
    %v5024 = vadd.f32 %v5015, %v5021
    %v5025 = vmax.f32 %v5023, 0.0
    %v5026 = vmax.f32 %v5024, 0.0
    %v5027 = vpack.c.bf16 %v5026, %v5025
    %v5028 = vld [vmem:[%s4] sm:$0x7]
    %v5030 = vsel %vm1420, %v5028, 0
    %v5033 = vsel %vm1424, %v5027, 0
    %5035 = vmatprep.subr.bf16.mxu0 0
    %5036 = vmatpush1.bf16.msra.mxu0 0
    %5037 = vmatprep.subr.bf16.mxu0 0
    %5038 = vmatpush1.bf16.msra.mxu0 0
    %5039 = vmatprep.subr.bf16.mxu0 0
    %5040 = vmatpush1.bf16.msra.mxu0 0
    %5041 = vmatprep.subr.bf16.mxu0 0
    %5042 = vmatpush1.bf16.msra.mxu0 0
    %5043 = vmatprep.subr.bf16.mxu0 0
    %5044 = vmatpush1.bf16.msra.mxu0 0
    %5045 = vmatprep.subr.bf16.mxu0 0
    %5046 = vmatpush1.bf16.msra.mxu0 0
    %5047 = vmatprep.subr.bf16.mxu0 0
    %5048 = vmatpush1.bf16.msra.mxu0 0
    %5049 = vmatprep.subr.bf16.mxu0 0
    %5050 = vmatpush1.bf16.msra.mxu0 %v5033
    %5051 = vmatprep.subr.bf16.mxu0 0
    %5052 = vmatpush2.bf16.msra.mxu0 0
    %5053 = vmatprep.subr.bf16.mxu0 0
    %5054 = vmatpush2.bf16.msra.mxu0 0
    %5055 = vmatprep.subr.bf16.mxu0 0
    %5056 = vmatpush2.bf16.msra.mxu0 0
    %5057 = vmatprep.subr.bf16.mxu0 0
    %5058 = vmatpush2.bf16.msra.mxu0 0
    %5059 = vmatprep.subr.bf16.mxu0 0
    %5060 = vmatpush2.bf16.msra.mxu0 0
    %5061 = vmatprep.subr.bf16.mxu0 0
    %5062 = vmatpush2.bf16.msra.mxu0 0
    %5063 = vmatprep.subr.bf16.mxu0 0
    %5064 = vmatpush2.bf16.msra.mxu0 0
    %5065 = vmatprep.subr.bf16.mxu0 0
    %5066 = vmatpush2.bf16.msra.mxu0 0
    %5067 = vmatprep.mubr.bf16.mxu0 0
    %5068 = vmatmul.mubr.bf16.gmra.mxu0 %v5030
    %v5069 = vpop.f32.mrf.mxu0
    %v5070 = vadd.f32 0.0, %v5069
    %v5071 = vpop.f32.mrf.mxu0
    %v5072 = vpop.f32.mrf.mxu0
    %v5073 = vpop.f32.mrf.mxu0
    %5074 = vdwg.mxu0
    %v5075 = vpack.c.bf16 %v5070, %v5070
    %v5076 = vld [vmem:[%s1469] sm:$0x7]
    %v5078 = vsel %vm1420, %v5076, 0
    %5080 = vmatprep.subr.bf16.mxu0 0
    %5081 = vmatpush1.bf16.msra.mxu0 0
    %5082 = vmatprep.subr.bf16.mxu0 0
    %5083 = vmatpush1.bf16.msra.mxu0 0
    %5084 = vmatprep.subr.bf16.mxu0 0
    %5085 = vmatpush1.bf16.msra.mxu0 0
    %5086 = vmatprep.subr.bf16.mxu0 0
    %5087 = vmatpush1.bf16.msra.mxu0 0
    %5088 = vmatprep.subr.bf16.mxu0 0
    %5089 = vmatpush1.bf16.msra.mxu0 0
    %5090 = vmatprep.subr.bf16.mxu0 0
    %5091 = vmatpush1.bf16.msra.mxu0 0
    %5092 = vmatprep.subr.bf16.mxu0 0
    %5093 = vmatpush1.bf16.msra.mxu0 0
    %5094 = vmatprep.subr.bf16.mxu0 0
    %5095 = vmatpush1.bf16.msra.mxu0 %v5033
    %5096 = vmatprep.subr.bf16.mxu0 0
    %5097 = vmatpush2.bf16.msra.mxu0 0
    %5098 = vmatprep.subr.bf16.mxu0 0
    %5099 = vmatpush2.bf16.msra.mxu0 0
    %5100 = vmatprep.subr.bf16.mxu0 0
    %5101 = vmatpush2.bf16.msra.mxu0 0
    %5102 = vmatprep.subr.bf16.mxu0 0
    %5103 = vmatpush2.bf16.msra.mxu0 0
    %5104 = vmatprep.subr.bf16.mxu0 0
    %5105 = vmatpush2.bf16.msra.mxu0 0
    %5106 = vmatprep.subr.bf16.mxu0 0
    %5107 = vmatpush2.bf16.msra.mxu0 0
    %5108 = vmatprep.subr.bf16.mxu0 0
    %5109 = vmatpush2.bf16.msra.mxu0 0
    %5110 = vmatprep.subr.bf16.mxu0 0
    %5111 = vmatpush2.bf16.msra.mxu0 0
    %5112 = vmatprep.mubr.bf16.mxu0 0
    %5113 = vmatmul.mubr.bf16.gmra.mxu0 %v5078
    %v5114 = vpop.f32.mrf.mxu0
    %v5115 = vadd.f32 0.0, %v5114
    %v5116 = vpop.f32.mrf.mxu0
    %v5117 = vpop.f32.mrf.mxu0
    %v5118 = vpop.f32.mrf.mxu0
    %5119 = vdwg.mxu0
    %v5120 = vpack.c.bf16 %v5115, %v5115
    %v5121 = vld [vmem:[%s1515] sm:$0x7]
    %v5123 = vsel %vm1420, %v5121, 0
    %5125 = vmatprep.subr.bf16.mxu0 0
    %5126 = vmatpush1.bf16.msra.mxu0 0
    %5127 = vmatprep.subr.bf16.mxu0 0
    %5128 = vmatpush1.bf16.msra.mxu0 0
    %5129 = vmatprep.subr.bf16.mxu0 0
    %5130 = vmatpush1.bf16.msra.mxu0 0
    %5131 = vmatprep.subr.bf16.mxu0 0
    %5132 = vmatpush1.bf16.msra.mxu0 0
    %5133 = vmatprep.subr.bf16.mxu0 0
    %5134 = vmatpush1.bf16.msra.mxu0 0
    %5135 = vmatprep.subr.bf16.mxu0 0
    %5136 = vmatpush1.bf16.msra.mxu0 0
    %5137 = vmatprep.subr.bf16.mxu0 0
    %5138 = vmatpush1.bf16.msra.mxu0 0
    %5139 = vmatprep.subr.bf16.mxu0 0
    %5140 = vmatpush1.bf16.msra.mxu0 %v5033
    %5141 = vmatprep.subr.bf16.mxu0 0
    %5142 = vmatpush2.bf16.msra.mxu0 0
    %5143 = vmatprep.subr.bf16.mxu0 0
    %5144 = vmatpush2.bf16.msra.mxu0 0
    %5145 = vmatprep.subr.bf16.mxu0 0
    %5146 = vmatpush2.bf16.msra.mxu0 0
    %5147 = vmatprep.subr.bf16.mxu0 0
    %5148 = vmatpush2.bf16.msra.mxu0 0
    %5149 = vmatprep.subr.bf16.mxu0 0
    %5150 = vmatpush2.bf16.msra.mxu0 0
    %5151 = vmatprep.subr.bf16.mxu0 0
    %5152 = vmatpush2.bf16.msra.mxu0 0
    %5153 = vmatprep.subr.bf16.mxu0 0
    %5154 = vmatpush2.bf16.msra.mxu0 0
    %5155 = vmatprep.subr.bf16.mxu0 0
    %5156 = vmatpush2.bf16.msra.mxu0 0
    %5157 = vmatprep.mubr.bf16.mxu0 0
    %5158 = vmatmul.mubr.bf16.gmra.mxu0 %v5123
    %v5159 = vpop.f32.mrf.mxu0
    %v5160 = vadd.f32 0.0, %v5159
    %v5161 = vpop.f32.mrf.mxu0
    %v5162 = vpop.f32.mrf.mxu0
    %v5163 = vpop.f32.mrf.mxu0
    %5164 = vdwg.mxu0
    %v5165 = vpack.c.bf16 %v5160, %v5160
    %v5166 = vld [vmem:[%s1561] sm:$0x7]
    %v5168 = vsel %vm1420, %v5166, 0
    %5170 = vmatprep.subr.bf16.mxu0 0
    %5171 = vmatpush1.bf16.msra.mxu0 0
    %5172 = vmatprep.subr.bf16.mxu0 0
    %5173 = vmatpush1.bf16.msra.mxu0 0
    %5174 = vmatprep.subr.bf16.mxu0 0
    %5175 = vmatpush1.bf16.msra.mxu0 0
    %5176 = vmatprep.subr.bf16.mxu0 0
    %5177 = vmatpush1.bf16.msra.mxu0 0
    %5178 = vmatprep.subr.bf16.mxu0 0
    %5179 = vmatpush1.bf16.msra.mxu0 0
    %5180 = vmatprep.subr.bf16.mxu0 0
    %5181 = vmatpush1.bf16.msra.mxu0 0
    %5182 = vmatprep.subr.bf16.mxu0 0
    %5183 = vmatpush1.bf16.msra.mxu0 0
    %5184 = vmatprep.subr.bf16.mxu0 0
    %5185 = vmatpush1.bf16.msra.mxu0 %v5033
    %5186 = vmatprep.subr.bf16.mxu0 0
    %5187 = vmatpush2.bf16.msra.mxu0 0
    %5188 = vmatprep.subr.bf16.mxu0 0
    %5189 = vmatpush2.bf16.msra.mxu0 0
    %5190 = vmatprep.subr.bf16.mxu0 0
    %5191 = vmatpush2.bf16.msra.mxu0 0
    %5192 = vmatprep.subr.bf16.mxu0 0
    %5193 = vmatpush2.bf16.msra.mxu0 0
    %5194 = vmatprep.subr.bf16.mxu0 0
    %5195 = vmatpush2.bf16.msra.mxu0 0
    %5196 = vmatprep.subr.bf16.mxu0 0
    %5197 = vmatpush2.bf16.msra.mxu0 0
    %5198 = vmatprep.subr.bf16.mxu0 0
    %5199 = vmatpush2.bf16.msra.mxu0 0
    %5200 = vmatprep.subr.bf16.mxu0 0
    %5201 = vmatpush2.bf16.msra.mxu0 0
    %5202 = vmatprep.mubr.bf16.mxu0 0
    %5203 = vmatmul.mubr.bf16.gmra.mxu0 %v5168
    %v5204 = vpop.f32.mrf.mxu0
    %v5205 = vadd.f32 0.0, %v5204
    %v5206 = vpop.f32.mrf.mxu0
    %v5207 = vpop.f32.mrf.mxu0
    %v5208 = vpop.f32.mrf.mxu0
    %5209 = vdwg.mxu0
    %v5210 = vpack.c.bf16 %v5205, %v5205
    %v5211 = vld [vmem:[%s1607] sm:$0x7]
    %v5213 = vsel %vm1420, %v5211, 0
    %5215 = vmatprep.subr.bf16.mxu0 0
    %5216 = vmatpush1.bf16.msra.mxu0 0
    %5217 = vmatprep.subr.bf16.mxu0 0
    %5218 = vmatpush1.bf16.msra.mxu0 0
    %5219 = vmatprep.subr.bf16.mxu0 0
    %5220 = vmatpush1.bf16.msra.mxu0 0
    %5221 = vmatprep.subr.bf16.mxu0 0
    %5222 = vmatpush1.bf16.msra.mxu0 0
    %5223 = vmatprep.subr.bf16.mxu0 0
    %5224 = vmatpush1.bf16.msra.mxu0 0
    %5225 = vmatprep.subr.bf16.mxu0 0
    %5226 = vmatpush1.bf16.msra.mxu0 0
    %5227 = vmatprep.subr.bf16.mxu0 0
    %5228 = vmatpush1.bf16.msra.mxu0 0
    %5229 = vmatprep.subr.bf16.mxu0 0
    %5230 = vmatpush1.bf16.msra.mxu0 %v5033
    %5231 = vmatprep.subr.bf16.mxu0 0
    %5232 = vmatpush2.bf16.msra.mxu0 0
    %5233 = vmatprep.subr.bf16.mxu0 0
    %5234 = vmatpush2.bf16.msra.mxu0 0
    %5235 = vmatprep.subr.bf16.mxu0 0
    %5236 = vmatpush2.bf16.msra.mxu0 0
    %5237 = vmatprep.subr.bf16.mxu0 0
    %5238 = vmatpush2.bf16.msra.mxu0 0
    %5239 = vmatprep.subr.bf16.mxu0 0
    %5240 = vmatpush2.bf16.msra.mxu0 0
    %5241 = vmatprep.subr.bf16.mxu0 0
    %5242 = vmatpush2.bf16.msra.mxu0 0
    %5243 = vmatprep.subr.bf16.mxu0 0
    %5244 = vmatpush2.bf16.msra.mxu0 0
    %5245 = vmatprep.subr.bf16.mxu0 0
    %5246 = vmatpush2.bf16.msra.mxu0 0
    %5247 = vmatprep.mubr.bf16.mxu0 0
    %5248 = vmatmul.mubr.bf16.gmra.mxu0 %v5213
    %v5249 = vpop.f32.mrf.mxu0
    %v5250 = vadd.f32 0.0, %v5249
    %v5251 = vpop.f32.mrf.mxu0
    %v5252 = vpop.f32.mrf.mxu0
    %v5253 = vpop.f32.mrf.mxu0
    %5254 = vdwg.mxu0
    %v5255 = vpack.c.bf16 %v5250, %v5250
    %v5256 = vld [vmem:[%s1653] sm:$0x7]
    %v5258 = vsel %vm1420, %v5256, 0
    %5260 = vmatprep.subr.bf16.mxu0 0
    %5261 = vmatpush1.bf16.msra.mxu0 0
    %5262 = vmatprep.subr.bf16.mxu0 0
    %5263 = vmatpush1.bf16.msra.mxu0 0
    %5264 = vmatprep.subr.bf16.mxu0 0
    %5265 = vmatpush1.bf16.msra.mxu0 0
    %5266 = vmatprep.subr.bf16.mxu0 0
    %5267 = vmatpush1.bf16.msra.mxu0 0
    %5268 = vmatprep.subr.bf16.mxu0 0
    %5269 = vmatpush1.bf16.msra.mxu0 0
    %5270 = vmatprep.subr.bf16.mxu0 0
    %5271 = vmatpush1.bf16.msra.mxu0 0
    %5272 = vmatprep.subr.bf16.mxu0 0
    %5273 = vmatpush1.bf16.msra.mxu0 0
    %5274 = vmatprep.subr.bf16.mxu0 0
    %5275 = vmatpush1.bf16.msra.mxu0 %v5033
    %5276 = vmatprep.subr.bf16.mxu0 0
    %5277 = vmatpush2.bf16.msra.mxu0 0
    %5278 = vmatprep.subr.bf16.mxu0 0
    %5279 = vmatpush2.bf16.msra.mxu0 0
    %5280 = vmatprep.subr.bf16.mxu0 0
    %5281 = vmatpush2.bf16.msra.mxu0 0
    %5282 = vmatprep.subr.bf16.mxu0 0
    %5283 = vmatpush2.bf16.msra.mxu0 0
    %5284 = vmatprep.subr.bf16.mxu0 0
    %5285 = vmatpush2.bf16.msra.mxu0 0
    %5286 = vmatprep.subr.bf16.mxu0 0
    %5287 = vmatpush2.bf16.msra.mxu0 0
    %5288 = vmatprep.subr.bf16.mxu0 0
    %5289 = vmatpush2.bf16.msra.mxu0 0
    %5290 = vmatprep.subr.bf16.mxu0 0
    %5291 = vmatpush2.bf16.msra.mxu0 0
    %5292 = vmatprep.mubr.bf16.mxu0 0
    %5293 = vmatmul.mubr.bf16.gmra.mxu0 %v5258
    %v5294 = vpop.f32.mrf.mxu0
    %v5295 = vadd.f32 0.0, %v5294
    %v5296 = vpop.f32.mrf.mxu0
    %v5297 = vpop.f32.mrf.mxu0
    %v5298 = vpop.f32.mrf.mxu0
    %5299 = vdwg.mxu0
    %v5300 = vpack.c.bf16 %v5295, %v5295
    %v5301 = vld [vmem:[%s5] sm:$0xf]
    %v5302 = vld [vmem:[%s5 + $0x4] sm:$0xf]
    %v5303 = vld [vmem:[%s5 + $0x8] sm:$0xf]
    %v5304 = vld [vmem:[%s5 + $0xc] sm:$0xf]
    %v5305 = vld [vmem:[%s5 + $0x10] sm:$0xf]
    %v5306 = vld [vmem:[%s5 + $0x14] sm:$0xf]
    %v5307 = vld [vmem:[%s5 + $0x18] sm:$0xf]
    %v5308 = vld [vmem:[%s5 + $0x1c] sm:$0xf]
    %v5309 = vld [vmem:[%s5 + $0x20] sm:$0xf]
    %v5310 = vld [vmem:[%s5 + $0x24] sm:$0xf]
    %v5311 = vld [vmem:[%s5 + $0x28] sm:$0x3]
    %v5312 = vld [vmem:[%s1710] sm:$0xf]
    %v5313 = vld [vmem:[%s1710 + $0x4] sm:$0xf]
    %v5314 = vld [vmem:[%s1710 + $0x8] sm:$0xf]
    %v5315 = vld [vmem:[%s1710 + $0xc] sm:$0xf]
    %v5316 = vld [vmem:[%s1710 + $0x10] sm:$0xf]
    %v5317 = vld [vmem:[%s1710 + $0x14] sm:$0xf]
    %v5318 = vld [vmem:[%s1710 + $0x18] sm:$0xf]
    %v5319 = vld [vmem:[%s1710 + $0x1c] sm:$0xf]
    %v5320 = vld [vmem:[%s1710 + $0x20] sm:$0xf]
    %v5321 = vld [vmem:[%s1710 + $0x24] sm:$0xf]
    %v5322 = vld [vmem:[%s1710 + $0x28] sm:$0x3]
    %v5334 = vunpack.c.l.b16 %v5312
    %v5335 = vunpack.c.l.b16 %v5313
    %v5336 = vunpack.c.l.b16 %v5314
    %v5337 = vunpack.c.l.b16 %v5315
    %v5338 = vunpack.c.l.b16 %v5316
    %v5339 = vunpack.c.l.b16 %v5317
    %v5340 = vunpack.c.l.b16 %v5318
    %v5341 = vunpack.c.l.b16 %v5319
    %v5342 = vunpack.c.l.b16 %v5320
    %v5343 = vunpack.c.l.b16 %v5321
    %v5344 = vunpack.c.l.b16 %v5322
    %v5345 = vpack.c.b16 %v5335, %v5334
    %v5346 = vpack.c.b16 %v5337, %v5336
    %v5347 = vpack.c.b16 %v5339, %v5338
    %v5348 = vpack.c.b16 %v5341, %v5340
    %v5349 = vpack.c.b16 %v5343, %v5342
    %v5350 = vpack.c.b16 %v5344, %v5344
    %v5357 = vsel %vm1755, %v5120, 0
    %v5360 = vsel %vm1759, %v5350, 0
    %5362 = vmatprep.subr.bf16.mxu0 0
    %5363 = vmatpush1.bf16.msra.mxu0 0
    %5364 = vmatprep.subr.bf16.mxu0 0
    %5365 = vmatpush1.bf16.msra.mxu0 0
    %5366 = vmatprep.subr.bf16.mxu0 0
    %5367 = vmatpush1.bf16.msra.mxu0 %v5360
    %5368 = vmatprep.subr.bf16.mxu0 0
    %5369 = vmatpush1.bf16.msra.mxu0 %v5349
    %5370 = vmatprep.subr.bf16.mxu0 0
    %5371 = vmatpush1.bf16.msra.mxu0 %v5348
    %5372 = vmatprep.subr.bf16.mxu0 0
    %5373 = vmatpush1.bf16.msra.mxu0 %v5347
    %5374 = vmatprep.subr.bf16.mxu0 0
    %5375 = vmatpush1.bf16.msra.mxu0 %v5346
    %5376 = vmatprep.subr.bf16.mxu0 0
    %5377 = vmatpush1.bf16.msra.mxu0 %v5345
    %5378 = vmatprep.subr.bf16.mxu0 0
    %5379 = vmatpush2.bf16.msra.mxu0 0
    %5380 = vmatprep.subr.bf16.mxu0 0
    %5381 = vmatpush2.bf16.msra.mxu0 0
    %5382 = vmatprep.subr.bf16.mxu0 0
    %5383 = vmatpush2.bf16.msra.mxu0 0
    %5384 = vmatprep.subr.bf16.mxu0 0
    %5385 = vmatpush2.bf16.msra.mxu0 0
    %5386 = vmatprep.subr.bf16.mxu0 0
    %5387 = vmatpush2.bf16.msra.mxu0 0
    %5388 = vmatprep.subr.bf16.mxu0 0
    %5389 = vmatpush2.bf16.msra.mxu0 0
    %5390 = vmatprep.subr.bf16.mxu0 0
    %5391 = vmatpush2.bf16.msra.mxu0 0
    %5392 = vmatprep.subr.bf16.mxu0 0
    %5393 = vmatpush2.bf16.msra.mxu0 0
    %5394 = vmatprep.mubr.bf16.mxu0 0
    %5395 = vmatmul.mubr.bf16.gmra.mxu0 %v5357
    %v5396 = vpop.f32.mrf.mxu0
    %v5397 = vadd.f32 0.0, %v5396
    %v5398 = vpop.f32.mrf.mxu0
    %v5399 = vpop.f32.mrf.mxu0
    %v5400 = vpop.f32.mrf.mxu0
    %5401 = vdwg.mxu0
    %v5413 = vunpack.c.l.b16 %v5301
    %v5414 = vunpack.c.l.b16 %v5302
    %v5415 = vunpack.c.l.b16 %v5303
    %v5416 = vunpack.c.l.b16 %v5304
    %v5417 = vunpack.c.l.b16 %v5305
    %v5418 = vunpack.c.l.b16 %v5306
    %v5419 = vunpack.c.l.b16 %v5307
    %v5420 = vunpack.c.l.b16 %v5308
    %v5421 = vunpack.c.l.b16 %v5309
    %v5422 = vunpack.c.l.b16 %v5310
    %v5423 = vunpack.c.l.b16 %v5311
    %v5424 = vpack.c.b16 %v5414, %v5413
    %v5425 = vpack.c.b16 %v5416, %v5415
    %v5426 = vpack.c.b16 %v5418, %v5417
    %v5427 = vpack.c.b16 %v5420, %v5419
    %v5428 = vpack.c.b16 %v5422, %v5421
    %v5429 = vpack.c.b16 %v5423, %v5423
    %v5436 = vsel %vm1755, %v5075, 0
    %v5439 = vsel %vm1759, %v5429, 0
    %5441 = vmatprep.subr.bf16.mxu0 0
    %5442 = vmatpush1.bf16.msra.mxu0 0
    %5443 = vmatprep.subr.bf16.mxu0 0
    %5444 = vmatpush1.bf16.msra.mxu0 0
    %5445 = vmatprep.subr.bf16.mxu0 0
    %5446 = vmatpush1.bf16.msra.mxu0 %v5439
    %5447 = vmatprep.subr.bf16.mxu0 0
    %5448 = vmatpush1.bf16.msra.mxu0 %v5428
    %5449 = vmatprep.subr.bf16.mxu0 0
    %5450 = vmatpush1.bf16.msra.mxu0 %v5427
    %5451 = vmatprep.subr.bf16.mxu0 0
    %5452 = vmatpush1.bf16.msra.mxu0 %v5426
    %5453 = vmatprep.subr.bf16.mxu0 0
    %5454 = vmatpush1.bf16.msra.mxu0 %v5425
    %5455 = vmatprep.subr.bf16.mxu0 0
    %5456 = vmatpush1.bf16.msra.mxu0 %v5424
    %5457 = vmatprep.subr.bf16.mxu0 0
    %5458 = vmatpush2.bf16.msra.mxu0 0
    %5459 = vmatprep.subr.bf16.mxu0 0
    %5460 = vmatpush2.bf16.msra.mxu0 0
    %5461 = vmatprep.subr.bf16.mxu0 0
    %5462 = vmatpush2.bf16.msra.mxu0 0
    %5463 = vmatprep.subr.bf16.mxu0 0
    %5464 = vmatpush2.bf16.msra.mxu0 0
    %5465 = vmatprep.subr.bf16.mxu0 0
    %5466 = vmatpush2.bf16.msra.mxu0 0
    %5467 = vmatprep.subr.bf16.mxu0 0
    %5468 = vmatpush2.bf16.msra.mxu0 0
    %5469 = vmatprep.subr.bf16.mxu0 0
    %5470 = vmatpush2.bf16.msra.mxu0 0
    %5471 = vmatprep.subr.bf16.mxu0 0
    %5472 = vmatpush2.bf16.msra.mxu0 0
    %5473 = vmatprep.mubr.bf16.mxu0 0
    %5474 = vmatmul.mubr.bf16.gmra.mxu0 %v5436
    %v5475 = vpop.f32.mrf.mxu0
    %v5476 = vadd.f32 %v5397, %v5475
    %v5477 = vpop.f32.mrf.mxu0
    %v5478 = vpop.f32.mrf.mxu0
    %v5479 = vpop.f32.mrf.mxu0
    %5480 = vdwg.mxu0
    %v5481 = vld [vmem:[%s1882] sm:$0xf]
    %v5482 = vld [vmem:[%s1882 + $0x4] sm:$0xf]
    %v5483 = vld [vmem:[%s1882 + $0x8] sm:$0xf]
    %v5484 = vld [vmem:[%s1882 + $0xc] sm:$0xf]
    %v5485 = vld [vmem:[%s1882 + $0x10] sm:$0xf]
    %v5486 = vld [vmem:[%s1882 + $0x14] sm:$0xf]
    %v5487 = vld [vmem:[%s1882 + $0x18] sm:$0xf]
    %v5488 = vld [vmem:[%s1882 + $0x1c] sm:$0xf]
    %v5489 = vld [vmem:[%s1882 + $0x20] sm:$0xf]
    %v5490 = vld [vmem:[%s1882 + $0x24] sm:$0xf]
    %v5491 = vld [vmem:[%s1882 + $0x28] sm:$0x3]
    %v5503 = vunpack.c.l.b16 %v5481
    %v5504 = vunpack.c.l.b16 %v5482
    %v5505 = vunpack.c.l.b16 %v5483
    %v5506 = vunpack.c.l.b16 %v5484
    %v5507 = vunpack.c.l.b16 %v5485
    %v5508 = vunpack.c.l.b16 %v5486
    %v5509 = vunpack.c.l.b16 %v5487
    %v5510 = vunpack.c.l.b16 %v5488
    %v5511 = vunpack.c.l.b16 %v5489
    %v5512 = vunpack.c.l.b16 %v5490
    %v5513 = vunpack.c.l.b16 %v5491
    %v5514 = vpack.c.b16 %v5504, %v5503
    %v5515 = vpack.c.b16 %v5506, %v5505
    %v5516 = vpack.c.b16 %v5508, %v5507
    %v5517 = vpack.c.b16 %v5510, %v5509
    %v5518 = vpack.c.b16 %v5512, %v5511
    %v5519 = vpack.c.b16 %v5513, %v5513
    %v5526 = vsel %vm1755, %v5165, 0
    %v5529 = vsel %vm1759, %v5519, 0
    %5531 = vmatprep.subr.bf16.mxu0 0
    %5532 = vmatpush1.bf16.msra.mxu0 0
    %5533 = vmatprep.subr.bf16.mxu0 0
    %5534 = vmatpush1.bf16.msra.mxu0 0
    %5535 = vmatprep.subr.bf16.mxu0 0
    %5536 = vmatpush1.bf16.msra.mxu0 %v5529
    %5537 = vmatprep.subr.bf16.mxu0 0
    %5538 = vmatpush1.bf16.msra.mxu0 %v5518
    %5539 = vmatprep.subr.bf16.mxu0 0
    %5540 = vmatpush1.bf16.msra.mxu0 %v5517
    %5541 = vmatprep.subr.bf16.mxu0 0
    %5542 = vmatpush1.bf16.msra.mxu0 %v5516
    %5543 = vmatprep.subr.bf16.mxu0 0
    %5544 = vmatpush1.bf16.msra.mxu0 %v5515
    %5545 = vmatprep.subr.bf16.mxu0 0
    %5546 = vmatpush1.bf16.msra.mxu0 %v5514
    %5547 = vmatprep.subr.bf16.mxu0 0
    %5548 = vmatpush2.bf16.msra.mxu0 0
    %5549 = vmatprep.subr.bf16.mxu0 0
    %5550 = vmatpush2.bf16.msra.mxu0 0
    %5551 = vmatprep.subr.bf16.mxu0 0
    %5552 = vmatpush2.bf16.msra.mxu0 0
    %5553 = vmatprep.subr.bf16.mxu0 0
    %5554 = vmatpush2.bf16.msra.mxu0 0
    %5555 = vmatprep.subr.bf16.mxu0 0
    %5556 = vmatpush2.bf16.msra.mxu0 0
    %5557 = vmatprep.subr.bf16.mxu0 0
    %5558 = vmatpush2.bf16.msra.mxu0 0
    %5559 = vmatprep.subr.bf16.mxu0 0
    %5560 = vmatpush2.bf16.msra.mxu0 0
    %5561 = vmatprep.subr.bf16.mxu0 0
    %5562 = vmatpush2.bf16.msra.mxu0 0
    %5563 = vmatprep.mubr.bf16.mxu0 0
    %5564 = vmatmul.mubr.bf16.gmra.mxu0 %v5526
    %v5565 = vpop.f32.mrf.mxu0
    %v5566 = vadd.f32 0.0, %v5565
    %v5567 = vpop.f32.mrf.mxu0
    %v5568 = vpop.f32.mrf.mxu0
    %v5569 = vpop.f32.mrf.mxu0
    %5570 = vdwg.mxu0
    %v5571 = vadd.f32 %v5476, %v5566
    %v5572 = vld [vmem:[%s1974] sm:$0xf]
    %v5573 = vld [vmem:[%s1974 + $0x4] sm:$0xf]
    %v5574 = vld [vmem:[%s1974 + $0x8] sm:$0xf]
    %v5575 = vld [vmem:[%s1974 + $0xc] sm:$0xf]
    %v5576 = vld [vmem:[%s1974 + $0x10] sm:$0xf]
    %v5577 = vld [vmem:[%s1974 + $0x14] sm:$0xf]
    %v5578 = vld [vmem:[%s1974 + $0x18] sm:$0xf]
    %v5579 = vld [vmem:[%s1974 + $0x1c] sm:$0xf]
    %v5580 = vld [vmem:[%s1974 + $0x20] sm:$0xf]
    %v5581 = vld [vmem:[%s1974 + $0x24] sm:$0xf]
    %v5582 = vld [vmem:[%s1974 + $0x28] sm:$0x3]
    %v5594 = vunpack.c.l.b16 %v5572
    %v5595 = vunpack.c.l.b16 %v5573
    %v5596 = vunpack.c.l.b16 %v5574
    %v5597 = vunpack.c.l.b16 %v5575
    %v5598 = vunpack.c.l.b16 %v5576
    %v5599 = vunpack.c.l.b16 %v5577
    %v5600 = vunpack.c.l.b16 %v5578
    %v5601 = vunpack.c.l.b16 %v5579
    %v5602 = vunpack.c.l.b16 %v5580
    %v5603 = vunpack.c.l.b16 %v5581
    %v5604 = vunpack.c.l.b16 %v5582
    %v5605 = vpack.c.b16 %v5595, %v5594
    %v5606 = vpack.c.b16 %v5597, %v5596
    %v5607 = vpack.c.b16 %v5599, %v5598
    %v5608 = vpack.c.b16 %v5601, %v5600
    %v5609 = vpack.c.b16 %v5603, %v5602
    %v5610 = vpack.c.b16 %v5604, %v5604
    %v5617 = vsel %vm1755, %v5210, 0
    %v5620 = vsel %vm1759, %v5610, 0
    %5622 = vmatprep.subr.bf16.mxu0 0
    %5623 = vmatpush1.bf16.msra.mxu0 0
    %5624 = vmatprep.subr.bf16.mxu0 0
    %5625 = vmatpush1.bf16.msra.mxu0 0
    %5626 = vmatprep.subr.bf16.mxu0 0
    %5627 = vmatpush1.bf16.msra.mxu0 %v5620
    %5628 = vmatprep.subr.bf16.mxu0 0
    %5629 = vmatpush1.bf16.msra.mxu0 %v5609
    %5630 = vmatprep.subr.bf16.mxu0 0
    %5631 = vmatpush1.bf16.msra.mxu0 %v5608
    %5632 = vmatprep.subr.bf16.mxu0 0
    %5633 = vmatpush1.bf16.msra.mxu0 %v5607
    %5634 = vmatprep.subr.bf16.mxu0 0
    %5635 = vmatpush1.bf16.msra.mxu0 %v5606
    %5636 = vmatprep.subr.bf16.mxu0 0
    %5637 = vmatpush1.bf16.msra.mxu0 %v5605
    %5638 = vmatprep.subr.bf16.mxu0 0
    %5639 = vmatpush2.bf16.msra.mxu0 0
    %5640 = vmatprep.subr.bf16.mxu0 0
    %5641 = vmatpush2.bf16.msra.mxu0 0
    %5642 = vmatprep.subr.bf16.mxu0 0
    %5643 = vmatpush2.bf16.msra.mxu0 0
    %5644 = vmatprep.subr.bf16.mxu0 0
    %5645 = vmatpush2.bf16.msra.mxu0 0
    %5646 = vmatprep.subr.bf16.mxu0 0
    %5647 = vmatpush2.bf16.msra.mxu0 0
    %5648 = vmatprep.subr.bf16.mxu0 0
    %5649 = vmatpush2.bf16.msra.mxu0 0
    %5650 = vmatprep.subr.bf16.mxu0 0
    %5651 = vmatpush2.bf16.msra.mxu0 0
    %5652 = vmatprep.subr.bf16.mxu0 0
    %5653 = vmatpush2.bf16.msra.mxu0 0
    %5654 = vmatprep.mubr.bf16.mxu0 0
    %5655 = vmatmul.mubr.bf16.gmra.mxu0 %v5617
    %v5656 = vpop.f32.mrf.mxu0
    %v5657 = vadd.f32 0.0, %v5656
    %v5658 = vpop.f32.mrf.mxu0
    %v5659 = vpop.f32.mrf.mxu0
    %v5660 = vpop.f32.mrf.mxu0
    %5661 = vdwg.mxu0
    %v5662 = vadd.f32 %v5571, %v5657
    %v5663 = vld [vmem:[%s2066] sm:$0xf]
    %v5664 = vld [vmem:[%s2066 + $0x4] sm:$0xf]
    %v5665 = vld [vmem:[%s2066 + $0x8] sm:$0xf]
    %v5666 = vld [vmem:[%s2066 + $0xc] sm:$0xf]
    %v5667 = vld [vmem:[%s2066 + $0x10] sm:$0xf]
    %v5668 = vld [vmem:[%s2066 + $0x14] sm:$0xf]
    %v5669 = vld [vmem:[%s2066 + $0x18] sm:$0xf]
    %v5670 = vld [vmem:[%s2066 + $0x1c] sm:$0xf]
    %v5671 = vld [vmem:[%s2066 + $0x20] sm:$0xf]
    %v5672 = vld [vmem:[%s2066 + $0x24] sm:$0xf]
    %v5673 = vld [vmem:[%s2066 + $0x28] sm:$0x3]
    %v5685 = vunpack.c.l.b16 %v5663
    %v5686 = vunpack.c.l.b16 %v5664
    %v5687 = vunpack.c.l.b16 %v5665
    %v5688 = vunpack.c.l.b16 %v5666
    %v5689 = vunpack.c.l.b16 %v5667
    %v5690 = vunpack.c.l.b16 %v5668
    %v5691 = vunpack.c.l.b16 %v5669
    %v5692 = vunpack.c.l.b16 %v5670
    %v5693 = vunpack.c.l.b16 %v5671
    %v5694 = vunpack.c.l.b16 %v5672
    %v5695 = vunpack.c.l.b16 %v5673
    %v5696 = vpack.c.b16 %v5686, %v5685
    %v5697 = vpack.c.b16 %v5688, %v5687
    %v5698 = vpack.c.b16 %v5690, %v5689
    %v5699 = vpack.c.b16 %v5692, %v5691
    %v5700 = vpack.c.b16 %v5694, %v5693
    %v5701 = vpack.c.b16 %v5695, %v5695
    %v5708 = vsel %vm1755, %v5255, 0
    %v5711 = vsel %vm1759, %v5701, 0
    %5713 = vmatprep.subr.bf16.mxu0 0
    %5714 = vmatpush1.bf16.msra.mxu0 0
    %5715 = vmatprep.subr.bf16.mxu0 0
    %5716 = vmatpush1.bf16.msra.mxu0 0
    %5717 = vmatprep.subr.bf16.mxu0 0
    %5718 = vmatpush1.bf16.msra.mxu0 %v5711
    %5719 = vmatprep.subr.bf16.mxu0 0
    %5720 = vmatpush1.bf16.msra.mxu0 %v5700
    %5721 = vmatprep.subr.bf16.mxu0 0
    %5722 = vmatpush1.bf16.msra.mxu0 %v5699
    %5723 = vmatprep.subr.bf16.mxu0 0
    %5724 = vmatpush1.bf16.msra.mxu0 %v5698
    %5725 = vmatprep.subr.bf16.mxu0 0
    %5726 = vmatpush1.bf16.msra.mxu0 %v5697
    %5727 = vmatprep.subr.bf16.mxu0 0
    %5728 = vmatpush1.bf16.msra.mxu0 %v5696
    %5729 = vmatprep.subr.bf16.mxu0 0
    %5730 = vmatpush2.bf16.msra.mxu0 0
    %5731 = vmatprep.subr.bf16.mxu0 0
    %5732 = vmatpush2.bf16.msra.mxu0 0
    %5733 = vmatprep.subr.bf16.mxu0 0
    %5734 = vmatpush2.bf16.msra.mxu0 0
    %5735 = vmatprep.subr.bf16.mxu0 0
    %5736 = vmatpush2.bf16.msra.mxu0 0
    %5737 = vmatprep.subr.bf16.mxu0 0
    %5738 = vmatpush2.bf16.msra.mxu0 0
    %5739 = vmatprep.subr.bf16.mxu0 0
    %5740 = vmatpush2.bf16.msra.mxu0 0
    %5741 = vmatprep.subr.bf16.mxu0 0
    %5742 = vmatpush2.bf16.msra.mxu0 0
    %5743 = vmatprep.subr.bf16.mxu0 0
    %5744 = vmatpush2.bf16.msra.mxu0 0
    %5745 = vmatprep.mubr.bf16.mxu0 0
    %5746 = vmatmul.mubr.bf16.gmra.mxu0 %v5708
    %v5747 = vpop.f32.mrf.mxu0
    %v5748 = vadd.f32 0.0, %v5747
    %v5749 = vpop.f32.mrf.mxu0
    %v5750 = vpop.f32.mrf.mxu0
    %v5751 = vpop.f32.mrf.mxu0
    %5752 = vdwg.mxu0
    %v5753 = vadd.f32 %v5662, %v5748
    %v5754 = vld [vmem:[%s2158] sm:$0xf]
    %v5755 = vld [vmem:[%s2158 + $0x4] sm:$0xf]
    %v5756 = vld [vmem:[%s2158 + $0x8] sm:$0xf]
    %v5757 = vld [vmem:[%s2158 + $0xc] sm:$0xf]
    %v5758 = vld [vmem:[%s2158 + $0x10] sm:$0xf]
    %v5759 = vld [vmem:[%s2158 + $0x14] sm:$0xf]
    %v5760 = vld [vmem:[%s2158 + $0x18] sm:$0xf]
    %v5761 = vld [vmem:[%s2158 + $0x1c] sm:$0xf]
    %v5762 = vld [vmem:[%s2158 + $0x20] sm:$0xf]
    %v5763 = vld [vmem:[%s2158 + $0x24] sm:$0xf]
    %v5764 = vld [vmem:[%s2158 + $0x28] sm:$0x3]
    %v5765 = vld [vmem:[%s2170] sm:$0xf]
    %v5766 = vld [vmem:[%s2170 + $0x4] sm:$0xf]
    %v5767 = vld [vmem:[%s2170 + $0x8] sm:$0xf]
    %v5768 = vld [vmem:[%s2170 + $0xc] sm:$0xf]
    %v5769 = vld [vmem:[%s2170 + $0x10] sm:$0xf]
    %v5770 = vld [vmem:[%s2170 + $0x14] sm:$0xf]
    %v5771 = vld [vmem:[%s2170 + $0x18] sm:$0xf]
    %v5772 = vld [vmem:[%s2170 + $0x1c] sm:$0xf]
    %v5773 = vld [vmem:[%s2170 + $0x20] sm:$0xf]
    %v5774 = vld [vmem:[%s2170 + $0x24] sm:$0xf]
    %v5775 = vld [vmem:[%s2170 + $0x28] sm:$0x3]
    %v5787 = vunpack.c.l.b16 %v5765
    %v5788 = vunpack.c.l.b16 %v5766
    %v5789 = vunpack.c.l.b16 %v5767
    %v5790 = vunpack.c.l.b16 %v5768
    %v5791 = vunpack.c.l.b16 %v5769
    %v5792 = vunpack.c.l.b16 %v5770
    %v5793 = vunpack.c.l.b16 %v5771
    %v5794 = vunpack.c.l.b16 %v5772
    %v5795 = vunpack.c.l.b16 %v5773
    %v5796 = vunpack.c.l.b16 %v5774
    %v5797 = vunpack.c.l.b16 %v5775
    %v5798 = vpack.c.b16 %v5788, %v5787
    %v5799 = vpack.c.b16 %v5790, %v5789
    %v5800 = vpack.c.b16 %v5792, %v5791
    %v5801 = vpack.c.b16 %v5794, %v5793
    %v5802 = vpack.c.b16 %v5796, %v5795
    %v5803 = vpack.c.b16 %v5797, %v5797
    %v5810 = vsel %vm1759, %v5803, 0
    %5812 = vmatprep.subr.bf16.mxu0 0
    %5813 = vmatpush1.bf16.msra.mxu0 0
    %5814 = vmatprep.subr.bf16.mxu0 0
    %5815 = vmatpush1.bf16.msra.mxu0 0
    %5816 = vmatprep.subr.bf16.mxu0 0
    %5817 = vmatpush1.bf16.msra.mxu0 %v5810
    %5818 = vmatprep.subr.bf16.mxu0 0
    %5819 = vmatpush1.bf16.msra.mxu0 %v5802
    %5820 = vmatprep.subr.bf16.mxu0 0
    %5821 = vmatpush1.bf16.msra.mxu0 %v5801
    %5822 = vmatprep.subr.bf16.mxu0 0
    %5823 = vmatpush1.bf16.msra.mxu0 %v5800
    %5824 = vmatprep.subr.bf16.mxu0 0
    %5825 = vmatpush1.bf16.msra.mxu0 %v5799
    %5826 = vmatprep.subr.bf16.mxu0 0
    %5827 = vmatpush1.bf16.msra.mxu0 %v5798
    %5828 = vmatprep.subr.bf16.mxu0 0
    %5829 = vmatpush2.bf16.msra.mxu0 0
    %5830 = vmatprep.subr.bf16.mxu0 0
    %5831 = vmatpush2.bf16.msra.mxu0 0
    %5832 = vmatprep.subr.bf16.mxu0 0
    %5833 = vmatpush2.bf16.msra.mxu0 0
    %5834 = vmatprep.subr.bf16.mxu0 0
    %5835 = vmatpush2.bf16.msra.mxu0 0
    %5836 = vmatprep.subr.bf16.mxu0 0
    %5837 = vmatpush2.bf16.msra.mxu0 0
    %5838 = vmatprep.subr.bf16.mxu0 0
    %5839 = vmatpush2.bf16.msra.mxu0 0
    %5840 = vmatprep.subr.bf16.mxu0 0
    %5841 = vmatpush2.bf16.msra.mxu0 0
    %5842 = vmatprep.subr.bf16.mxu0 0
    %5843 = vmatpush2.bf16.msra.mxu0 0
    %5844 = vmatprep.mubr.bf16.mxu0 0
    %5845 = vmatmul.mubr.bf16.gmra.mxu0 %v5357
    %v5846 = vpop.f32.mrf.mxu0
    %v5847 = vadd.f32 0.0, %v5846
    %v5848 = vpop.f32.mrf.mxu0
    %v5849 = vpop.f32.mrf.mxu0
    %v5850 = vpop.f32.mrf.mxu0
    %5851 = vdwg.mxu0
    %v5863 = vunpack.c.l.b16 %v5754
    %v5864 = vunpack.c.l.b16 %v5755
    %v5865 = vunpack.c.l.b16 %v5756
    %v5866 = vunpack.c.l.b16 %v5757
    %v5867 = vunpack.c.l.b16 %v5758
    %v5868 = vunpack.c.l.b16 %v5759
    %v5869 = vunpack.c.l.b16 %v5760
    %v5870 = vunpack.c.l.b16 %v5761
    %v5871 = vunpack.c.l.b16 %v5762
    %v5872 = vunpack.c.l.b16 %v5763
    %v5873 = vunpack.c.l.b16 %v5764
    %v5874 = vpack.c.b16 %v5864, %v5863
    %v5875 = vpack.c.b16 %v5866, %v5865
    %v5876 = vpack.c.b16 %v5868, %v5867
    %v5877 = vpack.c.b16 %v5870, %v5869
    %v5878 = vpack.c.b16 %v5872, %v5871
    %v5879 = vpack.c.b16 %v5873, %v5873
    %v5886 = vsel %vm1759, %v5879, 0
    %5888 = vmatprep.subr.bf16.mxu0 0
    %5889 = vmatpush1.bf16.msra.mxu0 0
    %5890 = vmatprep.subr.bf16.mxu0 0
    %5891 = vmatpush1.bf16.msra.mxu0 0
    %5892 = vmatprep.subr.bf16.mxu0 0
    %5893 = vmatpush1.bf16.msra.mxu0 %v5886
    %5894 = vmatprep.subr.bf16.mxu0 0
    %5895 = vmatpush1.bf16.msra.mxu0 %v5878
    %5896 = vmatprep.subr.bf16.mxu0 0
    %5897 = vmatpush1.bf16.msra.mxu0 %v5877
    %5898 = vmatprep.subr.bf16.mxu0 0
    %5899 = vmatpush1.bf16.msra.mxu0 %v5876
    %5900 = vmatprep.subr.bf16.mxu0 0
    %5901 = vmatpush1.bf16.msra.mxu0 %v5875
    %5902 = vmatprep.subr.bf16.mxu0 0
    %5903 = vmatpush1.bf16.msra.mxu0 %v5874
    %5904 = vmatprep.subr.bf16.mxu0 0
    %5905 = vmatpush2.bf16.msra.mxu0 0
    %5906 = vmatprep.subr.bf16.mxu0 0
    %5907 = vmatpush2.bf16.msra.mxu0 0
    %5908 = vmatprep.subr.bf16.mxu0 0
    %5909 = vmatpush2.bf16.msra.mxu0 0
    %5910 = vmatprep.subr.bf16.mxu0 0
    %5911 = vmatpush2.bf16.msra.mxu0 0
    %5912 = vmatprep.subr.bf16.mxu0 0
    %5913 = vmatpush2.bf16.msra.mxu0 0
    %5914 = vmatprep.subr.bf16.mxu0 0
    %5915 = vmatpush2.bf16.msra.mxu0 0
    %5916 = vmatprep.subr.bf16.mxu0 0
    %5917 = vmatpush2.bf16.msra.mxu0 0
    %5918 = vmatprep.subr.bf16.mxu0 0
    %5919 = vmatpush2.bf16.msra.mxu0 0
    %5920 = vmatprep.mubr.bf16.mxu0 0
    %5921 = vmatmul.mubr.bf16.gmra.mxu0 %v5436
    %v5922 = vpop.f32.mrf.mxu0
    %v5923 = vadd.f32 %v5847, %v5922
    %v5924 = vpop.f32.mrf.mxu0
    %v5925 = vpop.f32.mrf.mxu0
    %v5926 = vpop.f32.mrf.mxu0
    %5927 = vdwg.mxu0
    %v5928 = vld [vmem:[%s2334] sm:$0xf]
    %v5929 = vld [vmem:[%s2334 + $0x4] sm:$0xf]
    %v5930 = vld [vmem:[%s2334 + $0x8] sm:$0xf]
    %v5931 = vld [vmem:[%s2334 + $0xc] sm:$0xf]
    %v5932 = vld [vmem:[%s2334 + $0x10] sm:$0xf]
    %v5933 = vld [vmem:[%s2334 + $0x14] sm:$0xf]
    %v5934 = vld [vmem:[%s2334 + $0x18] sm:$0xf]
    %v5935 = vld [vmem:[%s2334 + $0x1c] sm:$0xf]
    %v5936 = vld [vmem:[%s2334 + $0x20] sm:$0xf]
    %v5937 = vld [vmem:[%s2334 + $0x24] sm:$0xf]
    %v5938 = vld [vmem:[%s2334 + $0x28] sm:$0x3]
    %v5950 = vunpack.c.l.b16 %v5928
    %v5951 = vunpack.c.l.b16 %v5929
    %v5952 = vunpack.c.l.b16 %v5930
    %v5953 = vunpack.c.l.b16 %v5931
    %v5954 = vunpack.c.l.b16 %v5932
    %v5955 = vunpack.c.l.b16 %v5933
    %v5956 = vunpack.c.l.b16 %v5934
    %v5957 = vunpack.c.l.b16 %v5935
    %v5958 = vunpack.c.l.b16 %v5936
    %v5959 = vunpack.c.l.b16 %v5937
    %v5960 = vunpack.c.l.b16 %v5938
    %v5961 = vpack.c.b16 %v5951, %v5950
    %v5962 = vpack.c.b16 %v5953, %v5952
    %v5963 = vpack.c.b16 %v5955, %v5954
    %v5964 = vpack.c.b16 %v5957, %v5956
    %v5965 = vpack.c.b16 %v5959, %v5958
    %v5966 = vpack.c.b16 %v5960, %v5960
    %v5973 = vsel %vm1759, %v5966, 0
    %5975 = vmatprep.subr.bf16.mxu0 0
    %5976 = vmatpush1.bf16.msra.mxu0 0
    %5977 = vmatprep.subr.bf16.mxu0 0
    %5978 = vmatpush1.bf16.msra.mxu0 0
    %5979 = vmatprep.subr.bf16.mxu0 0
    %5980 = vmatpush1.bf16.msra.mxu0 %v5973
    %5981 = vmatprep.subr.bf16.mxu0 0
    %5982 = vmatpush1.bf16.msra.mxu0 %v5965
    %5983 = vmatprep.subr.bf16.mxu0 0
    %5984 = vmatpush1.bf16.msra.mxu0 %v5964
    %5985 = vmatprep.subr.bf16.mxu0 0
    %5986 = vmatpush1.bf16.msra.mxu0 %v5963
    %5987 = vmatprep.subr.bf16.mxu0 0
    %5988 = vmatpush1.bf16.msra.mxu0 %v5962
    %5989 = vmatprep.subr.bf16.mxu0 0
    %5990 = vmatpush1.bf16.msra.mxu0 %v5961
    %5991 = vmatprep.subr.bf16.mxu0 0
    %5992 = vmatpush2.bf16.msra.mxu0 0
    %5993 = vmatprep.subr.bf16.mxu0 0
    %5994 = vmatpush2.bf16.msra.mxu0 0
    %5995 = vmatprep.subr.bf16.mxu0 0
    %5996 = vmatpush2.bf16.msra.mxu0 0
    %5997 = vmatprep.subr.bf16.mxu0 0
    %5998 = vmatpush2.bf16.msra.mxu0 0
    %5999 = vmatprep.subr.bf16.mxu0 0
    %6000 = vmatpush2.bf16.msra.mxu0 0
    %6001 = vmatprep.subr.bf16.mxu0 0
    %6002 = vmatpush2.bf16.msra.mxu0 0
    %6003 = vmatprep.subr.bf16.mxu0 0
    %6004 = vmatpush2.bf16.msra.mxu0 0
    %6005 = vmatprep.subr.bf16.mxu0 0
    %6006 = vmatpush2.bf16.msra.mxu0 0
    %6007 = vmatprep.mubr.bf16.mxu0 0
    %6008 = vmatmul.mubr.bf16.gmra.mxu0 %v5526
    %v6009 = vpop.f32.mrf.mxu0
    %v6010 = vadd.f32 0.0, %v6009
    %v6011 = vpop.f32.mrf.mxu0
    %v6012 = vpop.f32.mrf.mxu0
    %v6013 = vpop.f32.mrf.mxu0
    %6014 = vdwg.mxu0
    %v6015 = vadd.f32 %v5923, %v6010
    %v6016 = vld [vmem:[%s2423] sm:$0xf]
    %v6017 = vld [vmem:[%s2423 + $0x4] sm:$0xf]
    %v6018 = vld [vmem:[%s2423 + $0x8] sm:$0xf]
    %v6019 = vld [vmem:[%s2423 + $0xc] sm:$0xf]
    %v6020 = vld [vmem:[%s2423 + $0x10] sm:$0xf]
    %v6021 = vld [vmem:[%s2423 + $0x14] sm:$0xf]
    %v6022 = vld [vmem:[%s2423 + $0x18] sm:$0xf]
    %v6023 = vld [vmem:[%s2423 + $0x1c] sm:$0xf]
    %v6024 = vld [vmem:[%s2423 + $0x20] sm:$0xf]
    %v6025 = vld [vmem:[%s2423 + $0x24] sm:$0xf]
    %v6026 = vld [vmem:[%s2423 + $0x28] sm:$0x3]
    %v6038 = vunpack.c.l.b16 %v6016
    %v6039 = vunpack.c.l.b16 %v6017
    %v6040 = vunpack.c.l.b16 %v6018
    %v6041 = vunpack.c.l.b16 %v6019
    %v6042 = vunpack.c.l.b16 %v6020
    %v6043 = vunpack.c.l.b16 %v6021
    %v6044 = vunpack.c.l.b16 %v6022
    %v6045 = vunpack.c.l.b16 %v6023
    %v6046 = vunpack.c.l.b16 %v6024
    %v6047 = vunpack.c.l.b16 %v6025
    %v6048 = vunpack.c.l.b16 %v6026
    %v6049 = vpack.c.b16 %v6039, %v6038
    %v6050 = vpack.c.b16 %v6041, %v6040
    %v6051 = vpack.c.b16 %v6043, %v6042
    %v6052 = vpack.c.b16 %v6045, %v6044
    %v6053 = vpack.c.b16 %v6047, %v6046
    %v6054 = vpack.c.b16 %v6048, %v6048
    %v6061 = vsel %vm1759, %v6054, 0
    %6063 = vmatprep.subr.bf16.mxu0 0
    %6064 = vmatpush1.bf16.msra.mxu0 0
    %6065 = vmatprep.subr.bf16.mxu0 0
    %6066 = vmatpush1.bf16.msra.mxu0 0
    %6067 = vmatprep.subr.bf16.mxu0 0
    %6068 = vmatpush1.bf16.msra.mxu0 %v6061
    %6069 = vmatprep.subr.bf16.mxu0 0
    %6070 = vmatpush1.bf16.msra.mxu0 %v6053
    %6071 = vmatprep.subr.bf16.mxu0 0
    %6072 = vmatpush1.bf16.msra.mxu0 %v6052
    %6073 = vmatprep.subr.bf16.mxu0 0
    %6074 = vmatpush1.bf16.msra.mxu0 %v6051
    %6075 = vmatprep.subr.bf16.mxu0 0
    %6076 = vmatpush1.bf16.msra.mxu0 %v6050
    %6077 = vmatprep.subr.bf16.mxu0 0
    %6078 = vmatpush1.bf16.msra.mxu0 %v6049
    %6079 = vmatprep.subr.bf16.mxu0 0
    %6080 = vmatpush2.bf16.msra.mxu0 0
    %6081 = vmatprep.subr.bf16.mxu0 0
    %6082 = vmatpush2.bf16.msra.mxu0 0
    %6083 = vmatprep.subr.bf16.mxu0 0
    %6084 = vmatpush2.bf16.msra.mxu0 0
    %6085 = vmatprep.subr.bf16.mxu0 0
    %6086 = vmatpush2.bf16.msra.mxu0 0
    %6087 = vmatprep.subr.bf16.mxu0 0
    %6088 = vmatpush2.bf16.msra.mxu0 0
    %6089 = vmatprep.subr.bf16.mxu0 0
    %6090 = vmatpush2.bf16.msra.mxu0 0
    %6091 = vmatprep.subr.bf16.mxu0 0
    %6092 = vmatpush2.bf16.msra.mxu0 0
    %6093 = vmatprep.subr.bf16.mxu0 0
    %6094 = vmatpush2.bf16.msra.mxu0 0
    %6095 = vmatprep.mubr.bf16.mxu0 0
    %6096 = vmatmul.mubr.bf16.gmra.mxu0 %v5617
    %v6097 = vpop.f32.mrf.mxu0
    %v6098 = vadd.f32 0.0, %v6097
    %v6099 = vpop.f32.mrf.mxu0
    %v6100 = vpop.f32.mrf.mxu0
    %v6101 = vpop.f32.mrf.mxu0
    %6102 = vdwg.mxu0
    %v6103 = vadd.f32 %v6015, %v6098
    %v6104 = vld [vmem:[%s2512] sm:$0xf]
    %v6105 = vld [vmem:[%s2512 + $0x4] sm:$0xf]
    %v6106 = vld [vmem:[%s2512 + $0x8] sm:$0xf]
    %v6107 = vld [vmem:[%s2512 + $0xc] sm:$0xf]
    %v6108 = vld [vmem:[%s2512 + $0x10] sm:$0xf]
    %v6109 = vld [vmem:[%s2512 + $0x14] sm:$0xf]
    %v6110 = vld [vmem:[%s2512 + $0x18] sm:$0xf]
    %v6111 = vld [vmem:[%s2512 + $0x1c] sm:$0xf]
    %v6112 = vld [vmem:[%s2512 + $0x20] sm:$0xf]
    %v6113 = vld [vmem:[%s2512 + $0x24] sm:$0xf]
    %v6114 = vld [vmem:[%s2512 + $0x28] sm:$0x3]
    %v6126 = vunpack.c.l.b16 %v6104
    %v6127 = vunpack.c.l.b16 %v6105
    %v6128 = vunpack.c.l.b16 %v6106
    %v6129 = vunpack.c.l.b16 %v6107
    %v6130 = vunpack.c.l.b16 %v6108
    %v6131 = vunpack.c.l.b16 %v6109
    %v6132 = vunpack.c.l.b16 %v6110
    %v6133 = vunpack.c.l.b16 %v6111
    %v6134 = vunpack.c.l.b16 %v6112
    %v6135 = vunpack.c.l.b16 %v6113
    %v6136 = vunpack.c.l.b16 %v6114
    %v6137 = vpack.c.b16 %v6127, %v6126
    %v6138 = vpack.c.b16 %v6129, %v6128
    %v6139 = vpack.c.b16 %v6131, %v6130
    %v6140 = vpack.c.b16 %v6133, %v6132
    %v6141 = vpack.c.b16 %v6135, %v6134
    %v6142 = vpack.c.b16 %v6136, %v6136
    %v6149 = vsel %vm1759, %v6142, 0
    %6151 = vmatprep.subr.bf16.mxu0 0
    %6152 = vmatpush1.bf16.msra.mxu0 0
    %6153 = vmatprep.subr.bf16.mxu0 0
    %6154 = vmatpush1.bf16.msra.mxu0 0
    %6155 = vmatprep.subr.bf16.mxu0 0
    %6156 = vmatpush1.bf16.msra.mxu0 %v6149
    %6157 = vmatprep.subr.bf16.mxu0 0
    %6158 = vmatpush1.bf16.msra.mxu0 %v6141
    %6159 = vmatprep.subr.bf16.mxu0 0
    %6160 = vmatpush1.bf16.msra.mxu0 %v6140
    %6161 = vmatprep.subr.bf16.mxu0 0
    %6162 = vmatpush1.bf16.msra.mxu0 %v6139
    %6163 = vmatprep.subr.bf16.mxu0 0
    %6164 = vmatpush1.bf16.msra.mxu0 %v6138
    %6165 = vmatprep.subr.bf16.mxu0 0
    %6166 = vmatpush1.bf16.msra.mxu0 %v6137
    %6167 = vmatprep.subr.bf16.mxu0 0
    %6168 = vmatpush2.bf16.msra.mxu0 0
    %6169 = vmatprep.subr.bf16.mxu0 0
    %6170 = vmatpush2.bf16.msra.mxu0 0
    %6171 = vmatprep.subr.bf16.mxu0 0
    %6172 = vmatpush2.bf16.msra.mxu0 0
    %6173 = vmatprep.subr.bf16.mxu0 0
    %6174 = vmatpush2.bf16.msra.mxu0 0
    %6175 = vmatprep.subr.bf16.mxu0 0
    %6176 = vmatpush2.bf16.msra.mxu0 0
    %6177 = vmatprep.subr.bf16.mxu0 0
    %6178 = vmatpush2.bf16.msra.mxu0 0
    %6179 = vmatprep.subr.bf16.mxu0 0
    %6180 = vmatpush2.bf16.msra.mxu0 0
    %6181 = vmatprep.subr.bf16.mxu0 0
    %6182 = vmatpush2.bf16.msra.mxu0 0
    %6183 = vmatprep.mubr.bf16.mxu0 0
    %6184 = vmatmul.mubr.bf16.gmra.mxu0 %v5708
    %v6185 = vpop.f32.mrf.mxu0
    %v6186 = vadd.f32 0.0, %v6185
    %v6187 = vpop.f32.mrf.mxu0
    %v6188 = vpop.f32.mrf.mxu0
    %v6189 = vpop.f32.mrf.mxu0
    %6190 = vdwg.mxu0
    %v6191 = vadd.f32 %v6103, %v6186
    %v6192 = vmax.f32 %v5753, %v6191
    %6193 = vmatprep.subr.bf16.mxu0 0
    %6194 = vmatpush1.bf16.msra.mxu0 0
    %6195 = vmatprep.subr.bf16.mxu0 0
    %6196 = vmatpush1.bf16.msra.mxu0 0
    %6197 = vmatprep.subr.bf16.mxu0 0
    %6198 = vmatpush1.bf16.msra.mxu0 %v5360
    %6199 = vmatprep.subr.bf16.mxu0 0
    %6200 = vmatpush1.bf16.msra.mxu0 %v5349
    %6201 = vmatprep.subr.bf16.mxu0 0
    %6202 = vmatpush1.bf16.msra.mxu0 %v5348
    %6203 = vmatprep.subr.bf16.mxu0 0
    %6204 = vmatpush1.bf16.msra.mxu0 %v5347
    %6205 = vmatprep.subr.bf16.mxu0 0
    %6206 = vmatpush1.bf16.msra.mxu0 %v5346
    %6207 = vmatprep.subr.bf16.mxu0 0
    %6208 = vmatpush1.bf16.msra.mxu0 %v5345
    %6209 = vmatprep.subr.bf16.mxu0 0
    %6210 = vmatpush2.bf16.msra.mxu0 0
    %6211 = vmatprep.subr.bf16.mxu0 0
    %6212 = vmatpush2.bf16.msra.mxu0 0
    %6213 = vmatprep.subr.bf16.mxu0 0
    %6214 = vmatpush2.bf16.msra.mxu0 0
    %6215 = vmatprep.subr.bf16.mxu0 0
    %6216 = vmatpush2.bf16.msra.mxu0 0
    %6217 = vmatprep.subr.bf16.mxu0 0
    %6218 = vmatpush2.bf16.msra.mxu0 0
    %6219 = vmatprep.subr.bf16.mxu0 0
    %6220 = vmatpush2.bf16.msra.mxu0 0
    %6221 = vmatprep.subr.bf16.mxu0 0
    %6222 = vmatpush2.bf16.msra.mxu0 0
    %6223 = vmatprep.subr.bf16.mxu0 0
    %6224 = vmatpush2.bf16.msra.mxu0 0
    %6225 = vmatprep.mubr.bf16.mxu0 0
    %6226 = vmatmul.mubr.bf16.gmra.mxu0 %v5526
    %v6227 = vpop.f32.mrf.mxu0
    %v6228 = vadd.f32 0.0, %v6227
    %v6229 = vpop.f32.mrf.mxu0
    %v6230 = vpop.f32.mrf.mxu0
    %v6231 = vpop.f32.mrf.mxu0
    %6232 = vdwg.mxu0
    %6233 = vmatprep.subr.bf16.mxu0 0
    %6234 = vmatpush1.bf16.msra.mxu0 0
    %6235 = vmatprep.subr.bf16.mxu0 0
    %6236 = vmatpush1.bf16.msra.mxu0 0
    %6237 = vmatprep.subr.bf16.mxu0 0
    %6238 = vmatpush1.bf16.msra.mxu0 %v5439
    %6239 = vmatprep.subr.bf16.mxu0 0
    %6240 = vmatpush1.bf16.msra.mxu0 %v5428
    %6241 = vmatprep.subr.bf16.mxu0 0
    %6242 = vmatpush1.bf16.msra.mxu0 %v5427
    %6243 = vmatprep.subr.bf16.mxu0 0
    %6244 = vmatpush1.bf16.msra.mxu0 %v5426
    %6245 = vmatprep.subr.bf16.mxu0 0
    %6246 = vmatpush1.bf16.msra.mxu0 %v5425
    %6247 = vmatprep.subr.bf16.mxu0 0
    %6248 = vmatpush1.bf16.msra.mxu0 %v5424
    %6249 = vmatprep.subr.bf16.mxu0 0
    %6250 = vmatpush2.bf16.msra.mxu0 0
    %6251 = vmatprep.subr.bf16.mxu0 0
    %6252 = vmatpush2.bf16.msra.mxu0 0
    %6253 = vmatprep.subr.bf16.mxu0 0
    %6254 = vmatpush2.bf16.msra.mxu0 0
    %6255 = vmatprep.subr.bf16.mxu0 0
    %6256 = vmatpush2.bf16.msra.mxu0 0
    %6257 = vmatprep.subr.bf16.mxu0 0
    %6258 = vmatpush2.bf16.msra.mxu0 0
    %6259 = vmatprep.subr.bf16.mxu0 0
    %6260 = vmatpush2.bf16.msra.mxu0 0
    %6261 = vmatprep.subr.bf16.mxu0 0
    %6262 = vmatpush2.bf16.msra.mxu0 0
    %6263 = vmatprep.subr.bf16.mxu0 0
    %6264 = vmatpush2.bf16.msra.mxu0 0
    %6265 = vmatprep.mubr.bf16.mxu0 0
    %6266 = vmatmul.mubr.bf16.gmra.mxu0 %v5357
    %v6267 = vpop.f32.mrf.mxu0
    %v6268 = vadd.f32 %v6228, %v6267
    %v6269 = vpop.f32.mrf.mxu0
    %v6270 = vpop.f32.mrf.mxu0
    %v6271 = vpop.f32.mrf.mxu0
    %6272 = vdwg.mxu0
    %6273 = vmatprep.subr.bf16.mxu0 0
    %6274 = vmatpush1.bf16.msra.mxu0 0
    %6275 = vmatprep.subr.bf16.mxu0 0
    %6276 = vmatpush1.bf16.msra.mxu0 0
    %6277 = vmatprep.subr.bf16.mxu0 0
    %6278 = vmatpush1.bf16.msra.mxu0 %v5529
    %6279 = vmatprep.subr.bf16.mxu0 0
    %6280 = vmatpush1.bf16.msra.mxu0 %v5518
    %6281 = vmatprep.subr.bf16.mxu0 0
    %6282 = vmatpush1.bf16.msra.mxu0 %v5517
    %6283 = vmatprep.subr.bf16.mxu0 0
    %6284 = vmatpush1.bf16.msra.mxu0 %v5516
    %6285 = vmatprep.subr.bf16.mxu0 0
    %6286 = vmatpush1.bf16.msra.mxu0 %v5515
    %6287 = vmatprep.subr.bf16.mxu0 0
    %6288 = vmatpush1.bf16.msra.mxu0 %v5514
    %6289 = vmatprep.subr.bf16.mxu0 0
    %6290 = vmatpush2.bf16.msra.mxu0 0
    %6291 = vmatprep.subr.bf16.mxu0 0
    %6292 = vmatpush2.bf16.msra.mxu0 0
    %6293 = vmatprep.subr.bf16.mxu0 0
    %6294 = vmatpush2.bf16.msra.mxu0 0
    %6295 = vmatprep.subr.bf16.mxu0 0
    %6296 = vmatpush2.bf16.msra.mxu0 0
    %6297 = vmatprep.subr.bf16.mxu0 0
    %6298 = vmatpush2.bf16.msra.mxu0 0
    %6299 = vmatprep.subr.bf16.mxu0 0
    %6300 = vmatpush2.bf16.msra.mxu0 0
    %6301 = vmatprep.subr.bf16.mxu0 0
    %6302 = vmatpush2.bf16.msra.mxu0 0
    %6303 = vmatprep.subr.bf16.mxu0 0
    %6304 = vmatpush2.bf16.msra.mxu0 0
    %6305 = vmatprep.mubr.bf16.mxu0 0
    %6306 = vmatmul.mubr.bf16.gmra.mxu0 %v5617
    %v6307 = vpop.f32.mrf.mxu0
    %v6308 = vadd.f32 0.0, %v6307
    %v6309 = vpop.f32.mrf.mxu0
    %v6310 = vpop.f32.mrf.mxu0
    %v6311 = vpop.f32.mrf.mxu0
    %6312 = vdwg.mxu0
    %v6313 = vadd.f32 %v6268, %v6308
    %6314 = vmatprep.subr.bf16.mxu0 0
    %6315 = vmatpush1.bf16.msra.mxu0 0
    %6316 = vmatprep.subr.bf16.mxu0 0
    %6317 = vmatpush1.bf16.msra.mxu0 0
    %6318 = vmatprep.subr.bf16.mxu0 0
    %6319 = vmatpush1.bf16.msra.mxu0 %v5620
    %6320 = vmatprep.subr.bf16.mxu0 0
    %6321 = vmatpush1.bf16.msra.mxu0 %v5609
    %6322 = vmatprep.subr.bf16.mxu0 0
    %6323 = vmatpush1.bf16.msra.mxu0 %v5608
    %6324 = vmatprep.subr.bf16.mxu0 0
    %6325 = vmatpush1.bf16.msra.mxu0 %v5607
    %6326 = vmatprep.subr.bf16.mxu0 0
    %6327 = vmatpush1.bf16.msra.mxu0 %v5606
    %6328 = vmatprep.subr.bf16.mxu0 0
    %6329 = vmatpush1.bf16.msra.mxu0 %v5605
    %6330 = vmatprep.subr.bf16.mxu0 0
    %6331 = vmatpush2.bf16.msra.mxu0 0
    %6332 = vmatprep.subr.bf16.mxu0 0
    %6333 = vmatpush2.bf16.msra.mxu0 0
    %6334 = vmatprep.subr.bf16.mxu0 0
    %6335 = vmatpush2.bf16.msra.mxu0 0
    %6336 = vmatprep.subr.bf16.mxu0 0
    %6337 = vmatpush2.bf16.msra.mxu0 0
    %6338 = vmatprep.subr.bf16.mxu0 0
    %6339 = vmatpush2.bf16.msra.mxu0 0
    %6340 = vmatprep.subr.bf16.mxu0 0
    %6341 = vmatpush2.bf16.msra.mxu0 0
    %6342 = vmatprep.subr.bf16.mxu0 0
    %6343 = vmatpush2.bf16.msra.mxu0 0
    %6344 = vmatprep.subr.bf16.mxu0 0
    %6345 = vmatpush2.bf16.msra.mxu0 0
    %6346 = vmatprep.mubr.bf16.mxu0 0
    %6347 = vmatmul.mubr.bf16.gmra.mxu0 %v5708
    %v6348 = vpop.f32.mrf.mxu0
    %v6349 = vadd.f32 0.0, %v6348
    %v6350 = vpop.f32.mrf.mxu0
    %v6351 = vpop.f32.mrf.mxu0
    %v6352 = vpop.f32.mrf.mxu0
    %6353 = vdwg.mxu0
    %v6354 = vadd.f32 %v6313, %v6349
    %v6356 = vsel %vm1755, %v5300, 0
    %6358 = vmatprep.subr.bf16.mxu0 0
    %6359 = vmatpush1.bf16.msra.mxu0 0
    %6360 = vmatprep.subr.bf16.mxu0 0
    %6361 = vmatpush1.bf16.msra.mxu0 0
    %6362 = vmatprep.subr.bf16.mxu0 0
    %6363 = vmatpush1.bf16.msra.mxu0 %v5711
    %6364 = vmatprep.subr.bf16.mxu0 0
    %6365 = vmatpush1.bf16.msra.mxu0 %v5700
    %6366 = vmatprep.subr.bf16.mxu0 0
    %6367 = vmatpush1.bf16.msra.mxu0 %v5699
    %6368 = vmatprep.subr.bf16.mxu0 0
    %6369 = vmatpush1.bf16.msra.mxu0 %v5698
    %6370 = vmatprep.subr.bf16.mxu0 0
    %6371 = vmatpush1.bf16.msra.mxu0 %v5697
    %6372 = vmatprep.subr.bf16.mxu0 0
    %6373 = vmatpush1.bf16.msra.mxu0 %v5696
    %6374 = vmatprep.subr.bf16.mxu0 0
    %6375 = vmatpush2.bf16.msra.mxu0 0
    %6376 = vmatprep.subr.bf16.mxu0 0
    %6377 = vmatpush2.bf16.msra.mxu0 0
    %6378 = vmatprep.subr.bf16.mxu0 0
    %6379 = vmatpush2.bf16.msra.mxu0 0
    %6380 = vmatprep.subr.bf16.mxu0 0
    %6381 = vmatpush2.bf16.msra.mxu0 0
    %6382 = vmatprep.subr.bf16.mxu0 0
    %6383 = vmatpush2.bf16.msra.mxu0 0
    %6384 = vmatprep.subr.bf16.mxu0 0
    %6385 = vmatpush2.bf16.msra.mxu0 0
    %6386 = vmatprep.subr.bf16.mxu0 0
    %6387 = vmatpush2.bf16.msra.mxu0 0
    %6388 = vmatprep.subr.bf16.mxu0 0
    %6389 = vmatpush2.bf16.msra.mxu0 0
    %6390 = vmatprep.mubr.bf16.mxu0 0
    %6391 = vmatmul.mubr.bf16.gmra.mxu0 %v6356
    %v6392 = vpop.f32.mrf.mxu0
    %v6393 = vadd.f32 0.0, %v6392
    %v6394 = vpop.f32.mrf.mxu0
    %v6395 = vpop.f32.mrf.mxu0
    %v6396 = vpop.f32.mrf.mxu0
    %6397 = vdwg.mxu0
    %v6398 = vadd.f32 %v6354, %v6393
    %v6399 = vmax.f32 %v6192, %v6398
    %6400 = vmatprep.subr.bf16.mxu0 0
    %6401 = vmatpush1.bf16.msra.mxu0 0
    %6402 = vmatprep.subr.bf16.mxu0 0
    %6403 = vmatpush1.bf16.msra.mxu0 0
    %6404 = vmatprep.subr.bf16.mxu0 0
    %6405 = vmatpush1.bf16.msra.mxu0 %v5810
    %6406 = vmatprep.subr.bf16.mxu0 0
    %6407 = vmatpush1.bf16.msra.mxu0 %v5802
    %6408 = vmatprep.subr.bf16.mxu0 0
    %6409 = vmatpush1.bf16.msra.mxu0 %v5801
    %6410 = vmatprep.subr.bf16.mxu0 0
    %6411 = vmatpush1.bf16.msra.mxu0 %v5800
    %6412 = vmatprep.subr.bf16.mxu0 0
    %6413 = vmatpush1.bf16.msra.mxu0 %v5799
    %6414 = vmatprep.subr.bf16.mxu0 0
    %6415 = vmatpush1.bf16.msra.mxu0 %v5798
    %6416 = vmatprep.subr.bf16.mxu0 0
    %6417 = vmatpush2.bf16.msra.mxu0 0
    %6418 = vmatprep.subr.bf16.mxu0 0
    %6419 = vmatpush2.bf16.msra.mxu0 0
    %6420 = vmatprep.subr.bf16.mxu0 0
    %6421 = vmatpush2.bf16.msra.mxu0 0
    %6422 = vmatprep.subr.bf16.mxu0 0
    %6423 = vmatpush2.bf16.msra.mxu0 0
    %6424 = vmatprep.subr.bf16.mxu0 0
    %6425 = vmatpush2.bf16.msra.mxu0 0
    %6426 = vmatprep.subr.bf16.mxu0 0
    %6427 = vmatpush2.bf16.msra.mxu0 0
    %6428 = vmatprep.subr.bf16.mxu0 0
    %6429 = vmatpush2.bf16.msra.mxu0 0
    %6430 = vmatprep.subr.bf16.mxu0 0
    %6431 = vmatpush2.bf16.msra.mxu0 0
    %6432 = vmatprep.mubr.bf16.mxu0 0
    %6433 = vmatmul.mubr.bf16.gmra.mxu0 %v5526
    %v6434 = vpop.f32.mrf.mxu0
    %v6435 = vadd.f32 0.0, %v6434
    %v6436 = vpop.f32.mrf.mxu0
    %v6437 = vpop.f32.mrf.mxu0
    %v6438 = vpop.f32.mrf.mxu0
    %6439 = vdwg.mxu0
    %6440 = vmatprep.subr.bf16.mxu0 0
    %6441 = vmatpush1.bf16.msra.mxu0 0
    %6442 = vmatprep.subr.bf16.mxu0 0
    %6443 = vmatpush1.bf16.msra.mxu0 0
    %6444 = vmatprep.subr.bf16.mxu0 0
    %6445 = vmatpush1.bf16.msra.mxu0 %v5886
    %6446 = vmatprep.subr.bf16.mxu0 0
    %6447 = vmatpush1.bf16.msra.mxu0 %v5878
    %6448 = vmatprep.subr.bf16.mxu0 0
    %6449 = vmatpush1.bf16.msra.mxu0 %v5877
    %6450 = vmatprep.subr.bf16.mxu0 0
    %6451 = vmatpush1.bf16.msra.mxu0 %v5876
    %6452 = vmatprep.subr.bf16.mxu0 0
    %6453 = vmatpush1.bf16.msra.mxu0 %v5875
    %6454 = vmatprep.subr.bf16.mxu0 0
    %6455 = vmatpush1.bf16.msra.mxu0 %v5874
    %6456 = vmatprep.subr.bf16.mxu0 0
    %6457 = vmatpush2.bf16.msra.mxu0 0
    %6458 = vmatprep.subr.bf16.mxu0 0
    %6459 = vmatpush2.bf16.msra.mxu0 0
    %6460 = vmatprep.subr.bf16.mxu0 0
    %6461 = vmatpush2.bf16.msra.mxu0 0
    %6462 = vmatprep.subr.bf16.mxu0 0
    %6463 = vmatpush2.bf16.msra.mxu0 0
    %6464 = vmatprep.subr.bf16.mxu0 0
    %6465 = vmatpush2.bf16.msra.mxu0 0
    %6466 = vmatprep.subr.bf16.mxu0 0
    %6467 = vmatpush2.bf16.msra.mxu0 0
    %6468 = vmatprep.subr.bf16.mxu0 0
    %6469 = vmatpush2.bf16.msra.mxu0 0
    %6470 = vmatprep.subr.bf16.mxu0 0
    %6471 = vmatpush2.bf16.msra.mxu0 0
    %6472 = vmatprep.mubr.bf16.mxu0 0
    %6473 = vmatmul.mubr.bf16.gmra.mxu0 %v5357
    %v6474 = vpop.f32.mrf.mxu0
    %v6475 = vadd.f32 %v6435, %v6474
    %v6476 = vpop.f32.mrf.mxu0
    %v6477 = vpop.f32.mrf.mxu0
    %v6478 = vpop.f32.mrf.mxu0
    %6479 = vdwg.mxu0
    %6480 = vmatprep.subr.bf16.mxu0 0
    %6481 = vmatpush1.bf16.msra.mxu0 0
    %6482 = vmatprep.subr.bf16.mxu0 0
    %6483 = vmatpush1.bf16.msra.mxu0 0
    %6484 = vmatprep.subr.bf16.mxu0 0
    %6485 = vmatpush1.bf16.msra.mxu0 %v5973
    %6486 = vmatprep.subr.bf16.mxu0 0
    %6487 = vmatpush1.bf16.msra.mxu0 %v5965
    %6488 = vmatprep.subr.bf16.mxu0 0
    %6489 = vmatpush1.bf16.msra.mxu0 %v5964
    %6490 = vmatprep.subr.bf16.mxu0 0
    %6491 = vmatpush1.bf16.msra.mxu0 %v5963
    %6492 = vmatprep.subr.bf16.mxu0 0
    %6493 = vmatpush1.bf16.msra.mxu0 %v5962
    %6494 = vmatprep.subr.bf16.mxu0 0
    %6495 = vmatpush1.bf16.msra.mxu0 %v5961
    %6496 = vmatprep.subr.bf16.mxu0 0
    %6497 = vmatpush2.bf16.msra.mxu0 0
    %6498 = vmatprep.subr.bf16.mxu0 0
    %6499 = vmatpush2.bf16.msra.mxu0 0
    %6500 = vmatprep.subr.bf16.mxu0 0
    %6501 = vmatpush2.bf16.msra.mxu0 0
    %6502 = vmatprep.subr.bf16.mxu0 0
    %6503 = vmatpush2.bf16.msra.mxu0 0
    %6504 = vmatprep.subr.bf16.mxu0 0
    %6505 = vmatpush2.bf16.msra.mxu0 0
    %6506 = vmatprep.subr.bf16.mxu0 0
    %6507 = vmatpush2.bf16.msra.mxu0 0
    %6508 = vmatprep.subr.bf16.mxu0 0
    %6509 = vmatpush2.bf16.msra.mxu0 0
    %6510 = vmatprep.subr.bf16.mxu0 0
    %6511 = vmatpush2.bf16.msra.mxu0 0
    %6512 = vmatprep.mubr.bf16.mxu0 0
    %6513 = vmatmul.mubr.bf16.gmra.mxu0 %v5617
    %v6514 = vpop.f32.mrf.mxu0
    %v6515 = vadd.f32 0.0, %v6514
    %v6516 = vpop.f32.mrf.mxu0
    %v6517 = vpop.f32.mrf.mxu0
    %v6518 = vpop.f32.mrf.mxu0
    %6519 = vdwg.mxu0
    %v6520 = vadd.f32 %v6475, %v6515
    %6521 = vmatprep.subr.bf16.mxu0 0
    %6522 = vmatpush1.bf16.msra.mxu0 0
    %6523 = vmatprep.subr.bf16.mxu0 0
    %6524 = vmatpush1.bf16.msra.mxu0 0
    %6525 = vmatprep.subr.bf16.mxu0 0
    %6526 = vmatpush1.bf16.msra.mxu0 %v6061
    %6527 = vmatprep.subr.bf16.mxu0 0
    %6528 = vmatpush1.bf16.msra.mxu0 %v6053
    %6529 = vmatprep.subr.bf16.mxu0 0
    %6530 = vmatpush1.bf16.msra.mxu0 %v6052
    %6531 = vmatprep.subr.bf16.mxu0 0
    %6532 = vmatpush1.bf16.msra.mxu0 %v6051
    %6533 = vmatprep.subr.bf16.mxu0 0
    %6534 = vmatpush1.bf16.msra.mxu0 %v6050
    %6535 = vmatprep.subr.bf16.mxu0 0
    %6536 = vmatpush1.bf16.msra.mxu0 %v6049
    %6537 = vmatprep.subr.bf16.mxu0 0
    %6538 = vmatpush2.bf16.msra.mxu0 0
    %6539 = vmatprep.subr.bf16.mxu0 0
    %6540 = vmatpush2.bf16.msra.mxu0 0
    %6541 = vmatprep.subr.bf16.mxu0 0
    %6542 = vmatpush2.bf16.msra.mxu0 0
    %6543 = vmatprep.subr.bf16.mxu0 0
    %6544 = vmatpush2.bf16.msra.mxu0 0
    %6545 = vmatprep.subr.bf16.mxu0 0
    %6546 = vmatpush2.bf16.msra.mxu0 0
    %6547 = vmatprep.subr.bf16.mxu0 0
    %6548 = vmatpush2.bf16.msra.mxu0 0
    %6549 = vmatprep.subr.bf16.mxu0 0
    %6550 = vmatpush2.bf16.msra.mxu0 0
    %6551 = vmatprep.subr.bf16.mxu0 0
    %6552 = vmatpush2.bf16.msra.mxu0 0
    %6553 = vmatprep.mubr.bf16.mxu0 0
    %6554 = vmatmul.mubr.bf16.gmra.mxu0 %v5708
    %v6555 = vpop.f32.mrf.mxu0
    %v6556 = vadd.f32 0.0, %v6555
    %v6557 = vpop.f32.mrf.mxu0
    %v6558 = vpop.f32.mrf.mxu0
    %v6559 = vpop.f32.mrf.mxu0
    %6560 = vdwg.mxu0
    %v6561 = vadd.f32 %v6520, %v6556
    %6562 = vmatprep.subr.bf16.mxu0 0
    %6563 = vmatpush1.bf16.msra.mxu0 0
    %6564 = vmatprep.subr.bf16.mxu0 0
    %6565 = vmatpush1.bf16.msra.mxu0 0
    %6566 = vmatprep.subr.bf16.mxu0 0
    %6567 = vmatpush1.bf16.msra.mxu0 %v6149
    %6568 = vmatprep.subr.bf16.mxu0 0
    %6569 = vmatpush1.bf16.msra.mxu0 %v6141
    %6570 = vmatprep.subr.bf16.mxu0 0
    %6571 = vmatpush1.bf16.msra.mxu0 %v6140
    %6572 = vmatprep.subr.bf16.mxu0 0
    %6573 = vmatpush1.bf16.msra.mxu0 %v6139
    %6574 = vmatprep.subr.bf16.mxu0 0
    %6575 = vmatpush1.bf16.msra.mxu0 %v6138
    %6576 = vmatprep.subr.bf16.mxu0 0
    %6577 = vmatpush1.bf16.msra.mxu0 %v6137
    %6578 = vmatprep.subr.bf16.mxu0 0
    %6579 = vmatpush2.bf16.msra.mxu0 0
    %6580 = vmatprep.subr.bf16.mxu0 0
    %6581 = vmatpush2.bf16.msra.mxu0 0
    %6582 = vmatprep.subr.bf16.mxu0 0
    %6583 = vmatpush2.bf16.msra.mxu0 0
    %6584 = vmatprep.subr.bf16.mxu0 0
    %6585 = vmatpush2.bf16.msra.mxu0 0
    %6586 = vmatprep.subr.bf16.mxu0 0
    %6587 = vmatpush2.bf16.msra.mxu0 0
    %6588 = vmatprep.subr.bf16.mxu0 0
    %6589 = vmatpush2.bf16.msra.mxu0 0
    %6590 = vmatprep.subr.bf16.mxu0 0
    %6591 = vmatpush2.bf16.msra.mxu0 0
    %6592 = vmatprep.subr.bf16.mxu0 0
    %6593 = vmatpush2.bf16.msra.mxu0 0
    %6594 = vmatprep.mubr.bf16.mxu0 0
    %6595 = vmatmul.mubr.bf16.gmra.mxu0 %v6356
    %v6596 = vpop.f32.mrf.mxu0
    %v6597 = vadd.f32 0.0, %v6596
    %v6598 = vpop.f32.mrf.mxu0
    %v6599 = vpop.f32.mrf.mxu0
    %v6600 = vpop.f32.mrf.mxu0
    %6601 = vdwg.mxu0
    %v6602 = vadd.f32 %v6561, %v6597
    %v6603 = vmax.f32 %v6399, %v6602
    %v6604 = vld [vmem:[%s6] sm:$0x1]
    %v6606 = vlaneseq
    %v6607 = vshrl.u32 %v6606, 7
    %v6608 = vsub.s32 0, %v6607
    %v6609 = vrot.slane %v6604, %v6608
    %v6611 = vadd.f32 %v6603, %v6609
    %v6612 = vmax.f32 %v6611, 0.0
    %v6613 = vpack.c.bf16 %v6612, %v6612
    %v6614 = vld [vmem:[%s7] sm:$0xf]
    %v6615 = vld [vmem:[%s7 + $0x4] sm:$0xf]
    %v6616 = vld [vmem:[%s7 + $0x8] sm:$0xf]
    %v6617 = vld [vmem:[%s7 + $0xc] sm:$0xf]
    %v6618 = vld [vmem:[%s7 + $0x10] sm:$0xf]
    %v6619 = vld [vmem:[%s7 + $0x14] sm:$0xf]
    %v6620 = vld [vmem:[%s7 + $0x18] sm:$0xf]
    %v6621 = vld [vmem:[%s7 + $0x1c] sm:$0xf]
    %v6622 = vld [vmem:[%s7 + $0x20] sm:$0xf]
    %v6623 = vld [vmem:[%s7 + $0x24] sm:$0xf]
    %v6624 = vld [vmem:[%s3033] sm:$0xf]
    %v6625 = vld [vmem:[%s3033 + $0x4] sm:$0xf]
    %v6626 = vld [vmem:[%s3033 + $0x8] sm:$0xf]
    %v6627 = vld [vmem:[%s3033 + $0xc] sm:$0xf]
    %v6628 = vld [vmem:[%s3033 + $0x10] sm:$0xf]
    %v6629 = vld [vmem:[%s3033 + $0x14] sm:$0xf]
    %v6630 = vld [vmem:[%s3033 + $0x18] sm:$0xf]
    %v6631 = vld [vmem:[%s3033 + $0x1c] sm:$0xf]
    %v6632 = vld [vmem:[%s3033 + $0x20] sm:$0xf]
    %v6633 = vld [vmem:[%s3033 + $0x24] sm:$0xf]
    %v6635 = vshrl.u32 %v6613, 16
    %v6647 = vunpack.c.l.b16 %v6624
    %v6648 = vunpack.c.l.b16 %v6625
    %v6649 = vunpack.c.l.b16 %v6626
    %v6650 = vunpack.c.l.b16 %v6627
    %v6651 = vunpack.c.l.b16 %v6628
    %v6652 = vunpack.c.l.b16 %v6629
    %v6653 = vunpack.c.l.b16 %v6630
    %v6654 = vunpack.c.l.b16 %v6631
    %v6655 = vunpack.c.l.b16 %v6632
    %v6656 = vunpack.c.l.b16 %v6633
    %v6657 = vpack.c.b16 %v6648, %v6647
    %v6658 = vpack.c.b16 %v6650, %v6649
    %v6659 = vpack.c.b16 %v6652, %v6651
    %v6660 = vpack.c.b16 %v6654, %v6653
    %v6661 = vpack.c.b16 %v6656, %v6655
    %v6668 = vsel %vm3077, %v6635, 0
    %6670 = vmatprep.subr.bf16.mxu0 0
    %6671 = vmatpush1.bf16.msra.mxu0 0
    %6672 = vmatprep.subr.bf16.mxu0 0
    %6673 = vmatpush1.bf16.msra.mxu0 0
    %6674 = vmatprep.subr.bf16.mxu0 0
    %6675 = vmatpush1.bf16.msra.mxu0 0
    %6676 = vmatprep.subr.bf16.mxu0 0
    %6677 = vmatpush1.bf16.msra.mxu0 %v6661
    %6678 = vmatprep.subr.bf16.mxu0 0
    %6679 = vmatpush1.bf16.msra.mxu0 %v6660
    %6680 = vmatprep.subr.bf16.mxu0 0
    %6681 = vmatpush1.bf16.msra.mxu0 %v6659
    %6682 = vmatprep.subr.bf16.mxu0 0
    %6683 = vmatpush1.bf16.msra.mxu0 %v6658
    %6684 = vmatprep.subr.bf16.mxu0 0
    %6685 = vmatpush1.bf16.msra.mxu0 %v6657
    %6686 = vmatprep.subr.bf16.mxu0 0
    %6687 = vmatpush2.bf16.msra.mxu0 0
    %6688 = vmatprep.subr.bf16.mxu0 0
    %6689 = vmatpush2.bf16.msra.mxu0 0
    %6690 = vmatprep.subr.bf16.mxu0 0
    %6691 = vmatpush2.bf16.msra.mxu0 0
    %6692 = vmatprep.subr.bf16.mxu0 0
    %6693 = vmatpush2.bf16.msra.mxu0 0
    %6694 = vmatprep.subr.bf16.mxu0 0
    %6695 = vmatpush2.bf16.msra.mxu0 0
    %6696 = vmatprep.subr.bf16.mxu0 0
    %6697 = vmatpush2.bf16.msra.mxu0 0
    %6698 = vmatprep.subr.bf16.mxu0 0
    %6699 = vmatpush2.bf16.msra.mxu0 0
    %6700 = vmatprep.subr.bf16.mxu0 0
    %6701 = vmatpush2.bf16.msra.mxu0 0
    %6702 = vmatprep.mubr.bf16.mxu0 0
    %6703 = vmatmul.mubr.bf16.gmra.mxu0 %v6668
    %v6704 = vpop.f32.mrf.mxu0
    %v6705 = vadd.f32 0.0, %v6704
    %v6706 = vpop.f32.mrf.mxu0
    %v6707 = vpop.f32.mrf.mxu0
    %v6708 = vpop.f32.mrf.mxu0
    %6709 = vdwg.mxu0
    %v6720 = vunpack.c.l.b16 %v6614
    %v6721 = vunpack.c.l.b16 %v6615
    %v6722 = vunpack.c.l.b16 %v6616
    %v6723 = vunpack.c.l.b16 %v6617
    %v6724 = vunpack.c.l.b16 %v6618
    %v6725 = vunpack.c.l.b16 %v6619
    %v6726 = vunpack.c.l.b16 %v6620
    %v6727 = vunpack.c.l.b16 %v6621
    %v6728 = vunpack.c.l.b16 %v6622
    %v6729 = vunpack.c.l.b16 %v6623
    %v6730 = vpack.c.b16 %v6721, %v6720
    %v6731 = vpack.c.b16 %v6723, %v6722
    %v6732 = vpack.c.b16 %v6725, %v6724
    %v6733 = vpack.c.b16 %v6727, %v6726
    %v6734 = vpack.c.b16 %v6729, %v6728
    %v6740 = vsel %vm3077, %v6613, 0
    %6742 = vmatprep.subr.bf16.mxu0 0
    %6743 = vmatpush1.bf16.msra.mxu0 0
    %6744 = vmatprep.subr.bf16.mxu0 0
    %6745 = vmatpush1.bf16.msra.mxu0 0
    %6746 = vmatprep.subr.bf16.mxu0 0
    %6747 = vmatpush1.bf16.msra.mxu0 0
    %6748 = vmatprep.subr.bf16.mxu0 0
    %6749 = vmatpush1.bf16.msra.mxu0 %v6734
    %6750 = vmatprep.subr.bf16.mxu0 0
    %6751 = vmatpush1.bf16.msra.mxu0 %v6733
    %6752 = vmatprep.subr.bf16.mxu0 0
    %6753 = vmatpush1.bf16.msra.mxu0 %v6732
    %6754 = vmatprep.subr.bf16.mxu0 0
    %6755 = vmatpush1.bf16.msra.mxu0 %v6731
    %6756 = vmatprep.subr.bf16.mxu0 0
    %6757 = vmatpush1.bf16.msra.mxu0 %v6730
    %6758 = vmatprep.subr.bf16.mxu0 0
    %6759 = vmatpush2.bf16.msra.mxu0 0
    %6760 = vmatprep.subr.bf16.mxu0 0
    %6761 = vmatpush2.bf16.msra.mxu0 0
    %6762 = vmatprep.subr.bf16.mxu0 0
    %6763 = vmatpush2.bf16.msra.mxu0 0
    %6764 = vmatprep.subr.bf16.mxu0 0
    %6765 = vmatpush2.bf16.msra.mxu0 0
    %6766 = vmatprep.subr.bf16.mxu0 0
    %6767 = vmatpush2.bf16.msra.mxu0 0
    %6768 = vmatprep.subr.bf16.mxu0 0
    %6769 = vmatpush2.bf16.msra.mxu0 0
    %6770 = vmatprep.subr.bf16.mxu0 0
    %6771 = vmatpush2.bf16.msra.mxu0 0
    %6772 = vmatprep.subr.bf16.mxu0 0
    %6773 = vmatpush2.bf16.msra.mxu0 0
    %6774 = vmatprep.mubr.bf16.mxu0 0
    %6775 = vmatmul.mubr.bf16.gmra.mxu0 %v6740
    %v6776 = vpop.f32.mrf.mxu0
    %v6777 = vadd.f32 %v6705, %v6776
    %v6778 = vpop.f32.mrf.mxu0
    %v6779 = vpop.f32.mrf.mxu0
    %v6780 = vpop.f32.mrf.mxu0
    %6781 = vdwg.mxu0
    %v6782 = vld [vmem:[%s3193] sm:$0xf]
    %v6783 = vld [vmem:[%s3193 + $0x4] sm:$0xf]
    %v6784 = vld [vmem:[%s3193 + $0x8] sm:$0xf]
    %v6785 = vld [vmem:[%s3193 + $0xc] sm:$0xf]
    %v6786 = vld [vmem:[%s3193 + $0x10] sm:$0xf]
    %v6787 = vld [vmem:[%s3193 + $0x14] sm:$0xf]
    %v6788 = vld [vmem:[%s3193 + $0x18] sm:$0xf]
    %v6789 = vld [vmem:[%s3193 + $0x1c] sm:$0xf]
    %v6790 = vld [vmem:[%s3193 + $0x20] sm:$0xf]
    %v6791 = vld [vmem:[%s3193 + $0x24] sm:$0xf]
    %v6793 = vrot.slane %v6613, 1
    %v6804 = vunpack.c.l.b16 %v6782
    %v6805 = vunpack.c.l.b16 %v6783
    %v6806 = vunpack.c.l.b16 %v6784
    %v6807 = vunpack.c.l.b16 %v6785
    %v6808 = vunpack.c.l.b16 %v6786
    %v6809 = vunpack.c.l.b16 %v6787
    %v6810 = vunpack.c.l.b16 %v6788
    %v6811 = vunpack.c.l.b16 %v6789
    %v6812 = vunpack.c.l.b16 %v6790
    %v6813 = vunpack.c.l.b16 %v6791
    %v6814 = vpack.c.b16 %v6805, %v6804
    %v6815 = vpack.c.b16 %v6807, %v6806
    %v6816 = vpack.c.b16 %v6809, %v6808
    %v6817 = vpack.c.b16 %v6811, %v6810
    %v6818 = vpack.c.b16 %v6813, %v6812
    %v6825 = vsel %vm3077, %v6793, 0
    %6827 = vmatprep.subr.bf16.mxu0 0
    %6828 = vmatpush1.bf16.msra.mxu0 0
    %6829 = vmatprep.subr.bf16.mxu0 0
    %6830 = vmatpush1.bf16.msra.mxu0 0
    %6831 = vmatprep.subr.bf16.mxu0 0
    %6832 = vmatpush1.bf16.msra.mxu0 0
    %6833 = vmatprep.subr.bf16.mxu0 0
    %6834 = vmatpush1.bf16.msra.mxu0 %v6818
    %6835 = vmatprep.subr.bf16.mxu0 0
    %6836 = vmatpush1.bf16.msra.mxu0 %v6817
    %6837 = vmatprep.subr.bf16.mxu0 0
    %6838 = vmatpush1.bf16.msra.mxu0 %v6816
    %6839 = vmatprep.subr.bf16.mxu0 0
    %6840 = vmatpush1.bf16.msra.mxu0 %v6815
    %6841 = vmatprep.subr.bf16.mxu0 0
    %6842 = vmatpush1.bf16.msra.mxu0 %v6814
    %6843 = vmatprep.subr.bf16.mxu0 0
    %6844 = vmatpush2.bf16.msra.mxu0 0
    %6845 = vmatprep.subr.bf16.mxu0 0
    %6846 = vmatpush2.bf16.msra.mxu0 0
    %6847 = vmatprep.subr.bf16.mxu0 0
    %6848 = vmatpush2.bf16.msra.mxu0 0
    %6849 = vmatprep.subr.bf16.mxu0 0
    %6850 = vmatpush2.bf16.msra.mxu0 0
    %6851 = vmatprep.subr.bf16.mxu0 0
    %6852 = vmatpush2.bf16.msra.mxu0 0
    %6853 = vmatprep.subr.bf16.mxu0 0
    %6854 = vmatpush2.bf16.msra.mxu0 0
    %6855 = vmatprep.subr.bf16.mxu0 0
    %6856 = vmatpush2.bf16.msra.mxu0 0
    %6857 = vmatprep.subr.bf16.mxu0 0
    %6858 = vmatpush2.bf16.msra.mxu0 0
    %6859 = vmatprep.mubr.bf16.mxu0 0
    %6860 = vmatmul.mubr.bf16.gmra.mxu0 %v6825
    %v6861 = vpop.f32.mrf.mxu0
    %v6862 = vadd.f32 0.0, %v6861
    %v6863 = vpop.f32.mrf.mxu0
    %v6864 = vpop.f32.mrf.mxu0
    %v6865 = vpop.f32.mrf.mxu0
    %6866 = vdwg.mxu0
    %v6867 = vadd.f32 %v6777, %v6862
    %v6868 = vld [vmem:[%s3280] sm:$0xf]
    %v6869 = vld [vmem:[%s3280 + $0x4] sm:$0xf]
    %v6870 = vld [vmem:[%s3280 + $0x8] sm:$0xf]
    %v6871 = vld [vmem:[%s3280 + $0xc] sm:$0xf]
    %v6872 = vld [vmem:[%s3280 + $0x10] sm:$0xf]
    %v6873 = vld [vmem:[%s3280 + $0x14] sm:$0xf]
    %v6874 = vld [vmem:[%s3280 + $0x18] sm:$0xf]
    %v6875 = vld [vmem:[%s3280 + $0x1c] sm:$0xf]
    %v6876 = vld [vmem:[%s3280 + $0x20] sm:$0xf]
    %v6877 = vld [vmem:[%s3280 + $0x24] sm:$0xf]
    %v6878 = vrot.slane %v6635, 1
    %v6889 = vunpack.c.l.b16 %v6868
    %v6890 = vunpack.c.l.b16 %v6869
    %v6891 = vunpack.c.l.b16 %v6870
    %v6892 = vunpack.c.l.b16 %v6871
    %v6893 = vunpack.c.l.b16 %v6872
    %v6894 = vunpack.c.l.b16 %v6873
    %v6895 = vunpack.c.l.b16 %v6874
    %v6896 = vunpack.c.l.b16 %v6875
    %v6897 = vunpack.c.l.b16 %v6876
    %v6898 = vunpack.c.l.b16 %v6877
    %v6899 = vpack.c.b16 %v6890, %v6889
    %v6900 = vpack.c.b16 %v6892, %v6891
    %v6901 = vpack.c.b16 %v6894, %v6893
    %v6902 = vpack.c.b16 %v6896, %v6895
    %v6903 = vpack.c.b16 %v6898, %v6897
    %v6910 = vsel %vm3077, %v6878, 0
    %6912 = vmatprep.subr.bf16.mxu0 0
    %6913 = vmatpush1.bf16.msra.mxu0 0
    %6914 = vmatprep.subr.bf16.mxu0 0
    %6915 = vmatpush1.bf16.msra.mxu0 0
    %6916 = vmatprep.subr.bf16.mxu0 0
    %6917 = vmatpush1.bf16.msra.mxu0 0
    %6918 = vmatprep.subr.bf16.mxu0 0
    %6919 = vmatpush1.bf16.msra.mxu0 %v6903
    %6920 = vmatprep.subr.bf16.mxu0 0
    %6921 = vmatpush1.bf16.msra.mxu0 %v6902
    %6922 = vmatprep.subr.bf16.mxu0 0
    %6923 = vmatpush1.bf16.msra.mxu0 %v6901
    %6924 = vmatprep.subr.bf16.mxu0 0
    %6925 = vmatpush1.bf16.msra.mxu0 %v6900
    %6926 = vmatprep.subr.bf16.mxu0 0
    %6927 = vmatpush1.bf16.msra.mxu0 %v6899
    %6928 = vmatprep.subr.bf16.mxu0 0
    %6929 = vmatpush2.bf16.msra.mxu0 0
    %6930 = vmatprep.subr.bf16.mxu0 0
    %6931 = vmatpush2.bf16.msra.mxu0 0
    %6932 = vmatprep.subr.bf16.mxu0 0
    %6933 = vmatpush2.bf16.msra.mxu0 0
    %6934 = vmatprep.subr.bf16.mxu0 0
    %6935 = vmatpush2.bf16.msra.mxu0 0
    %6936 = vmatprep.subr.bf16.mxu0 0
    %6937 = vmatpush2.bf16.msra.mxu0 0
    %6938 = vmatprep.subr.bf16.mxu0 0
    %6939 = vmatpush2.bf16.msra.mxu0 0
    %6940 = vmatprep.subr.bf16.mxu0 0
    %6941 = vmatpush2.bf16.msra.mxu0 0
    %6942 = vmatprep.subr.bf16.mxu0 0
    %6943 = vmatpush2.bf16.msra.mxu0 0
    %6944 = vmatprep.mubr.bf16.mxu0 0
    %6945 = vmatmul.mubr.bf16.gmra.mxu0 %v6910
    %v6946 = vpop.f32.mrf.mxu0
    %v6947 = vadd.f32 0.0, %v6946
    %v6948 = vpop.f32.mrf.mxu0
    %v6949 = vpop.f32.mrf.mxu0
    %v6950 = vpop.f32.mrf.mxu0
    %6951 = vdwg.mxu0
    %v6952 = vadd.f32 %v6867, %v6947
    %v6953 = vld [vmem:[%s3366] sm:$0xf]
    %v6954 = vld [vmem:[%s3366 + $0x4] sm:$0xf]
    %v6955 = vld [vmem:[%s3366 + $0x8] sm:$0xf]
    %v6956 = vld [vmem:[%s3366 + $0xc] sm:$0xf]
    %v6957 = vld [vmem:[%s3366 + $0x10] sm:$0xf]
    %v6958 = vld [vmem:[%s3366 + $0x14] sm:$0xf]
    %v6959 = vld [vmem:[%s3366 + $0x18] sm:$0xf]
    %v6960 = vld [vmem:[%s3366 + $0x1c] sm:$0xf]
    %v6961 = vld [vmem:[%s3366 + $0x20] sm:$0xf]
    %v6962 = vld [vmem:[%s3366 + $0x24] sm:$0xf]
    %v6963 = vrot.slane %v6613, 2
    %v6974 = vunpack.c.l.b16 %v6953
    %v6975 = vunpack.c.l.b16 %v6954
    %v6976 = vunpack.c.l.b16 %v6955
    %v6977 = vunpack.c.l.b16 %v6956
    %v6978 = vunpack.c.l.b16 %v6957
    %v6979 = vunpack.c.l.b16 %v6958
    %v6980 = vunpack.c.l.b16 %v6959
    %v6981 = vunpack.c.l.b16 %v6960
    %v6982 = vunpack.c.l.b16 %v6961
    %v6983 = vunpack.c.l.b16 %v6962
    %v6984 = vpack.c.b16 %v6975, %v6974
    %v6985 = vpack.c.b16 %v6977, %v6976
    %v6986 = vpack.c.b16 %v6979, %v6978
    %v6987 = vpack.c.b16 %v6981, %v6980
    %v6988 = vpack.c.b16 %v6983, %v6982
    %v6995 = vsel %vm3077, %v6963, 0
    %6997 = vmatprep.subr.bf16.mxu0 0
    %6998 = vmatpush1.bf16.msra.mxu0 0
    %6999 = vmatprep.subr.bf16.mxu0 0
    %7000 = vmatpush1.bf16.msra.mxu0 0
    %7001 = vmatprep.subr.bf16.mxu0 0
    %7002 = vmatpush1.bf16.msra.mxu0 0
    %7003 = vmatprep.subr.bf16.mxu0 0
    %7004 = vmatpush1.bf16.msra.mxu0 %v6988
    %7005 = vmatprep.subr.bf16.mxu0 0
    %7006 = vmatpush1.bf16.msra.mxu0 %v6987
    %7007 = vmatprep.subr.bf16.mxu0 0
    %7008 = vmatpush1.bf16.msra.mxu0 %v6986
    %7009 = vmatprep.subr.bf16.mxu0 0
    %7010 = vmatpush1.bf16.msra.mxu0 %v6985
    %7011 = vmatprep.subr.bf16.mxu0 0
    %7012 = vmatpush1.bf16.msra.mxu0 %v6984
    %7013 = vmatprep.subr.bf16.mxu0 0
    %7014 = vmatpush2.bf16.msra.mxu0 0
    %7015 = vmatprep.subr.bf16.mxu0 0
    %7016 = vmatpush2.bf16.msra.mxu0 0
    %7017 = vmatprep.subr.bf16.mxu0 0
    %7018 = vmatpush2.bf16.msra.mxu0 0
    %7019 = vmatprep.subr.bf16.mxu0 0
    %7020 = vmatpush2.bf16.msra.mxu0 0
    %7021 = vmatprep.subr.bf16.mxu0 0
    %7022 = vmatpush2.bf16.msra.mxu0 0
    %7023 = vmatprep.subr.bf16.mxu0 0
    %7024 = vmatpush2.bf16.msra.mxu0 0
    %7025 = vmatprep.subr.bf16.mxu0 0
    %7026 = vmatpush2.bf16.msra.mxu0 0
    %7027 = vmatprep.subr.bf16.mxu0 0
    %7028 = vmatpush2.bf16.msra.mxu0 0
    %7029 = vmatprep.mubr.bf16.mxu0 0
    %7030 = vmatmul.mubr.bf16.gmra.mxu0 %v6995
    %v7031 = vpop.f32.mrf.mxu0
    %v7032 = vadd.f32 0.0, %v7031
    %v7033 = vpop.f32.mrf.mxu0
    %v7034 = vpop.f32.mrf.mxu0
    %v7035 = vpop.f32.mrf.mxu0
    %7036 = vdwg.mxu0
    %v7037 = vadd.f32 %v6952, %v7032
    %v7038 = vld [vmem:[%s8] sm:$0x1]
    %v7039 = vadd.f32 %v7037, %v7038
    %v7040 = vmax.f32 %v7039, 0.0
    %v7041 = vpack.c.bf16 %v7040, %v7040
    %v7042 = vld [vmem:[%s9] sm:$0xf]
    %v7043 = vld [vmem:[%s9 + $0x4] sm:$0xf]
    %v7044 = vld [vmem:[%s9 + $0x8] sm:$0xf]
    %v7045 = vld [vmem:[%s9 + $0xc] sm:$0xf]
    %v7046 = vld [vmem:[%s9 + $0x10] sm:$0xf]
    %v7047 = vld [vmem:[%s9 + $0x14] sm:$0xf]
    %v7048 = vld [vmem:[%s9 + $0x18] sm:$0xf]
    %v7049 = vld [vmem:[%s9 + $0x1c] sm:$0xf]
    %v7050 = vld [vmem:[%s9 + $0x20] sm:$0xf]
    %v7051 = vld [vmem:[%s9 + $0x24] sm:$0xf]
    %v7052 = vld [vmem:[%s9 + $0x28] sm:$0xf]
    %v7053 = vld [vmem:[%s9 + $0x2c] sm:$0xf]
    %v7054 = vld [vmem:[%s9 + $0x30] sm:$0xf]
    %v7055 = vld [vmem:[%s9 + $0x34] sm:$0xf]
    %v7056 = vld [vmem:[%s9 + $0x38] sm:$0xf]
    %v7057 = vld [vmem:[%s9 + $0x3c] sm:$0xf]
    %v7058 = vld [vmem:[%s10] sm:$0x1]
    %v7075 = vunpack.c.l.b16 %v7042
    %v7076 = vunpack.c.l.b16 %v7043
    %v7077 = vunpack.c.l.b16 %v7044
    %v7078 = vunpack.c.l.b16 %v7045
    %v7079 = vunpack.c.l.b16 %v7046
    %v7080 = vunpack.c.l.b16 %v7047
    %v7081 = vunpack.c.l.b16 %v7048
    %v7082 = vunpack.c.l.b16 %v7049
    %v7083 = vunpack.c.l.b16 %v7050
    %v7084 = vunpack.c.l.b16 %v7051
    %v7085 = vunpack.c.l.b16 %v7052
    %v7086 = vunpack.c.l.b16 %v7053
    %v7087 = vunpack.c.l.b16 %v7054
    %v7088 = vunpack.c.l.b16 %v7055
    %v7089 = vunpack.c.l.b16 %v7056
    %v7090 = vunpack.c.l.b16 %v7057
    %v7091 = vpack.c.b16 %v7076, %v7075
    %v7092 = vpack.c.b16 %v7078, %v7077
    %v7093 = vpack.c.b16 %v7080, %v7079
    %v7094 = vpack.c.b16 %v7082, %v7081
    %v7095 = vpack.c.b16 %v7084, %v7083
    %v7096 = vpack.c.b16 %v7086, %v7085
    %v7097 = vpack.c.b16 %v7088, %v7087
    %v7098 = vpack.c.b16 %v7090, %v7089
    %7107 = vmatprep.subr.bf16.mxu0 0
    %7108 = vmatpush1.bf16.msra.mxu0 %v7098
    %7109 = vmatprep.subr.bf16.mxu0 0
    %7110 = vmatpush1.bf16.msra.mxu0 %v7097
    %7111 = vmatprep.subr.bf16.mxu0 0
    %7112 = vmatpush1.bf16.msra.mxu0 %v7096
    %7113 = vmatprep.subr.bf16.mxu0 0
    %7114 = vmatpush1.bf16.msra.mxu0 %v7095
    %7115 = vmatprep.subr.bf16.mxu0 0
    %7116 = vmatpush1.bf16.msra.mxu0 %v7094
    %7117 = vmatprep.subr.bf16.mxu0 0
    %7118 = vmatpush1.bf16.msra.mxu0 %v7093
    %7119 = vmatprep.subr.bf16.mxu0 0
    %7120 = vmatpush1.bf16.msra.mxu0 %v7092
    %7121 = vmatprep.subr.bf16.mxu0 0
    %7122 = vmatpush1.bf16.msra.mxu0 %v7091
    %7123 = vmatprep.subr.bf16.mxu0 0
    %7124 = vmatpush2.bf16.msra.mxu0 0
    %7125 = vmatprep.subr.bf16.mxu0 0
    %7126 = vmatpush2.bf16.msra.mxu0 0
    %7127 = vmatprep.subr.bf16.mxu0 0
    %7128 = vmatpush2.bf16.msra.mxu0 0
    %7129 = vmatprep.subr.bf16.mxu0 0
    %7130 = vmatpush2.bf16.msra.mxu0 0
    %7131 = vmatprep.subr.bf16.mxu0 0
    %7132 = vmatpush2.bf16.msra.mxu0 0
    %7133 = vmatprep.subr.bf16.mxu0 0
    %7134 = vmatpush2.bf16.msra.mxu0 0
    %7135 = vmatprep.subr.bf16.mxu0 0
    %7136 = vmatpush2.bf16.msra.mxu0 0
    %7137 = vmatprep.subr.bf16.mxu0 0
    %7138 = vmatpush2.bf16.msra.mxu0 0
    %7139 = vmatprep.mubr.bf16.mxu0 0
    %7140 = vmatmul.mubr.bf16.gmra.mxu0 %v7041
    %v7141 = vpop.f32.mrf.mxu0
    %v7142 = vadd.f32 %v7058, %v7141
    %v7143 = vpop.f32.mrf.mxu0
    %v7144 = vpop.f32.mrf.mxu0
    %v7145 = vpop.f32.mrf.mxu0
    %7146 = vdwg.mxu0
    %v7147 = vmax.f32 %v7142, 0.0
    %v7148 = vpack.c.bf16 %v7147, %v7147
    %v7149 = vld [vmem:[%s11] sm:$0xf]
    %v7150 = vld [vmem:[%s11 + $0x4] sm:$0xf]
    %v7151 = vld [vmem:[%s11 + $0x8] sm:$0xf]
    %v7152 = vld [vmem:[%s11 + $0xc] sm:$0xf]
    %v7153 = vld [vmem:[%s11 + $0x10] sm:$0xf]
    %v7154 = vld [vmem:[%s11 + $0x14] sm:$0xf]
    %v7155 = vld [vmem:[%s11 + $0x18] sm:$0xf]
    %v7156 = vld [vmem:[%s11 + $0x1c] sm:$0xf]
    %v7157 = vld [vmem:[%s11 + $0x20] sm:$0xf]
    %v7158 = vld [vmem:[%s11 + $0x24] sm:$0xf]
    %v7159 = vld [vmem:[%s11 + $0x28] sm:$0xf]
    %v7160 = vld [vmem:[%s11 + $0x2c] sm:$0xf]
    %v7161 = vld [vmem:[%s11 + $0x30] sm:$0xf]
    %v7162 = vld [vmem:[%s11 + $0x34] sm:$0xf]
    %v7163 = vld [vmem:[%s11 + $0x38] sm:$0xf]
    %v7164 = vld [vmem:[%s11 + $0x3c] sm:$0xf]
    %v7165 = vld [vmem:[%s12] sm:$0x1]
    %v7182 = vunpack.c.l.b16 %v7149
    %v7183 = vunpack.c.l.b16 %v7150
    %v7184 = vunpack.c.l.b16 %v7151
    %v7185 = vunpack.c.l.b16 %v7152
    %v7186 = vunpack.c.l.b16 %v7153
    %v7187 = vunpack.c.l.b16 %v7154
    %v7188 = vunpack.c.l.b16 %v7155
    %v7189 = vunpack.c.l.b16 %v7156
    %v7190 = vunpack.c.l.b16 %v7157
    %v7191 = vunpack.c.l.b16 %v7158
    %v7192 = vunpack.c.l.b16 %v7159
    %v7193 = vunpack.c.l.b16 %v7160
    %v7194 = vunpack.c.l.b16 %v7161
    %v7195 = vunpack.c.l.b16 %v7162
    %v7196 = vunpack.c.l.b16 %v7163
    %v7197 = vunpack.c.l.b16 %v7164
    %v7198 = vpack.c.b16 %v7183, %v7182
    %v7199 = vpack.c.b16 %v7185, %v7184
    %v7200 = vpack.c.b16 %v7187, %v7186
    %v7201 = vpack.c.b16 %v7189, %v7188
    %v7202 = vpack.c.b16 %v7191, %v7190
    %v7203 = vpack.c.b16 %v7193, %v7192
    %v7204 = vpack.c.b16 %v7195, %v7194
    %v7205 = vpack.c.b16 %v7197, %v7196
    %7214 = vmatprep.subr.bf16.mxu0 0
    %7215 = vmatpush1.bf16.msra.mxu0 %v7205
    %7216 = vmatprep.subr.bf16.mxu0 0
    %7217 = vmatpush1.bf16.msra.mxu0 %v7204
    %7218 = vmatprep.subr.bf16.mxu0 0
    %7219 = vmatpush1.bf16.msra.mxu0 %v7203
    %7220 = vmatprep.subr.bf16.mxu0 0
    %7221 = vmatpush1.bf16.msra.mxu0 %v7202
    %7222 = vmatprep.subr.bf16.mxu0 0
    %7223 = vmatpush1.bf16.msra.mxu0 %v7201
    %7224 = vmatprep.subr.bf16.mxu0 0
    %7225 = vmatpush1.bf16.msra.mxu0 %v7200
    %7226 = vmatprep.subr.bf16.mxu0 0
    %7227 = vmatpush1.bf16.msra.mxu0 %v7199
    %7228 = vmatprep.subr.bf16.mxu0 0
    %7229 = vmatpush1.bf16.msra.mxu0 %v7198
    %7230 = vmatprep.subr.bf16.mxu0 0
    %7231 = vmatpush2.bf16.msra.mxu0 0
    %7232 = vmatprep.subr.bf16.mxu0 0
    %7233 = vmatpush2.bf16.msra.mxu0 0
    %7234 = vmatprep.subr.bf16.mxu0 0
    %7235 = vmatpush2.bf16.msra.mxu0 0
    %7236 = vmatprep.subr.bf16.mxu0 0
    %7237 = vmatpush2.bf16.msra.mxu0 0
    %7238 = vmatprep.subr.bf16.mxu0 0
    %7239 = vmatpush2.bf16.msra.mxu0 0
    %7240 = vmatprep.subr.bf16.mxu0 0
    %7241 = vmatpush2.bf16.msra.mxu0 0
    %7242 = vmatprep.subr.bf16.mxu0 0
    %7243 = vmatpush2.bf16.msra.mxu0 0
    %7244 = vmatprep.subr.bf16.mxu0 0
    %7245 = vmatpush2.bf16.msra.mxu0 0
    %7246 = vmatprep.mubr.bf16.mxu0 0
    %7247 = vmatmul.mubr.bf16.gmra.mxu0 %v7148
    %v7248 = vpop.f32.mrf.mxu0
    %v7249 = vadd.f32 %v7165, %v7248
    %v7250 = vpop.f32.mrf.mxu0
    %v7251 = vpop.f32.mrf.mxu0
    %v7252 = vpop.f32.mrf.mxu0
    %7253 = vdwg.mxu0
    %7254 = vst [vmem:[#allocation2 + $0x1] sm:$0x1] %v7249
    // Predicated region
    $region54: #{net_forward.1} parent=1 // pred_check
      _
    $region55: #{net_forward.1} parent=1 // pred_check_branch
      %7256 = sbr.rel (0) target = $region57
    $region56: #{net_forward.1} parent=1 // pred_region
      %s7258 = ssub.s32 32, 32
      %7259 = vsyncadd [#allocation3], %s7258
      %s7261 = sshll.u32 [#allocation2], 4
      %s7262 = int_to_ptr.vmem [resolvable:$true] %s7261
      %7264 = dma.vmem_to_hbm [thread:$0]  %s7262, 32, %s13, [#allocation3]
    $region57: #{net_forward.1} parent=1 // pred_fallthru
      _
    // Predicated region
    $region58: #{net_forward.1} parent=1 // pred_check
      _
    $region59: #{net_forward.1} parent=1 // pred_check_branch
      %7266 = sbr.rel (0) target = $region61
    $region60: #{net_forward.1} parent=1 // pred_region
      %7267 = dma.done [#allocation3], 32
    $region61: #{net_forward.1} parent=1 // pred_fallthru
      _
    %7268 = vsyncpa [#allocation3], 1

</llo_original>
